<compile_context>
chip_gen: v7x
topology: tpu7x:2x2x1
jax: 0.10.0
libtpu: 0.0.40
codegen_flags: <defaults>
</compile_context>

<pallas_src>
import numpy as np
import jax
import jax.numpy as jnp
from jax.experimental import pallas as pl
from jax.experimental.pallas import tpu as pltpu

BN_EPS = 1e-5
LANE = 128


def _round_up(x, m):
    return (x + m - 1) // m * m


# --------------------------------------------------------------------------
# Static per-layer geometry (ConvTranspose2d: OH = (IH-1)*S + K, no padding)
# --------------------------------------------------------------------------
def _make_cfgs(latent_dim, n_filters, out_channels, n_batch):
    specs = [
        (latent_dim,     n_filters * 4, 3, 2),   # ConvTranspose2d(k=3, s=2)
        (n_filters * 4,  n_filters * 2, 4, 1),   # ConvTranspose2d(k=4, s=1)
        (n_filters * 2,  n_filters,     3, 2),   # ConvTranspose2d(k=3, s=2)
        (n_filters,      out_channels,  4, 2),   # ConvTranspose2d(k=4, s=2)
    ]
    cfgs = []
    ih = iw = 1
    for cin, cout, k, s in specs:
        oh = (ih - 1) * s + k
        ow = (iw - 1) * s + k
        ph = (ih - 1) * s + 1 + 2 * (k - 1)      # zero-inserted + (K-1)-padded
        pw = (iw - 1) * s + 1 + 2 * (k - 1)
        phw = ph * pw
        lp = _round_up(n_batch * phw, LANE)      # activation / accumulator lanes
        off_max = (k - 1) * (pw + 1)             # largest im2col tap offset
        pb = _round_up(off_max + lp, LANE)       # padded-input buffer lanes
        # host-side geometry ties (review correctness concern #3)
        assert lp >= n_batch * phw
        assert pb >= off_max + lp
        cfgs.append(dict(cin=cin, cout=cout, k=k, s=s, ih=ih, iw=iw,
                         oh=oh, ow=ow, ph=ph, pw=pw, phw=phw,
                         lp=lp, pb=pb, ckk=cin * k * k))
        ih, iw = oh, ow
    return cfgs


# --------------------------------------------------------------------------
# Host-side precompute: 0/1 scatter matrices, BN validity masks, packed weights
# --------------------------------------------------------------------------
def _scatter_matrix(prev_lanes, prev_pw, prev_phw, cfg, n_batch):
    """0/1 matrix mapping the previous layer's flat output lanes
    (n*PHW_prev + ih*PW_prev + iw) to this layer's zero-inserted +
    (K-1)-padded flat input-buffer lanes."""
    k, s, pw, phw = cfg['k'], cfg['s'], cfg['pw'], cfg['phw']
    mat = np.zeros((prev_lanes, cfg['pb']), np.float32)
    for n in range(n_batch):
        for ih in range(cfg['ih']):
            for iw in range(cfg['iw']):
                m = n * prev_phw + ih * prev_pw + iw
                p = n * phw + (k - 1 + ih * s) * pw + (k - 1 + iw * s)
                mat[m, p] = 1.0
    return mat


def _valid_mask(cfg, n_batch):
    """1.0 on lanes that are true (n, oh, ow) output positions, 0.0 elsewhere."""
    m = np.zeros((1, cfg['lp']), np.float32)
    for n in range(n_batch):
        for oh in range(cfg['oh']):
            j0 = n * cfg['phw'] + oh * cfg['pw']
            m[0, j0:j0 + cfg['ow']] = 1.0
    return m


def init_params(key, cfgs):
    """Deterministic PyTorch-like parameters: weight (CIN, COUT, K, K), bias (COUT,)."""
    weights, biases = [], []
    for cfg in cfgs:
        cin, cout, k = cfg['cin'], cfg['cout'], cfg['k']
        key, wk, bk = jax.random.split(key, 3)
        bound = 1.0 / float(np.sqrt(cin * k * k))
        weights.append(jax.random.uniform(wk, (cin, cout, k, k), jnp.float32,
                                          -bound, bound))
        biases.append(jax.random.uniform(bk, (cout,), jnp.float32, -bound, bound))
    return weights, biases


def _pack_weights(cfgs, weights, biases, cpad):
    """GEMM-ready fused weights: W[co, (kh*K+kw)*CIN + c] = w[c, co, K-1-kh, K-1-kw],
    bf16; the final layer's COUT is zero-padded to `cpad` for a dense output slab."""
    packed = []
    for li, (cfg, w) in enumerate(zip(cfgs, weights)):
        cin, cout, k = cfg['cin'], cfg['cout'], cfg['k']
        wf = jnp.transpose(w[:, :, ::-1, ::-1], (2, 3, 0, 1))      # (K, K, CIN, COUT)
        wf = wf.reshape(k * k * cin, cout).T                        # (COUT, CIN*K*K)
        if li == len(cfgs) - 1:
            wf = jnp.pad(wf, ((0, cpad - cout), (0, 0)))
        packed.append(wf.astype(jnp.bfloat16))
    b_last = jnp.pad(biases[-1], (0, cpad - cfgs[-1]['cout']))
    return packed, b_last.reshape(-1, 1).astype(jnp.float32)


# --------------------------------------------------------------------------
# Fused kernel: 4x (scatter-GEMM -> im2col -> conv-GEMM -> BN/ReLU or Tanh)
# --------------------------------------------------------------------------
def _make_kernel(cfgs, counts):
    nl = len(cfgs)

    def kernel(*args):
        s_refs = args[1:1 + nl]                  # 0/1 scatter matrices (bf16)
        w_refs = args[1 + nl:1 + 2 * nl]         # fused conv weights (bf16)
        m_refs = args[1 + 2 * nl:3 * nl]         # BN validity masks (f32)
        b_ref = args[3 * nl]                     # final conv bias (f32)
        o_ref = args[3 * nl + 1]                 # output slab (f32)
        scratch = args[3 * nl + 2:]
        base_refs = scratch[0::2]                # padded / zero-inserted inputs
        col_refs = scratch[1::2]                 # im2col (CIN*K*K, Lp) buffers

        prev = args[0][...].astype(jnp.bfloat16)          # latent (CIN0, Zp)

        for li, cfg in enumerate(cfgs):
            k, pw, cin, lp = cfg['k'], cfg['pw'], cfg['cin'], cfg['lp']
            base, col = base_refs[li], col_refs[li]

            # (1) zero-insertion + (K-1)-padding of this layer's input as ONE
            #     bf16 GEMM against the precomputed 0/1 scatter matrix (also
            #     zero-fills every hole / pad lane of the buffer).
            base[...] = jnp.dot(prev, s_refs[li][...],
                                preferred_element_type=jnp.float32)

            # (2) im2col built once per layer: the K*K lane-shifted windows of
            #     the padded buffer stacked along sublanes (contraction axis).
            for kh in range(k):
                for kw in range(k):
                    t = kh * k + kw
                    off = kh * pw + kw
                    col[t * cin:(t + 1) * cin, :] = base[:, off:off + lp]

            # (3) the whole transposed conv: ONE bf16 GEMM, f32 accumulation.
            acc = jnp.dot(w_refs[li][...], col[...].astype(jnp.bfloat16),
                          preferred_element_type=jnp.float32)

            if li < nl - 1:
                # (4) BatchNorm2d (training-mode batch stats, default affine),
                #     one-pass masked statistics, then ReLU.  The conv bias
                #     cancels exactly under the mean subtraction -> dropped.
                maskf = m_refs[li][...]                   # (1, lp) 0/1
                inv = 1.0 / float(counts[li])
                am = acc * maskf
                mu = jnp.sum(am, axis=1, keepdims=True) * inv
                ex2 = jnp.sum(am * acc, axis=1, keepdims=True) * inv
                var = jnp.maximum(ex2 - mu * mu, 0.0)
                y = jnp.maximum((acc - mu) * jax.lax.rsqrt(var + BN_EPS), 0.0)
                prev = y.astype(jnp.bfloat16)             # bf16 activations
            else:
                # (5) final bias + Tanh; single lane/sublane-dense store.
                o_ref[...] = jnp.tanh(acc + b_ref[...])

    return kernel


# --------------------------------------------------------------------------
# Forward wrapper: one fused pallas_call, NCHW interface like the PyTorch module
# --------------------------------------------------------------------------
def cyclegan_generator_forward(z, cfgs, weights, biases):
    n = z.shape[0]
    last = cfgs[-1]
    out_c = last['cout']
    cpad = _round_up(out_c, 8)

    # latent as (latent_dim, N) lanes, zero-padded to a full vreg of lanes
    zp_lanes = _round_up(n, LANE)
    z_t = jnp.transpose(z.reshape(n, -1), (1, 0)).astype(jnp.float32)
    z_p = jnp.pad(z_t, ((0, 0), (0, zp_lanes - n)))

    # host-side packing (all static geometry)
    w_packed, b_last = _pack_weights(cfgs, weights, biases, cpad)
    s_mats, prev_pw, prev_phw, prev_lanes = [], 1, 1, zp_lanes
    for cfg in cfgs:
        s_mats.append(jnp.asarray(
            _scatter_matrix(prev_lanes, prev_pw, prev_phw, cfg, n),
            dtype=jnp.bfloat16))
        prev_pw, prev_phw, prev_lanes = cfg['pw'], cfg['phw'], cfg['lp']
    masks = [jnp.asarray(_valid_mask(c, n)) for c in cfgs[:-1]]
    counts = [n * c['oh'] * c['ow'] for c in cfgs[:-1]]

    kernel = _make_kernel(cfgs, counts)
    vmem = pl.BlockSpec(memory_space=pltpu.MemorySpace.VMEM)
    args = [z_p, *s_mats, *w_packed, *masks, b_last]
    scratch_shapes = []
    for c in cfgs:
        scratch_shapes.append(pltpu.VMEM((c['cin'], c['pb']), jnp.float32))
        scratch_shapes.append(pltpu.VMEM((c['ckk'], c['lp']), jnp.float32))

    slab = pl.pallas_call(
        kernel,
        out_shape=jax.ShapeDtypeStruct((cpad, last['lp']), jnp.float32),
        in_specs=[vmem] * len(args),
        out_specs=vmem,
        scratch_shapes=scratch_shapes,
    )(*args)

    # lane-dense slab -> NCHW: pure layout work left to XLA
    img = slab[:out_c, :n * last['phw']].reshape(out_c, n, last['ph'], last['pw'])
    img = img[:, :, :last['oh'], :last['ow']]
    return jnp.transpose(img, (1, 0, 2, 3))


# --------------------------------------------------------------------------
# Independent NumPy reference (scatter-add definition of ConvTranspose2d)
# --------------------------------------------------------------------------
def _reference_forward_np(z, cfgs, weights, biases):
    x = np.asarray(z, np.float32)
    nl = len(cfgs)
    for li, cfg in enumerate(cfgs):
        k, s = cfg['k'], cfg['s']
        w = np.asarray(weights[li], np.float32)
        b = np.asarray(biases[li], np.float32)
        n, _, ihh, iww = x.shape
        cout = w.shape[1]
        oh = (ihh - 1) * s + k
        ow = (iww - 1) * s + k
        out = np.zeros((n, cout, oh, ow), np.float32)
        for ih in range(ihh):
            for iw in range(iww):
                contrib = np.einsum('nc,cokl->nokl', x[:, :, ih, iw], w)
                out[:, :, ih * s:ih * s + k, iw * s:iw * s + k] += contrib
        out = out + b[None, :, None, None]
        if li < nl - 1:
            mu = out.mean(axis=(0, 2, 3), keepdims=True)
            var = out.var(axis=(0, 2, 3), keepdims=True)
            out = np.maximum((out - mu) / np.sqrt(var + BN_EPS), 0.0)
        else:
            out = np.tanh(out)
        x = out.astype(np.float32)
    return x


if __name__ == "__main__":
    latent_dim, n_filters, out_channels = 8, 8, 3     # output_shape = (28, 28, 3)
    n_batch = 2

    key = jax.random.PRNGKey(0)
    kz, kp = jax.random.split(key)
    cfgs = _make_cfgs(latent_dim, n_filters, out_channels, n_batch)
    weights, biases = init_params(kp, cfgs)

    # same convention as CycleGANGenerator.sample(): z uniform in [-1, 1]
    z = (jax.random.uniform(kz, (n_batch, latent_dim), jnp.float32) - 0.5) * 2.0
    z = z.reshape(n_batch, latent_dim, 1, 1)          # NCHW, spatial 1x1

    out = cyclegan_generator_forward(z, cfgs, weights, biases)
    out = jax.block_until_ready(out)

    # 1x1 -> 3x3 -> 6x6 -> 13x13 -> 28x28
    assert out.shape == (n_batch, out_channels, 28, 28), out.shape
    assert bool(jnp.all(jnp.isfinite(out)))
    assert bool(jnp.all(jnp.abs(out) <= 1.0 + 1e-6))  # tanh range

    # tolerance check against an independent f32 NumPy reference (kernel uses
    # bf16 weights / activations internally, f32 accumulation and BN math)
    ref = _reference_forward_np(np.asarray(z), cfgs, weights, biases)
    err = float(np.max(np.abs(np.asarray(out, dtype=np.float32) - ref)))
    assert err < 0.1, f"max |kernel - reference| = {err}"

    print("KERNEL_OK")
</pallas_src>

<mosaic_0001>
module attributes {stable_mosaic.version = 11 : i64} {
  func.func @kernel(%arg0: memref<8x128xf32, #tpu.memory_space<vmem>>, %arg1: memref<128x256xbf16, #tpu.memory_space<vmem>>, %arg2: memref<128x384xbf16, #tpu.memory_space<vmem>>, %arg3: memref<256x640xbf16, #tpu.memory_space<vmem>>, %arg4: memref<512x2176xbf16, #tpu.memory_space<vmem>>, %arg5: memref<32x72xbf16, #tpu.memory_space<vmem>>, %arg6: memref<16x512xbf16, #tpu.memory_space<vmem>>, %arg7: memref<8x144xbf16, #tpu.memory_space<vmem>>, %arg8: memref<8x128xbf16, #tpu.memory_space<vmem>>, %arg9: memref<1x128xf32, #tpu.memory_space<vmem>>, %arg10: memref<1x256xf32, #tpu.memory_space<vmem>>, %arg11: memref<1x512xf32, #tpu.memory_space<vmem>>, %arg12: memref<8x1xf32, #tpu.memory_space<vmem>>, %arg13: memref<8x2048xf32, #tpu.memory_space<vmem>>, %arg14: memref<8x256xf32, #tpu.memory_space<vmem>>, %arg15: memref<72x128xf32, #tpu.memory_space<vmem>>, %arg16: memref<32x384xf32, #tpu.memory_space<vmem>>, %arg17: memref<512x256xf32, #tpu.memory_space<vmem>>, %arg18: memref<16x640xf32, #tpu.memory_space<vmem>>, %arg19: memref<144x512xf32, #tpu.memory_space<vmem>>, %arg20: memref<8x2176xf32, #tpu.memory_space<vmem>>, %arg21: memref<128x2048xf32, #tpu.memory_space<vmem>>) attributes {dimension_semantics = [], scalar_prefetch = 0 : i64, scratch_operands = 8 : i64, tpu.core_type = #tpu.core_type<tc>} {
    %c0 = arith.constant 0 : index
    %c0_0 = arith.constant 0 : index
    %0 = vector.load %arg0[%c0, %c0_0] : memref<8x128xf32, #tpu.memory_space<vmem>>, vector<8x128xf32>
    %1 = arith.truncf %0 : vector<8x128xf32> to vector<8x128xbf16>
    %c0_1 = arith.constant 0 : index
    %c0_2 = arith.constant 0 : index
    %2 = vector.load %arg1[%c0_1, %c0_2] : memref<128x256xbf16, #tpu.memory_space<vmem>>, vector<128x256xbf16>
    %cst = arith.constant dense<0.000000e+00> : vector<8x256xf32>
    %3 = tpu.matmul %1, %2, %cst {dimension_numbers = #tpu.dot_dimension_numbers<[1], [0], [0], [1], [0, 0, 1, 1], [], []>} : vector<8x128xbf16>, vector<128x256xbf16>, vector<8x256xf32> -> vector<8x256xf32>
    %c0_3 = arith.constant 0 : index
    %c0_4 = arith.constant 0 : index
    %4 = vector.load %arg14[%c0_3, %c0_4] : memref<8x256xf32, #tpu.memory_space<vmem>>, vector<8x256xf32>
    tpu.vector_store %arg14[%c0_3, %c0_4], %3 {strides = array<i32>} : memref<8x256xf32, #tpu.memory_space<vmem>>, vector<8x256xf32>,
    %c0_5 = arith.constant 0 : index
    %c0_6 = arith.constant 0 : index
    %5 = vector.load %arg14[%c0_5, %c0_6] : memref<8x256xf32, #tpu.memory_space<vmem>>, vector<8x128xf32>
    %c0_7 = arith.constant 0 : index
    %c0_8 = arith.constant 0 : index
    %6 = vector.load %arg15[%c0_7, %c0_8] : memref<72x128xf32, #tpu.memory_space<vmem>>, vector<8x128xf32>
    tpu.vector_store %arg15[%c0_7, %c0_8], %5 {strides = array<i32>} : memref<72x128xf32, #tpu.memory_space<vmem>>, vector<8x128xf32>,
    %c0_9 = arith.constant 0 : index
    %c1 = arith.constant 1 : index
    %7 = vector.load %arg14[%c0_9, %c1] : memref<8x256xf32, #tpu.memory_space<vmem>>, vector<8x128xf32>
    %c8 = arith.constant 8 : index
    %c0_10 = arith.constant 0 : index
    %8 = vector.load %arg15[%c8, %c0_10] : memref<72x128xf32, #tpu.memory_space<vmem>>, vector<8x128xf32>
    tpu.vector_store %arg15[%c8, %c0_10], %7 {strides = array<i32>} : memref<72x128xf32, #tpu.memory_space<vmem>>, vector<8x128xf32>,
    %c0_11 = arith.constant 0 : index
    %c2 = arith.constant 2 : index
    %9 = vector.load %arg14[%c0_11, %c2] : memref<8x256xf32, #tpu.memory_space<vmem>>, vector<8x128xf32>
    %c16 = arith.constant 16 : index
    %c0_12 = arith.constant 0 : index
    %10 = vector.load %arg15[%c16, %c0_12] : memref<72x128xf32, #tpu.memory_space<vmem>>, vector<8x128xf32>
    tpu.vector_store %arg15[%c16, %c0_12], %9 {strides = array<i32>} : memref<72x128xf32, #tpu.memory_space<vmem>>, vector<8x128xf32>,
    %c0_13 = arith.constant 0 : index
    %c5 = arith.constant 5 : index
    %11 = vector.load %arg14[%c0_13, %c5] : memref<8x256xf32, #tpu.memory_space<vmem>>, vector<8x128xf32>
    %c24 = arith.constant 24 : index
    %c0_14 = arith.constant 0 : index
    %12 = vector.load %arg15[%c24, %c0_14] : memref<72x128xf32, #tpu.memory_space<vmem>>, vector<8x128xf32>
    tpu.vector_store %arg15[%c24, %c0_14], %11 {strides = array<i32>} : memref<72x128xf32, #tpu.memory_space<vmem>>, vector<8x128xf32>,
    %c0_15 = arith.constant 0 : index
    %c6 = arith.constant 6 : index
    %13 = vector.load %arg14[%c0_15, %c6] : memref<8x256xf32, #tpu.memory_space<vmem>>, vector<8x128xf32>
    %c32 = arith.constant 32 : index
    %c0_16 = arith.constant 0 : index
    %14 = vector.load %arg15[%c32, %c0_16] : memref<72x128xf32, #tpu.memory_space<vmem>>, vector<8x128xf32>
    tpu.vector_store %arg15[%c32, %c0_16], %13 {strides = array<i32>} : memref<72x128xf32, #tpu.memory_space<vmem>>, vector<8x128xf32>,
    %c0_17 = arith.constant 0 : index
    %c7 = arith.constant 7 : index
    %15 = vector.load %arg14[%c0_17, %c7] : memref<8x256xf32, #tpu.memory_space<vmem>>, vector<8x128xf32>
    %c40 = arith.constant 40 : index
    %c0_18 = arith.constant 0 : index
    %16 = vector.load %arg15[%c40, %c0_18] : memref<72x128xf32, #tpu.memory_space<vmem>>, vector<8x128xf32>
    tpu.vector_store %arg15[%c40, %c0_18], %15 {strides = array<i32>} : memref<72x128xf32, #tpu.memory_space<vmem>>, vector<8x128xf32>,
    %c0_19 = arith.constant 0 : index
    %c10 = arith.constant 10 : index
    %17 = vector.load %arg14[%c0_19, %c10] : memref<8x256xf32, #tpu.memory_space<vmem>>, vector<8x128xf32>
    %c48 = arith.constant 48 : index
    %c0_20 = arith.constant 0 : index
    %18 = vector.load %arg15[%c48, %c0_20] : memref<72x128xf32, #tpu.memory_space<vmem>>, vector<8x128xf32>
    tpu.vector_store %arg15[%c48, %c0_20], %17 {strides = array<i32>} : memref<72x128xf32, #tpu.memory_space<vmem>>, vector<8x128xf32>,
    %c0_21 = arith.constant 0 : index
    %c11 = arith.constant 11 : index
    %19 = vector.load %arg14[%c0_21, %c11] : memref<8x256xf32, #tpu.memory_space<vmem>>, vector<8x128xf32>
    %c56 = arith.constant 56 : index
    %c0_22 = arith.constant 0 : index
    %20 = vector.load %arg15[%c56, %c0_22] : memref<72x128xf32, #tpu.memory_space<vmem>>, vector<8x128xf32>
    tpu.vector_store %arg15[%c56, %c0_22], %19 {strides = array<i32>} : memref<72x128xf32, #tpu.memory_space<vmem>>, vector<8x128xf32>,
    %c0_23 = arith.constant 0 : index
    %c12 = arith.constant 12 : index
    %21 = vector.load %arg14[%c0_23, %c12] : memref<8x256xf32, #tpu.memory_space<vmem>>, vector<8x128xf32>
    %c64 = arith.constant 64 : index
    %c0_24 = arith.constant 0 : index
    %22 = vector.load %arg15[%c64, %c0_24] : memref<72x128xf32, #tpu.memory_space<vmem>>, vector<8x128xf32>
    tpu.vector_store %arg15[%c64, %c0_24], %21 {strides = array<i32>} : memref<72x128xf32, #tpu.memory_space<vmem>>, vector<8x128xf32>,
    %c0_25 = arith.constant 0 : index
    %c0_26 = arith.constant 0 : index
    %23 = vector.load %arg5[%c0_25, %c0_26] : memref<32x72xbf16, #tpu.memory_space<vmem>>, vector<32x72xbf16>
    %c0_27 = arith.constant 0 : index
    %c0_28 = arith.constant 0 : index
    %24 = vector.load %arg15[%c0_27, %c0_28] : memref<72x128xf32, #tpu.memory_space<vmem>>, vector<72x128xf32>
    %25 = arith.truncf %24 : vector<72x128xf32> to vector<72x128xbf16>
    %cst_29 = arith.constant dense<0.000000e+00> : vector<32x128xf32>
    %26 = tpu.matmul %23, %25, %cst_29 {dimension_numbers = #tpu.dot_dimension_numbers<[1], [0], [0], [1], [0, 0, 1, 1], [], []>} : vector<32x72xbf16>, vector<72x128xbf16>, vector<32x128xf32> -> vector<32x128xf32>
    %c0_30 = arith.constant 0 : index
    %c0_31 = arith.constant 0 : index
    %27 = vector.load %arg9[%c0_30, %c0_31] : memref<1x128xf32, #tpu.memory_space<vmem>>, vector<1x128xf32>
    %28 = vector.broadcast %27 : vector<1x128xf32> to vector<32x128xf32>
    %29 = arith.mulf %26, %28 : vector<32x128xf32>
    %cst_32 = arith.constant dense<0.000000e+00> : vector<32xf32>
    %30 = vector.multi_reduction <add>, %29, %cst_32 [1] : vector<32x128xf32> to vector<32xf32>
    %31 = vector.shape_cast %30 : vector<32xf32> to vector<32x1xf32>
    %cst_33 = arith.constant 0.055555556 : f32
    %32 = vector.broadcast %cst_33 : f32 to vector<32x1xf32>
    %33 = arith.mulf %31, %32 : vector<32x1xf32>
    %34 = arith.mulf %29, %26 : vector<32x128xf32>
    %cst_34 = arith.constant dense<0.000000e+00> : vector<32xf32>
    %35 = vector.multi_reduction <add>, %34, %cst_34 [1] : vector<32x128xf32> to vector<32xf32>
    %36 = vector.shape_cast %35 : vector<32xf32> to vector<32x1xf32>
    %cst_35 = arith.constant 0.055555556 : f32
    %37 = vector.broadcast %cst_35 : f32 to vector<32x1xf32>
    %38 = arith.mulf %36, %37 : vector<32x1xf32>
    %39 = arith.mulf %33, %33 : vector<32x1xf32>
    %40 = arith.subf %38, %39 : vector<32x1xf32>
    %cst_36 = arith.constant 0.000000e+00 : f32
    %41 = vector.broadcast %cst_36 : f32 to vector<32x1xf32>
    %42 = arith.maximumf %40, %41 : vector<32x1xf32>
    %43 = vector.broadcast %33 : vector<32x1xf32> to vector<32x128xf32>
    %44 = arith.subf %26, %43 : vector<32x128xf32>
    %cst_37 = arith.constant 9.99999974E-6 : f32
    %45 = vector.broadcast %cst_37 : f32 to vector<32x1xf32>
    %46 = arith.addf %42, %45 : vector<32x1xf32>
    %47 = math.rsqrt %46 : vector<32x1xf32>
    %48 = vector.broadcast %47 : vector<32x1xf32> to vector<32x128xf32>
    %49 = arith.mulf %44, %48 : vector<32x128xf32>
    %cst_38 = arith.constant 0.000000e+00 : f32
    %50 = vector.broadcast %cst_38 : f32 to vector<32x128xf32>
    %51 = arith.maximumf %49, %50 : vector<32x128xf32>
    %52 = arith.truncf %51 : vector<32x128xf32> to vector<32x128xbf16>
    %c0_39 = arith.constant 0 : index
    %c0_40 = arith.constant 0 : index
    %53 = vector.load %arg2[%c0_39, %c0_40] : memref<128x384xbf16, #tpu.memory_space<vmem>>, vector<128x384xbf16>
    %cst_41 = arith.constant dense<0.000000e+00> : vector<32x384xf32>
    %54 = tpu.matmul %52, %53, %cst_41 {dimension_numbers = #tpu.dot_dimension_numbers<[1], [0], [0], [1], [0, 0, 1, 1], [], []>} : vector<32x128xbf16>, vector<128x384xbf16>, vector<32x384xf32> -> vector<32x384xf32>
    %c0_42 = arith.constant 0 : index
    %c0_43 = arith.constant 0 : index
    %55 = vector.load %arg16[%c0_42, %c0_43] : memref<32x384xf32, #tpu.memory_space<vmem>>, vector<32x384xf32>
    tpu.vector_store %arg16[%c0_42, %c0_43], %54 {strides = array<i32>} : memref<32x384xf32, #tpu.memory_space<vmem>>, vector<32x384xf32>,
    %c0_44 = arith.constant 0 : index
    %c0_45 = arith.constant 0 : index
    %56 = vector.load %arg16[%c0_44, %c0_45] : memref<32x384xf32, #tpu.memory_space<vmem>>, vector<32x256xf32>
    %c0_46 = arith.constant 0 : index
    %c0_47 = arith.constant 0 : index
    %57 = vector.load %arg17[%c0_46, %c0_47] : memref<512x256xf32, #tpu.memory_space<vmem>>, vector<32x256xf32>
    tpu.vector_store %arg17[%c0_46, %c0_47], %56 {strides = array<i32>} : memref<512x256xf32, #tpu.memory_space<vmem>>, vector<32x256xf32>,
    %c0_48 = arith.constant 0 : index
    %c1_49 = arith.constant 1 : index
    %58 = vector.load %arg16[%c0_48, %c1_49] : memref<32x384xf32, #tpu.memory_space<vmem>>, vector<32x256xf32>
    %c32_50 = arith.constant 32 : index
    %c0_51 = arith.constant 0 : index
    %59 = vector.load %arg17[%c32_50, %c0_51] : memref<512x256xf32, #tpu.memory_space<vmem>>, vector<32x256xf32>
    tpu.vector_store %arg17[%c32_50, %c0_51], %58 {strides = array<i32>} : memref<512x256xf32, #tpu.memory_space<vmem>>, vector<32x256xf32>,
    %c0_52 = arith.constant 0 : index
    %c2_53 = arith.constant 2 : index
    %60 = vector.load %arg16[%c0_52, %c2_53] : memref<32x384xf32, #tpu.memory_space<vmem>>, vector<32x256xf32>
    %c64_54 = arith.constant 64 : index
    %c0_55 = arith.constant 0 : index
    %61 = vector.load %arg17[%c64_54, %c0_55] : memref<512x256xf32, #tpu.memory_space<vmem>>, vector<32x256xf32>
    tpu.vector_store %arg17[%c64_54, %c0_55], %60 {strides = array<i32>} : memref<512x256xf32, #tpu.memory_space<vmem>>, vector<32x256xf32>,
    %c0_56 = arith.constant 0 : index
    %c3 = arith.constant 3 : index
    %62 = vector.load %arg16[%c0_56, %c3] : memref<32x384xf32, #tpu.memory_space<vmem>>, vector<32x256xf32>
    %c96 = arith.constant 96 : index
    %c0_57 = arith.constant 0 : index
    %63 = vector.load %arg17[%c96, %c0_57] : memref<512x256xf32, #tpu.memory_space<vmem>>, vector<32x256xf32>
    tpu.vector_store %arg17[%c96, %c0_57], %62 {strides = array<i32>} : memref<512x256xf32, #tpu.memory_space<vmem>>, vector<32x256xf32>,
    %c0_58 = arith.constant 0 : index
    %c9 = arith.constant 9 : index
    %64 = vector.load %arg16[%c0_58, %c9] : memref<32x384xf32, #tpu.memory_space<vmem>>, vector<32x256xf32>
    %c128 = arith.constant 128 : index
    %c0_59 = arith.constant 0 : index
    %65 = vector.load %arg17[%c128, %c0_59] : memref<512x256xf32, #tpu.memory_space<vmem>>, vector<32x256xf32>
    tpu.vector_store %arg17[%c128, %c0_59], %64 {strides = array<i32>} : memref<512x256xf32, #tpu.memory_space<vmem>>, vector<32x256xf32>,
    %c0_60 = arith.constant 0 : index
    %c10_61 = arith.constant 10 : index
    %66 = vector.load %arg16[%c0_60, %c10_61] : memref<32x384xf32, #tpu.memory_space<vmem>>, vector<32x256xf32>
    %c160 = arith.constant 160 : index
    %c0_62 = arith.constant 0 : index
    %67 = vector.load %arg17[%c160, %c0_62] : memref<512x256xf32, #tpu.memory_space<vmem>>, vector<32x256xf32>
    tpu.vector_store %arg17[%c160, %c0_62], %66 {strides = array<i32>} : memref<512x256xf32, #tpu.memory_space<vmem>>, vector<32x256xf32>,
    %c0_63 = arith.constant 0 : index
    %c11_64 = arith.constant 11 : index
    %68 = vector.load %arg16[%c0_63, %c11_64] : memref<32x384xf32, #tpu.memory_space<vmem>>, vector<32x256xf32>
    %c192 = arith.constant 192 : index
    %c0_65 = arith.constant 0 : index
    %69 = vector.load %arg17[%c192, %c0_65] : memref<512x256xf32, #tpu.memory_space<vmem>>, vector<32x256xf32>
    tpu.vector_store %arg17[%c192, %c0_65], %68 {strides = array<i32>} : memref<512x256xf32, #tpu.memory_space<vmem>>, vector<32x256xf32>,
    %c0_66 = arith.constant 0 : index
    %c12_67 = arith.constant 12 : index
    %70 = vector.load %arg16[%c0_66, %c12_67] : memref<32x384xf32, #tpu.memory_space<vmem>>, vector<32x256xf32>
    %c224 = arith.constant 224 : index
    %c0_68 = arith.constant 0 : index
    %71 = vector.load %arg17[%c224, %c0_68] : memref<512x256xf32, #tpu.memory_space<vmem>>, vector<32x256xf32>
    tpu.vector_store %arg17[%c224, %c0_68], %70 {strides = array<i32>} : memref<512x256xf32, #tpu.memory_space<vmem>>, vector<32x256xf32>,
    %c0_69 = arith.constant 0 : index
    %c18 = arith.constant 18 : index
    %72 = vector.load %arg16[%c0_69, %c18] : memref<32x384xf32, #tpu.memory_space<vmem>>, vector<32x256xf32>
    %c256 = arith.constant 256 : index
    %c0_70 = arith.constant 0 : index
    %73 = vector.load %arg17[%c256, %c0_70] : memref<512x256xf32, #tpu.memory_space<vmem>>, vector<32x256xf32>
    tpu.vector_store %arg17[%c256, %c0_70], %72 {strides = array<i32>} : memref<512x256xf32, #tpu.memory_space<vmem>>, vector<32x256xf32>,
    %c0_71 = arith.constant 0 : index
    %c19 = arith.constant 19 : index
    %74 = vector.load %arg16[%c0_71, %c19] : memref<32x384xf32, #tpu.memory_space<vmem>>, vector<32x256xf32>
    %c288 = arith.constant 288 : index
    %c0_72 = arith.constant 0 : index
    %75 = vector.load %arg17[%c288, %c0_72] : memref<512x256xf32, #tpu.memory_space<vmem>>, vector<32x256xf32>
    tpu.vector_store %arg17[%c288, %c0_72], %74 {strides = array<i32>} : memref<512x256xf32, #tpu.memory_space<vmem>>, vector<32x256xf32>,
    %c0_73 = arith.constant 0 : index
    %c20 = arith.constant 20 : index
    %76 = vector.load %arg16[%c0_73, %c20] : memref<32x384xf32, #tpu.memory_space<vmem>>, vector<32x256xf32>
    %c320 = arith.constant 320 : index
    %c0_74 = arith.constant 0 : index
    %77 = vector.load %arg17[%c320, %c0_74] : memref<512x256xf32, #tpu.memory_space<vmem>>, vector<32x256xf32>
    tpu.vector_store %arg17[%c320, %c0_74], %76 {strides = array<i32>} : memref<512x256xf32, #tpu.memory_space<vmem>>, vector<32x256xf32>,
    %c0_75 = arith.constant 0 : index
    %c21 = arith.constant 21 : index
    %78 = vector.load %arg16[%c0_75, %c21] : memref<32x384xf32, #tpu.memory_space<vmem>>, vector<32x256xf32>
    %c352 = arith.constant 352 : index
    %c0_76 = arith.constant 0 : index
    %79 = vector.load %arg17[%c352, %c0_76] : memref<512x256xf32, #tpu.memory_space<vmem>>, vector<32x256xf32>
    tpu.vector_store %arg17[%c352, %c0_76], %78 {strides = array<i32>} : memref<512x256xf32, #tpu.memory_space<vmem>>, vector<32x256xf32>,
    %c0_77 = arith.constant 0 : index
    %c27 = arith.constant 27 : index
    %80 = vector.load %arg16[%c0_77, %c27] : memref<32x384xf32, #tpu.memory_space<vmem>>, vector<32x256xf32>
    %c384 = arith.constant 384 : index
    %c0_78 = arith.constant 0 : index
    %81 = vector.load %arg17[%c384, %c0_78] : memref<512x256xf32, #tpu.memory_space<vmem>>, vector<32x256xf32>
    tpu.vector_store %arg17[%c384, %c0_78], %80 {strides = array<i32>} : memref<512x256xf32, #tpu.memory_space<vmem>>, vector<32x256xf32>,
    %c0_79 = arith.constant 0 : index
    %c28 = arith.constant 28 : index
    %82 = vector.load %arg16[%c0_79, %c28] : memref<32x384xf32, #tpu.memory_space<vmem>>, vector<32x256xf32>
    %c416 = arith.constant 416 : index
    %c0_80 = arith.constant 0 : index
    %83 = vector.load %arg17[%c416, %c0_80] : memref<512x256xf32, #tpu.memory_space<vmem>>, vector<32x256xf32>
    tpu.vector_store %arg17[%c416, %c0_80], %82 {strides = array<i32>} : memref<512x256xf32, #tpu.memory_space<vmem>>, vector<32x256xf32>,
    %c0_81 = arith.constant 0 : index
    %c29 = arith.constant 29 : index
    %84 = vector.load %arg16[%c0_81, %c29] : memref<32x384xf32, #tpu.memory_space<vmem>>, vector<32x256xf32>
    %c448 = arith.constant 448 : index
    %c0_82 = arith.constant 0 : index
    %85 = vector.load %arg17[%c448, %c0_82] : memref<512x256xf32, #tpu.memory_space<vmem>>, vector<32x256xf32>
    tpu.vector_store %arg17[%c448, %c0_82], %84 {strides = array<i32>} : memref<512x256xf32, #tpu.memory_space<vmem>>, vector<32x256xf32>,
    %c0_83 = arith.constant 0 : index
    %c30 = arith.constant 30 : index
    %86 = vector.load %arg16[%c0_83, %c30] : memref<32x384xf32, #tpu.memory_space<vmem>>, vector<32x256xf32>
    %c480 = arith.constant 480 : index
    %c0_84 = arith.constant 0 : index
    %87 = vector.load %arg17[%c480, %c0_84] : memref<512x256xf32, #tpu.memory_space<vmem>>, vector<32x256xf32>
    tpu.vector_store %arg17[%c480, %c0_84], %86 {strides = array<i32>} : memref<512x256xf32, #tpu.memory_space<vmem>>, vector<32x256xf32>,
    %c0_85 = arith.constant 0 : index
    %c0_86 = arith.constant 0 : index
    %88 = vector.load %arg6[%c0_85, %c0_86] : memref<16x512xbf16, #tpu.memory_space<vmem>>, vector<16x512xbf16>
    %c0_87 = arith.constant 0 : index
    %c0_88 = arith.constant 0 : index
    %89 = vector.load %arg17[%c0_87, %c0_88] : memref<512x256xf32, #tpu.memory_space<vmem>>, vector<512x256xf32>
    %90 = arith.truncf %89 : vector<512x256xf32> to vector<512x256xbf16>
    %cst_89 = arith.constant dense<0.000000e+00> : vector<16x256xf32>
    %91 = tpu.matmul %88, %90, %cst_89 {dimension_numbers = #tpu.dot_dimension_numbers<[1], [0], [0], [1], [0, 0, 1, 1], [], []>} : vector<16x512xbf16>, vector<512x256xbf16>, vector<16x256xf32> -> vector<16x256xf32>
    %c0_90 = arith.constant 0 : index
    %c0_91 = arith.constant 0 : index
    %92 = vector.load %arg10[%c0_90, %c0_91] : memref<1x256xf32, #tpu.memory_space<vmem>>, vector<1x256xf32>
    %93 = vector.broadcast %92 : vector<1x256xf32> to vector<16x256xf32>
    %94 = arith.mulf %91, %93 : vector<16x256xf32>
    %cst_92 = arith.constant dense<0.000000e+00> : vector<16xf32>
    %95 = vector.multi_reduction <add>, %94, %cst_92 [1] : vector<16x256xf32> to vector<16xf32>
    %96 = vector.shape_cast %95 : vector<16xf32> to vector<16x1xf32>
    %cst_93 = arith.constant 0.013888889 : f32
    %97 = vector.broadcast %cst_93 : f32 to vector<16x1xf32>
    %98 = arith.mulf %96, %97 : vector<16x1xf32>
    %99 = arith.mulf %94, %91 : vector<16x256xf32>
    %cst_94 = arith.constant dense<0.000000e+00> : vector<16xf32>
    %100 = vector.multi_reduction <add>, %99, %cst_94 [1] : vector<16x256xf32> to vector<16xf32>
    %101 = vector.shape_cast %100 : vector<16xf32> to vector<16x1xf32>
    %cst_95 = arith.constant 0.013888889 : f32
    %102 = vector.broadcast %cst_95 : f32 to vector<16x1xf32>
    %103 = arith.mulf %101, %102 : vector<16x1xf32>
    %104 = arith.mulf %98, %98 : vector<16x1xf32>
    %105 = arith.subf %103, %104 : vector<16x1xf32>
    %cst_96 = arith.constant 0.000000e+00 : f32
    %106 = vector.broadcast %cst_96 : f32 to vector<16x1xf32>
    %107 = arith.maximumf %105, %106 : vector<16x1xf32>
    %108 = vector.broadcast %98 : vector<16x1xf32> to vector<16x256xf32>
    %109 = arith.subf %91, %108 : vector<16x256xf32>
    %cst_97 = arith.constant 9.99999974E-6 : f32
    %110 = vector.broadcast %cst_97 : f32 to vector<16x1xf32>
    %111 = arith.addf %107, %110 : vector<16x1xf32>
    %112 = math.rsqrt %111 : vector<16x1xf32>
    %113 = vector.broadcast %112 : vector<16x1xf32> to vector<16x256xf32>
    %114 = arith.mulf %109, %113 : vector<16x256xf32>
    %cst_98 = arith.constant 0.000000e+00 : f32
    %115 = vector.broadcast %cst_98 : f32 to vector<16x256xf32>
    %116 = arith.maximumf %114, %115 : vector<16x256xf32>
    %117 = arith.truncf %116 : vector<16x256xf32> to vector<16x256xbf16>
    %c0_99 = arith.constant 0 : index
    %c0_100 = arith.constant 0 : index
    %118 = vector.load %arg3[%c0_99, %c0_100] : memref<256x640xbf16, #tpu.memory_space<vmem>>, vector<256x640xbf16>
    %cst_101 = arith.constant dense<0.000000e+00> : vector<16x640xf32>
    %119 = tpu.matmul %117, %118, %cst_101 {dimension_numbers = #tpu.dot_dimension_numbers<[1], [0], [0], [1], [0, 0, 1, 1], [], []>} : vector<16x256xbf16>, vector<256x640xbf16>, vector<16x640xf32> -> vector<16x640xf32>
    %c0_102 = arith.constant 0 : index
    %c0_103 = arith.constant 0 : index
    %120 = vector.load %arg18[%c0_102, %c0_103] : memref<16x640xf32, #tpu.memory_space<vmem>>, vector<16x640xf32>
    tpu.vector_store %arg18[%c0_102, %c0_103], %119 {strides = array<i32>} : memref<16x640xf32, #tpu.memory_space<vmem>>, vector<16x640xf32>,
    %c0_104 = arith.constant 0 : index
    %c0_105 = arith.constant 0 : index
    %121 = vector.load %arg18[%c0_104, %c0_105] : memref<16x640xf32, #tpu.memory_space<vmem>>, vector<16x512xf32>
    %c0_106 = arith.constant 0 : index
    %c0_107 = arith.constant 0 : index
    %122 = vector.load %arg19[%c0_106, %c0_107] : memref<144x512xf32, #tpu.memory_space<vmem>>, vector<16x512xf32>
    tpu.vector_store %arg19[%c0_106, %c0_107], %121 {strides = array<i32>} : memref<144x512xf32, #tpu.memory_space<vmem>>, vector<16x512xf32>,
    %c0_108 = arith.constant 0 : index
    %c1_109 = arith.constant 1 : index
    %123 = vector.load %arg18[%c0_108, %c1_109] : memref<16x640xf32, #tpu.memory_space<vmem>>, vector<16x512xf32>
    %c16_110 = arith.constant 16 : index
    %c0_111 = arith.constant 0 : index
    %124 = vector.load %arg19[%c16_110, %c0_111] : memref<144x512xf32, #tpu.memory_space<vmem>>, vector<16x512xf32>
    tpu.vector_store %arg19[%c16_110, %c0_111], %123 {strides = array<i32>} : memref<144x512xf32, #tpu.memory_space<vmem>>, vector<16x512xf32>,
    %c0_112 = arith.constant 0 : index
    %c2_113 = arith.constant 2 : index
    %125 = vector.load %arg18[%c0_112, %c2_113] : memref<16x640xf32, #tpu.memory_space<vmem>>, vector<16x512xf32>
    %c32_114 = arith.constant 32 : index
    %c0_115 = arith.constant 0 : index
    %126 = vector.load %arg19[%c32_114, %c0_115] : memref<144x512xf32, #tpu.memory_space<vmem>>, vector<16x512xf32>
    tpu.vector_store %arg19[%c32_114, %c0_115], %125 {strides = array<i32>} : memref<144x512xf32, #tpu.memory_space<vmem>>, vector<16x512xf32>,
    %c0_116 = arith.constant 0 : index
    %c15 = arith.constant 15 : index
    %127 = vector.load %arg18[%c0_116, %c15] : memref<16x640xf32, #tpu.memory_space<vmem>>, vector<16x512xf32>
    %c48_117 = arith.constant 48 : index
    %c0_118 = arith.constant 0 : index
    %128 = vector.load %arg19[%c48_117, %c0_118] : memref<144x512xf32, #tpu.memory_space<vmem>>, vector<16x512xf32>
    tpu.vector_store %arg19[%c48_117, %c0_118], %127 {strides = array<i32>} : memref<144x512xf32, #tpu.memory_space<vmem>>, vector<16x512xf32>,
    %c0_119 = arith.constant 0 : index
    %c16_120 = arith.constant 16 : index
    %129 = vector.load %arg18[%c0_119, %c16_120] : memref<16x640xf32, #tpu.memory_space<vmem>>, vector<16x512xf32>
    %c64_121 = arith.constant 64 : index
    %c0_122 = arith.constant 0 : index
    %130 = vector.load %arg19[%c64_121, %c0_122] : memref<144x512xf32, #tpu.memory_space<vmem>>, vector<16x512xf32>
    tpu.vector_store %arg19[%c64_121, %c0_122], %129 {strides = array<i32>} : memref<144x512xf32, #tpu.memory_space<vmem>>, vector<16x512xf32>,
    %c0_123 = arith.constant 0 : index
    %c17 = arith.constant 17 : index
    %131 = vector.load %arg18[%c0_123, %c17] : memref<16x640xf32, #tpu.memory_space<vmem>>, vector<16x512xf32>
    %c80 = arith.constant 80 : index
    %c0_124 = arith.constant 0 : index
    %132 = vector.load %arg19[%c80, %c0_124] : memref<144x512xf32, #tpu.memory_space<vmem>>, vector<16x512xf32>
    tpu.vector_store %arg19[%c80, %c0_124], %131 {strides = array<i32>} : memref<144x512xf32, #tpu.memory_space<vmem>>, vector<16x512xf32>,
    %c0_125 = arith.constant 0 : index
    %c30_126 = arith.constant 30 : index
    %133 = vector.load %arg18[%c0_125, %c30_126] : memref<16x640xf32, #tpu.memory_space<vmem>>, vector<16x512xf32>
    %c96_127 = arith.constant 96 : index
    %c0_128 = arith.constant 0 : index
    %134 = vector.load %arg19[%c96_127, %c0_128] : memref<144x512xf32, #tpu.memory_space<vmem>>, vector<16x512xf32>
    tpu.vector_store %arg19[%c96_127, %c0_128], %133 {strides = array<i32>} : memref<144x512xf32, #tpu.memory_space<vmem>>, vector<16x512xf32>,
    %c0_129 = arith.constant 0 : index
    %c31 = arith.constant 31 : index
    %135 = vector.load %arg18[%c0_129, %c31] : memref<16x640xf32, #tpu.memory_space<vmem>>, vector<16x512xf32>
    %c112 = arith.constant 112 : index
    %c0_130 = arith.constant 0 : index
    %136 = vector.load %arg19[%c112, %c0_130] : memref<144x512xf32, #tpu.memory_space<vmem>>, vector<16x512xf32>
    tpu.vector_store %arg19[%c112, %c0_130], %135 {strides = array<i32>} : memref<144x512xf32, #tpu.memory_space<vmem>>, vector<16x512xf32>,
    %c0_131 = arith.constant 0 : index
    %c32_132 = arith.constant 32 : index
    %137 = vector.load %arg18[%c0_131, %c32_132] : memref<16x640xf32, #tpu.memory_space<vmem>>, vector<16x512xf32>
    %c128_133 = arith.constant 128 : index
    %c0_134 = arith.constant 0 : index
    %138 = vector.load %arg19[%c128_133, %c0_134] : memref<144x512xf32, #tpu.memory_space<vmem>>, vector<16x512xf32>
    tpu.vector_store %arg19[%c128_133, %c0_134], %137 {strides = array<i32>} : memref<144x512xf32, #tpu.memory_space<vmem>>, vector<16x512xf32>,
    %c0_135 = arith.constant 0 : index
    %c0_136 = arith.constant 0 : index
    %139 = vector.load %arg7[%c0_135, %c0_136] : memref<8x144xbf16, #tpu.memory_space<vmem>>, vector<8x144xbf16>
    %c0_137 = arith.constant 0 : index
    %c0_138 = arith.constant 0 : index
    %140 = vector.load %arg19[%c0_137, %c0_138] : memref<144x512xf32, #tpu.memory_space<vmem>>, vector<144x512xf32>
    %141 = arith.truncf %140 : vector<144x512xf32> to vector<144x512xbf16>
    %cst_139 = arith.constant dense<0.000000e+00> : vector<8x512xf32>
    %142 = tpu.matmul %139, %141, %cst_139 {dimension_numbers = #tpu.dot_dimension_numbers<[1], [0], [0], [1], [0, 0, 1, 1], [], []>} : vector<8x144xbf16>, vector<144x512xbf16>, vector<8x512xf32> -> vector<8x512xf32>
    %c0_140 = arith.constant 0 : index
    %c0_141 = arith.constant 0 : index
    %143 = vector.load %arg11[%c0_140, %c0_141] : memref<1x512xf32, #tpu.memory_space<vmem>>, vector<1x512xf32>
    %144 = vector.broadcast %143 : vector<1x512xf32> to vector<8x512xf32>
    %145 = arith.mulf %142, %144 : vector<8x512xf32>
    %cst_142 = arith.constant dense<0.000000e+00> : vector<8xf32>
    %146 = vector.multi_reduction <add>, %145, %cst_142 [1] : vector<8x512xf32> to vector<8xf32>
    %147 = vector.shape_cast %146 : vector<8xf32> to vector<8x1xf32>
    %cst_143 = arith.constant 2.958580e-03 : f32
    %148 = vector.broadcast %cst_143 : f32 to vector<8x1xf32>
    %149 = arith.mulf %147, %148 : vector<8x1xf32>
    %150 = arith.mulf %145, %142 : vector<8x512xf32>
    %cst_144 = arith.constant dense<0.000000e+00> : vector<8xf32>
    %151 = vector.multi_reduction <add>, %150, %cst_144 [1] : vector<8x512xf32> to vector<8xf32>
    %152 = vector.shape_cast %151 : vector<8xf32> to vector<8x1xf32>
    %cst_145 = arith.constant 2.958580e-03 : f32
    %153 = vector.broadcast %cst_145 : f32 to vector<8x1xf32>
    %154 = arith.mulf %152, %153 : vector<8x1xf32>
    %155 = arith.mulf %149, %149 : vector<8x1xf32>
    %156 = arith.subf %154, %155 : vector<8x1xf32>
    %cst_146 = arith.constant 0.000000e+00 : f32
    %157 = vector.broadcast %cst_146 : f32 to vector<8x1xf32>
    %158 = arith.maximumf %156, %157 : vector<8x1xf32>
    %159 = vector.broadcast %149 : vector<8x1xf32> to vector<8x512xf32>
    %160 = arith.subf %142, %159 : vector<8x512xf32>
    %cst_147 = arith.constant 9.99999974E-6 : f32
    %161 = vector.broadcast %cst_147 : f32 to vector<8x1xf32>
    %162 = arith.addf %158, %161 : vector<8x1xf32>
    %163 = math.rsqrt %162 : vector<8x1xf32>
    %164 = vector.broadcast %163 : vector<8x1xf32> to vector<8x512xf32>
    %165 = arith.mulf %160, %164 : vector<8x512xf32>
    %cst_148 = arith.constant 0.000000e+00 : f32
    %166 = vector.broadcast %cst_148 : f32 to vector<8x512xf32>
    %167 = arith.maximumf %165, %166 : vector<8x512xf32>
    %168 = arith.truncf %167 : vector<8x512xf32> to vector<8x512xbf16>
    %c0_149 = arith.constant 0 : index
    %c0_150 = arith.constant 0 : index
    %169 = vector.load %arg4[%c0_149, %c0_150] : memref<512x2176xbf16, #tpu.memory_space<vmem>>, vector<512x2176xbf16>
    %cst_151 = arith.constant dense<0.000000e+00> : vector<8x2176xf32>
    %170 = tpu.matmul %168, %169, %cst_151 {dimension_numbers = #tpu.dot_dimension_numbers<[1], [0], [0], [1], [0, 0, 1, 1], [], []>} : vector<8x512xbf16>, vector<512x2176xbf16>, vector<8x2176xf32> -> vector<8x2176xf32>
    %c0_152 = arith.constant 0 : index
    %c0_153 = arith.constant 0 : index
    %171 = vector.load %arg20[%c0_152, %c0_153] : memref<8x2176xf32, #tpu.memory_space<vmem>>, vector<8x2176xf32>
    tpu.vector_store %arg20[%c0_152, %c0_153], %170 {strides = array<i32>} : memref<8x2176xf32, #tpu.memory_space<vmem>>, vector<8x2176xf32>,
    %c0_154 = arith.constant 0 : index
    %c0_155 = arith.constant 0 : index
    %172 = vector.load %arg20[%c0_154, %c0_155] : memref<8x2176xf32, #tpu.memory_space<vmem>>, vector<8x2048xf32>
    %c0_156 = arith.constant 0 : index
    %c0_157 = arith.constant 0 : index
    %173 = vector.load %arg21[%c0_156, %c0_157] : memref<128x2048xf32, #tpu.memory_space<vmem>>, vector<8x2048xf32>
    tpu.vector_store %arg21[%c0_156, %c0_157], %172 {strides = array<i32>} : memref<128x2048xf32, #tpu.memory_space<vmem>>, vector<8x2048xf32>,
    %c0_158 = arith.constant 0 : index
    %c1_159 = arith.constant 1 : index
    %174 = vector.load %arg20[%c0_158, %c1_159] : memref<8x2176xf32, #tpu.memory_space<vmem>>, vector<8x2048xf32>
    %c8_160 = arith.constant 8 : index
    %c0_161 = arith.constant 0 : index
    %175 = vector.load %arg21[%c8_160, %c0_161] : memref<128x2048xf32, #tpu.memory_space<vmem>>, vector<8x2048xf32>
    tpu.vector_store %arg21[%c8_160, %c0_161], %174 {strides = array<i32>} : memref<128x2048xf32, #tpu.memory_space<vmem>>, vector<8x2048xf32>,
    %c0_162 = arith.constant 0 : index
    %c2_163 = arith.constant 2 : index
    %176 = vector.load %arg20[%c0_162, %c2_163] : memref<8x2176xf32, #tpu.memory_space<vmem>>, vector<8x2048xf32>
    %c16_164 = arith.constant 16 : index
    %c0_165 = arith.constant 0 : index
    %177 = vector.load %arg21[%c16_164, %c0_165] : memref<128x2048xf32, #tpu.memory_space<vmem>>, vector<8x2048xf32>
    tpu.vector_store %arg21[%c16_164, %c0_165], %176 {strides = array<i32>} : memref<128x2048xf32, #tpu.memory_space<vmem>>, vector<8x2048xf32>,
    %c0_166 = arith.constant 0 : index
    %c3_167 = arith.constant 3 : index
    %178 = vector.load %arg20[%c0_166, %c3_167] : memref<8x2176xf32, #tpu.memory_space<vmem>>, vector<8x2048xf32>
    %c24_168 = arith.constant 24 : index
    %c0_169 = arith.constant 0 : index
    %179 = vector.load %arg21[%c24_168, %c0_169] : memref<128x2048xf32, #tpu.memory_space<vmem>>, vector<8x2048xf32>
    tpu.vector_store %arg21[%c24_168, %c0_169], %178 {strides = array<i32>} : memref<128x2048xf32, #tpu.memory_space<vmem>>, vector<8x2048xf32>,
    %c0_170 = arith.constant 0 : index
    %c31_171 = arith.constant 31 : index
    %180 = vector.load %arg20[%c0_170, %c31_171] : memref<8x2176xf32, #tpu.memory_space<vmem>>, vector<8x2048xf32>
    %c32_172 = arith.constant 32 : index
    %c0_173 = arith.constant 0 : index
    %181 = vector.load %arg21[%c32_172, %c0_173] : memref<128x2048xf32, #tpu.memory_space<vmem>>, vector<8x2048xf32>
    tpu.vector_store %arg21[%c32_172, %c0_173], %180 {strides = array<i32>} : memref<128x2048xf32, #tpu.memory_space<vmem>>, vector<8x2048xf32>,
    %c0_174 = arith.constant 0 : index
    %c32_175 = arith.constant 32 : index
    %182 = vector.load %arg20[%c0_174, %c32_175] : memref<8x2176xf32, #tpu.memory_space<vmem>>, vector<8x2048xf32>
    %c40_176 = arith.constant 40 : index
    %c0_177 = arith.constant 0 : index
    %183 = vector.load %arg21[%c40_176, %c0_177] : memref<128x2048xf32, #tpu.memory_space<vmem>>, vector<8x2048xf32>
    tpu.vector_store %arg21[%c40_176, %c0_177], %182 {strides = array<i32>} : memref<128x2048xf32, #tpu.memory_space<vmem>>, vector<8x2048xf32>,
    %c0_178 = arith.constant 0 : index
    %c33 = arith.constant 33 : index
    %184 = vector.load %arg20[%c0_178, %c33] : memref<8x2176xf32, #tpu.memory_space<vmem>>, vector<8x2048xf32>
    %c48_179 = arith.constant 48 : index
    %c0_180 = arith.constant 0 : index
    %185 = vector.load %arg21[%c48_179, %c0_180] : memref<128x2048xf32, #tpu.memory_space<vmem>>, vector<8x2048xf32>
    tpu.vector_store %arg21[%c48_179, %c0_180], %184 {strides = array<i32>} : memref<128x2048xf32, #tpu.memory_space<vmem>>, vector<8x2048xf32>,
    %c0_181 = arith.constant 0 : index
    %c34 = arith.constant 34 : index
    %186 = vector.load %arg20[%c0_181, %c34] : memref<8x2176xf32, #tpu.memory_space<vmem>>, vector<8x2048xf32>
    %c56_182 = arith.constant 56 : index
    %c0_183 = arith.constant 0 : index
    %187 = vector.load %arg21[%c56_182, %c0_183] : memref<128x2048xf32, #tpu.memory_space<vmem>>, vector<8x2048xf32>
    tpu.vector_store %arg21[%c56_182, %c0_183], %186 {strides = array<i32>} : memref<128x2048xf32, #tpu.memory_space<vmem>>, vector<8x2048xf32>,
    %c0_184 = arith.constant 0 : index
    %c62 = arith.constant 62 : index
    %188 = vector.load %arg20[%c0_184, %c62] : memref<8x2176xf32, #tpu.memory_space<vmem>>, vector<8x2048xf32>
    %c64_185 = arith.constant 64 : index
    %c0_186 = arith.constant 0 : index
    %189 = vector.load %arg21[%c64_185, %c0_186] : memref<128x2048xf32, #tpu.memory_space<vmem>>, vector<8x2048xf32>
    tpu.vector_store %arg21[%c64_185, %c0_186], %188 {strides = array<i32>} : memref<128x2048xf32, #tpu.memory_space<vmem>>, vector<8x2048xf32>,
    %c0_187 = arith.constant 0 : index
    %c63 = arith.constant 63 : index
    %190 = vector.load %arg20[%c0_187, %c63] : memref<8x2176xf32, #tpu.memory_space<vmem>>, vector<8x2048xf32>
    %c72 = arith.constant 72 : index
    %c0_188 = arith.constant 0 : index
    %191 = vector.load %arg21[%c72, %c0_188] : memref<128x2048xf32, #tpu.memory_space<vmem>>, vector<8x2048xf32>
    tpu.vector_store %arg21[%c72, %c0_188], %190 {strides = array<i32>} : memref<128x2048xf32, #tpu.memory_space<vmem>>, vector<8x2048xf32>,
    %c0_189 = arith.constant 0 : index
    %c64_190 = arith.constant 64 : index
    %192 = vector.load %arg20[%c0_189, %c64_190] : memref<8x2176xf32, #tpu.memory_space<vmem>>, vector<8x2048xf32>
    %c80_191 = arith.constant 80 : index
    %c0_192 = arith.constant 0 : index
    %193 = vector.load %arg21[%c80_191, %c0_192] : memref<128x2048xf32, #tpu.memory_space<vmem>>, vector<8x2048xf32>
    tpu.vector_store %arg21[%c80_191, %c0_192], %192 {strides = array<i32>} : memref<128x2048xf32, #tpu.memory_space<vmem>>, vector<8x2048xf32>,
    %c0_193 = arith.constant 0 : index
    %c65 = arith.constant 65 : index
    %194 = vector.load %arg20[%c0_193, %c65] : memref<8x2176xf32, #tpu.memory_space<vmem>>, vector<8x2048xf32>
    %c88 = arith.constant 88 : index
    %c0_194 = arith.constant 0 : index
    %195 = vector.load %arg21[%c88, %c0_194] : memref<128x2048xf32, #tpu.memory_space<vmem>>, vector<8x2048xf32>
    tpu.vector_store %arg21[%c88, %c0_194], %194 {strides = array<i32>} : memref<128x2048xf32, #tpu.memory_space<vmem>>, vector<8x2048xf32>,
    %c0_195 = arith.constant 0 : index
    %c93 = arith.constant 93 : index
    %196 = vector.load %arg20[%c0_195, %c93] : memref<8x2176xf32, #tpu.memory_space<vmem>>, vector<8x2048xf32>
    %c96_196 = arith.constant 96 : index
    %c0_197 = arith.constant 0 : index
    %197 = vector.load %arg21[%c96_196, %c0_197] : memref<128x2048xf32, #tpu.memory_space<vmem>>, vector<8x2048xf32>
    tpu.vector_store %arg21[%c96_196, %c0_197], %196 {strides = array<i32>} : memref<128x2048xf32, #tpu.memory_space<vmem>>, vector<8x2048xf32>,
    %c0_198 = arith.constant 0 : index
    %c94 = arith.constant 94 : index
    %198 = vector.load %arg20[%c0_198, %c94] : memref<8x2176xf32, #tpu.memory_space<vmem>>, vector<8x2048xf32>
    %c104 = arith.constant 104 : index
    %c0_199 = arith.constant 0 : index
    %199 = vector.load %arg21[%c104, %c0_199] : memref<128x2048xf32, #tpu.memory_space<vmem>>, vector<8x2048xf32>
    tpu.vector_store %arg21[%c104, %c0_199], %198 {strides = array<i32>} : memref<128x2048xf32, #tpu.memory_space<vmem>>, vector<8x2048xf32>,
    %c0_200 = arith.constant 0 : index
    %c95 = arith.constant 95 : index
    %200 = vector.load %arg20[%c0_200, %c95] : memref<8x2176xf32, #tpu.memory_space<vmem>>, vector<8x2048xf32>
    %c112_201 = arith.constant 112 : index
    %c0_202 = arith.constant 0 : index
    %201 = vector.load %arg21[%c112_201, %c0_202] : memref<128x2048xf32, #tpu.memory_space<vmem>>, vector<8x2048xf32>
    tpu.vector_store %arg21[%c112_201, %c0_202], %200 {strides = array<i32>} : memref<128x2048xf32, #tpu.memory_space<vmem>>, vector<8x2048xf32>,
    %c0_203 = arith.constant 0 : index
    %c96_204 = arith.constant 96 : index
    %202 = vector.load %arg20[%c0_203, %c96_204] : memref<8x2176xf32, #tpu.memory_space<vmem>>, vector<8x2048xf32>
    %c120 = arith.constant 120 : index
    %c0_205 = arith.constant 0 : index
    %203 = vector.load %arg21[%c120, %c0_205] : memref<128x2048xf32, #tpu.memory_space<vmem>>, vector<8x2048xf32>
    tpu.vector_store %arg21[%c120, %c0_205], %202 {strides = array<i32>} : memref<128x2048xf32, #tpu.memory_space<vmem>>, vector<8x2048xf32>,
    %c0_206 = arith.constant 0 : index
    %c0_207 = arith.constant 0 : index
    %204 = vector.load %arg8[%c0_206, %c0_207] : memref<8x128xbf16, #tpu.memory_space<vmem>>, vector<8x128xbf16>
    %c0_208 = arith.constant 0 : index
    %c0_209 = arith.constant 0 : index
    %205 = vector.load %arg21[%c0_208, %c0_209] : memref<128x2048xf32, #tpu.memory_space<vmem>>, vector<128x2048xf32>
    %206 = arith.truncf %205 : vector<128x2048xf32> to vector<128x2048xbf16>
    %cst_210 = arith.constant dense<0.000000e+00> : vector<8x2048xf32>
    %207 = tpu.matmul %204, %206, %cst_210 {dimension_numbers = #tpu.dot_dimension_numbers<[1], [0], [0], [1], [0, 0, 1, 1], [], []>} : vector<8x128xbf16>, vector<128x2048xbf16>, vector<8x2048xf32> -> vector<8x2048xf32>
    %c0_211 = arith.constant 0 : index
    %c0_212 = arith.constant 0 : index
    %208 = vector.load %arg12[%c0_211, %c0_212] : memref<8x1xf32, #tpu.memory_space<vmem>>, vector<8x1xf32>
    %209 = vector.broadcast %208 : vector<8x1xf32> to vector<8x2048xf32>
    %210 = arith.addf %207, %209 : vector<8x2048xf32>
    %211 = math.tanh %210 : vector<8x2048xf32>
    %c0_213 = arith.constant 0 : index
    %c0_214 = arith.constant 0 : index
    %212 = vector.load %arg13[%c0_213, %c0_214] : memref<8x2048xf32, #tpu.memory_space<vmem>>, vector<8x2048xf32>
    tpu.vector_store %arg13[%c0_213, %c0_214], %211 {strides = array<i32>} : memref<8x2048xf32, #tpu.memory_space<vmem>>, vector<8x2048xf32>,
    return
  }
}

</mosaic_0001>

<llo_original>
// kernel: tpu_custom_call.1
$region0: #{tpu_custom_call.1}
  #allocation0 [shape = 'u32[]', space=smem, size = 0x4, offset = 0x4, fixed_abs, tag = 'smem constant byte address 0x4 - core index']
  #allocation1 [shape = 'u32[144,128]{1,0:T(1,128)}', space=vmem, size = 0x12000, scoped, tag = 'internal scratch']
  #allocation2 [shape = 'f32[8,256]{1,0:T(8,128)}', space=vmem, size = 0x2000, scoped, tag = 'scratch operand']
  #allocation3 [shape = 'f32[72,128]{1,0:T(8,128)}', space=vmem, size = 0x9000, scoped, tag = 'scratch operand']
  #allocation4 [shape = 'f32[32,384]{1,0:T(8,128)}', space=vmem, size = 0xc000, scoped, tag = 'scratch operand']
  #allocation5 [shape = 'f32[512,256]{1,0:T(8,128)}', space=vmem, size = 0x80000, scoped, tag = 'scratch operand']
  #allocation6 [shape = 'f32[16,640]{1,0:T(8,128)}', space=vmem, size = 0xa000, scoped, tag = 'scratch operand']
  #allocation7 [shape = 'f32[144,512]{1,0:T(8,128)}', space=vmem, size = 0x48000, scoped, tag = 'scratch operand']
  #allocation8 [shape = 'f32[8,2176]{1,0:T(8,128)}', space=vmem, size = 0x11000, scoped, tag = 'scratch operand']
  #allocation9 [shape = 'f32[128,2048]{1,0:T(8,128)}', space=vmem, size = 0x100000, scoped, tag = 'scratch operand']
  %s0 = inlined_call_operand.hbm [shape: f32[8,128], index: 0, kind: input, shape index: {}]
  %s1 = inlined_call_operand.hbm [shape: bf16[128,256], index: 1, kind: input, shape index: {}]
  %s2 = inlined_call_operand.hbm [shape: bf16[128,384], index: 2, kind: input, shape index: {}]
  %s3 = inlined_call_operand.hbm [shape: bf16[256,640], index: 3, kind: input, shape index: {}]
  %s4 = inlined_call_operand.hbm [shape: bf16[512,2176], index: 4, kind: input, shape index: {}]
  %s5 = inlined_call_operand.hbm [shape: bf16[32,72], index: 5, kind: input, shape index: {}]
  %s6 = inlined_call_operand.hbm [shape: bf16[16,512], index: 6, kind: input, shape index: {}]
  %s7 = inlined_call_operand.hbm [shape: bf16[8,144], index: 7, kind: input, shape index: {}]
  %s8 = inlined_call_operand.hbm [shape: bf16[8,128], index: 8, kind: input, shape index: {}]
  %s9 = inlined_call_operand.hbm [shape: f32[1,128], index: 9, kind: input, shape index: {}]
  %s10 = inlined_call_operand.hbm [shape: f32[1,256], index: 10, kind: input, shape index: {}]
  %s11 = inlined_call_operand.hbm [shape: f32[1,512], index: 11, kind: input, shape index: {}]
  %s12 = inlined_call_operand.vmem [shape: f32[8,1], index: 12, kind: input, shape index: {}]
  %s13 = inlined_call_operand.hbm [shape: f32[8,2048], index: 13, kind: output, shape index: {}]
  %s14 = sld [smem:[#allocation0]]
  $region110: #{tpu_custom_call.1} parent=0
    _
  %s16 = ssub.s32 1, %s14
  %s17 = scalar_select 0, %s16, %s14
  $region1: #{tpu_custom_call.1} parent=0
    #allocation10 [shape = 'u8[4096]{0}', space=vmem, size = 0x1000, scoped, tag = 'input window, operand 0, single buffered']
    #allocation11 [shape = 's32[1]{0}', space=sflag, size = 0x4, scoped, tag = 'scoped memory for tpu_custom_call.1']
    #allocation12 [shape = 's32[1]{0}', space=sflag, size = 0x4, scoped, tag = 'scoped memory for tpu_custom_call.1']
    #allocation13 [shape = 'u8[65536]{0}', space=vmem, size = 0x10000, scoped, tag = 'input window, operand 1, single buffered']
    #allocation14 [shape = 's32[1]{0}', space=sflag, size = 0x4, scoped, tag = 'scoped memory for tpu_custom_call.1']
    #allocation15 [shape = 'u8[98304]{0}', space=vmem, size = 0x18000, scoped, tag = 'input window, operand 2, single buffered']
    #allocation16 [shape = 'u8[327680]{0}', space=vmem, size = 0x50000, scoped, tag = 'input window, operand 3, single buffered']
    #allocation17 [shape = 's32[1]{0}', space=sflag, size = 0x4, scoped, tag = 'scoped memory for tpu_custom_call.1']
    #allocation18 [shape = 'u8[2228224]{0}', space=vmem, size = 0x220000, scoped, tag = 'input window, operand 4, single buffered']
    #allocation19 [shape = 'u8[8192]{0}', space=vmem, size = 0x2000, scoped, tag = 'input window, operand 5, single buffered']
    #allocation20 [shape = 's32[1]{0}', space=sflag, size = 0x4, scoped, tag = 'scoped memory for tpu_custom_call.1']
    #allocation21 [shape = 'u8[16384]{0}', space=vmem, size = 0x4000, scoped, tag = 'input window, operand 6, single buffered']
    #allocation22 [shape = 'u8[4096]{0}', space=vmem, size = 0x1000, scoped, tag = 'input window, operand 7, single buffered']
    #allocation23 [shape = 's32[1]{0}', space=sflag, size = 0x4, scoped, tag = 'scoped memory for tpu_custom_call.1']
    #allocation24 [shape = 'u8[2048]{0}', space=vmem, size = 0x800, scoped, tag = 'input window, operand 8, single buffered']
    #allocation25 [shape = 'u8[512]{0}', space=vmem, size = 0x400, scoped, tag = 'input window, operand 9, single buffered']
    #allocation26 [shape = 's32[1]{0}', space=sflag, size = 0x4, scoped, tag = 'scoped memory for tpu_custom_call.1']
    #allocation27 [shape = 'u8[1024]{0}', space=vmem, size = 0x400, scoped, tag = 'input window, operand 10, single buffered']
    #allocation28 [shape = 'u8[2048]{0}', space=vmem, size = 0x800, scoped, tag = 'input window, operand 11, single buffered']
    #allocation29 [shape = 's32[1]{0}', space=sflag, size = 0x4, scoped, tag = 'scoped memory for tpu_custom_call.1']
    #allocation30 [shape = 'u8[65536]{0}', space=vmem, size = 0x10000, scoped, tag = 'output window, operand 0, single buffered']
    %18 = vsyncpa [#allocation11], 0
    %19 = vsyncpa [#allocation14], 0
    %20 = vsyncpa [#allocation17], 0
    %21 = vsyncpa [#allocation20], 0
    %22 = vsyncpa [#allocation23], 0
    %23 = vsyncpa [#allocation26], 0
    %24 = vsyncpa [#allocation29], 0
    %25 = vsyncpa [#allocation12], 0
    // Predicated region
    $region2: #{tpu_custom_call.1} parent=1 // pred_check
      _
    $region3: #{tpu_custom_call.1} parent=1 // pred_check_branch
      %27 = sbr.rel (0) target = $region5
    $region4: #{tpu_custom_call.1} parent=1 // pred_region
      %s29 = ssub.s32 128, 128
      %30 = vsyncadd [#allocation11], %s29
      %s32 = sshll.u32 [#allocation10], 4
      %s33 = int_to_ptr.vmem [resolvable:$true] %s32
      %35 = dma.hbm_to_vmem [thread:$0]  %s0, 128, %s33, [#allocation11]
    $region5: #{tpu_custom_call.1} parent=1 // pred_fallthru
      _
    // Predicated region
    $region6: #{tpu_custom_call.1} parent=1 // pred_check
      _
    $region7: #{tpu_custom_call.1} parent=1 // pred_check_branch
      %37 = sbr.rel (0) target = $region9
    $region8: #{tpu_custom_call.1} parent=1 // pred_region
      %s39 = ssub.s32 2048, 2048
      %40 = vsyncadd [#allocation14], %s39
      %s41 = sshll.u32 [#allocation13], 4
      %s42 = int_to_ptr.vmem [resolvable:$true] %s41
      %47 = dma.hbm_to_vmem [thread:$0]  %s1, 2048, %s42, [#allocation14], 128, 128, 8
    $region9: #{tpu_custom_call.1} parent=1 // pred_fallthru
      _
    // Predicated region
    $region10: #{tpu_custom_call.1} parent=1 // pred_check
      _
    $region11: #{tpu_custom_call.1} parent=1 // pred_check_branch
      %49 = sbr.rel (0) target = $region13
    $region12: #{tpu_custom_call.1} parent=1 // pred_region
      %s51 = ssub.s32 3072, 3072
      %52 = vsyncadd [#allocation14], %s51
      %s53 = sshll.u32 [#allocation15], 4
      %s54 = int_to_ptr.vmem [resolvable:$true] %s53
      %59 = dma.hbm_to_vmem [thread:$0]  %s2, 3072, %s54, [#allocation14], 192, 192, 12
    $region13: #{tpu_custom_call.1} parent=1 // pred_fallthru
      _
    // Predicated region
    $region14: #{tpu_custom_call.1} parent=1 // pred_check
      _
    $region15: #{tpu_custom_call.1} parent=1 // pred_check_branch
      %61 = sbr.rel (0) target = $region17
    $region16: #{tpu_custom_call.1} parent=1 // pred_region
      %s63 = ssub.s32 10240, 10240
      %64 = vsyncadd [#allocation17], %s63
      %s65 = sshll.u32 [#allocation16], 4
      %s66 = int_to_ptr.vmem [resolvable:$true] %s65
      %71 = dma.hbm_to_vmem [thread:$0]  %s3, 10240, %s66, [#allocation17], 320, 320, 20
    $region17: #{tpu_custom_call.1} parent=1 // pred_fallthru
      _
    // Predicated region
    $region18: #{tpu_custom_call.1} parent=1 // pred_check
      _
    $region19: #{tpu_custom_call.1} parent=1 // pred_check_branch
      %73 = sbr.rel (0) target = $region21
    $region20: #{tpu_custom_call.1} parent=1 // pred_region
      %s75 = ssub.s32 69632, 69632
      %76 = vsyncadd [#allocation17], %s75
      %s77 = sshll.u32 [#allocation18], 4
      %s78 = int_to_ptr.vmem [resolvable:$true] %s77
      %83 = dma.hbm_to_vmem [thread:$0]  %s4, 69632, %s78, [#allocation17], 1088, 1088, 68
    $region21: #{tpu_custom_call.1} parent=1 // pred_fallthru
      _
    // Predicated region
    $region22: #{tpu_custom_call.1} parent=1 // pred_check
      _
    $region23: #{tpu_custom_call.1} parent=1 // pred_check_branch
      %85 = sbr.rel (0) target = $region25
    $region24: #{tpu_custom_call.1} parent=1 // pred_region
      %s87 = ssub.s32 256, 256
      %88 = vsyncadd [#allocation20], %s87
      %s89 = sshll.u32 [#allocation19], 4
      %s90 = int_to_ptr.vmem [resolvable:$true] %s89
      %95 = dma.hbm_to_vmem [thread:$0]  %s5, 256, %s90, [#allocation20], 64, 64, 4
    $region25: #{tpu_custom_call.1} parent=1 // pred_fallthru
      _
    // Predicated region
    $region26: #{tpu_custom_call.1} parent=1 // pred_check
      _
    $region27: #{tpu_custom_call.1} parent=1 // pred_check_branch
      %97 = sbr.rel (0) target = $region29
    $region28: #{tpu_custom_call.1} parent=1 // pred_region
      %s99 = ssub.s32 512, 512
      %100 = vsyncadd [#allocation20], %s99
      %s101 = sshll.u32 [#allocation21], 4
      %s102 = int_to_ptr.vmem [resolvable:$true] %s101
      %107 = dma.hbm_to_vmem [thread:$0]  %s6, 512, %s102, [#allocation20], 256, 256, 16
    $region29: #{tpu_custom_call.1} parent=1 // pred_fallthru
      _
    // Predicated region
    $region30: #{tpu_custom_call.1} parent=1 // pred_check
      _
    $region31: #{tpu_custom_call.1} parent=1 // pred_check_branch
      %109 = sbr.rel (0) target = $region33
    $region32: #{tpu_custom_call.1} parent=1 // pred_region
      %s111 = ssub.s32 128, 128
      %112 = vsyncadd [#allocation23], %s111
      %s114 = sshll.u32 [#allocation22], 4
      %s115 = int_to_ptr.vmem [resolvable:$true] %s114
      %117 = dma.hbm_to_vmem [thread:$0]  %s7, 128, %s115, [#allocation23]
    $region33: #{tpu_custom_call.1} parent=1 // pred_fallthru
      _
    // Predicated region
    $region34: #{tpu_custom_call.1} parent=1 // pred_check
      _
    $region35: #{tpu_custom_call.1} parent=1 // pred_check_branch
      %119 = sbr.rel (0) target = $region37
    $region36: #{tpu_custom_call.1} parent=1 // pred_region
      %s121 = ssub.s32 64, 64
      %122 = vsyncadd [#allocation23], %s121
      %s124 = sshll.u32 [#allocation24], 4
      %s125 = int_to_ptr.vmem [resolvable:$true] %s124
      %127 = dma.hbm_to_vmem [thread:$0]  %s8, 64, %s125, [#allocation23]
    $region37: #{tpu_custom_call.1} parent=1 // pred_fallthru
      _
    // Predicated region
    $region38: #{tpu_custom_call.1} parent=1 // pred_check
      _
    $region39: #{tpu_custom_call.1} parent=1 // pred_check_branch
      %129 = sbr.rel (0) target = $region41
    $region40: #{tpu_custom_call.1} parent=1 // pred_region
      %s131 = ssub.s32 16, 16
      %132 = vsyncadd [#allocation26], %s131
      %s134 = sshll.u32 [#allocation25], 4
      %s135 = int_to_ptr.vmem [resolvable:$true] %s134
      %137 = dma.hbm_to_vmem [thread:$0]  %s9, 16, %s135, [#allocation26]
    $region41: #{tpu_custom_call.1} parent=1 // pred_fallthru
      _
    // Predicated region
    $region42: #{tpu_custom_call.1} parent=1 // pred_check
      _
    $region43: #{tpu_custom_call.1} parent=1 // pred_check_branch
      %139 = sbr.rel (0) target = $region45
    $region44: #{tpu_custom_call.1} parent=1 // pred_region
      %s141 = ssub.s32 32, 32
      %142 = vsyncadd [#allocation26], %s141
      %s144 = sshll.u32 [#allocation27], 4
      %s145 = int_to_ptr.vmem [resolvable:$true] %s144
      %147 = dma.hbm_to_vmem [thread:$0]  %s10, 32, %s145, [#allocation26]
    $region45: #{tpu_custom_call.1} parent=1 // pred_fallthru
      _
    // Predicated region
    $region46: #{tpu_custom_call.1} parent=1 // pred_check
      _
    $region47: #{tpu_custom_call.1} parent=1 // pred_check_branch
      %149 = sbr.rel (0) target = $region49
    $region48: #{tpu_custom_call.1} parent=1 // pred_region
      %s151 = ssub.s32 64, 64
      %152 = vsyncadd [#allocation29], %s151
      %s154 = sshll.u32 [#allocation28], 4
      %s155 = int_to_ptr.vmem [resolvable:$true] %s154
      %157 = dma.hbm_to_vmem [thread:$0]  %s11, 64, %s155, [#allocation29]
    $region49: #{tpu_custom_call.1} parent=1 // pred_fallthru
      _
    // Predicated region
    $region50: #{tpu_custom_call.1} parent=1 // pred_check
      _
    $region51: #{tpu_custom_call.1} parent=1 // pred_check_branch
      %159 = sbr.rel (0) target = $region53
    $region52: #{tpu_custom_call.1} parent=1 // pred_region
      _
    $region53: #{tpu_custom_call.1} parent=1 // pred_fallthru
      _
    // Predicated region
    $region54: #{tpu_custom_call.1} parent=1 // pred_check
      _
    $region55: #{tpu_custom_call.1} parent=1 // pred_check_branch
      %161 = sbr.rel (0) target = $region57
    $region56: #{tpu_custom_call.1} parent=1 // pred_region
      %162 = dma.done [#allocation11], 128
    $region57: #{tpu_custom_call.1} parent=1 // pred_fallthru
      _
    // Predicated region
    $region58: #{tpu_custom_call.1} parent=1 // pred_check
      _
    $region59: #{tpu_custom_call.1} parent=1 // pred_check_branch
      %164 = sbr.rel (0) target = $region61
    $region60: #{tpu_custom_call.1} parent=1 // pred_region
      %165 = dma.done [#allocation14], 2048
    $region61: #{tpu_custom_call.1} parent=1 // pred_fallthru
      _
    // Predicated region
    $region62: #{tpu_custom_call.1} parent=1 // pred_check
      _
    $region63: #{tpu_custom_call.1} parent=1 // pred_check_branch
      %167 = sbr.rel (0) target = $region65
    $region64: #{tpu_custom_call.1} parent=1 // pred_region
      %168 = dma.done [#allocation14], 3072
    $region65: #{tpu_custom_call.1} parent=1 // pred_fallthru
      _
    // Predicated region
    $region66: #{tpu_custom_call.1} parent=1 // pred_check
      _
    $region67: #{tpu_custom_call.1} parent=1 // pred_check_branch
      %170 = sbr.rel (0) target = $region69
    $region68: #{tpu_custom_call.1} parent=1 // pred_region
      %171 = dma.done [#allocation17], 10240
    $region69: #{tpu_custom_call.1} parent=1 // pred_fallthru
      _
    // Predicated region
    $region70: #{tpu_custom_call.1} parent=1 // pred_check
      _
    $region71: #{tpu_custom_call.1} parent=1 // pred_check_branch
      %173 = sbr.rel (0) target = $region73
    $region72: #{tpu_custom_call.1} parent=1 // pred_region
      %174 = dma.done [#allocation17], 69632
    $region73: #{tpu_custom_call.1} parent=1 // pred_fallthru
      _
    // Predicated region
    $region74: #{tpu_custom_call.1} parent=1 // pred_check
      _
    $region75: #{tpu_custom_call.1} parent=1 // pred_check_branch
      %176 = sbr.rel (0) target = $region77
    $region76: #{tpu_custom_call.1} parent=1 // pred_region
      %177 = dma.done [#allocation20], 256
    $region77: #{tpu_custom_call.1} parent=1 // pred_fallthru
      _
    // Predicated region
    $region78: #{tpu_custom_call.1} parent=1 // pred_check
      _
    $region79: #{tpu_custom_call.1} parent=1 // pred_check_branch
      %179 = sbr.rel (0) target = $region81
    $region80: #{tpu_custom_call.1} parent=1 // pred_region
      %180 = dma.done [#allocation20], 512
    $region81: #{tpu_custom_call.1} parent=1 // pred_fallthru
      _
    // Predicated region
    $region82: #{tpu_custom_call.1} parent=1 // pred_check
      _
    $region83: #{tpu_custom_call.1} parent=1 // pred_check_branch
      %182 = sbr.rel (0) target = $region85
    $region84: #{tpu_custom_call.1} parent=1 // pred_region
      %183 = dma.done [#allocation23], 128
    $region85: #{tpu_custom_call.1} parent=1 // pred_fallthru
      _
    // Predicated region
    $region86: #{tpu_custom_call.1} parent=1 // pred_check
      _
    $region87: #{tpu_custom_call.1} parent=1 // pred_check_branch
      %185 = sbr.rel (0) target = $region89
    $region88: #{tpu_custom_call.1} parent=1 // pred_region
      %186 = dma.done [#allocation23], 64
    $region89: #{tpu_custom_call.1} parent=1 // pred_fallthru
      _
    // Predicated region
    $region90: #{tpu_custom_call.1} parent=1 // pred_check
      _
    $region91: #{tpu_custom_call.1} parent=1 // pred_check_branch
      %188 = sbr.rel (0) target = $region93
    $region92: #{tpu_custom_call.1} parent=1 // pred_region
      %189 = dma.done [#allocation26], 16
    $region93: #{tpu_custom_call.1} parent=1 // pred_fallthru
      _
    // Predicated region
    $region94: #{tpu_custom_call.1} parent=1 // pred_check
      _
    $region95: #{tpu_custom_call.1} parent=1 // pred_check_branch
      %191 = sbr.rel (0) target = $region97
    $region96: #{tpu_custom_call.1} parent=1 // pred_region
      %192 = dma.done [#allocation26], 32
    $region97: #{tpu_custom_call.1} parent=1 // pred_fallthru
      _
    // Predicated region
    $region98: #{tpu_custom_call.1} parent=1 // pred_check
      _
    $region99: #{tpu_custom_call.1} parent=1 // pred_check_branch
      %194 = sbr.rel (0) target = $region101
    $region100: #{tpu_custom_call.1} parent=1 // pred_region
      %195 = dma.done [#allocation29], 64
    $region101: #{tpu_custom_call.1} parent=1 // pred_fallthru
      _
    %v197 = vld [vmem:[#allocation10] sm:$0xff]
    %v198 = vpack.c.bf16 %v197, %v197
    %v199 = vld [vmem:[#allocation13] sm:$0xff]
    %v200 = vld [vmem:[#allocation13 + $0x8] sm:$0xff]
    %v201 = vld [vmem:[#allocation13 + $0x10] sm:$0xff]
    %v202 = vld [vmem:[#allocation13 + $0x18] sm:$0xff]
    %v203 = vld [vmem:[#allocation13 + $0x20] sm:$0xff]
    %v204 = vld [vmem:[#allocation13 + $0x28] sm:$0xff]
    %v205 = vld [vmem:[#allocation13 + $0x30] sm:$0xff]
    %v206 = vld [vmem:[#allocation13 + $0x38] sm:$0xff]
    %v207 = vld [vmem:[#allocation13 + $0x40] sm:$0xff]
    %v208 = vld [vmem:[#allocation13 + $0x48] sm:$0xff]
    %v209 = vld [vmem:[#allocation13 + $0x50] sm:$0xff]
    %v210 = vld [vmem:[#allocation13 + $0x58] sm:$0xff]
    %v211 = vld [vmem:[#allocation13 + $0x60] sm:$0xff]
    %v212 = vld [vmem:[#allocation13 + $0x68] sm:$0xff]
    %v213 = vld [vmem:[#allocation13 + $0x70] sm:$0xff]
    %v214 = vld [vmem:[#allocation13 + $0x78] sm:$0xff]
    %v231 = vunpack.c.l.b16 %v199
    %v232 = vunpack.c.h.b16 %v199
    %v233 = vunpack.c.l.b16 %v200
    %v234 = vunpack.c.h.b16 %v200
    %v235 = vunpack.c.l.b16 %v201
    %v236 = vunpack.c.h.b16 %v201
    %v237 = vunpack.c.l.b16 %v202
    %v238 = vunpack.c.h.b16 %v202
    %v239 = vunpack.c.l.b16 %v203
    %v240 = vunpack.c.h.b16 %v203
    %v241 = vunpack.c.l.b16 %v204
    %v242 = vunpack.c.h.b16 %v204
    %v243 = vunpack.c.l.b16 %v205
    %v244 = vunpack.c.h.b16 %v205
    %v245 = vunpack.c.l.b16 %v206
    %v246 = vunpack.c.h.b16 %v206
    %v247 = vunpack.c.l.b16 %v207
    %v248 = vunpack.c.h.b16 %v207
    %v249 = vunpack.c.l.b16 %v208
    %v250 = vunpack.c.h.b16 %v208
    %v251 = vunpack.c.l.b16 %v209
    %v252 = vunpack.c.h.b16 %v209
    %v253 = vunpack.c.l.b16 %v210
    %v254 = vunpack.c.h.b16 %v210
    %v255 = vunpack.c.l.b16 %v211
    %v256 = vunpack.c.h.b16 %v211
    %v257 = vunpack.c.l.b16 %v212
    %v258 = vunpack.c.h.b16 %v212
    %v259 = vunpack.c.l.b16 %v213
    %v260 = vunpack.c.h.b16 %v213
    %v261 = vunpack.c.l.b16 %v214
    %v262 = vunpack.c.h.b16 %v214
    %v263 = vpack.c.b16 %v233, %v231
    %v264 = vpack.c.b16 %v234, %v232
    %v265 = vpack.c.b16 %v237, %v235
    %v266 = vpack.c.b16 %v238, %v236
    %v267 = vpack.c.b16 %v241, %v239
    %v268 = vpack.c.b16 %v242, %v240
    %v269 = vpack.c.b16 %v245, %v243
    %v270 = vpack.c.b16 %v246, %v244
    %v271 = vpack.c.b16 %v249, %v247
    %v272 = vpack.c.b16 %v250, %v248
    %v273 = vpack.c.b16 %v253, %v251
    %v274 = vpack.c.b16 %v254, %v252
    %v275 = vpack.c.b16 %v257, %v255
    %v276 = vpack.c.b16 %v258, %v256
    %v277 = vpack.c.b16 %v261, %v259
    %v278 = vpack.c.b16 %v262, %v260
    %295 = vmatprep.subr.bf16.mxu0 %v264
    %296 = vmatpush1.bf16.msra.mxu0 %v263
    %297 = vmatprep.subr.bf16.mxu0 %v266
    %298 = vmatpush1.bf16.msra.mxu0 %v265
    %299 = vmatprep.subr.bf16.mxu0 %v268
    %300 = vmatpush1.bf16.msra.mxu0 %v267
    %301 = vmatprep.subr.bf16.mxu0 %v270
    %302 = vmatpush1.bf16.msra.mxu0 %v269
    %303 = vmatprep.subr.bf16.mxu0 %v272
    %304 = vmatpush1.bf16.msra.mxu0 %v271
    %305 = vmatprep.subr.bf16.mxu0 %v274
    %306 = vmatpush1.bf16.msra.mxu0 %v273
    %307 = vmatprep.subr.bf16.mxu0 %v276
    %308 = vmatpush1.bf16.msra.mxu0 %v275
    %309 = vmatprep.subr.bf16.mxu0 %v278
    %310 = vmatpush1.bf16.msra.mxu0 %v277
    %311 = vmatprep.subr.bf16.mxu0 0
    %312 = vmatpush1.bf16.msra.mxu0 0
    %313 = vmatprep.subr.bf16.mxu0 0
    %314 = vmatpush1.bf16.msra.mxu0 0
    %315 = vmatprep.subr.bf16.mxu0 0
    %316 = vmatpush1.bf16.msra.mxu0 0
    %317 = vmatprep.subr.bf16.mxu0 0
    %318 = vmatpush1.bf16.msra.mxu0 0
    %319 = vmatprep.subr.bf16.mxu0 0
    %320 = vmatpush1.bf16.msra.mxu0 0
    %321 = vmatprep.subr.bf16.mxu0 0
    %322 = vmatpush1.bf16.msra.mxu0 0
    %323 = vmatprep.subr.bf16.mxu0 0
    %324 = vmatpush1.bf16.msra.mxu0 0
    %325 = vmatprep.subr.bf16.mxu0 0
    %326 = vmatpush1.bf16.msra.mxu0 0
    %327 = vmatprep.mubr.bf16.mxu0 0
    %328 = vmatmul.mubr.bf16.gmra.mrb[0].mxu0 %v198
    %v329 = vpop.f32.mrb[0].mxu0
    %v330 = vadd.f32 0.0, %v329
    %v331 = vpop.f32.mrb[0].mxu0
    %v332 = vadd.f32 0.0, %v331
    %v333 = vpop.f32.mrb[0].mxu0
    %v334 = vpop.f32.mrb[0].mxu0
    %335 = vdwg.mxu0
    %336 = vst [vmem:[#allocation2] sm:$0xff] %v330
    %337 = vst [vmem:[#allocation2 + $0x8] sm:$0xff] %v332
    %v338 = vld [vmem:[#allocation2] sm:$0xff]
    %339 = vst [vmem:[#allocation3] sm:$0xff] %v338
    %v340 = vld [vmem:[#allocation2] sm:$0xff]
    %v341 = vld [vmem:[#allocation2 + $0x8] sm:$0xff]
    %344 = vrot.lane.b32.xlu0 %v340, 127
    %v345 = vpop.permute.xlu0 %344
    %346 = vrot.lane.b32.xlu0 %v341, 127
    %v347 = vpop.permute.xlu0 %346
    %vm348 = vcmask 1039360
    %v349 = vsel %vm348, %v345, %v347
    %351 = vst [vmem:[#allocation3 + $0x8] sm:$0xff] %v349
    %v352 = vld [vmem:[#allocation2] sm:$0xff]
    %v353 = vld [vmem:[#allocation2 + $0x8] sm:$0xff]
    %356 = vrot.lane.b32.xlu0 %v352, 126
    %v357 = vpop.permute.xlu0 %356
    %358 = vrot.lane.b32.xlu0 %v353, 126
    %v359 = vpop.permute.xlu0 %358
    %vm360 = vcmask 1031168
    %v361 = vsel %vm360, %v357, %v359
    %363 = vst [vmem:[#allocation3 + $0x10] sm:$0xff] %v361
    %v364 = vld [vmem:[#allocation2] sm:$0xff]
    %v365 = vld [vmem:[#allocation2 + $0x8] sm:$0xff]
    %368 = vrot.lane.b32.xlu0 %v364, 123
    %v369 = vpop.permute.xlu0 %368
    %370 = vrot.lane.b32.xlu0 %v365, 123
    %v371 = vpop.permute.xlu0 %370
    %vm372 = vcmask 1006592
    %v373 = vsel %vm372, %v369, %v371
    %375 = vst [vmem:[#allocation3 + $0x18] sm:$0xff] %v373
    %v376 = vld [vmem:[#allocation2] sm:$0xff]
    %v377 = vld [vmem:[#allocation2 + $0x8] sm:$0xff]
    %380 = vrot.lane.b32.xlu0 %v376, 122
    %v381 = vpop.permute.xlu0 %380
    %382 = vrot.lane.b32.xlu0 %v377, 122
    %v383 = vpop.permute.xlu0 %382
    %vm384 = vcmask 998400
    %v385 = vsel %vm384, %v381, %v383
    %387 = vst [vmem:[#allocation3 + $0x20] sm:$0xff] %v385
    %v388 = vld [vmem:[#allocation2] sm:$0xff]
    %v389 = vld [vmem:[#allocation2 + $0x8] sm:$0xff]
    %392 = vrot.lane.b32.xlu0 %v388, 121
    %v393 = vpop.permute.xlu0 %392
    %394 = vrot.lane.b32.xlu0 %v389, 121
    %v395 = vpop.permute.xlu0 %394
    %vm396 = vcmask 990208
    %v397 = vsel %vm396, %v393, %v395
    %399 = vst [vmem:[#allocation3 + $0x28] sm:$0xff] %v397
    %v400 = vld [vmem:[#allocation2] sm:$0xff]
    %v401 = vld [vmem:[#allocation2 + $0x8] sm:$0xff]
    %404 = vrot.lane.b32.xlu0 %v400, 118
    %v405 = vpop.permute.xlu0 %404
    %406 = vrot.lane.b32.xlu0 %v401, 118
    %v407 = vpop.permute.xlu0 %406
    %vm408 = vcmask 965632
    %v409 = vsel %vm408, %v405, %v407
    %411 = vst [vmem:[#allocation3 + $0x30] sm:$0xff] %v409
    %v412 = vld [vmem:[#allocation2] sm:$0xff]
    %v413 = vld [vmem:[#allocation2 + $0x8] sm:$0xff]
    %416 = vrot.lane.b32.xlu0 %v412, 117
    %v417 = vpop.permute.xlu0 %416
    %418 = vrot.lane.b32.xlu0 %v413, 117
    %v419 = vpop.permute.xlu0 %418
    %vm420 = vcmask 957440
    %v421 = vsel %vm420, %v417, %v419
    %423 = vst [vmem:[#allocation3 + $0x38] sm:$0xff] %v421
    %v424 = vld [vmem:[#allocation2] sm:$0xff]
    %v425 = vld [vmem:[#allocation2 + $0x8] sm:$0xff]
    %428 = vrot.lane.b32.xlu0 %v424, 116
    %v429 = vpop.permute.xlu0 %428
    %430 = vrot.lane.b32.xlu0 %v425, 116
    %v431 = vpop.permute.xlu0 %430
    %vm432 = vcmask 949248
    %v433 = vsel %vm432, %v429, %v431
    %435 = vst [vmem:[#allocation3 + $0x40] sm:$0xff] %v433
    %v436 = vld [vmem:[#allocation19] sm:$0xf]
    %v437 = vld [vmem:[#allocation19 + $0x4] sm:$0xf]
    %v438 = vld [vmem:[#allocation19 + $0x8] sm:$0xf]
    %v439 = vld [vmem:[#allocation19 + $0xc] sm:$0xf]
    %v440 = vld [vmem:[#allocation3] sm:$0xff]
    %v441 = vld [vmem:[#allocation3 + $0x8] sm:$0xff]
    %v442 = vld [vmem:[#allocation3 + $0x10] sm:$0xff]
    %v443 = vld [vmem:[#allocation3 + $0x18] sm:$0xff]
    %v444 = vld [vmem:[#allocation3 + $0x20] sm:$0xff]
    %v445 = vld [vmem:[#allocation3 + $0x28] sm:$0xff]
    %v446 = vld [vmem:[#allocation3 + $0x30] sm:$0xff]
    %v447 = vld [vmem:[#allocation3 + $0x38] sm:$0xff]
    %v448 = vld [vmem:[#allocation3 + $0x40] sm:$0xff]
    %v449 = vpack.c.bf16 %v441, %v440
    %v450 = vpack.c.bf16 %v443, %v442
    %v451 = vpack.c.bf16 %v445, %v444
    %v452 = vpack.c.bf16 %v447, %v446
    %v453 = vpack.c.bf16 %v448, %v448
    %v458 = vunpack.c.l.b16 %v436
    %v459 = vunpack.c.l.b16 %v437
    %v460 = vunpack.c.l.b16 %v438
    %v461 = vunpack.c.l.b16 %v439
    %v462 = vpack.c.b16 %v459, %v458
    %v463 = vpack.c.b16 %v461, %v460
    %vm464 = vcmask 588800
    %v466 = vsel %vm464, %v462, 0
    %v469 = vsel %vm464, %v463, 0
    %vm471 = vcmask 1043456
    %v473 = vsel %vm471, %v453, 0
    %475 = vmatprep.subr.bf16.mxu0 0
    %476 = vmatpush1.bf16.msra.mxu0 %v449
    %477 = vmatprep.subr.bf16.mxu0 0
    %478 = vmatpush1.bf16.msra.mxu0 %v450
    %479 = vmatprep.subr.bf16.mxu0 0
    %480 = vmatpush1.bf16.msra.mxu0 %v451
    %481 = vmatprep.subr.bf16.mxu0 0
    %482 = vmatpush1.bf16.msra.mxu0 %v452
    %483 = vmatprep.subr.bf16.mxu0 0
    %484 = vmatpush1.bf16.msra.mxu0 %v473
    %485 = vmatprep.subr.bf16.mxu0 0
    %486 = vmatpush1.bf16.msra.mxu0 0
    %487 = vmatprep.subr.bf16.mxu0 0
    %488 = vmatpush1.bf16.msra.mxu0 0
    %489 = vmatprep.subr.bf16.mxu0 0
    %490 = vmatpush1.bf16.msra.mxu0 0
    %491 = vmatprep.subr.bf16.mxu0 0
    %492 = vmatpush1.bf16.msra.mxu0 0
    %493 = vmatprep.subr.bf16.mxu0 0
    %494 = vmatpush1.bf16.msra.mxu0 0
    %495 = vmatprep.subr.bf16.mxu0 0
    %496 = vmatpush1.bf16.msra.mxu0 0
    %497 = vmatprep.subr.bf16.mxu0 0
    %498 = vmatpush1.bf16.msra.mxu0 0
    %499 = vmatprep.subr.bf16.mxu0 0
    %500 = vmatpush1.bf16.msra.mxu0 0
    %501 = vmatprep.subr.bf16.mxu0 0
    %502 = vmatpush1.bf16.msra.mxu0 0
    %503 = vmatprep.subr.bf16.mxu0 0
    %504 = vmatpush1.bf16.msra.mxu0 0
    %505 = vmatprep.subr.bf16.mxu0 0
    %506 = vmatpush1.bf16.msra.mxu0 0
    %507 = vmatprep.mubr.bf16.mxu0 0
    %508 = vmatmul.mubr.bf16.gmra.mrb[0].mxu0 %v466
    %v509 = vpop.f32.mrb[0].mxu0
    %v510 = vadd.f32 0.0, %v509
    %v511 = vpop.f32.mrb[0].mxu0
    %v512 = vpop.f32.mrb[0].mxu0
    %v513 = vadd.f32 0.0, %v512
    %v514 = vpop.f32.mrb[0].mxu0
    %515 = vmatprep.mubr.bf16.mxu0 0
    %516 = vmatmul.mubr.bf16.gmra.mrb[0].mxu0 %v469
    %v517 = vpop.f32.mrb[0].mxu0
    %v518 = vadd.f32 0.0, %v517
    %v519 = vpop.f32.mrb[0].mxu0
    %v520 = vpop.f32.mrb[0].mxu0
    %v521 = vadd.f32 0.0, %v520
    %v522 = vpop.f32.mrb[0].mxu0
    %523 = vdwg.mxu0
    %v524 = vld [vmem:[#allocation25] sm:$0x1]
    %v526 = vlaneseq
    %v527 = vshrl.u32 %v526, 7
    %v528 = vsub.s32 0, %v527
    %v529 = vrot.slane %v524, %v528
    %v531 = vmul.f32 %v510, %v529
    %v532 = vmul.f32 %v513, %v529
    %v533 = vmul.f32 %v518, %v529
    %v534 = vmul.f32 %v521, %v529
    %535 = vadd.xlane.f32.xlu0 %v531
    %v536 = vpop.xlane.xlu0 %535
    %537 = vadd.xlane.f32.xlu0 %v532
    %v538 = vpop.xlane.xlu0 %537
    %539 = vadd.xlane.f32.xlu0 %v533
    %v540 = vpop.xlane.xlu0 %539
    %541 = vadd.xlane.f32.xlu0 %v534
    %v542 = vpop.xlane.xlu0 %541
    %v543 = vmul.f32 %v536, 0.055555556
    %v544 = vmul.f32 %v538, 0.055555556
    %v545 = vmul.f32 %v540, 0.055555556
    %v546 = vmul.f32 %v542, 0.055555556
    %v547 = vmul.f32 %v531, %v510
    %v548 = vmul.f32 %v532, %v513
    %v549 = vmul.f32 %v533, %v518
    %v550 = vmul.f32 %v534, %v521
    %551 = vadd.xlane.f32.xlu0 %v547
    %v552 = vpop.xlane.xlu0 %551
    %553 = vadd.xlane.f32.xlu0 %v548
    %v554 = vpop.xlane.xlu0 %553
    %555 = vadd.xlane.f32.xlu0 %v549
    %v556 = vpop.xlane.xlu0 %555
    %557 = vadd.xlane.f32.xlu0 %v550
    %v558 = vpop.xlane.xlu0 %557
    %v559 = vmul.f32 %v552, 0.055555556
    %v560 = vmul.f32 %v554, 0.055555556
    %v561 = vmul.f32 %v556, 0.055555556
    %v562 = vmul.f32 %v558, 0.055555556
    %v563 = vmul.f32 %v543, %v543
    %v564 = vmul.f32 %v544, %v544
    %v565 = vmul.f32 %v545, %v545
    %v566 = vmul.f32 %v546, %v546
    %v567 = vsub.f32 %v559, %v563
    %v568 = vsub.f32 %v560, %v564
    %v569 = vsub.f32 %v561, %v565
    %v570 = vsub.f32 %v562, %v566
    %v571 = vmax.f32 %v567, 0.0
    %v572 = vmax.f32 %v568, 0.0
    %v573 = vmax.f32 %v569, 0.0
    %v574 = vmax.f32 %v570, 0.0
    %v575 = vsub.f32 %v510, %v543
    %v576 = vsub.f32 %v513, %v544
    %v577 = vsub.f32 %v518, %v545
    %v578 = vsub.f32 %v521, %v546
    %v579 = vadd.f32 %v571, 1e-05
    %v580 = vadd.f32 %v572, 1e-05
    %v581 = vadd.f32 %v573, 1e-05
    %v582 = vadd.f32 %v574, 1e-05
    %v583 = vrsqrt.pop %v579
    %v584 = vrsqrt.pop %v580
    %v585 = vrsqrt.pop %v581
    %v586 = vrsqrt.pop %v582
    %v587 = vmul.f32 %v575, %v583
    %v588 = vmul.f32 %v576, %v584
    %v589 = vmul.f32 %v577, %v585
    %v590 = vmul.f32 %v578, %v586
    %v591 = vmax.f32 %v587, 0.0
    %v592 = vmax.f32 %v588, 0.0
    %v593 = vmax.f32 %v589, 0.0
    %v594 = vmax.f32 %v590, 0.0
    %v595 = vpack.c.bf16 %v592, %v591
    %v596 = vpack.c.bf16 %v594, %v593
    %v597 = vld [vmem:[#allocation15] sm:$0xff]
    %v598 = vld [vmem:[#allocation15 + $0x8] sm:$0xf]
    %v599 = vld [vmem:[#allocation15 + $0xc] sm:$0xff]
    %v600 = vld [vmem:[#allocation15 + $0x14] sm:$0xf]
    %v601 = vld [vmem:[#allocation15 + $0x18] sm:$0xff]
    %v602 = vld [vmem:[#allocation15 + $0x20] sm:$0xf]
    %v603 = vld [vmem:[#allocation15 + $0x24] sm:$0xff]
    %v604 = vld [vmem:[#allocation15 + $0x2c] sm:$0xf]
    %v605 = vld [vmem:[#allocation15 + $0x30] sm:$0xff]
    %v606 = vld [vmem:[#allocation15 + $0x38] sm:$0xf]
    %v607 = vld [vmem:[#allocation15 + $0x3c] sm:$0xff]
    %v608 = vld [vmem:[#allocation15 + $0x44] sm:$0xf]
    %v609 = vld [vmem:[#allocation15 + $0x48] sm:$0xff]
    %v610 = vld [vmem:[#allocation15 + $0x50] sm:$0xf]
    %v611 = vld [vmem:[#allocation15 + $0x54] sm:$0xff]
    %v612 = vld [vmem:[#allocation15 + $0x5c] sm:$0xf]
    %v613 = vld [vmem:[#allocation15 + $0x60] sm:$0xff]
    %v614 = vld [vmem:[#allocation15 + $0x68] sm:$0xf]
    %v615 = vld [vmem:[#allocation15 + $0x6c] sm:$0xff]
    %v616 = vld [vmem:[#allocation15 + $0x74] sm:$0xf]
    %v617 = vld [vmem:[#allocation15 + $0x78] sm:$0xff]
    %v618 = vld [vmem:[#allocation15 + $0x80] sm:$0xf]
    %v619 = vld [vmem:[#allocation15 + $0x84] sm:$0xff]
    %v620 = vld [vmem:[#allocation15 + $0x8c] sm:$0xf]
    %v621 = vld [vmem:[#allocation15 + $0x90] sm:$0xff]
    %v622 = vld [vmem:[#allocation15 + $0x98] sm:$0xf]
    %v623 = vld [vmem:[#allocation15 + $0x9c] sm:$0xff]
    %v624 = vld [vmem:[#allocation15 + $0xa4] sm:$0xf]
    %v625 = vld [vmem:[#allocation15 + $0xa8] sm:$0xff]
    %v626 = vld [vmem:[#allocation15 + $0xb0] sm:$0xf]
    %v627 = vld [vmem:[#allocation15 + $0xb4] sm:$0xff]
    %v628 = vld [vmem:[#allocation15 + $0xbc] sm:$0xf]
    %v661 = vunpack.c.l.b16 %v597
    %v662 = vunpack.c.h.b16 %v597
    %v663 = vunpack.c.l.b16 %v598
    %v664 = vunpack.c.l.b16 %v599
    %v665 = vunpack.c.h.b16 %v599
    %v666 = vunpack.c.l.b16 %v600
    %v667 = vunpack.c.l.b16 %v601
    %v668 = vunpack.c.h.b16 %v601
    %v669 = vunpack.c.l.b16 %v602
    %v670 = vunpack.c.l.b16 %v603
    %v671 = vunpack.c.h.b16 %v603
    %v672 = vunpack.c.l.b16 %v604
    %v673 = vunpack.c.l.b16 %v605
    %v674 = vunpack.c.h.b16 %v605
    %v675 = vunpack.c.l.b16 %v606
    %v676 = vunpack.c.l.b16 %v607
    %v677 = vunpack.c.h.b16 %v607
    %v678 = vunpack.c.l.b16 %v608
    %v679 = vunpack.c.l.b16 %v609
    %v680 = vunpack.c.h.b16 %v609
    %v681 = vunpack.c.l.b16 %v610
    %v682 = vunpack.c.l.b16 %v611
    %v683 = vunpack.c.h.b16 %v611
    %v684 = vunpack.c.l.b16 %v612
    %v685 = vunpack.c.l.b16 %v613
    %v686 = vunpack.c.h.b16 %v613
    %v687 = vunpack.c.l.b16 %v614
    %v688 = vunpack.c.l.b16 %v615
    %v689 = vunpack.c.h.b16 %v615
    %v690 = vunpack.c.l.b16 %v616
    %v691 = vunpack.c.l.b16 %v617
    %v692 = vunpack.c.h.b16 %v617
    %v693 = vunpack.c.l.b16 %v618
    %v694 = vunpack.c.l.b16 %v619
    %v695 = vunpack.c.h.b16 %v619
    %v696 = vunpack.c.l.b16 %v620
    %v697 = vunpack.c.l.b16 %v621
    %v698 = vunpack.c.h.b16 %v621
    %v699 = vunpack.c.l.b16 %v622
    %v700 = vunpack.c.l.b16 %v623
    %v701 = vunpack.c.h.b16 %v623
    %v702 = vunpack.c.l.b16 %v624
    %v703 = vunpack.c.l.b16 %v625
    %v704 = vunpack.c.h.b16 %v625
    %v705 = vunpack.c.l.b16 %v626
    %v706 = vunpack.c.l.b16 %v627
    %v707 = vunpack.c.h.b16 %v627
    %v708 = vunpack.c.l.b16 %v628
    %v709 = vpack.c.b16 %v664, %v661
    %v710 = vpack.c.b16 %v665, %v662
    %v711 = vpack.c.b16 %v666, %v663
    %v712 = vpack.c.b16 %v670, %v667
    %v713 = vpack.c.b16 %v671, %v668
    %v714 = vpack.c.b16 %v672, %v669
    %v715 = vpack.c.b16 %v676, %v673
    %v716 = vpack.c.b16 %v677, %v674
    %v717 = vpack.c.b16 %v678, %v675
    %v718 = vpack.c.b16 %v682, %v679
    %v719 = vpack.c.b16 %v683, %v680
    %v720 = vpack.c.b16 %v684, %v681
    %v721 = vpack.c.b16 %v688, %v685
    %v722 = vpack.c.b16 %v689, %v686
    %v723 = vpack.c.b16 %v690, %v687
    %v724 = vpack.c.b16 %v694, %v691
    %v725 = vpack.c.b16 %v695, %v692
    %v726 = vpack.c.b16 %v696, %v693
    %v727 = vpack.c.b16 %v700, %v697
    %v728 = vpack.c.b16 %v701, %v698
    %v729 = vpack.c.b16 %v702, %v699
    %v730 = vpack.c.b16 %v706, %v703
    %v731 = vpack.c.b16 %v707, %v704
    %v732 = vpack.c.b16 %v708, %v705
    %757 = vmatprep.subr.bf16.mxu0 %v710
    %758 = vmatpush1.bf16.msra.mxu0 %v709
    %759 = vmatprep.subr.bf16.mxu0 %v713
    %760 = vmatpush1.bf16.msra.mxu0 %v712
    %761 = vmatprep.subr.bf16.mxu0 %v716
    %762 = vmatpush1.bf16.msra.mxu0 %v715
    %763 = vmatprep.subr.bf16.mxu0 %v719
    %764 = vmatpush1.bf16.msra.mxu0 %v718
    %765 = vmatprep.subr.bf16.mxu0 %v722
    %766 = vmatpush1.bf16.msra.mxu0 %v721
    %767 = vmatprep.subr.bf16.mxu0 %v725
    %768 = vmatpush1.bf16.msra.mxu0 %v724
    %769 = vmatprep.subr.bf16.mxu0 %v728
    %770 = vmatpush1.bf16.msra.mxu0 %v727
    %771 = vmatprep.subr.bf16.mxu0 %v731
    %772 = vmatpush1.bf16.msra.mxu0 %v730
    %773 = vmatprep.subr.bf16.mxu0 0
    %774 = vmatpush1.bf16.msra.mxu0 0
    %775 = vmatprep.subr.bf16.mxu0 0
    %776 = vmatpush1.bf16.msra.mxu0 0
    %777 = vmatprep.subr.bf16.mxu0 0
    %778 = vmatpush1.bf16.msra.mxu0 0
    %779 = vmatprep.subr.bf16.mxu0 0
    %780 = vmatpush1.bf16.msra.mxu0 0
    %781 = vmatprep.subr.bf16.mxu0 0
    %782 = vmatpush1.bf16.msra.mxu0 0
    %783 = vmatprep.subr.bf16.mxu0 0
    %784 = vmatpush1.bf16.msra.mxu0 0
    %785 = vmatprep.subr.bf16.mxu0 0
    %786 = vmatpush1.bf16.msra.mxu0 0
    %787 = vmatprep.subr.bf16.mxu0 0
    %788 = vmatpush1.bf16.msra.mxu0 0
    %789 = vmatprep.mubr.bf16.mxu0 0
    %790 = vmatmul.mubr.bf16.gmra.mrb[0].mxu0 %v595
    %v791 = vpop.f32.mrb[0].mxu0
    %v792 = vadd.f32 0.0, %v791
    %v793 = vpop.f32.mrb[0].mxu0
    %v794 = vadd.f32 0.0, %v793
    %v795 = vpop.f32.mrb[0].mxu0
    %v796 = vadd.f32 0.0, %v795
    %v797 = vpop.f32.mrb[0].mxu0
    %v798 = vadd.f32 0.0, %v797
    %799 = vmatprep.mubr.bf16.mxu0 0
    %800 = vmatmul.mubr.bf16.gmra.mrb[0].mxu0 %v596
    %v801 = vpop.f32.mrb[0].mxu0
    %v802 = vadd.f32 0.0, %v801
    %v803 = vpop.f32.mrb[0].mxu0
    %v804 = vadd.f32 0.0, %v803
    %v805 = vpop.f32.mrb[0].mxu0
    %v806 = vadd.f32 0.0, %v805
    %v807 = vpop.f32.mrb[0].mxu0
    %v808 = vadd.f32 0.0, %v807
    %809 = vdwg.mxu0
    %810 = vmatprep.subr.bf16.mxu0 0
    %811 = vmatpush1.bf16.msra.mxu0 %v711
    %812 = vmatprep.subr.bf16.mxu0 0
    %813 = vmatpush1.bf16.msra.mxu0 %v714
    %814 = vmatprep.subr.bf16.mxu0 0
    %815 = vmatpush1.bf16.msra.mxu0 %v717
    %816 = vmatprep.subr.bf16.mxu0 0
    %817 = vmatpush1.bf16.msra.mxu0 %v720
    %818 = vmatprep.subr.bf16.mxu0 0
    %819 = vmatpush1.bf16.msra.mxu0 %v723
    %820 = vmatprep.subr.bf16.mxu0 0
    %821 = vmatpush1.bf16.msra.mxu0 %v726
    %822 = vmatprep.subr.bf16.mxu0 0
    %823 = vmatpush1.bf16.msra.mxu0 %v729
    %824 = vmatprep.subr.bf16.mxu0 0
    %825 = vmatpush1.bf16.msra.mxu0 %v732
    %826 = vmatprep.subr.bf16.mxu0 0
    %827 = vmatpush1.bf16.msra.mxu0 0
    %828 = vmatprep.subr.bf16.mxu0 0
    %829 = vmatpush1.bf16.msra.mxu0 0
    %830 = vmatprep.subr.bf16.mxu0 0
    %831 = vmatpush1.bf16.msra.mxu0 0
    %832 = vmatprep.subr.bf16.mxu0 0
    %833 = vmatpush1.bf16.msra.mxu0 0
    %834 = vmatprep.subr.bf16.mxu0 0
    %835 = vmatpush1.bf16.msra.mxu0 0
    %836 = vmatprep.subr.bf16.mxu0 0
    %837 = vmatpush1.bf16.msra.mxu0 0
    %838 = vmatprep.subr.bf16.mxu0 0
    %839 = vmatpush1.bf16.msra.mxu0 0
    %840 = vmatprep.subr.bf16.mxu0 0
    %841 = vmatpush1.bf16.msra.mxu0 0
    %842 = vmatprep.mubr.bf16.mxu0 0
    %843 = vmatmul.mubr.bf16.gmra.mrb[0].mxu0 %v595
    %v844 = vpop.f32.mrb[0].mxu0
    %v845 = vadd.f32 0.0, %v844
    %v846 = vpop.f32.mrb[0].mxu0
    %v847 = vpop.f32.mrb[0].mxu0
    %v848 = vadd.f32 0.0, %v847
    %v849 = vpop.f32.mrb[0].mxu0
    %850 = vmatprep.mubr.bf16.mxu0 0
    %851 = vmatmul.mubr.bf16.gmra.mrb[0].mxu0 %v596
    %v852 = vpop.f32.mrb[0].mxu0
    %v853 = vadd.f32 0.0, %v852
    %v854 = vpop.f32.mrb[0].mxu0
    %v855 = vpop.f32.mrb[0].mxu0
    %v856 = vadd.f32 0.0, %v855
    %v857 = vpop.f32.mrb[0].mxu0
    %858 = vdwg.mxu0
    %859 = vst [vmem:[#allocation4] sm:$0xff] %v792
    %860 = vst [vmem:[#allocation4 + $0x8] sm:$0xff] %v794
    %861 = vst [vmem:[#allocation4 + $0x10] sm:$0xff] %v845
    %862 = vst [vmem:[#allocation4 + $0x18] sm:$0xff] %v796
    %863 = vst [vmem:[#allocation4 + $0x20] sm:$0xff] %v798
    %864 = vst [vmem:[#allocation4 + $0x28] sm:$0xff] %v848
    %865 = vst [vmem:[#allocation4 + $0x30] sm:$0xff] %v802
    %866 = vst [vmem:[#allocation4 + $0x38] sm:$0xff] %v804
    %867 = vst [vmem:[#allocation4 + $0x40] sm:$0xff] %v853
    %868 = vst [vmem:[#allocation4 + $0x48] sm:$0xff] %v806
    %869 = vst [vmem:[#allocation4 + $0x50] sm:$0xff] %v808
    %870 = vst [vmem:[#allocation4 + $0x58] sm:$0xff] %v856
    %v871 = vld [vmem:[#allocation4] sm:$0xff]
    %v872 = vld [vmem:[#allocation4 + $0x8] sm:$0xff]
    %v873 = vld [vmem:[#allocation4 + $0x18] sm:$0xff]
    %v874 = vld [vmem:[#allocation4 + $0x20] sm:$0xff]
    %v875 = vld [vmem:[#allocation4 + $0x30] sm:$0xff]
    %v876 = vld [vmem:[#allocation4 + $0x38] sm:$0xff]
    %v877 = vld [vmem:[#allocation4 + $0x48] sm:$0xff]
    %v878 = vld [vmem:[#allocation4 + $0x50] sm:$0xff]
    %879 = vst [vmem:[#allocation5] sm:$0xff] %v871
    %880 = vst [vmem:[#allocation5 + $0x8] sm:$0xff] %v872
    %881 = vst [vmem:[#allocation5 + $0x10] sm:$0xff] %v873
    %882 = vst [vmem:[#allocation5 + $0x18] sm:$0xff] %v874
    %883 = vst [vmem:[#allocation5 + $0x20] sm:$0xff] %v875
    %884 = vst [vmem:[#allocation5 + $0x28] sm:$0xff] %v876
    %885 = vst [vmem:[#allocation5 + $0x30] sm:$0xff] %v877
    %886 = vst [vmem:[#allocation5 + $0x38] sm:$0xff] %v878
    %v887 = vld [vmem:[#allocation4] sm:$0xff]
    %v888 = vld [vmem:[#allocation4 + $0x8] sm:$0xff]
    %v889 = vld [vmem:[#allocation4 + $0x10] sm:$0xff]
    %v890 = vld [vmem:[#allocation4 + $0x18] sm:$0xff]
    %v891 = vld [vmem:[#allocation4 + $0x20] sm:$0xff]
    %v892 = vld [vmem:[#allocation4 + $0x28] sm:$0xff]
    %v893 = vld [vmem:[#allocation4 + $0x30] sm:$0xff]
    %v894 = vld [vmem:[#allocation4 + $0x38] sm:$0xff]
    %v895 = vld [vmem:[#allocation4 + $0x40] sm:$0xff]
    %v896 = vld [vmem:[#allocation4 + $0x48] sm:$0xff]
    %v897 = vld [vmem:[#allocation4 + $0x50] sm:$0xff]
    %v898 = vld [vmem:[#allocation4 + $0x58] sm:$0xff]
    %911 = vrot.lane.b32.xlu0 %v887, 127
    %v912 = vpop.permute.xlu0 %911
    %913 = vrot.lane.b32.xlu0 %v888, 127
    %v914 = vpop.permute.xlu0 %913
    %915 = vrot.lane.b32.xlu0 %v889, 127
    %v916 = vpop.permute.xlu0 %915
    %917 = vrot.lane.b32.xlu0 %v890, 127
    %v918 = vpop.permute.xlu0 %917
    %919 = vrot.lane.b32.xlu0 %v891, 127
    %v920 = vpop.permute.xlu0 %919
    %921 = vrot.lane.b32.xlu0 %v892, 127
    %v922 = vpop.permute.xlu0 %921
    %923 = vrot.lane.b32.xlu0 %v893, 127
    %v924 = vpop.permute.xlu0 %923
    %925 = vrot.lane.b32.xlu0 %v894, 127
    %v926 = vpop.permute.xlu0 %925
    %927 = vrot.lane.b32.xlu0 %v895, 127
    %v928 = vpop.permute.xlu0 %927
    %929 = vrot.lane.b32.xlu0 %v896, 127
    %v930 = vpop.permute.xlu0 %929
    %931 = vrot.lane.b32.xlu0 %v897, 127
    %v932 = vpop.permute.xlu0 %931
    %933 = vrot.lane.b32.xlu0 %v898, 127
    %v934 = vpop.permute.xlu0 %933
    %v935 = vsel %vm348, %v912, %v914
    %v936 = vsel %vm348, %v914, %v916
    %v937 = vsel %vm348, %v918, %v920
    %v938 = vsel %vm348, %v920, %v922
    %v939 = vsel %vm348, %v924, %v926
    %v940 = vsel %vm348, %v926, %v928
    %v941 = vsel %vm348, %v930, %v932
    %v942 = vsel %vm348, %v932, %v934
    %951 = vst [vmem:[#allocation5 + $0x40] sm:$0xff] %v935
    %952 = vst [vmem:[#allocation5 + $0x48] sm:$0xff] %v936
    %953 = vst [vmem:[#allocation5 + $0x50] sm:$0xff] %v937
    %954 = vst [vmem:[#allocation5 + $0x58] sm:$0xff] %v938
    %955 = vst [vmem:[#allocation5 + $0x60] sm:$0xff] %v939
    %956 = vst [vmem:[#allocation5 + $0x68] sm:$0xff] %v940
    %957 = vst [vmem:[#allocation5 + $0x70] sm:$0xff] %v941
    %958 = vst [vmem:[#allocation5 + $0x78] sm:$0xff] %v942
    %v959 = vld [vmem:[#allocation4] sm:$0xff]
    %v960 = vld [vmem:[#allocation4 + $0x8] sm:$0xff]
    %v961 = vld [vmem:[#allocation4 + $0x10] sm:$0xff]
    %v962 = vld [vmem:[#allocation4 + $0x18] sm:$0xff]
    %v963 = vld [vmem:[#allocation4 + $0x20] sm:$0xff]
    %v964 = vld [vmem:[#allocation4 + $0x28] sm:$0xff]
    %v965 = vld [vmem:[#allocation4 + $0x30] sm:$0xff]
    %v966 = vld [vmem:[#allocation4 + $0x38] sm:$0xff]
    %v967 = vld [vmem:[#allocation4 + $0x40] sm:$0xff]
    %v968 = vld [vmem:[#allocation4 + $0x48] sm:$0xff]
    %v969 = vld [vmem:[#allocation4 + $0x50] sm:$0xff]
    %v970 = vld [vmem:[#allocation4 + $0x58] sm:$0xff]
    %983 = vrot.lane.b32.xlu0 %v959, 126
    %v984 = vpop.permute.xlu0 %983
    %985 = vrot.lane.b32.xlu0 %v960, 126
    %v986 = vpop.permute.xlu0 %985
    %987 = vrot.lane.b32.xlu0 %v961, 126
    %v988 = vpop.permute.xlu0 %987
    %989 = vrot.lane.b32.xlu0 %v962, 126
    %v990 = vpop.permute.xlu0 %989
    %991 = vrot.lane.b32.xlu0 %v963, 126
    %v992 = vpop.permute.xlu0 %991
    %993 = vrot.lane.b32.xlu0 %v964, 126
    %v994 = vpop.permute.xlu0 %993
    %995 = vrot.lane.b32.xlu0 %v965, 126
    %v996 = vpop.permute.xlu0 %995
    %997 = vrot.lane.b32.xlu0 %v966, 126
    %v998 = vpop.permute.xlu0 %997
    %999 = vrot.lane.b32.xlu0 %v967, 126
    %v1000 = vpop.permute.xlu0 %999
    %1001 = vrot.lane.b32.xlu0 %v968, 126
    %v1002 = vpop.permute.xlu0 %1001
    %1003 = vrot.lane.b32.xlu0 %v969, 126
    %v1004 = vpop.permute.xlu0 %1003
    %1005 = vrot.lane.b32.xlu0 %v970, 126
    %v1006 = vpop.permute.xlu0 %1005
    %v1007 = vsel %vm360, %v984, %v986
    %v1008 = vsel %vm360, %v986, %v988
    %v1009 = vsel %vm360, %v990, %v992
    %v1010 = vsel %vm360, %v992, %v994
    %v1011 = vsel %vm360, %v996, %v998
    %v1012 = vsel %vm360, %v998, %v1000
    %v1013 = vsel %vm360, %v1002, %v1004
    %v1014 = vsel %vm360, %v1004, %v1006
    %1023 = vst [vmem:[#allocation5 + $0x80] sm:$0xff] %v1007
    %1024 = vst [vmem:[#allocation5 + $0x88] sm:$0xff] %v1008
    %1025 = vst [vmem:[#allocation5 + $0x90] sm:$0xff] %v1009
    %1026 = vst [vmem:[#allocation5 + $0x98] sm:$0xff] %v1010
    %1027 = vst [vmem:[#allocation5 + $0xa0] sm:$0xff] %v1011
    %1028 = vst [vmem:[#allocation5 + $0xa8] sm:$0xff] %v1012
    %1029 = vst [vmem:[#allocation5 + $0xb0] sm:$0xff] %v1013
    %1030 = vst [vmem:[#allocation5 + $0xb8] sm:$0xff] %v1014
    %v1031 = vld [vmem:[#allocation4] sm:$0xff]
    %v1032 = vld [vmem:[#allocation4 + $0x8] sm:$0xff]
    %v1033 = vld [vmem:[#allocation4 + $0x10] sm:$0xff]
    %v1034 = vld [vmem:[#allocation4 + $0x18] sm:$0xff]
    %v1035 = vld [vmem:[#allocation4 + $0x20] sm:$0xff]
    %v1036 = vld [vmem:[#allocation4 + $0x28] sm:$0xff]
    %v1037 = vld [vmem:[#allocation4 + $0x30] sm:$0xff]
    %v1038 = vld [vmem:[#allocation4 + $0x38] sm:$0xff]
    %v1039 = vld [vmem:[#allocation4 + $0x40] sm:$0xff]
    %v1040 = vld [vmem:[#allocation4 + $0x48] sm:$0xff]
    %v1041 = vld [vmem:[#allocation4 + $0x50] sm:$0xff]
    %v1042 = vld [vmem:[#allocation4 + $0x58] sm:$0xff]
    %1055 = vrot.lane.b32.xlu0 %v1031, 125
    %v1056 = vpop.permute.xlu0 %1055
    %1057 = vrot.lane.b32.xlu0 %v1032, 125
    %v1058 = vpop.permute.xlu0 %1057
    %1059 = vrot.lane.b32.xlu0 %v1033, 125
    %v1060 = vpop.permute.xlu0 %1059
    %1061 = vrot.lane.b32.xlu0 %v1034, 125
    %v1062 = vpop.permute.xlu0 %1061
    %1063 = vrot.lane.b32.xlu0 %v1035, 125
    %v1064 = vpop.permute.xlu0 %1063
    %1065 = vrot.lane.b32.xlu0 %v1036, 125
    %v1066 = vpop.permute.xlu0 %1065
    %1067 = vrot.lane.b32.xlu0 %v1037, 125
    %v1068 = vpop.permute.xlu0 %1067
    %1069 = vrot.lane.b32.xlu0 %v1038, 125
    %v1070 = vpop.permute.xlu0 %1069
    %1071 = vrot.lane.b32.xlu0 %v1039, 125
    %v1072 = vpop.permute.xlu0 %1071
    %1073 = vrot.lane.b32.xlu0 %v1040, 125
    %v1074 = vpop.permute.xlu0 %1073
    %1075 = vrot.lane.b32.xlu0 %v1041, 125
    %v1076 = vpop.permute.xlu0 %1075
    %1077 = vrot.lane.b32.xlu0 %v1042, 125
    %v1078 = vpop.permute.xlu0 %1077
    %vm1079 = vcmask 1022976
    %v1080 = vsel %vm1079, %v1056, %v1058
    %v1081 = vsel %vm1079, %v1058, %v1060
    %v1082 = vsel %vm1079, %v1062, %v1064
    %v1083 = vsel %vm1079, %v1064, %v1066
    %v1084 = vsel %vm1079, %v1068, %v1070
    %v1085 = vsel %vm1079, %v1070, %v1072
    %v1086 = vsel %vm1079, %v1074, %v1076
    %v1087 = vsel %vm1079, %v1076, %v1078
    %1096 = vst [vmem:[#allocation5 + $0xc0] sm:$0xff] %v1080
    %1097 = vst [vmem:[#allocation5 + $0xc8] sm:$0xff] %v1081
    %1098 = vst [vmem:[#allocation5 + $0xd0] sm:$0xff] %v1082
    %1099 = vst [vmem:[#allocation5 + $0xd8] sm:$0xff] %v1083
    %1100 = vst [vmem:[#allocation5 + $0xe0] sm:$0xff] %v1084
    %1101 = vst [vmem:[#allocation5 + $0xe8] sm:$0xff] %v1085
    %1102 = vst [vmem:[#allocation5 + $0xf0] sm:$0xff] %v1086
    %1103 = vst [vmem:[#allocation5 + $0xf8] sm:$0xff] %v1087
    %v1104 = vld [vmem:[#allocation4] sm:$0xff]
    %v1105 = vld [vmem:[#allocation4 + $0x8] sm:$0xff]
    %v1106 = vld [vmem:[#allocation4 + $0x10] sm:$0xff]
    %v1107 = vld [vmem:[#allocation4 + $0x18] sm:$0xff]
    %v1108 = vld [vmem:[#allocation4 + $0x20] sm:$0xff]
    %v1109 = vld [vmem:[#allocation4 + $0x28] sm:$0xff]
    %v1110 = vld [vmem:[#allocation4 + $0x30] sm:$0xff]
    %v1111 = vld [vmem:[#allocation4 + $0x38] sm:$0xff]
    %v1112 = vld [vmem:[#allocation4 + $0x40] sm:$0xff]
    %v1113 = vld [vmem:[#allocation4 + $0x48] sm:$0xff]
    %v1114 = vld [vmem:[#allocation4 + $0x50] sm:$0xff]
    %v1115 = vld [vmem:[#allocation4 + $0x58] sm:$0xff]
    %1128 = vrot.lane.b32.xlu0 %v1104, 119
    %v1129 = vpop.permute.xlu0 %1128
    %1130 = vrot.lane.b32.xlu0 %v1105, 119
    %v1131 = vpop.permute.xlu0 %1130
    %1132 = vrot.lane.b32.xlu0 %v1106, 119
    %v1133 = vpop.permute.xlu0 %1132
    %1134 = vrot.lane.b32.xlu0 %v1107, 119
    %v1135 = vpop.permute.xlu0 %1134
    %1136 = vrot.lane.b32.xlu0 %v1108, 119
    %v1137 = vpop.permute.xlu0 %1136
    %1138 = vrot.lane.b32.xlu0 %v1109, 119
    %v1139 = vpop.permute.xlu0 %1138
    %1140 = vrot.lane.b32.xlu0 %v1110, 119
    %v1141 = vpop.permute.xlu0 %1140
    %1142 = vrot.lane.b32.xlu0 %v1111, 119
    %v1143 = vpop.permute.xlu0 %1142
    %1144 = vrot.lane.b32.xlu0 %v1112, 119
    %v1145 = vpop.permute.xlu0 %1144
    %1146 = vrot.lane.b32.xlu0 %v1113, 119
    %v1147 = vpop.permute.xlu0 %1146
    %1148 = vrot.lane.b32.xlu0 %v1114, 119
    %v1149 = vpop.permute.xlu0 %1148
    %1150 = vrot.lane.b32.xlu0 %v1115, 119
    %v1151 = vpop.permute.xlu0 %1150
    %vm1152 = vcmask 973824
    %v1153 = vsel %vm1152, %v1129, %v1131
    %v1154 = vsel %vm1152, %v1131, %v1133
    %v1155 = vsel %vm1152, %v1135, %v1137
    %v1156 = vsel %vm1152, %v1137, %v1139
    %v1157 = vsel %vm1152, %v1141, %v1143
    %v1158 = vsel %vm1152, %v1143, %v1145
    %v1159 = vsel %vm1152, %v1147, %v1149
    %v1160 = vsel %vm1152, %v1149, %v1151
    %1169 = vst [vmem:[#allocation5 + $0x100] sm:$0xff] %v1153
    %1170 = vst [vmem:[#allocation5 + $0x108] sm:$0xff] %v1154
    %1171 = vst [vmem:[#allocation5 + $0x110] sm:$0xff] %v1155
    %1172 = vst [vmem:[#allocation5 + $0x118] sm:$0xff] %v1156
    %1173 = vst [vmem:[#allocation5 + $0x120] sm:$0xff] %v1157
    %1174 = vst [vmem:[#allocation5 + $0x128] sm:$0xff] %v1158
    %1175 = vst [vmem:[#allocation5 + $0x130] sm:$0xff] %v1159
    %1176 = vst [vmem:[#allocation5 + $0x138] sm:$0xff] %v1160
    %v1177 = vld [vmem:[#allocation4] sm:$0xff]
    %v1178 = vld [vmem:[#allocation4 + $0x8] sm:$0xff]
    %v1179 = vld [vmem:[#allocation4 + $0x10] sm:$0xff]
    %v1180 = vld [vmem:[#allocation4 + $0x18] sm:$0xff]
    %v1181 = vld [vmem:[#allocation4 + $0x20] sm:$0xff]
    %v1182 = vld [vmem:[#allocation4 + $0x28] sm:$0xff]
    %v1183 = vld [vmem:[#allocation4 + $0x30] sm:$0xff]
    %v1184 = vld [vmem:[#allocation4 + $0x38] sm:$0xff]
    %v1185 = vld [vmem:[#allocation4 + $0x40] sm:$0xff]
    %v1186 = vld [vmem:[#allocation4 + $0x48] sm:$0xff]
    %v1187 = vld [vmem:[#allocation4 + $0x50] sm:$0xff]
    %v1188 = vld [vmem:[#allocation4 + $0x58] sm:$0xff]
    %1201 = vrot.lane.b32.xlu0 %v1177, 118
    %v1202 = vpop.permute.xlu0 %1201
    %1203 = vrot.lane.b32.xlu0 %v1178, 118
    %v1204 = vpop.permute.xlu0 %1203
    %1205 = vrot.lane.b32.xlu0 %v1179, 118
    %v1206 = vpop.permute.xlu0 %1205
    %1207 = vrot.lane.b32.xlu0 %v1180, 118
    %v1208 = vpop.permute.xlu0 %1207
    %1209 = vrot.lane.b32.xlu0 %v1181, 118
    %v1210 = vpop.permute.xlu0 %1209
    %1211 = vrot.lane.b32.xlu0 %v1182, 118
    %v1212 = vpop.permute.xlu0 %1211
    %1213 = vrot.lane.b32.xlu0 %v1183, 118
    %v1214 = vpop.permute.xlu0 %1213
    %1215 = vrot.lane.b32.xlu0 %v1184, 118
    %v1216 = vpop.permute.xlu0 %1215
    %1217 = vrot.lane.b32.xlu0 %v1185, 118
    %v1218 = vpop.permute.xlu0 %1217
    %1219 = vrot.lane.b32.xlu0 %v1186, 118
    %v1220 = vpop.permute.xlu0 %1219
    %1221 = vrot.lane.b32.xlu0 %v1187, 118
    %v1222 = vpop.permute.xlu0 %1221
    %1223 = vrot.lane.b32.xlu0 %v1188, 118
    %v1224 = vpop.permute.xlu0 %1223
    %v1225 = vsel %vm408, %v1202, %v1204
    %v1226 = vsel %vm408, %v1204, %v1206
    %v1227 = vsel %vm408, %v1208, %v1210
    %v1228 = vsel %vm408, %v1210, %v1212
    %v1229 = vsel %vm408, %v1214, %v1216
    %v1230 = vsel %vm408, %v1216, %v1218
    %v1231 = vsel %vm408, %v1220, %v1222
    %v1232 = vsel %vm408, %v1222, %v1224
    %1241 = vst [vmem:[#allocation5 + $0x140] sm:$0xff] %v1225
    %1242 = vst [vmem:[#allocation5 + $0x148] sm:$0xff] %v1226
    %1243 = vst [vmem:[#allocation5 + $0x150] sm:$0xff] %v1227
    %1244 = vst [vmem:[#allocation5 + $0x158] sm:$0xff] %v1228
    %1245 = vst [vmem:[#allocation5 + $0x160] sm:$0xff] %v1229
    %1246 = vst [vmem:[#allocation5 + $0x168] sm:$0xff] %v1230
    %1247 = vst [vmem:[#allocation5 + $0x170] sm:$0xff] %v1231
    %1248 = vst [vmem:[#allocation5 + $0x178] sm:$0xff] %v1232
    %v1249 = vld [vmem:[#allocation4] sm:$0xff]
    %v1250 = vld [vmem:[#allocation4 + $0x8] sm:$0xff]
    %v1251 = vld [vmem:[#allocation4 + $0x10] sm:$0xff]
    %v1252 = vld [vmem:[#allocation4 + $0x18] sm:$0xff]
    %v1253 = vld [vmem:[#allocation4 + $0x20] sm:$0xff]
    %v1254 = vld [vmem:[#allocation4 + $0x28] sm:$0xff]
    %v1255 = vld [vmem:[#allocation4 + $0x30] sm:$0xff]
    %v1256 = vld [vmem:[#allocation4 + $0x38] sm:$0xff]
    %v1257 = vld [vmem:[#allocation4 + $0x40] sm:$0xff]
    %v1258 = vld [vmem:[#allocation4 + $0x48] sm:$0xff]
    %v1259 = vld [vmem:[#allocation4 + $0x50] sm:$0xff]
    %v1260 = vld [vmem:[#allocation4 + $0x58] sm:$0xff]
    %1273 = vrot.lane.b32.xlu0 %v1249, 117
    %v1274 = vpop.permute.xlu0 %1273
    %1275 = vrot.lane.b32.xlu0 %v1250, 117
    %v1276 = vpop.permute.xlu0 %1275
    %1277 = vrot.lane.b32.xlu0 %v1251, 117
    %v1278 = vpop.permute.xlu0 %1277
    %1279 = vrot.lane.b32.xlu0 %v1252, 117
    %v1280 = vpop.permute.xlu0 %1279
    %1281 = vrot.lane.b32.xlu0 %v1253, 117
    %v1282 = vpop.permute.xlu0 %1281
    %1283 = vrot.lane.b32.xlu0 %v1254, 117
    %v1284 = vpop.permute.xlu0 %1283
    %1285 = vrot.lane.b32.xlu0 %v1255, 117
    %v1286 = vpop.permute.xlu0 %1285
    %1287 = vrot.lane.b32.xlu0 %v1256, 117
    %v1288 = vpop.permute.xlu0 %1287
    %1289 = vrot.lane.b32.xlu0 %v1257, 117
    %v1290 = vpop.permute.xlu0 %1289
    %1291 = vrot.lane.b32.xlu0 %v1258, 117
    %v1292 = vpop.permute.xlu0 %1291
    %1293 = vrot.lane.b32.xlu0 %v1259, 117
    %v1294 = vpop.permute.xlu0 %1293
    %1295 = vrot.lane.b32.xlu0 %v1260, 117
    %v1296 = vpop.permute.xlu0 %1295
    %v1297 = vsel %vm420, %v1274, %v1276
    %v1298 = vsel %vm420, %v1276, %v1278
    %v1299 = vsel %vm420, %v1280, %v1282
    %v1300 = vsel %vm420, %v1282, %v1284
    %v1301 = vsel %vm420, %v1286, %v1288
    %v1302 = vsel %vm420, %v1288, %v1290
    %v1303 = vsel %vm420, %v1292, %v1294
    %v1304 = vsel %vm420, %v1294, %v1296
    %1313 = vst [vmem:[#allocation5 + $0x180] sm:$0xff] %v1297
    %1314 = vst [vmem:[#allocation5 + $0x188] sm:$0xff] %v1298
    %1315 = vst [vmem:[#allocation5 + $0x190] sm:$0xff] %v1299
    %1316 = vst [vmem:[#allocation5 + $0x198] sm:$0xff] %v1300
    %1317 = vst [vmem:[#allocation5 + $0x1a0] sm:$0xff] %v1301
    %1318 = vst [vmem:[#allocation5 + $0x1a8] sm:$0xff] %v1302
    %1319 = vst [vmem:[#allocation5 + $0x1b0] sm:$0xff] %v1303
    %1320 = vst [vmem:[#allocation5 + $0x1b8] sm:$0xff] %v1304
    %v1321 = vld [vmem:[#allocation4] sm:$0xff]
    %v1322 = vld [vmem:[#allocation4 + $0x8] sm:$0xff]
    %v1323 = vld [vmem:[#allocation4 + $0x10] sm:$0xff]
    %v1324 = vld [vmem:[#allocation4 + $0x18] sm:$0xff]
    %v1325 = vld [vmem:[#allocation4 + $0x20] sm:$0xff]
    %v1326 = vld [vmem:[#allocation4 + $0x28] sm:$0xff]
    %v1327 = vld [vmem:[#allocation4 + $0x30] sm:$0xff]
    %v1328 = vld [vmem:[#allocation4 + $0x38] sm:$0xff]
    %v1329 = vld [vmem:[#allocation4 + $0x40] sm:$0xff]
    %v1330 = vld [vmem:[#allocation4 + $0x48] sm:$0xff]
    %v1331 = vld [vmem:[#allocation4 + $0x50] sm:$0xff]
    %v1332 = vld [vmem:[#allocation4 + $0x58] sm:$0xff]
    %1345 = vrot.lane.b32.xlu0 %v1321, 116
    %v1346 = vpop.permute.xlu0 %1345
    %1347 = vrot.lane.b32.xlu0 %v1322, 116
    %v1348 = vpop.permute.xlu0 %1347
    %1349 = vrot.lane.b32.xlu0 %v1323, 116
    %v1350 = vpop.permute.xlu0 %1349
    %1351 = vrot.lane.b32.xlu0 %v1324, 116
    %v1352 = vpop.permute.xlu0 %1351
    %1353 = vrot.lane.b32.xlu0 %v1325, 116
    %v1354 = vpop.permute.xlu0 %1353
    %1355 = vrot.lane.b32.xlu0 %v1326, 116
    %v1356 = vpop.permute.xlu0 %1355
    %1357 = vrot.lane.b32.xlu0 %v1327, 116
    %v1358 = vpop.permute.xlu0 %1357
    %1359 = vrot.lane.b32.xlu0 %v1328, 116
    %v1360 = vpop.permute.xlu0 %1359
    %1361 = vrot.lane.b32.xlu0 %v1329, 116
    %v1362 = vpop.permute.xlu0 %1361
    %1363 = vrot.lane.b32.xlu0 %v1330, 116
    %v1364 = vpop.permute.xlu0 %1363
    %1365 = vrot.lane.b32.xlu0 %v1331, 116
    %v1366 = vpop.permute.xlu0 %1365
    %1367 = vrot.lane.b32.xlu0 %v1332, 116
    %v1368 = vpop.permute.xlu0 %1367
    %v1369 = vsel %vm432, %v1346, %v1348
    %v1370 = vsel %vm432, %v1348, %v1350
    %v1371 = vsel %vm432, %v1352, %v1354
    %v1372 = vsel %vm432, %v1354, %v1356
    %v1373 = vsel %vm432, %v1358, %v1360
    %v1374 = vsel %vm432, %v1360, %v1362
    %v1375 = vsel %vm432, %v1364, %v1366
    %v1376 = vsel %vm432, %v1366, %v1368
    %1385 = vst [vmem:[#allocation5 + $0x1c0] sm:$0xff] %v1369
    %1386 = vst [vmem:[#allocation5 + $0x1c8] sm:$0xff] %v1370
    %1387 = vst [vmem:[#allocation5 + $0x1d0] sm:$0xff] %v1371
    %1388 = vst [vmem:[#allocation5 + $0x1d8] sm:$0xff] %v1372
    %1389 = vst [vmem:[#allocation5 + $0x1e0] sm:$0xff] %v1373
    %1390 = vst [vmem:[#allocation5 + $0x1e8] sm:$0xff] %v1374
    %1391 = vst [vmem:[#allocation5 + $0x1f0] sm:$0xff] %v1375
    %1392 = vst [vmem:[#allocation5 + $0x1f8] sm:$0xff] %v1376
    %v1393 = vld [vmem:[#allocation4] sm:$0xff]
    %v1394 = vld [vmem:[#allocation4 + $0x8] sm:$0xff]
    %v1395 = vld [vmem:[#allocation4 + $0x10] sm:$0xff]
    %v1396 = vld [vmem:[#allocation4 + $0x18] sm:$0xff]
    %v1397 = vld [vmem:[#allocation4 + $0x20] sm:$0xff]
    %v1398 = vld [vmem:[#allocation4 + $0x28] sm:$0xff]
    %v1399 = vld [vmem:[#allocation4 + $0x30] sm:$0xff]
    %v1400 = vld [vmem:[#allocation4 + $0x38] sm:$0xff]
    %v1401 = vld [vmem:[#allocation4 + $0x40] sm:$0xff]
    %v1402 = vld [vmem:[#allocation4 + $0x48] sm:$0xff]
    %v1403 = vld [vmem:[#allocation4 + $0x50] sm:$0xff]
    %v1404 = vld [vmem:[#allocation4 + $0x58] sm:$0xff]
    %1417 = vrot.lane.b32.xlu0 %v1393, 110
    %v1418 = vpop.permute.xlu0 %1417
    %1419 = vrot.lane.b32.xlu0 %v1394, 110
    %v1420 = vpop.permute.xlu0 %1419
    %1421 = vrot.lane.b32.xlu0 %v1395, 110
    %v1422 = vpop.permute.xlu0 %1421
    %1423 = vrot.lane.b32.xlu0 %v1396, 110
    %v1424 = vpop.permute.xlu0 %1423
    %1425 = vrot.lane.b32.xlu0 %v1397, 110
    %v1426 = vpop.permute.xlu0 %1425
    %1427 = vrot.lane.b32.xlu0 %v1398, 110
    %v1428 = vpop.permute.xlu0 %1427
    %1429 = vrot.lane.b32.xlu0 %v1399, 110
    %v1430 = vpop.permute.xlu0 %1429
    %1431 = vrot.lane.b32.xlu0 %v1400, 110
    %v1432 = vpop.permute.xlu0 %1431
    %1433 = vrot.lane.b32.xlu0 %v1401, 110
    %v1434 = vpop.permute.xlu0 %1433
    %1435 = vrot.lane.b32.xlu0 %v1402, 110
    %v1436 = vpop.permute.xlu0 %1435
    %1437 = vrot.lane.b32.xlu0 %v1403, 110
    %v1438 = vpop.permute.xlu0 %1437
    %1439 = vrot.lane.b32.xlu0 %v1404, 110
    %v1440 = vpop.permute.xlu0 %1439
    %vm1441 = vcmask 900096
    %v1442 = vsel %vm1441, %v1418, %v1420
    %v1443 = vsel %vm1441, %v1420, %v1422
    %v1444 = vsel %vm1441, %v1424, %v1426
    %v1445 = vsel %vm1441, %v1426, %v1428
    %v1446 = vsel %vm1441, %v1430, %v1432
    %v1447 = vsel %vm1441, %v1432, %v1434
    %v1448 = vsel %vm1441, %v1436, %v1438
    %v1449 = vsel %vm1441, %v1438, %v1440
    %1458 = vst [vmem:[#allocation5 + $0x200] sm:$0xff] %v1442
    %1459 = vst [vmem:[#allocation5 + $0x208] sm:$0xff] %v1443
    %1460 = vst [vmem:[#allocation5 + $0x210] sm:$0xff] %v1444
    %1461 = vst [vmem:[#allocation5 + $0x218] sm:$0xff] %v1445
    %1462 = vst [vmem:[#allocation5 + $0x220] sm:$0xff] %v1446
    %1463 = vst [vmem:[#allocation5 + $0x228] sm:$0xff] %v1447
    %1464 = vst [vmem:[#allocation5 + $0x230] sm:$0xff] %v1448
    %1465 = vst [vmem:[#allocation5 + $0x238] sm:$0xff] %v1449
    %v1466 = vld [vmem:[#allocation4] sm:$0xff]
    %v1467 = vld [vmem:[#allocation4 + $0x8] sm:$0xff]
    %v1468 = vld [vmem:[#allocation4 + $0x10] sm:$0xff]
    %v1469 = vld [vmem:[#allocation4 + $0x18] sm:$0xff]
    %v1470 = vld [vmem:[#allocation4 + $0x20] sm:$0xff]
    %v1471 = vld [vmem:[#allocation4 + $0x28] sm:$0xff]
    %v1472 = vld [vmem:[#allocation4 + $0x30] sm:$0xff]
    %v1473 = vld [vmem:[#allocation4 + $0x38] sm:$0xff]
    %v1474 = vld [vmem:[#allocation4 + $0x40] sm:$0xff]
    %v1475 = vld [vmem:[#allocation4 + $0x48] sm:$0xff]
    %v1476 = vld [vmem:[#allocation4 + $0x50] sm:$0xff]
    %v1477 = vld [vmem:[#allocation4 + $0x58] sm:$0xff]
    %1490 = vrot.lane.b32.xlu0 %v1466, 109
    %v1491 = vpop.permute.xlu0 %1490
    %1492 = vrot.lane.b32.xlu0 %v1467, 109
    %v1493 = vpop.permute.xlu0 %1492
    %1494 = vrot.lane.b32.xlu0 %v1468, 109
    %v1495 = vpop.permute.xlu0 %1494
    %1496 = vrot.lane.b32.xlu0 %v1469, 109
    %v1497 = vpop.permute.xlu0 %1496
    %1498 = vrot.lane.b32.xlu0 %v1470, 109
    %v1499 = vpop.permute.xlu0 %1498
    %1500 = vrot.lane.b32.xlu0 %v1471, 109
    %v1501 = vpop.permute.xlu0 %1500
    %1502 = vrot.lane.b32.xlu0 %v1472, 109
    %v1503 = vpop.permute.xlu0 %1502
    %1504 = vrot.lane.b32.xlu0 %v1473, 109
    %v1505 = vpop.permute.xlu0 %1504
    %1506 = vrot.lane.b32.xlu0 %v1474, 109
    %v1507 = vpop.permute.xlu0 %1506
    %1508 = vrot.lane.b32.xlu0 %v1475, 109
    %v1509 = vpop.permute.xlu0 %1508
    %1510 = vrot.lane.b32.xlu0 %v1476, 109
    %v1511 = vpop.permute.xlu0 %1510
    %1512 = vrot.lane.b32.xlu0 %v1477, 109
    %v1513 = vpop.permute.xlu0 %1512
    %vm1514 = vcmask 891904
    %v1515 = vsel %vm1514, %v1491, %v1493
    %v1516 = vsel %vm1514, %v1493, %v1495
    %v1517 = vsel %vm1514, %v1497, %v1499
    %v1518 = vsel %vm1514, %v1499, %v1501
    %v1519 = vsel %vm1514, %v1503, %v1505
    %v1520 = vsel %vm1514, %v1505, %v1507
    %v1521 = vsel %vm1514, %v1509, %v1511
    %v1522 = vsel %vm1514, %v1511, %v1513
    %1531 = vst [vmem:[#allocation5 + $0x240] sm:$0xff] %v1515
    %1532 = vst [vmem:[#allocation5 + $0x248] sm:$0xff] %v1516
    %1533 = vst [vmem:[#allocation5 + $0x250] sm:$0xff] %v1517
    %1534 = vst [vmem:[#allocation5 + $0x258] sm:$0xff] %v1518
    %1535 = vst [vmem:[#allocation5 + $0x260] sm:$0xff] %v1519
    %1536 = vst [vmem:[#allocation5 + $0x268] sm:$0xff] %v1520
    %1537 = vst [vmem:[#allocation5 + $0x270] sm:$0xff] %v1521
    %1538 = vst [vmem:[#allocation5 + $0x278] sm:$0xff] %v1522
    %v1539 = vld [vmem:[#allocation4] sm:$0xff]
    %v1540 = vld [vmem:[#allocation4 + $0x8] sm:$0xff]
    %v1541 = vld [vmem:[#allocation4 + $0x10] sm:$0xff]
    %v1542 = vld [vmem:[#allocation4 + $0x18] sm:$0xff]
    %v1543 = vld [vmem:[#allocation4 + $0x20] sm:$0xff]
    %v1544 = vld [vmem:[#allocation4 + $0x28] sm:$0xff]
    %v1545 = vld [vmem:[#allocation4 + $0x30] sm:$0xff]
    %v1546 = vld [vmem:[#allocation4 + $0x38] sm:$0xff]
    %v1547 = vld [vmem:[#allocation4 + $0x40] sm:$0xff]
    %v1548 = vld [vmem:[#allocation4 + $0x48] sm:$0xff]
    %v1549 = vld [vmem:[#allocation4 + $0x50] sm:$0xff]
    %v1550 = vld [vmem:[#allocation4 + $0x58] sm:$0xff]
    %1563 = vrot.lane.b32.xlu0 %v1539, 108
    %v1564 = vpop.permute.xlu0 %1563
    %1565 = vrot.lane.b32.xlu0 %v1540, 108
    %v1566 = vpop.permute.xlu0 %1565
    %1567 = vrot.lane.b32.xlu0 %v1541, 108
    %v1568 = vpop.permute.xlu0 %1567
    %1569 = vrot.lane.b32.xlu0 %v1542, 108
    %v1570 = vpop.permute.xlu0 %1569
    %1571 = vrot.lane.b32.xlu0 %v1543, 108
    %v1572 = vpop.permute.xlu0 %1571
    %1573 = vrot.lane.b32.xlu0 %v1544, 108
    %v1574 = vpop.permute.xlu0 %1573
    %1575 = vrot.lane.b32.xlu0 %v1545, 108
    %v1576 = vpop.permute.xlu0 %1575
    %1577 = vrot.lane.b32.xlu0 %v1546, 108
    %v1578 = vpop.permute.xlu0 %1577
    %1579 = vrot.lane.b32.xlu0 %v1547, 108
    %v1580 = vpop.permute.xlu0 %1579
    %1581 = vrot.lane.b32.xlu0 %v1548, 108
    %v1582 = vpop.permute.xlu0 %1581
    %1583 = vrot.lane.b32.xlu0 %v1549, 108
    %v1584 = vpop.permute.xlu0 %1583
    %1585 = vrot.lane.b32.xlu0 %v1550, 108
    %v1586 = vpop.permute.xlu0 %1585
    %vm1587 = vcmask 883712
    %v1588 = vsel %vm1587, %v1564, %v1566
    %v1589 = vsel %vm1587, %v1566, %v1568
    %v1590 = vsel %vm1587, %v1570, %v1572
    %v1591 = vsel %vm1587, %v1572, %v1574
    %v1592 = vsel %vm1587, %v1576, %v1578
    %v1593 = vsel %vm1587, %v1578, %v1580
    %v1594 = vsel %vm1587, %v1582, %v1584
    %v1595 = vsel %vm1587, %v1584, %v1586
    %1604 = vst [vmem:[#allocation5 + $0x280] sm:$0xff] %v1588
    %1605 = vst [vmem:[#allocation5 + $0x288] sm:$0xff] %v1589
    %1606 = vst [vmem:[#allocation5 + $0x290] sm:$0xff] %v1590
    %1607 = vst [vmem:[#allocation5 + $0x298] sm:$0xff] %v1591
    %1608 = vst [vmem:[#allocation5 + $0x2a0] sm:$0xff] %v1592
    %1609 = vst [vmem:[#allocation5 + $0x2a8] sm:$0xff] %v1593
    %1610 = vst [vmem:[#allocation5 + $0x2b0] sm:$0xff] %v1594
    %1611 = vst [vmem:[#allocation5 + $0x2b8] sm:$0xff] %v1595
    %v1612 = vld [vmem:[#allocation4] sm:$0xff]
    %v1613 = vld [vmem:[#allocation4 + $0x8] sm:$0xff]
    %v1614 = vld [vmem:[#allocation4 + $0x10] sm:$0xff]
    %v1615 = vld [vmem:[#allocation4 + $0x18] sm:$0xff]
    %v1616 = vld [vmem:[#allocation4 + $0x20] sm:$0xff]
    %v1617 = vld [vmem:[#allocation4 + $0x28] sm:$0xff]
    %v1618 = vld [vmem:[#allocation4 + $0x30] sm:$0xff]
    %v1619 = vld [vmem:[#allocation4 + $0x38] sm:$0xff]
    %v1620 = vld [vmem:[#allocation4 + $0x40] sm:$0xff]
    %v1621 = vld [vmem:[#allocation4 + $0x48] sm:$0xff]
    %v1622 = vld [vmem:[#allocation4 + $0x50] sm:$0xff]
    %v1623 = vld [vmem:[#allocation4 + $0x58] sm:$0xff]
    %1636 = vrot.lane.b32.xlu0 %v1612, 107
    %v1637 = vpop.permute.xlu0 %1636
    %1638 = vrot.lane.b32.xlu0 %v1613, 107
    %v1639 = vpop.permute.xlu0 %1638
    %1640 = vrot.lane.b32.xlu0 %v1614, 107
    %v1641 = vpop.permute.xlu0 %1640
    %1642 = vrot.lane.b32.xlu0 %v1615, 107
    %v1643 = vpop.permute.xlu0 %1642
    %1644 = vrot.lane.b32.xlu0 %v1616, 107
    %v1645 = vpop.permute.xlu0 %1644
    %1646 = vrot.lane.b32.xlu0 %v1617, 107
    %v1647 = vpop.permute.xlu0 %1646
    %1648 = vrot.lane.b32.xlu0 %v1618, 107
    %v1649 = vpop.permute.xlu0 %1648
    %1650 = vrot.lane.b32.xlu0 %v1619, 107
    %v1651 = vpop.permute.xlu0 %1650
    %1652 = vrot.lane.b32.xlu0 %v1620, 107
    %v1653 = vpop.permute.xlu0 %1652
    %1654 = vrot.lane.b32.xlu0 %v1621, 107
    %v1655 = vpop.permute.xlu0 %1654
    %1656 = vrot.lane.b32.xlu0 %v1622, 107
    %v1657 = vpop.permute.xlu0 %1656
    %1658 = vrot.lane.b32.xlu0 %v1623, 107
    %v1659 = vpop.permute.xlu0 %1658
    %vm1660 = vcmask 875520
    %v1661 = vsel %vm1660, %v1637, %v1639
    %v1662 = vsel %vm1660, %v1639, %v1641
    %v1663 = vsel %vm1660, %v1643, %v1645
    %v1664 = vsel %vm1660, %v1645, %v1647
    %v1665 = vsel %vm1660, %v1649, %v1651
    %v1666 = vsel %vm1660, %v1651, %v1653
    %v1667 = vsel %vm1660, %v1655, %v1657
    %v1668 = vsel %vm1660, %v1657, %v1659
    %1677 = vst [vmem:[#allocation5 + $0x2c0] sm:$0xff] %v1661
    %1678 = vst [vmem:[#allocation5 + $0x2c8] sm:$0xff] %v1662
    %1679 = vst [vmem:[#allocation5 + $0x2d0] sm:$0xff] %v1663
    %1680 = vst [vmem:[#allocation5 + $0x2d8] sm:$0xff] %v1664
    %1681 = vst [vmem:[#allocation5 + $0x2e0] sm:$0xff] %v1665
    %1682 = vst [vmem:[#allocation5 + $0x2e8] sm:$0xff] %v1666
    %1683 = vst [vmem:[#allocation5 + $0x2f0] sm:$0xff] %v1667
    %1684 = vst [vmem:[#allocation5 + $0x2f8] sm:$0xff] %v1668
    %v1685 = vld [vmem:[#allocation4] sm:$0xff]
    %v1686 = vld [vmem:[#allocation4 + $0x8] sm:$0xff]
    %v1687 = vld [vmem:[#allocation4 + $0x10] sm:$0xff]
    %v1688 = vld [vmem:[#allocation4 + $0x18] sm:$0xff]
    %v1689 = vld [vmem:[#allocation4 + $0x20] sm:$0xff]
    %v1690 = vld [vmem:[#allocation4 + $0x28] sm:$0xff]
    %v1691 = vld [vmem:[#allocation4 + $0x30] sm:$0xff]
    %v1692 = vld [vmem:[#allocation4 + $0x38] sm:$0xff]
    %v1693 = vld [vmem:[#allocation4 + $0x40] sm:$0xff]
    %v1694 = vld [vmem:[#allocation4 + $0x48] sm:$0xff]
    %v1695 = vld [vmem:[#allocation4 + $0x50] sm:$0xff]
    %v1696 = vld [vmem:[#allocation4 + $0x58] sm:$0xff]
    %1709 = vrot.lane.b32.xlu0 %v1685, 101
    %v1710 = vpop.permute.xlu0 %1709
    %1711 = vrot.lane.b32.xlu0 %v1686, 101
    %v1712 = vpop.permute.xlu0 %1711
    %1713 = vrot.lane.b32.xlu0 %v1687, 101
    %v1714 = vpop.permute.xlu0 %1713
    %1715 = vrot.lane.b32.xlu0 %v1688, 101
    %v1716 = vpop.permute.xlu0 %1715
    %1717 = vrot.lane.b32.xlu0 %v1689, 101
    %v1718 = vpop.permute.xlu0 %1717
    %1719 = vrot.lane.b32.xlu0 %v1690, 101
    %v1720 = vpop.permute.xlu0 %1719
    %1721 = vrot.lane.b32.xlu0 %v1691, 101
    %v1722 = vpop.permute.xlu0 %1721
    %1723 = vrot.lane.b32.xlu0 %v1692, 101
    %v1724 = vpop.permute.xlu0 %1723
    %1725 = vrot.lane.b32.xlu0 %v1693, 101
    %v1726 = vpop.permute.xlu0 %1725
    %1727 = vrot.lane.b32.xlu0 %v1694, 101
    %v1728 = vpop.permute.xlu0 %1727
    %1729 = vrot.lane.b32.xlu0 %v1695, 101
    %v1730 = vpop.permute.xlu0 %1729
    %1731 = vrot.lane.b32.xlu0 %v1696, 101
    %v1732 = vpop.permute.xlu0 %1731
    %vm1733 = vcmask 826368
    %v1734 = vsel %vm1733, %v1710, %v1712
    %v1735 = vsel %vm1733, %v1712, %v1714
    %v1736 = vsel %vm1733, %v1716, %v1718
    %v1737 = vsel %vm1733, %v1718, %v1720
    %v1738 = vsel %vm1733, %v1722, %v1724
    %v1739 = vsel %vm1733, %v1724, %v1726
    %v1740 = vsel %vm1733, %v1728, %v1730
    %v1741 = vsel %vm1733, %v1730, %v1732
    %1750 = vst [vmem:[#allocation5 + $0x300] sm:$0xff] %v1734
    %1751 = vst [vmem:[#allocation5 + $0x308] sm:$0xff] %v1735
    %1752 = vst [vmem:[#allocation5 + $0x310] sm:$0xff] %v1736
    %1753 = vst [vmem:[#allocation5 + $0x318] sm:$0xff] %v1737
    %1754 = vst [vmem:[#allocation5 + $0x320] sm:$0xff] %v1738
    %1755 = vst [vmem:[#allocation5 + $0x328] sm:$0xff] %v1739
    %1756 = vst [vmem:[#allocation5 + $0x330] sm:$0xff] %v1740
    %1757 = vst [vmem:[#allocation5 + $0x338] sm:$0xff] %v1741
    %v1758 = vld [vmem:[#allocation4] sm:$0xff]
    %v1759 = vld [vmem:[#allocation4 + $0x8] sm:$0xff]
    %v1760 = vld [vmem:[#allocation4 + $0x10] sm:$0xff]
    %v1761 = vld [vmem:[#allocation4 + $0x18] sm:$0xff]
    %v1762 = vld [vmem:[#allocation4 + $0x20] sm:$0xff]
    %v1763 = vld [vmem:[#allocation4 + $0x28] sm:$0xff]
    %v1764 = vld [vmem:[#allocation4 + $0x30] sm:$0xff]
    %v1765 = vld [vmem:[#allocation4 + $0x38] sm:$0xff]
    %v1766 = vld [vmem:[#allocation4 + $0x40] sm:$0xff]
    %v1767 = vld [vmem:[#allocation4 + $0x48] sm:$0xff]
    %v1768 = vld [vmem:[#allocation4 + $0x50] sm:$0xff]
    %v1769 = vld [vmem:[#allocation4 + $0x58] sm:$0xff]
    %1782 = vrot.lane.b32.xlu0 %v1758, 100
    %v1783 = vpop.permute.xlu0 %1782
    %1784 = vrot.lane.b32.xlu0 %v1759, 100
    %v1785 = vpop.permute.xlu0 %1784
    %1786 = vrot.lane.b32.xlu0 %v1760, 100
    %v1787 = vpop.permute.xlu0 %1786
    %1788 = vrot.lane.b32.xlu0 %v1761, 100
    %v1789 = vpop.permute.xlu0 %1788
    %1790 = vrot.lane.b32.xlu0 %v1762, 100
    %v1791 = vpop.permute.xlu0 %1790
    %1792 = vrot.lane.b32.xlu0 %v1763, 100
    %v1793 = vpop.permute.xlu0 %1792
    %1794 = vrot.lane.b32.xlu0 %v1764, 100
    %v1795 = vpop.permute.xlu0 %1794
    %1796 = vrot.lane.b32.xlu0 %v1765, 100
    %v1797 = vpop.permute.xlu0 %1796
    %1798 = vrot.lane.b32.xlu0 %v1766, 100
    %v1799 = vpop.permute.xlu0 %1798
    %1800 = vrot.lane.b32.xlu0 %v1767, 100
    %v1801 = vpop.permute.xlu0 %1800
    %1802 = vrot.lane.b32.xlu0 %v1768, 100
    %v1803 = vpop.permute.xlu0 %1802
    %1804 = vrot.lane.b32.xlu0 %v1769, 100
    %v1805 = vpop.permute.xlu0 %1804
    %vm1806 = vcmask 818176
    %v1807 = vsel %vm1806, %v1783, %v1785
    %v1808 = vsel %vm1806, %v1785, %v1787
    %v1809 = vsel %vm1806, %v1789, %v1791
    %v1810 = vsel %vm1806, %v1791, %v1793
    %v1811 = vsel %vm1806, %v1795, %v1797
    %v1812 = vsel %vm1806, %v1797, %v1799
    %v1813 = vsel %vm1806, %v1801, %v1803
    %v1814 = vsel %vm1806, %v1803, %v1805
    %1823 = vst [vmem:[#allocation5 + $0x340] sm:$0xff] %v1807
    %1824 = vst [vmem:[#allocation5 + $0x348] sm:$0xff] %v1808
    %1825 = vst [vmem:[#allocation5 + $0x350] sm:$0xff] %v1809
    %1826 = vst [vmem:[#allocation5 + $0x358] sm:$0xff] %v1810
    %1827 = vst [vmem:[#allocation5 + $0x360] sm:$0xff] %v1811
    %1828 = vst [vmem:[#allocation5 + $0x368] sm:$0xff] %v1812
    %1829 = vst [vmem:[#allocation5 + $0x370] sm:$0xff] %v1813
    %1830 = vst [vmem:[#allocation5 + $0x378] sm:$0xff] %v1814
    %v1831 = vld [vmem:[#allocation4] sm:$0xff]
    %v1832 = vld [vmem:[#allocation4 + $0x8] sm:$0xff]
    %v1833 = vld [vmem:[#allocation4 + $0x10] sm:$0xff]
    %v1834 = vld [vmem:[#allocation4 + $0x18] sm:$0xff]
    %v1835 = vld [vmem:[#allocation4 + $0x20] sm:$0xff]
    %v1836 = vld [vmem:[#allocation4 + $0x28] sm:$0xff]
    %v1837 = vld [vmem:[#allocation4 + $0x30] sm:$0xff]
    %v1838 = vld [vmem:[#allocation4 + $0x38] sm:$0xff]
    %v1839 = vld [vmem:[#allocation4 + $0x40] sm:$0xff]
    %v1840 = vld [vmem:[#allocation4 + $0x48] sm:$0xff]
    %v1841 = vld [vmem:[#allocation4 + $0x50] sm:$0xff]
    %v1842 = vld [vmem:[#allocation4 + $0x58] sm:$0xff]
    %1855 = vrot.lane.b32.xlu0 %v1831, 99
    %v1856 = vpop.permute.xlu0 %1855
    %1857 = vrot.lane.b32.xlu0 %v1832, 99
    %v1858 = vpop.permute.xlu0 %1857
    %1859 = vrot.lane.b32.xlu0 %v1833, 99
    %v1860 = vpop.permute.xlu0 %1859
    %1861 = vrot.lane.b32.xlu0 %v1834, 99
    %v1862 = vpop.permute.xlu0 %1861
    %1863 = vrot.lane.b32.xlu0 %v1835, 99
    %v1864 = vpop.permute.xlu0 %1863
    %1865 = vrot.lane.b32.xlu0 %v1836, 99
    %v1866 = vpop.permute.xlu0 %1865
    %1867 = vrot.lane.b32.xlu0 %v1837, 99
    %v1868 = vpop.permute.xlu0 %1867
    %1869 = vrot.lane.b32.xlu0 %v1838, 99
    %v1870 = vpop.permute.xlu0 %1869
    %1871 = vrot.lane.b32.xlu0 %v1839, 99
    %v1872 = vpop.permute.xlu0 %1871
    %1873 = vrot.lane.b32.xlu0 %v1840, 99
    %v1874 = vpop.permute.xlu0 %1873
    %1875 = vrot.lane.b32.xlu0 %v1841, 99
    %v1876 = vpop.permute.xlu0 %1875
    %1877 = vrot.lane.b32.xlu0 %v1842, 99
    %v1878 = vpop.permute.xlu0 %1877
    %vm1879 = vcmask 809984
    %v1880 = vsel %vm1879, %v1856, %v1858
    %v1881 = vsel %vm1879, %v1858, %v1860
    %v1882 = vsel %vm1879, %v1862, %v1864
    %v1883 = vsel %vm1879, %v1864, %v1866
    %v1884 = vsel %vm1879, %v1868, %v1870
    %v1885 = vsel %vm1879, %v1870, %v1872
    %v1886 = vsel %vm1879, %v1874, %v1876
    %v1887 = vsel %vm1879, %v1876, %v1878
    %1896 = vst [vmem:[#allocation5 + $0x380] sm:$0xff] %v1880
    %1897 = vst [vmem:[#allocation5 + $0x388] sm:$0xff] %v1881
    %1898 = vst [vmem:[#allocation5 + $0x390] sm:$0xff] %v1882
    %1899 = vst [vmem:[#allocation5 + $0x398] sm:$0xff] %v1883
    %1900 = vst [vmem:[#allocation5 + $0x3a0] sm:$0xff] %v1884
    %1901 = vst [vmem:[#allocation5 + $0x3a8] sm:$0xff] %v1885
    %1902 = vst [vmem:[#allocation5 + $0x3b0] sm:$0xff] %v1886
    %1903 = vst [vmem:[#allocation5 + $0x3b8] sm:$0xff] %v1887
    %v1904 = vld [vmem:[#allocation4] sm:$0xff]
    %v1905 = vld [vmem:[#allocation4 + $0x8] sm:$0xff]
    %v1906 = vld [vmem:[#allocation4 + $0x10] sm:$0xff]
    %v1907 = vld [vmem:[#allocation4 + $0x18] sm:$0xff]
    %v1908 = vld [vmem:[#allocation4 + $0x20] sm:$0xff]
    %v1909 = vld [vmem:[#allocation4 + $0x28] sm:$0xff]
    %v1910 = vld [vmem:[#allocation4 + $0x30] sm:$0xff]
    %v1911 = vld [vmem:[#allocation4 + $0x38] sm:$0xff]
    %v1912 = vld [vmem:[#allocation4 + $0x40] sm:$0xff]
    %v1913 = vld [vmem:[#allocation4 + $0x48] sm:$0xff]
    %v1914 = vld [vmem:[#allocation4 + $0x50] sm:$0xff]
    %v1915 = vld [vmem:[#allocation4 + $0x58] sm:$0xff]
    %1928 = vrot.lane.b32.xlu0 %v1904, 98
    %v1929 = vpop.permute.xlu0 %1928
    %1930 = vrot.lane.b32.xlu0 %v1905, 98
    %v1931 = vpop.permute.xlu0 %1930
    %1932 = vrot.lane.b32.xlu0 %v1906, 98
    %v1933 = vpop.permute.xlu0 %1932
    %1934 = vrot.lane.b32.xlu0 %v1907, 98
    %v1935 = vpop.permute.xlu0 %1934
    %1936 = vrot.lane.b32.xlu0 %v1908, 98
    %v1937 = vpop.permute.xlu0 %1936
    %1938 = vrot.lane.b32.xlu0 %v1909, 98
    %v1939 = vpop.permute.xlu0 %1938
    %1940 = vrot.lane.b32.xlu0 %v1910, 98
    %v1941 = vpop.permute.xlu0 %1940
    %1942 = vrot.lane.b32.xlu0 %v1911, 98
    %v1943 = vpop.permute.xlu0 %1942
    %1944 = vrot.lane.b32.xlu0 %v1912, 98
    %v1945 = vpop.permute.xlu0 %1944
    %1946 = vrot.lane.b32.xlu0 %v1913, 98
    %v1947 = vpop.permute.xlu0 %1946
    %1948 = vrot.lane.b32.xlu0 %v1914, 98
    %v1949 = vpop.permute.xlu0 %1948
    %1950 = vrot.lane.b32.xlu0 %v1915, 98
    %v1951 = vpop.permute.xlu0 %1950
    %vm1952 = vcmask 801792
    %v1953 = vsel %vm1952, %v1929, %v1931
    %v1954 = vsel %vm1952, %v1931, %v1933
    %v1955 = vsel %vm1952, %v1935, %v1937
    %v1956 = vsel %vm1952, %v1937, %v1939
    %v1957 = vsel %vm1952, %v1941, %v1943
    %v1958 = vsel %vm1952, %v1943, %v1945
    %v1959 = vsel %vm1952, %v1947, %v1949
    %v1960 = vsel %vm1952, %v1949, %v1951
    %1969 = vst [vmem:[#allocation5 + $0x3c0] sm:$0xff] %v1953
    %1970 = vst [vmem:[#allocation5 + $0x3c8] sm:$0xff] %v1954
    %1971 = vst [vmem:[#allocation5 + $0x3d0] sm:$0xff] %v1955
    %1972 = vst [vmem:[#allocation5 + $0x3d8] sm:$0xff] %v1956
    %1973 = vst [vmem:[#allocation5 + $0x3e0] sm:$0xff] %v1957
    %1974 = vst [vmem:[#allocation5 + $0x3e8] sm:$0xff] %v1958
    %1975 = vst [vmem:[#allocation5 + $0x3f0] sm:$0xff] %v1959
    %1976 = vst [vmem:[#allocation5 + $0x3f8] sm:$0xff] %v1960
    %v1977 = vld [vmem:[#allocation21] sm:$0xff]
    %v1978 = vld [vmem:[#allocation21 + $0x8] sm:$0xff]
    %v1979 = vld [vmem:[#allocation21 + $0x10] sm:$0xff]
    %v1980 = vld [vmem:[#allocation21 + $0x18] sm:$0xff]
    %v1981 = vld [vmem:[#allocation5] sm:$0xff]
    %v1982 = vld [vmem:[#allocation5 + $0x8] sm:$0xff]
    %v1983 = vld [vmem:[#allocation5 + $0x10] sm:$0xff]
    %v1984 = vld [vmem:[#allocation5 + $0x18] sm:$0xff]
    %v1985 = vld [vmem:[#allocation5 + $0x20] sm:$0xff]
    %v1986 = vld [vmem:[#allocation5 + $0x28] sm:$0xff]
    %v1987 = vld [vmem:[#allocation5 + $0x30] sm:$0xff]
    %v1988 = vld [vmem:[#allocation5 + $0x38] sm:$0xff]
    %v1989 = vld [vmem:[#allocation5 + $0x40] sm:$0xff]
    %v1990 = vld [vmem:[#allocation5 + $0x48] sm:$0xff]
    %v1991 = vld [vmem:[#allocation5 + $0x50] sm:$0xff]
    %v1992 = vld [vmem:[#allocation5 + $0x58] sm:$0xff]
    %v1993 = vld [vmem:[#allocation5 + $0x60] sm:$0xff]
    %v1994 = vld [vmem:[#allocation5 + $0x68] sm:$0xff]
    %v1995 = vld [vmem:[#allocation5 + $0x70] sm:$0xff]
    %v1996 = vld [vmem:[#allocation5 + $0x78] sm:$0xff]
    %v1997 = vld [vmem:[#allocation5 + $0x80] sm:$0xff]
    %v1998 = vld [vmem:[#allocation5 + $0x88] sm:$0xff]
    %v1999 = vld [vmem:[#allocation5 + $0x90] sm:$0xff]
    %v2000 = vld [vmem:[#allocation5 + $0x98] sm:$0xff]
    %v2001 = vld [vmem:[#allocation5 + $0xa0] sm:$0xff]
    %v2002 = vld [vmem:[#allocation5 + $0xa8] sm:$0xff]
    %v2003 = vld [vmem:[#allocation5 + $0xb0] sm:$0xff]
    %v2004 = vld [vmem:[#allocation5 + $0xb8] sm:$0xff]
    %v2005 = vld [vmem:[#allocation5 + $0xc0] sm:$0xff]
    %v2006 = vld [vmem:[#allocation5 + $0xc8] sm:$0xff]
    %v2007 = vld [vmem:[#allocation5 + $0xd0] sm:$0xff]
    %v2008 = vld [vmem:[#allocation5 + $0xd8] sm:$0xff]
    %v2009 = vld [vmem:[#allocation5 + $0xe0] sm:$0xff]
    %v2010 = vld [vmem:[#allocation5 + $0xe8] sm:$0xff]
    %v2011 = vld [vmem:[#allocation5 + $0xf0] sm:$0xff]
    %v2012 = vld [vmem:[#allocation5 + $0xf8] sm:$0xff]
    %v2013 = vld [vmem:[#allocation5 + $0x100] sm:$0xff]
    %v2014 = vld [vmem:[#allocation5 + $0x108] sm:$0xff]
    %v2015 = vld [vmem:[#allocation5 + $0x110] sm:$0xff]
    %v2016 = vld [vmem:[#allocation5 + $0x118] sm:$0xff]
    %v2017 = vld [vmem:[#allocation5 + $0x120] sm:$0xff]
    %v2018 = vld [vmem:[#allocation5 + $0x128] sm:$0xff]
    %v2019 = vld [vmem:[#allocation5 + $0x130] sm:$0xff]
    %v2020 = vld [vmem:[#allocation5 + $0x138] sm:$0xff]
    %v2021 = vld [vmem:[#allocation5 + $0x140] sm:$0xff]
    %v2022 = vld [vmem:[#allocation5 + $0x148] sm:$0xff]
    %v2023 = vld [vmem:[#allocation5 + $0x150] sm:$0xff]
    %v2024 = vld [vmem:[#allocation5 + $0x158] sm:$0xff]
    %v2025 = vld [vmem:[#allocation5 + $0x160] sm:$0xff]
    %v2026 = vld [vmem:[#allocation5 + $0x168] sm:$0xff]
    %v2027 = vld [vmem:[#allocation5 + $0x170] sm:$0xff]
    %v2028 = vld [vmem:[#allocation5 + $0x178] sm:$0xff]
    %v2029 = vld [vmem:[#allocation5 + $0x180] sm:$0xff]
    %v2030 = vld [vmem:[#allocation5 + $0x188] sm:$0xff]
    %v2031 = vld [vmem:[#allocation5 + $0x190] sm:$0xff]
    %v2032 = vld [vmem:[#allocation5 + $0x198] sm:$0xff]
    %v2033 = vld [vmem:[#allocation5 + $0x1a0] sm:$0xff]
    %v2034 = vld [vmem:[#allocation5 + $0x1a8] sm:$0xff]
    %v2035 = vld [vmem:[#allocation5 + $0x1b0] sm:$0xff]
    %v2036 = vld [vmem:[#allocation5 + $0x1b8] sm:$0xff]
    %v2037 = vld [vmem:[#allocation5 + $0x1c0] sm:$0xff]
    %v2038 = vld [vmem:[#allocation5 + $0x1c8] sm:$0xff]
    %v2039 = vld [vmem:[#allocation5 + $0x1d0] sm:$0xff]
    %v2040 = vld [vmem:[#allocation5 + $0x1d8] sm:$0xff]
    %v2041 = vld [vmem:[#allocation5 + $0x1e0] sm:$0xff]
    %v2042 = vld [vmem:[#allocation5 + $0x1e8] sm:$0xff]
    %v2043 = vld [vmem:[#allocation5 + $0x1f0] sm:$0xff]
    %v2044 = vld [vmem:[#allocation5 + $0x1f8] sm:$0xff]
    %v2045 = vld [vmem:[#allocation5 + $0x200] sm:$0xff]
    %v2046 = vld [vmem:[#allocation5 + $0x208] sm:$0xff]
    %v2047 = vld [vmem:[#allocation5 + $0x210] sm:$0xff]
    %v2048 = vld [vmem:[#allocation5 + $0x218] sm:$0xff]
    %v2049 = vld [vmem:[#allocation5 + $0x220] sm:$0xff]
    %v2050 = vld [vmem:[#allocation5 + $0x228] sm:$0xff]
    %v2051 = vld [vmem:[#allocation5 + $0x230] sm:$0xff]
    %v2052 = vld [vmem:[#allocation5 + $0x238] sm:$0xff]
    %v2053 = vld [vmem:[#allocation5 + $0x240] sm:$0xff]
    %v2054 = vld [vmem:[#allocation5 + $0x248] sm:$0xff]
    %v2055 = vld [vmem:[#allocation5 + $0x250] sm:$0xff]
    %v2056 = vld [vmem:[#allocation5 + $0x258] sm:$0xff]
    %v2057 = vld [vmem:[#allocation5 + $0x260] sm:$0xff]
    %v2058 = vld [vmem:[#allocation5 + $0x268] sm:$0xff]
    %v2059 = vld [vmem:[#allocation5 + $0x270] sm:$0xff]
    %v2060 = vld [vmem:[#allocation5 + $0x278] sm:$0xff]
    %v2061 = vld [vmem:[#allocation5 + $0x280] sm:$0xff]
    %v2062 = vld [vmem:[#allocation5 + $0x288] sm:$0xff]
    %v2063 = vld [vmem:[#allocation5 + $0x290] sm:$0xff]
    %v2064 = vld [vmem:[#allocation5 + $0x298] sm:$0xff]
    %v2065 = vld [vmem:[#allocation5 + $0x2a0] sm:$0xff]
    %v2066 = vld [vmem:[#allocation5 + $0x2a8] sm:$0xff]
    %v2067 = vld [vmem:[#allocation5 + $0x2b0] sm:$0xff]
    %v2068 = vld [vmem:[#allocation5 + $0x2b8] sm:$0xff]
    %v2069 = vld [vmem:[#allocation5 + $0x2c0] sm:$0xff]
    %v2070 = vld [vmem:[#allocation5 + $0x2c8] sm:$0xff]
    %v2071 = vld [vmem:[#allocation5 + $0x2d0] sm:$0xff]
    %v2072 = vld [vmem:[#allocation5 + $0x2d8] sm:$0xff]
    %v2073 = vld [vmem:[#allocation5 + $0x2e0] sm:$0xff]
    %v2074 = vld [vmem:[#allocation5 + $0x2e8] sm:$0xff]
    %v2075 = vld [vmem:[#allocation5 + $0x2f0] sm:$0xff]
    %v2076 = vld [vmem:[#allocation5 + $0x2f8] sm:$0xff]
    %v2077 = vld [vmem:[#allocation5 + $0x300] sm:$0xff]
    %v2078 = vld [vmem:[#allocation5 + $0x308] sm:$0xff]
    %v2079 = vld [vmem:[#allocation5 + $0x310] sm:$0xff]
    %v2080 = vld [vmem:[#allocation5 + $0x318] sm:$0xff]
    %v2081 = vld [vmem:[#allocation5 + $0x320] sm:$0xff]
    %v2082 = vld [vmem:[#allocation5 + $0x328] sm:$0xff]
    %v2083 = vld [vmem:[#allocation5 + $0x330] sm:$0xff]
    %v2084 = vld [vmem:[#allocation5 + $0x338] sm:$0xff]
    %v2085 = vld [vmem:[#allocation5 + $0x340] sm:$0xff]
    %v2086 = vld [vmem:[#allocation5 + $0x348] sm:$0xff]
    %v2087 = vld [vmem:[#allocation5 + $0x350] sm:$0xff]
    %v2088 = vld [vmem:[#allocation5 + $0x358] sm:$0xff]
    %v2089 = vld [vmem:[#allocation5 + $0x360] sm:$0xff]
    %v2090 = vld [vmem:[#allocation5 + $0x368] sm:$0xff]
    %v2091 = vld [vmem:[#allocation5 + $0x370] sm:$0xff]
    %v2092 = vld [vmem:[#allocation5 + $0x378] sm:$0xff]
    %v2093 = vld [vmem:[#allocation5 + $0x380] sm:$0xff]
    %v2094 = vld [vmem:[#allocation5 + $0x388] sm:$0xff]
    %v2095 = vld [vmem:[#allocation5 + $0x390] sm:$0xff]
    %v2096 = vld [vmem:[#allocation5 + $0x398] sm:$0xff]
    %v2097 = vld [vmem:[#allocation5 + $0x3a0] sm:$0xff]
    %v2098 = vld [vmem:[#allocation5 + $0x3a8] sm:$0xff]
    %v2099 = vld [vmem:[#allocation5 + $0x3b0] sm:$0xff]
    %v2100 = vld [vmem:[#allocation5 + $0x3b8] sm:$0xff]
    %v2101 = vld [vmem:[#allocation5 + $0x3c0] sm:$0xff]
    %v2102 = vld [vmem:[#allocation5 + $0x3c8] sm:$0xff]
    %v2103 = vld [vmem:[#allocation5 + $0x3d0] sm:$0xff]
    %v2104 = vld [vmem:[#allocation5 + $0x3d8] sm:$0xff]
    %v2105 = vld [vmem:[#allocation5 + $0x3e0] sm:$0xff]
    %v2106 = vld [vmem:[#allocation5 + $0x3e8] sm:$0xff]
    %v2107 = vld [vmem:[#allocation5 + $0x3f0] sm:$0xff]
    %v2108 = vld [vmem:[#allocation5 + $0x3f8] sm:$0xff]
    %v2109 = vpack.c.bf16 %v1983, %v1981
    %v2110 = vpack.c.bf16 %v1984, %v1982
    %v2111 = vpack.c.bf16 %v1987, %v1985
    %v2112 = vpack.c.bf16 %v1988, %v1986
    %v2113 = vpack.c.bf16 %v1991, %v1989
    %v2114 = vpack.c.bf16 %v1992, %v1990
    %v2115 = vpack.c.bf16 %v1995, %v1993
    %v2116 = vpack.c.bf16 %v1996, %v1994
    %v2117 = vpack.c.bf16 %v1999, %v1997
    %v2118 = vpack.c.bf16 %v2000, %v1998
    %v2119 = vpack.c.bf16 %v2003, %v2001
    %v2120 = vpack.c.bf16 %v2004, %v2002
    %v2121 = vpack.c.bf16 %v2007, %v2005
    %v2122 = vpack.c.bf16 %v2008, %v2006
    %v2123 = vpack.c.bf16 %v2011, %v2009
    %v2124 = vpack.c.bf16 %v2012, %v2010
    %v2125 = vpack.c.bf16 %v2015, %v2013
    %v2126 = vpack.c.bf16 %v2016, %v2014
    %v2127 = vpack.c.bf16 %v2019, %v2017
    %v2128 = vpack.c.bf16 %v2020, %v2018
    %v2129 = vpack.c.bf16 %v2023, %v2021
    %v2130 = vpack.c.bf16 %v2024, %v2022
    %v2131 = vpack.c.bf16 %v2027, %v2025
    %v2132 = vpack.c.bf16 %v2028, %v2026
    %v2133 = vpack.c.bf16 %v2031, %v2029
    %v2134 = vpack.c.bf16 %v2032, %v2030
    %v2135 = vpack.c.bf16 %v2035, %v2033
    %v2136 = vpack.c.bf16 %v2036, %v2034
    %v2137 = vpack.c.bf16 %v2039, %v2037
    %v2138 = vpack.c.bf16 %v2040, %v2038
    %v2139 = vpack.c.bf16 %v2043, %v2041
    %v2140 = vpack.c.bf16 %v2044, %v2042
    %v2141 = vpack.c.bf16 %v2047, %v2045
    %v2142 = vpack.c.bf16 %v2048, %v2046
    %v2143 = vpack.c.bf16 %v2051, %v2049
    %v2144 = vpack.c.bf16 %v2052, %v2050
    %v2145 = vpack.c.bf16 %v2055, %v2053
    %v2146 = vpack.c.bf16 %v2056, %v2054
    %v2147 = vpack.c.bf16 %v2059, %v2057
    %v2148 = vpack.c.bf16 %v2060, %v2058
    %v2149 = vpack.c.bf16 %v2063, %v2061
    %v2150 = vpack.c.bf16 %v2064, %v2062
    %v2151 = vpack.c.bf16 %v2067, %v2065
    %v2152 = vpack.c.bf16 %v2068, %v2066
    %v2153 = vpack.c.bf16 %v2071, %v2069
    %v2154 = vpack.c.bf16 %v2072, %v2070
    %v2155 = vpack.c.bf16 %v2075, %v2073
    %v2156 = vpack.c.bf16 %v2076, %v2074
    %v2157 = vpack.c.bf16 %v2079, %v2077
    %v2158 = vpack.c.bf16 %v2080, %v2078
    %v2159 = vpack.c.bf16 %v2083, %v2081
    %v2160 = vpack.c.bf16 %v2084, %v2082
    %v2161 = vpack.c.bf16 %v2087, %v2085
    %v2162 = vpack.c.bf16 %v2088, %v2086
    %v2163 = vpack.c.bf16 %v2091, %v2089
    %v2164 = vpack.c.bf16 %v2092, %v2090
    %v2165 = vpack.c.bf16 %v2095, %v2093
    %v2166 = vpack.c.bf16 %v2096, %v2094
    %v2167 = vpack.c.bf16 %v2099, %v2097
    %v2168 = vpack.c.bf16 %v2100, %v2098
    %v2169 = vpack.c.bf16 %v2103, %v2101
    %v2170 = vpack.c.bf16 %v2104, %v2102
    %v2171 = vpack.c.bf16 %v2107, %v2105
    %v2172 = vpack.c.bf16 %v2108, %v2106
    %v2177 = vunpack.c.l.b16 %v1977
    %v2178 = vunpack.c.h.b16 %v1977
    %v2179 = vunpack.c.l.b16 %v1978
    %v2180 = vunpack.c.h.b16 %v1978
    %v2181 = vunpack.c.l.b16 %v1979
    %v2182 = vunpack.c.h.b16 %v1979
    %v2183 = vunpack.c.l.b16 %v1980
    %v2184 = vunpack.c.h.b16 %v1980
    %v2185 = vpack.c.b16 %v2181, %v2177
    %v2186 = vpack.c.b16 %v2182, %v2178
    %v2187 = vpack.c.b16 %v2183, %v2179
    %v2188 = vpack.c.b16 %v2184, %v2180
    %2193 = vmatprep.subr.bf16.mxu0 %v2110
    %2194 = vmatpush1.bf16.msra.mxu0 %v2109
    %2195 = vmatprep.subr.bf16.mxu0 %v2112
    %2196 = vmatpush1.bf16.msra.mxu0 %v2111
    %2197 = vmatprep.subr.bf16.mxu0 %v2114
    %2198 = vmatpush1.bf16.msra.mxu0 %v2113
    %2199 = vmatprep.subr.bf16.mxu0 %v2116
    %2200 = vmatpush1.bf16.msra.mxu0 %v2115
    %2201 = vmatprep.subr.bf16.mxu0 %v2118
    %2202 = vmatpush1.bf16.msra.mxu0 %v2117
    %2203 = vmatprep.subr.bf16.mxu0 %v2120
    %2204 = vmatpush1.bf16.msra.mxu0 %v2119
    %2205 = vmatprep.subr.bf16.mxu0 %v2122
    %2206 = vmatpush1.bf16.msra.mxu0 %v2121
    %2207 = vmatprep.subr.bf16.mxu0 %v2124
    %2208 = vmatpush1.bf16.msra.mxu0 %v2123
    %2209 = vmatprep.subr.bf16.mxu0 %v2126
    %2210 = vmatpush1.bf16.msra.mxu0 %v2125
    %2211 = vmatprep.subr.bf16.mxu0 %v2128
    %2212 = vmatpush1.bf16.msra.mxu0 %v2127
    %2213 = vmatprep.subr.bf16.mxu0 %v2130
    %2214 = vmatpush1.bf16.msra.mxu0 %v2129
    %2215 = vmatprep.subr.bf16.mxu0 %v2132
    %2216 = vmatpush1.bf16.msra.mxu0 %v2131
    %2217 = vmatprep.subr.bf16.mxu0 %v2134
    %2218 = vmatpush1.bf16.msra.mxu0 %v2133
    %2219 = vmatprep.subr.bf16.mxu0 %v2136
    %2220 = vmatpush1.bf16.msra.mxu0 %v2135
    %2221 = vmatprep.subr.bf16.mxu0 %v2138
    %2222 = vmatpush1.bf16.msra.mxu0 %v2137
    %2223 = vmatprep.subr.bf16.mxu0 %v2140
    %2224 = vmatpush1.bf16.msra.mxu0 %v2139
    %2225 = vmatprep.mubr.bf16.mxu0 %v2186
    %2226 = vmatmul.mubr.bf16.gmra.mrb[0].mxu0 %v2185
    %v2227 = vpop.f32.mrb[0].mxu0
    %v2228 = vadd.f32 0.0, %v2227
    %v2229 = vpop.f32.mrb[0].mxu0
    %v2230 = vadd.f32 0.0, %v2229
    %v2231 = vpop.f32.mrb[0].mxu0
    %v2232 = vadd.f32 0.0, %v2231
    %v2233 = vpop.f32.mrb[0].mxu0
    %v2234 = vadd.f32 0.0, %v2233
    %2235 = vdwg.mxu0
    %2236 = vmatprep.subr.bf16.mxu0 %v2142
    %2237 = vmatpush1.bf16.msra.mxu0 %v2141
    %2238 = vmatprep.subr.bf16.mxu0 %v2144
    %2239 = vmatpush1.bf16.msra.mxu0 %v2143
    %2240 = vmatprep.subr.bf16.mxu0 %v2146
    %2241 = vmatpush1.bf16.msra.mxu0 %v2145
    %2242 = vmatprep.subr.bf16.mxu0 %v2148
    %2243 = vmatpush1.bf16.msra.mxu0 %v2147
    %2244 = vmatprep.subr.bf16.mxu0 %v2150
    %2245 = vmatpush1.bf16.msra.mxu0 %v2149
    %2246 = vmatprep.subr.bf16.mxu0 %v2152
    %2247 = vmatpush1.bf16.msra.mxu0 %v2151
    %2248 = vmatprep.subr.bf16.mxu0 %v2154
    %2249 = vmatpush1.bf16.msra.mxu0 %v2153
    %2250 = vmatprep.subr.bf16.mxu0 %v2156
    %2251 = vmatpush1.bf16.msra.mxu0 %v2155
    %2252 = vmatprep.subr.bf16.mxu0 %v2158
    %2253 = vmatpush1.bf16.msra.mxu0 %v2157
    %2254 = vmatprep.subr.bf16.mxu0 %v2160
    %2255 = vmatpush1.bf16.msra.mxu0 %v2159
    %2256 = vmatprep.subr.bf16.mxu0 %v2162
    %2257 = vmatpush1.bf16.msra.mxu0 %v2161
    %2258 = vmatprep.subr.bf16.mxu0 %v2164
    %2259 = vmatpush1.bf16.msra.mxu0 %v2163
    %2260 = vmatprep.subr.bf16.mxu0 %v2166
    %2261 = vmatpush1.bf16.msra.mxu0 %v2165
    %2262 = vmatprep.subr.bf16.mxu0 %v2168
    %2263 = vmatpush1.bf16.msra.mxu0 %v2167
    %2264 = vmatprep.subr.bf16.mxu0 %v2170
    %2265 = vmatpush1.bf16.msra.mxu0 %v2169
    %2266 = vmatprep.subr.bf16.mxu0 %v2172
    %2267 = vmatpush1.bf16.msra.mxu0 %v2171
    %2268 = vmatprep.mubr.bf16.mxu0 %v2188
    %2269 = vmatmul.mubr.bf16.gmra.mrb[0].mxu0 %v2187
    %v2270 = vpop.f32.mrb[0].mxu0
    %v2271 = vadd.f32 %v2228, %v2270
    %v2272 = vpop.f32.mrb[0].mxu0
    %v2273 = vadd.f32 %v2230, %v2272
    %v2274 = vpop.f32.mrb[0].mxu0
    %v2275 = vadd.f32 %v2232, %v2274
    %v2276 = vpop.f32.mrb[0].mxu0
    %v2277 = vadd.f32 %v2234, %v2276
    %2278 = vdwg.mxu0
    %v2279 = vld [vmem:[#allocation27] sm:$0x3]
    %v2281 = vlaneseq
    %v2282 = vshrl.u32 %v2281, 7
    %v2283 = vsub.s32 0, %v2282
    %v2284 = vrot.slane %v2279, %v2283
    %v2285 = vlaneseq
    %v2286 = vshrl.u32 %v2285, 7
    %v2287 = vsub.s32 1, %v2286
    %v2288 = vrot.slane %v2279, %v2287
    %v2291 = vmul.f32 %v2271, %v2284
    %v2292 = vmul.f32 %v2273, %v2288
    %v2293 = vmul.f32 %v2275, %v2284
    %v2294 = vmul.f32 %v2277, %v2288
    %v2295 = vadd.f32 %v2291, %v2292
    %2296 = vadd.xlane.f32.xlu0 %v2295
    %v2297 = vpop.xlane.xlu0 %2296
    %v2298 = vadd.f32 %v2293, %v2294
    %2299 = vadd.xlane.f32.xlu0 %v2298
    %v2300 = vpop.xlane.xlu0 %2299
    %v2301 = vmul.f32 %v2297, 0.013888889
    %v2302 = vmul.f32 %v2300, 0.013888889
    %v2303 = vmul.f32 %v2291, %v2271
    %v2304 = vmul.f32 %v2292, %v2273
    %v2305 = vmul.f32 %v2293, %v2275
    %v2306 = vmul.f32 %v2294, %v2277
    %v2307 = vadd.f32 %v2303, %v2304
    %2308 = vadd.xlane.f32.xlu0 %v2307
    %v2309 = vpop.xlane.xlu0 %2308
    %v2310 = vadd.f32 %v2305, %v2306
    %2311 = vadd.xlane.f32.xlu0 %v2310
    %v2312 = vpop.xlane.xlu0 %2311
    %v2313 = vmul.f32 %v2309, 0.013888889
    %v2314 = vmul.f32 %v2312, 0.013888889
    %v2315 = vmul.f32 %v2301, %v2301
    %v2316 = vmul.f32 %v2302, %v2302
    %v2317 = vsub.f32 %v2313, %v2315
    %v2318 = vsub.f32 %v2314, %v2316
    %v2319 = vmax.f32 %v2317, 0.0
    %v2320 = vmax.f32 %v2318, 0.0
    %v2321 = vsub.f32 %v2271, %v2301
    %v2322 = vsub.f32 %v2273, %v2301
    %v2323 = vsub.f32 %v2275, %v2302
    %v2324 = vsub.f32 %v2277, %v2302
    %v2325 = vadd.f32 %v2319, 1e-05
    %v2326 = vadd.f32 %v2320, 1e-05
    %v2327 = vrsqrt.pop %v2325
    %v2328 = vrsqrt.pop %v2326
    %v2329 = vmul.f32 %v2321, %v2327
    %v2330 = vmul.f32 %v2322, %v2327
    %v2331 = vmul.f32 %v2323, %v2328
    %v2332 = vmul.f32 %v2324, %v2328
    %v2333 = vmax.f32 %v2329, 0.0
    %v2334 = vmax.f32 %v2330, 0.0
    %v2335 = vmax.f32 %v2331, 0.0
    %v2336 = vmax.f32 %v2332, 0.0
    %v2337 = vpack.c.bf16 %v2335, %v2333
    %v2338 = vpack.c.bf16 %v2336, %v2334
    %v2339 = vld [vmem:[#allocation16] sm:$0xff]
    %v2340 = vld [vmem:[#allocation16 + $0x8] sm:$0xff]
    %v2341 = vld [vmem:[#allocation16 + $0x10] sm:$0xf]
    %v2342 = vld [vmem:[#allocation16 + $0x14] sm:$0xff]
    %v2343 = vld [vmem:[#allocation16 + $0x1c] sm:$0xff]
    %v2344 = vld [vmem:[#allocation16 + $0x24] sm:$0xf]
    %v2345 = vld [vmem:[#allocation16 + $0x28] sm:$0xff]
    %v2346 = vld [vmem:[#allocation16 + $0x30] sm:$0xff]
    %v2347 = vld [vmem:[#allocation16 + $0x38] sm:$0xf]
    %v2348 = vld [vmem:[#allocation16 + $0x3c] sm:$0xff]
    %v2349 = vld [vmem:[#allocation16 + $0x44] sm:$0xff]
    %v2350 = vld [vmem:[#allocation16 + $0x4c] sm:$0xf]
    %v2351 = vld [vmem:[#allocation16 + $0x50] sm:$0xff]
    %v2352 = vld [vmem:[#allocation16 + $0x58] sm:$0xff]
    %v2353 = vld [vmem:[#allocation16 + $0x60] sm:$0xf]
    %v2354 = vld [vmem:[#allocation16 + $0x64] sm:$0xff]
    %v2355 = vld [vmem:[#allocation16 + $0x6c] sm:$0xff]
    %v2356 = vld [vmem:[#allocation16 + $0x74] sm:$0xf]
    %v2357 = vld [vmem:[#allocation16 + $0x78] sm:$0xff]
    %v2358 = vld [vmem:[#allocation16 + $0x80] sm:$0xff]
    %v2359 = vld [vmem:[#allocation16 + $0x88] sm:$0xf]
    %v2360 = vld [vmem:[#allocation16 + $0x8c] sm:$0xff]
    %v2361 = vld [vmem:[#allocation16 + $0x94] sm:$0xff]
    %v2362 = vld [vmem:[#allocation16 + $0x9c] sm:$0xf]
    %v2363 = vld [vmem:[#allocation16 + $0xa0] sm:$0xff]
    %v2364 = vld [vmem:[#allocation16 + $0xa8] sm:$0xff]
    %v2365 = vld [vmem:[#allocation16 + $0xb0] sm:$0xf]
    %v2366 = vld [vmem:[#allocation16 + $0xb4] sm:$0xff]
    %v2367 = vld [vmem:[#allocation16 + $0xbc] sm:$0xff]
    %v2368 = vld [vmem:[#allocation16 + $0xc4] sm:$0xf]
    %v2369 = vld [vmem:[#allocation16 + $0xc8] sm:$0xff]
    %v2370 = vld [vmem:[#allocation16 + $0xd0] sm:$0xff]
    %v2371 = vld [vmem:[#allocation16 + $0xd8] sm:$0xf]
    %v2372 = vld [vmem:[#allocation16 + $0xdc] sm:$0xff]
    %v2373 = vld [vmem:[#allocation16 + $0xe4] sm:$0xff]
    %v2374 = vld [vmem:[#allocation16 + $0xec] sm:$0xf]
    %v2375 = vld [vmem:[#allocation16 + $0xf0] sm:$0xff]
    %v2376 = vld [vmem:[#allocation16 + $0xf8] sm:$0xff]
    %v2377 = vld [vmem:[#allocation16 + $0x100] sm:$0xf]
    %v2378 = vld [vmem:[#allocation16 + $0x104] sm:$0xff]
    %v2379 = vld [vmem:[#allocation16 + $0x10c] sm:$0xff]
    %v2380 = vld [vmem:[#allocation16 + $0x114] sm:$0xf]
    %v2381 = vld [vmem:[#allocation16 + $0x118] sm:$0xff]
    %v2382 = vld [vmem:[#allocation16 + $0x120] sm:$0xff]
    %v2383 = vld [vmem:[#allocation16 + $0x128] sm:$0xf]
    %v2384 = vld [vmem:[#allocation16 + $0x12c] sm:$0xff]
    %v2385 = vld [vmem:[#allocation16 + $0x134] sm:$0xff]
    %v2386 = vld [vmem:[#allocation16 + $0x13c] sm:$0xf]
    %v2387 = vld [vmem:[#allocation16 + $0x140] sm:$0xff]
    %v2388 = vld [vmem:[#allocation16 + $0x148] sm:$0xff]
    %v2389 = vld [vmem:[#allocation16 + $0x150] sm:$0xf]
    %v2390 = vld [vmem:[#allocation16 + $0x154] sm:$0xff]
    %v2391 = vld [vmem:[#allocation16 + $0x15c] sm:$0xff]
    %v2392 = vld [vmem:[#allocation16 + $0x164] sm:$0xf]
    %v2393 = vld [vmem:[#allocation16 + $0x168] sm:$0xff]
    %v2394 = vld [vmem:[#allocation16 + $0x170] sm:$0xff]
    %v2395 = vld [vmem:[#allocation16 + $0x178] sm:$0xf]
    %v2396 = vld [vmem:[#allocation16 + $0x17c] sm:$0xff]
    %v2397 = vld [vmem:[#allocation16 + $0x184] sm:$0xff]
    %v2398 = vld [vmem:[#allocation16 + $0x18c] sm:$0xf]
    %v2399 = vld [vmem:[#allocation16 + $0x190] sm:$0xff]
    %v2400 = vld [vmem:[#allocation16 + $0x198] sm:$0xff]
    %v2401 = vld [vmem:[#allocation16 + $0x1a0] sm:$0xf]
    %v2402 = vld [vmem:[#allocation16 + $0x1a4] sm:$0xff]
    %v2403 = vld [vmem:[#allocation16 + $0x1ac] sm:$0xff]
    %v2404 = vld [vmem:[#allocation16 + $0x1b4] sm:$0xf]
    %v2405 = vld [vmem:[#allocation16 + $0x1b8] sm:$0xff]
    %v2406 = vld [vmem:[#allocation16 + $0x1c0] sm:$0xff]
    %v2407 = vld [vmem:[#allocation16 + $0x1c8] sm:$0xf]
    %v2408 = vld [vmem:[#allocation16 + $0x1cc] sm:$0xff]
    %v2409 = vld [vmem:[#allocation16 + $0x1d4] sm:$0xff]
    %v2410 = vld [vmem:[#allocation16 + $0x1dc] sm:$0xf]
    %v2411 = vld [vmem:[#allocation16 + $0x1e0] sm:$0xff]
    %v2412 = vld [vmem:[#allocation16 + $0x1e8] sm:$0xff]
    %v2413 = vld [vmem:[#allocation16 + $0x1f0] sm:$0xf]
    %v2414 = vld [vmem:[#allocation16 + $0x1f4] sm:$0xff]
    %v2415 = vld [vmem:[#allocation16 + $0x1fc] sm:$0xff]
    %v2416 = vld [vmem:[#allocation16 + $0x204] sm:$0xf]
    %v2417 = vld [vmem:[#allocation16 + $0x208] sm:$0xff]
    %v2418 = vld [vmem:[#allocation16 + $0x210] sm:$0xff]
    %v2419 = vld [vmem:[#allocation16 + $0x218] sm:$0xf]
    %v2420 = vld [vmem:[#allocation16 + $0x21c] sm:$0xff]
    %v2421 = vld [vmem:[#allocation16 + $0x224] sm:$0xff]
    %v2422 = vld [vmem:[#allocation16 + $0x22c] sm:$0xf]
    %v2423 = vld [vmem:[#allocation16 + $0x230] sm:$0xff]
    %v2424 = vld [vmem:[#allocation16 + $0x238] sm:$0xff]
    %v2425 = vld [vmem:[#allocation16 + $0x240] sm:$0xf]
    %v2426 = vld [vmem:[#allocation16 + $0x244] sm:$0xff]
    %v2427 = vld [vmem:[#allocation16 + $0x24c] sm:$0xff]
    %v2428 = vld [vmem:[#allocation16 + $0x254] sm:$0xf]
    %v2429 = vld [vmem:[#allocation16 + $0x258] sm:$0xff]
    %v2430 = vld [vmem:[#allocation16 + $0x260] sm:$0xff]
    %v2431 = vld [vmem:[#allocation16 + $0x268] sm:$0xf]
    %v2432 = vld [vmem:[#allocation16 + $0x26c] sm:$0xff]
    %v2433 = vld [vmem:[#allocation16 + $0x274] sm:$0xff]
    %v2434 = vld [vmem:[#allocation16 + $0x27c] sm:$0xf]
    %v2531 = vunpack.c.l.b16 %v2339
    %v2532 = vunpack.c.h.b16 %v2339
    %v2533 = vunpack.c.l.b16 %v2340
    %v2534 = vunpack.c.h.b16 %v2340
    %v2535 = vunpack.c.l.b16 %v2341
    %v2536 = vunpack.c.l.b16 %v2342
    %v2537 = vunpack.c.h.b16 %v2342
    %v2538 = vunpack.c.l.b16 %v2343
    %v2539 = vunpack.c.h.b16 %v2343
    %v2540 = vunpack.c.l.b16 %v2344
    %v2541 = vunpack.c.l.b16 %v2345
    %v2542 = vunpack.c.h.b16 %v2345
    %v2543 = vunpack.c.l.b16 %v2346
    %v2544 = vunpack.c.h.b16 %v2346
    %v2545 = vunpack.c.l.b16 %v2347
    %v2546 = vunpack.c.l.b16 %v2348
    %v2547 = vunpack.c.h.b16 %v2348
    %v2548 = vunpack.c.l.b16 %v2349
    %v2549 = vunpack.c.h.b16 %v2349
    %v2550 = vunpack.c.l.b16 %v2350
    %v2551 = vunpack.c.l.b16 %v2351
    %v2552 = vunpack.c.h.b16 %v2351
    %v2553 = vunpack.c.l.b16 %v2352
    %v2554 = vunpack.c.h.b16 %v2352
    %v2555 = vunpack.c.l.b16 %v2353
    %v2556 = vunpack.c.l.b16 %v2354
    %v2557 = vunpack.c.h.b16 %v2354
    %v2558 = vunpack.c.l.b16 %v2355
    %v2559 = vunpack.c.h.b16 %v2355
    %v2560 = vunpack.c.l.b16 %v2356
    %v2561 = vunpack.c.l.b16 %v2357
    %v2562 = vunpack.c.h.b16 %v2357
    %v2563 = vunpack.c.l.b16 %v2358
    %v2564 = vunpack.c.h.b16 %v2358
    %v2565 = vunpack.c.l.b16 %v2359
    %v2566 = vunpack.c.l.b16 %v2360
    %v2567 = vunpack.c.h.b16 %v2360
    %v2568 = vunpack.c.l.b16 %v2361
    %v2569 = vunpack.c.h.b16 %v2361
    %v2570 = vunpack.c.l.b16 %v2362
    %v2571 = vunpack.c.l.b16 %v2363
    %v2572 = vunpack.c.h.b16 %v2363
    %v2573 = vunpack.c.l.b16 %v2364
    %v2574 = vunpack.c.h.b16 %v2364
    %v2575 = vunpack.c.l.b16 %v2365
    %v2576 = vunpack.c.l.b16 %v2366
    %v2577 = vunpack.c.h.b16 %v2366
    %v2578 = vunpack.c.l.b16 %v2367
    %v2579 = vunpack.c.h.b16 %v2367
    %v2580 = vunpack.c.l.b16 %v2368
    %v2581 = vunpack.c.l.b16 %v2369
    %v2582 = vunpack.c.h.b16 %v2369
    %v2583 = vunpack.c.l.b16 %v2370
    %v2584 = vunpack.c.h.b16 %v2370
    %v2585 = vunpack.c.l.b16 %v2371
    %v2586 = vunpack.c.l.b16 %v2372
    %v2587 = vunpack.c.h.b16 %v2372
    %v2588 = vunpack.c.l.b16 %v2373
    %v2589 = vunpack.c.h.b16 %v2373
    %v2590 = vunpack.c.l.b16 %v2374
    %v2591 = vunpack.c.l.b16 %v2375
    %v2592 = vunpack.c.h.b16 %v2375
    %v2593 = vunpack.c.l.b16 %v2376
    %v2594 = vunpack.c.h.b16 %v2376
    %v2595 = vunpack.c.l.b16 %v2377
    %v2596 = vunpack.c.l.b16 %v2378
    %v2597 = vunpack.c.h.b16 %v2378
    %v2598 = vunpack.c.l.b16 %v2379
    %v2599 = vunpack.c.h.b16 %v2379
    %v2600 = vunpack.c.l.b16 %v2380
    %v2601 = vunpack.c.l.b16 %v2381
    %v2602 = vunpack.c.h.b16 %v2381
    %v2603 = vunpack.c.l.b16 %v2382
    %v2604 = vunpack.c.h.b16 %v2382
    %v2605 = vunpack.c.l.b16 %v2383
    %v2606 = vunpack.c.l.b16 %v2384
    %v2607 = vunpack.c.h.b16 %v2384
    %v2608 = vunpack.c.l.b16 %v2385
    %v2609 = vunpack.c.h.b16 %v2385
    %v2610 = vunpack.c.l.b16 %v2386
    %v2611 = vunpack.c.l.b16 %v2387
    %v2612 = vunpack.c.h.b16 %v2387
    %v2613 = vunpack.c.l.b16 %v2388
    %v2614 = vunpack.c.h.b16 %v2388
    %v2615 = vunpack.c.l.b16 %v2389
    %v2616 = vunpack.c.l.b16 %v2390
    %v2617 = vunpack.c.h.b16 %v2390
    %v2618 = vunpack.c.l.b16 %v2391
    %v2619 = vunpack.c.h.b16 %v2391
    %v2620 = vunpack.c.l.b16 %v2392
    %v2621 = vunpack.c.l.b16 %v2393
    %v2622 = vunpack.c.h.b16 %v2393
    %v2623 = vunpack.c.l.b16 %v2394
    %v2624 = vunpack.c.h.b16 %v2394
    %v2625 = vunpack.c.l.b16 %v2395
    %v2626 = vunpack.c.l.b16 %v2396
    %v2627 = vunpack.c.h.b16 %v2396
    %v2628 = vunpack.c.l.b16 %v2397
    %v2629 = vunpack.c.h.b16 %v2397
    %v2630 = vunpack.c.l.b16 %v2398
    %v2631 = vunpack.c.l.b16 %v2399
    %v2632 = vunpack.c.h.b16 %v2399
    %v2633 = vunpack.c.l.b16 %v2400
    %v2634 = vunpack.c.h.b16 %v2400
    %v2635 = vunpack.c.l.b16 %v2401
    %v2636 = vunpack.c.l.b16 %v2402
    %v2637 = vunpack.c.h.b16 %v2402
    %v2638 = vunpack.c.l.b16 %v2403
    %v2639 = vunpack.c.h.b16 %v2403
    %v2640 = vunpack.c.l.b16 %v2404
    %v2641 = vunpack.c.l.b16 %v2405
    %v2642 = vunpack.c.h.b16 %v2405
    %v2643 = vunpack.c.l.b16 %v2406
    %v2644 = vunpack.c.h.b16 %v2406
    %v2645 = vunpack.c.l.b16 %v2407
    %v2646 = vunpack.c.l.b16 %v2408
    %v2647 = vunpack.c.h.b16 %v2408
    %v2648 = vunpack.c.l.b16 %v2409
    %v2649 = vunpack.c.h.b16 %v2409
    %v2650 = vunpack.c.l.b16 %v2410
    %v2651 = vunpack.c.l.b16 %v2411
    %v2652 = vunpack.c.h.b16 %v2411
    %v2653 = vunpack.c.l.b16 %v2412
    %v2654 = vunpack.c.h.b16 %v2412
    %v2655 = vunpack.c.l.b16 %v2413
    %v2656 = vunpack.c.l.b16 %v2414
    %v2657 = vunpack.c.h.b16 %v2414
    %v2658 = vunpack.c.l.b16 %v2415
    %v2659 = vunpack.c.h.b16 %v2415
    %v2660 = vunpack.c.l.b16 %v2416
    %v2661 = vunpack.c.l.b16 %v2417
    %v2662 = vunpack.c.h.b16 %v2417
    %v2663 = vunpack.c.l.b16 %v2418
    %v2664 = vunpack.c.h.b16 %v2418
    %v2665 = vunpack.c.l.b16 %v2419
    %v2666 = vunpack.c.l.b16 %v2420
    %v2667 = vunpack.c.h.b16 %v2420
    %v2668 = vunpack.c.l.b16 %v2421
    %v2669 = vunpack.c.h.b16 %v2421
    %v2670 = vunpack.c.l.b16 %v2422
    %v2671 = vunpack.c.l.b16 %v2423
    %v2672 = vunpack.c.h.b16 %v2423
    %v2673 = vunpack.c.l.b16 %v2424
    %v2674 = vunpack.c.h.b16 %v2424
    %v2675 = vunpack.c.l.b16 %v2425
    %v2676 = vunpack.c.l.b16 %v2426
    %v2677 = vunpack.c.h.b16 %v2426
    %v2678 = vunpack.c.l.b16 %v2427
    %v2679 = vunpack.c.h.b16 %v2427
    %v2680 = vunpack.c.l.b16 %v2428
    %v2681 = vunpack.c.l.b16 %v2429
    %v2682 = vunpack.c.h.b16 %v2429
    %v2683 = vunpack.c.l.b16 %v2430
    %v2684 = vunpack.c.h.b16 %v2430
    %v2685 = vunpack.c.l.b16 %v2431
    %v2686 = vunpack.c.l.b16 %v2432
    %v2687 = vunpack.c.h.b16 %v2432
    %v2688 = vunpack.c.l.b16 %v2433
    %v2689 = vunpack.c.h.b16 %v2433
    %v2690 = vunpack.c.l.b16 %v2434
    %v2691 = vpack.c.b16 %v2536, %v2531
    %v2692 = vpack.c.b16 %v2537, %v2532
    %v2693 = vpack.c.b16 %v2538, %v2533
    %v2694 = vpack.c.b16 %v2539, %v2534
    %v2695 = vpack.c.b16 %v2540, %v2535
    %v2696 = vpack.c.b16 %v2546, %v2541
    %v2697 = vpack.c.b16 %v2547, %v2542
    %v2698 = vpack.c.b16 %v2548, %v2543
    %v2699 = vpack.c.b16 %v2549, %v2544
    %v2700 = vpack.c.b16 %v2550, %v2545
    %v2701 = vpack.c.b16 %v2556, %v2551
    %v2702 = vpack.c.b16 %v2557, %v2552
    %v2703 = vpack.c.b16 %v2558, %v2553
    %v2704 = vpack.c.b16 %v2559, %v2554
    %v2705 = vpack.c.b16 %v2560, %v2555
    %v2706 = vpack.c.b16 %v2566, %v2561
    %v2707 = vpack.c.b16 %v2567, %v2562
    %v2708 = vpack.c.b16 %v2568, %v2563
    %v2709 = vpack.c.b16 %v2569, %v2564
    %v2710 = vpack.c.b16 %v2570, %v2565
    %v2711 = vpack.c.b16 %v2576, %v2571
    %v2712 = vpack.c.b16 %v2577, %v2572
    %v2713 = vpack.c.b16 %v2578, %v2573
    %v2714 = vpack.c.b16 %v2579, %v2574
    %v2715 = vpack.c.b16 %v2580, %v2575
    %v2716 = vpack.c.b16 %v2586, %v2581
    %v2717 = vpack.c.b16 %v2587, %v2582
    %v2718 = vpack.c.b16 %v2588, %v2583
    %v2719 = vpack.c.b16 %v2589, %v2584
    %v2720 = vpack.c.b16 %v2590, %v2585
    %v2721 = vpack.c.b16 %v2596, %v2591
    %v2722 = vpack.c.b16 %v2597, %v2592
    %v2723 = vpack.c.b16 %v2598, %v2593
    %v2724 = vpack.c.b16 %v2599, %v2594
    %v2725 = vpack.c.b16 %v2600, %v2595
    %v2726 = vpack.c.b16 %v2606, %v2601
    %v2727 = vpack.c.b16 %v2607, %v2602
    %v2728 = vpack.c.b16 %v2608, %v2603
    %v2729 = vpack.c.b16 %v2609, %v2604
    %v2730 = vpack.c.b16 %v2610, %v2605
    %v2731 = vpack.c.b16 %v2616, %v2611
    %v2732 = vpack.c.b16 %v2617, %v2612
    %v2733 = vpack.c.b16 %v2618, %v2613
    %v2734 = vpack.c.b16 %v2619, %v2614
    %v2735 = vpack.c.b16 %v2620, %v2615
    %v2736 = vpack.c.b16 %v2626, %v2621
    %v2737 = vpack.c.b16 %v2627, %v2622
    %v2738 = vpack.c.b16 %v2628, %v2623
    %v2739 = vpack.c.b16 %v2629, %v2624
    %v2740 = vpack.c.b16 %v2630, %v2625
    %v2741 = vpack.c.b16 %v2636, %v2631
    %v2742 = vpack.c.b16 %v2637, %v2632
    %v2743 = vpack.c.b16 %v2638, %v2633
    %v2744 = vpack.c.b16 %v2639, %v2634
    %v2745 = vpack.c.b16 %v2640, %v2635
    %v2746 = vpack.c.b16 %v2646, %v2641
    %v2747 = vpack.c.b16 %v2647, %v2642
    %v2748 = vpack.c.b16 %v2648, %v2643
    %v2749 = vpack.c.b16 %v2649, %v2644
    %v2750 = vpack.c.b16 %v2650, %v2645
    %v2751 = vpack.c.b16 %v2656, %v2651
    %v2752 = vpack.c.b16 %v2657, %v2652
    %v2753 = vpack.c.b16 %v2658, %v2653
    %v2754 = vpack.c.b16 %v2659, %v2654
    %v2755 = vpack.c.b16 %v2660, %v2655
    %v2756 = vpack.c.b16 %v2666, %v2661
    %v2757 = vpack.c.b16 %v2667, %v2662
    %v2758 = vpack.c.b16 %v2668, %v2663
    %v2759 = vpack.c.b16 %v2669, %v2664
    %v2760 = vpack.c.b16 %v2670, %v2665
    %v2761 = vpack.c.b16 %v2676, %v2671
    %v2762 = vpack.c.b16 %v2677, %v2672
    %v2763 = vpack.c.b16 %v2678, %v2673
    %v2764 = vpack.c.b16 %v2679, %v2674
    %v2765 = vpack.c.b16 %v2680, %v2675
    %v2766 = vpack.c.b16 %v2686, %v2681
    %v2767 = vpack.c.b16 %v2687, %v2682
    %v2768 = vpack.c.b16 %v2688, %v2683
    %v2769 = vpack.c.b16 %v2689, %v2684
    %v2770 = vpack.c.b16 %v2690, %v2685
    %2851 = vmatprep.subr.bf16.mxu0 %v2692
    %2852 = vmatpush1.bf16.msra.mxu0 %v2691
    %2853 = vmatprep.subr.bf16.mxu0 %v2697
    %2854 = vmatpush1.bf16.msra.mxu0 %v2696
    %2855 = vmatprep.subr.bf16.mxu0 %v2702
    %2856 = vmatpush1.bf16.msra.mxu0 %v2701
    %2857 = vmatprep.subr.bf16.mxu0 %v2707
    %2858 = vmatpush1.bf16.msra.mxu0 %v2706
    %2859 = vmatprep.subr.bf16.mxu0 %v2712
    %2860 = vmatpush1.bf16.msra.mxu0 %v2711
    %2861 = vmatprep.subr.bf16.mxu0 %v2717
    %2862 = vmatpush1.bf16.msra.mxu0 %v2716
    %2863 = vmatprep.subr.bf16.mxu0 %v2722
    %2864 = vmatpush1.bf16.msra.mxu0 %v2721
    %2865 = vmatprep.subr.bf16.mxu0 %v2727
    %2866 = vmatpush1.bf16.msra.mxu0 %v2726
    %2867 = vmatprep.subr.bf16.mxu0 %v2732
    %2868 = vmatpush1.bf16.msra.mxu0 %v2731
    %2869 = vmatprep.subr.bf16.mxu0 %v2737
    %2870 = vmatpush1.bf16.msra.mxu0 %v2736
    %2871 = vmatprep.subr.bf16.mxu0 %v2742
    %2872 = vmatpush1.bf16.msra.mxu0 %v2741
    %2873 = vmatprep.subr.bf16.mxu0 %v2747
    %2874 = vmatpush1.bf16.msra.mxu0 %v2746
    %2875 = vmatprep.subr.bf16.mxu0 %v2752
    %2876 = vmatpush1.bf16.msra.mxu0 %v2751
    %2877 = vmatprep.subr.bf16.mxu0 %v2757
    %2878 = vmatpush1.bf16.msra.mxu0 %v2756
    %2879 = vmatprep.subr.bf16.mxu0 %v2762
    %2880 = vmatpush1.bf16.msra.mxu0 %v2761
    %2881 = vmatprep.subr.bf16.mxu0 %v2767
    %2882 = vmatpush1.bf16.msra.mxu0 %v2766
    %2883 = vmatprep.mubr.bf16.mxu0 %v2338
    %2884 = vmatmul.mubr.bf16.gmra.mrb[0].mxu0 %v2337
    %v2885 = vpop.f32.mrb[0].mxu0
    %v2886 = vadd.f32 0.0, %v2885
    %v2887 = vpop.f32.mrb[0].mxu0
    %v2888 = vadd.f32 0.0, %v2887
    %v2889 = vpop.f32.mrb[0].mxu0
    %v2890 = vadd.f32 0.0, %v2889
    %v2891 = vpop.f32.mrb[0].mxu0
    %v2892 = vadd.f32 0.0, %v2891
    %2893 = vdwg.mxu0
    %2894 = vmatprep.subr.bf16.mxu0 %v2694
    %2895 = vmatpush1.bf16.msra.mxu0 %v2693
    %2896 = vmatprep.subr.bf16.mxu0 %v2699
    %2897 = vmatpush1.bf16.msra.mxu0 %v2698
    %2898 = vmatprep.subr.bf16.mxu0 %v2704
    %2899 = vmatpush1.bf16.msra.mxu0 %v2703
    %2900 = vmatprep.subr.bf16.mxu0 %v2709
    %2901 = vmatpush1.bf16.msra.mxu0 %v2708
    %2902 = vmatprep.subr.bf16.mxu0 %v2714
    %2903 = vmatpush1.bf16.msra.mxu0 %v2713
    %2904 = vmatprep.subr.bf16.mxu0 %v2719
    %2905 = vmatpush1.bf16.msra.mxu0 %v2718
    %2906 = vmatprep.subr.bf16.mxu0 %v2724
    %2907 = vmatpush1.bf16.msra.mxu0 %v2723
    %2908 = vmatprep.subr.bf16.mxu0 %v2729
    %2909 = vmatpush1.bf16.msra.mxu0 %v2728
    %2910 = vmatprep.subr.bf16.mxu0 %v2734
    %2911 = vmatpush1.bf16.msra.mxu0 %v2733
    %2912 = vmatprep.subr.bf16.mxu0 %v2739
    %2913 = vmatpush1.bf16.msra.mxu0 %v2738
    %2914 = vmatprep.subr.bf16.mxu0 %v2744
    %2915 = vmatpush1.bf16.msra.mxu0 %v2743
    %2916 = vmatprep.subr.bf16.mxu0 %v2749
    %2917 = vmatpush1.bf16.msra.mxu0 %v2748
    %2918 = vmatprep.subr.bf16.mxu0 %v2754
    %2919 = vmatpush1.bf16.msra.mxu0 %v2753
    %2920 = vmatprep.subr.bf16.mxu0 %v2759
    %2921 = vmatpush1.bf16.msra.mxu0 %v2758
    %2922 = vmatprep.subr.bf16.mxu0 %v2764
    %2923 = vmatpush1.bf16.msra.mxu0 %v2763
    %2924 = vmatprep.subr.bf16.mxu0 %v2769
    %2925 = vmatpush1.bf16.msra.mxu0 %v2768
    %2926 = vmatprep.mubr.bf16.mxu0 %v2338
    %2927 = vmatmul.mubr.bf16.gmra.mrb[0].mxu0 %v2337
    %v2928 = vpop.f32.mrb[0].mxu0
    %v2929 = vadd.f32 0.0, %v2928
    %v2930 = vpop.f32.mrb[0].mxu0
    %v2931 = vadd.f32 0.0, %v2930
    %v2932 = vpop.f32.mrb[0].mxu0
    %v2933 = vadd.f32 0.0, %v2932
    %v2934 = vpop.f32.mrb[0].mxu0
    %v2935 = vadd.f32 0.0, %v2934
    %2936 = vdwg.mxu0
    %2937 = vmatprep.subr.bf16.mxu0 0
    %2938 = vmatpush1.bf16.msra.mxu0 %v2695
    %2939 = vmatprep.subr.bf16.mxu0 0
    %2940 = vmatpush1.bf16.msra.mxu0 %v2700
    %2941 = vmatprep.subr.bf16.mxu0 0
    %2942 = vmatpush1.bf16.msra.mxu0 %v2705
    %2943 = vmatprep.subr.bf16.mxu0 0
    %2944 = vmatpush1.bf16.msra.mxu0 %v2710
    %2945 = vmatprep.subr.bf16.mxu0 0
    %2946 = vmatpush1.bf16.msra.mxu0 %v2715
    %2947 = vmatprep.subr.bf16.mxu0 0
    %2948 = vmatpush1.bf16.msra.mxu0 %v2720
    %2949 = vmatprep.subr.bf16.mxu0 0
    %2950 = vmatpush1.bf16.msra.mxu0 %v2725
    %2951 = vmatprep.subr.bf16.mxu0 0
    %2952 = vmatpush1.bf16.msra.mxu0 %v2730
    %2953 = vmatprep.subr.bf16.mxu0 0
    %2954 = vmatpush1.bf16.msra.mxu0 %v2735
    %2955 = vmatprep.subr.bf16.mxu0 0
    %2956 = vmatpush1.bf16.msra.mxu0 %v2740
    %2957 = vmatprep.subr.bf16.mxu0 0
    %2958 = vmatpush1.bf16.msra.mxu0 %v2745
    %2959 = vmatprep.subr.bf16.mxu0 0
    %2960 = vmatpush1.bf16.msra.mxu0 %v2750
    %2961 = vmatprep.subr.bf16.mxu0 0
    %2962 = vmatpush1.bf16.msra.mxu0 %v2755
    %2963 = vmatprep.subr.bf16.mxu0 0
    %2964 = vmatpush1.bf16.msra.mxu0 %v2760
    %2965 = vmatprep.subr.bf16.mxu0 0
    %2966 = vmatpush1.bf16.msra.mxu0 %v2765
    %2967 = vmatprep.subr.bf16.mxu0 0
    %2968 = vmatpush1.bf16.msra.mxu0 %v2770
    %2969 = vmatprep.mubr.bf16.mxu0 %v2338
    %2970 = vmatmul.mubr.bf16.gmra.mrb[0].mxu0 %v2337
    %v2971 = vpop.f32.mrb[0].mxu0
    %v2972 = vadd.f32 0.0, %v2971
    %v2973 = vpop.f32.mrb[0].mxu0
    %v2974 = vpop.f32.mrb[0].mxu0
    %v2975 = vadd.f32 0.0, %v2974
    %v2976 = vpop.f32.mrb[0].mxu0
    %2977 = vdwg.mxu0
    %2978 = vst [vmem:[#allocation6] sm:$0xff] %v2886
    %2979 = vst [vmem:[#allocation6 + $0x8] sm:$0xff] %v2888
    %2980 = vst [vmem:[#allocation6 + $0x10] sm:$0xff] %v2929
    %2981 = vst [vmem:[#allocation6 + $0x18] sm:$0xff] %v2931
    %2982 = vst [vmem:[#allocation6 + $0x20] sm:$0xff] %v2972
    %2983 = vst [vmem:[#allocation6 + $0x28] sm:$0xff] %v2890
    %2984 = vst [vmem:[#allocation6 + $0x30] sm:$0xff] %v2892
    %2985 = vst [vmem:[#allocation6 + $0x38] sm:$0xff] %v2933
    %2986 = vst [vmem:[#allocation6 + $0x40] sm:$0xff] %v2935
    %2987 = vst [vmem:[#allocation6 + $0x48] sm:$0xff] %v2975
    %v2988 = vld [vmem:[#allocation6] sm:$0xff]
    %v2989 = vld [vmem:[#allocation6 + $0x8] sm:$0xff]
    %v2990 = vld [vmem:[#allocation6 + $0x10] sm:$0xff]
    %v2991 = vld [vmem:[#allocation6 + $0x18] sm:$0xff]
    %v2992 = vld [vmem:[#allocation6 + $0x28] sm:$0xff]
    %v2993 = vld [vmem:[#allocation6 + $0x30] sm:$0xff]
    %v2994 = vld [vmem:[#allocation6 + $0x38] sm:$0xff]
    %v2995 = vld [vmem:[#allocation6 + $0x40] sm:$0xff]
    %2996 = vst [vmem:[#allocation7] sm:$0xff] %v2988
    %2997 = vst [vmem:[#allocation7 + $0x8] sm:$0xff] %v2989
    %2998 = vst [vmem:[#allocation7 + $0x10] sm:$0xff] %v2990
    %2999 = vst [vmem:[#allocation7 + $0x18] sm:$0xff] %v2991
    %3000 = vst [vmem:[#allocation7 + $0x20] sm:$0xff] %v2992
    %3001 = vst [vmem:[#allocation7 + $0x28] sm:$0xff] %v2993
    %3002 = vst [vmem:[#allocation7 + $0x30] sm:$0xff] %v2994
    %3003 = vst [vmem:[#allocation7 + $0x38] sm:$0xff] %v2995
    %v3004 = vld [vmem:[#allocation6] sm:$0xff]
    %v3005 = vld [vmem:[#allocation6 + $0x8] sm:$0xff]
    %v3006 = vld [vmem:[#allocation6 + $0x10] sm:$0xff]
    %v3007 = vld [vmem:[#allocation6 + $0x18] sm:$0xff]
    %v3008 = vld [vmem:[#allocation6 + $0x20] sm:$0xff]
    %v3009 = vld [vmem:[#allocation6 + $0x28] sm:$0xff]
    %v3010 = vld [vmem:[#allocation6 + $0x30] sm:$0xff]
    %v3011 = vld [vmem:[#allocation6 + $0x38] sm:$0xff]
    %v3012 = vld [vmem:[#allocation6 + $0x40] sm:$0xff]
    %v3013 = vld [vmem:[#allocation6 + $0x48] sm:$0xff]
    %3024 = vrot.lane.b32.xlu0 %v3004, 127
    %v3025 = vpop.permute.xlu0 %3024
    %3026 = vrot.lane.b32.xlu0 %v3005, 127
    %v3027 = vpop.permute.xlu0 %3026
    %3028 = vrot.lane.b32.xlu0 %v3006, 127
    %v3029 = vpop.permute.xlu0 %3028
    %3030 = vrot.lane.b32.xlu0 %v3007, 127
    %v3031 = vpop.permute.xlu0 %3030
    %3032 = vrot.lane.b32.xlu0 %v3008, 127
    %v3033 = vpop.permute.xlu0 %3032
    %3034 = vrot.lane.b32.xlu0 %v3009, 127
    %v3035 = vpop.permute.xlu0 %3034
    %3036 = vrot.lane.b32.xlu0 %v3010, 127
    %v3037 = vpop.permute.xlu0 %3036
    %3038 = vrot.lane.b32.xlu0 %v3011, 127
    %v3039 = vpop.permute.xlu0 %3038
    %3040 = vrot.lane.b32.xlu0 %v3012, 127
    %v3041 = vpop.permute.xlu0 %3040
    %3042 = vrot.lane.b32.xlu0 %v3013, 127
    %v3043 = vpop.permute.xlu0 %3042
    %v3044 = vsel %vm348, %v3025, %v3027
    %v3045 = vsel %vm348, %v3027, %v3029
    %v3046 = vsel %vm348, %v3029, %v3031
    %v3047 = vsel %vm348, %v3031, %v3033
    %v3048 = vsel %vm348, %v3035, %v3037
    %v3049 = vsel %vm348, %v3037, %v3039
    %v3050 = vsel %vm348, %v3039, %v3041
    %v3051 = vsel %vm348, %v3041, %v3043
    %3060 = vst [vmem:[#allocation7 + $0x40] sm:$0xff] %v3044
    %3061 = vst [vmem:[#allocation7 + $0x48] sm:$0xff] %v3045
    %3062 = vst [vmem:[#allocation7 + $0x50] sm:$0xff] %v3046
    %3063 = vst [vmem:[#allocation7 + $0x58] sm:$0xff] %v3047
    %3064 = vst [vmem:[#allocation7 + $0x60] sm:$0xff] %v3048
    %3065 = vst [vmem:[#allocation7 + $0x68] sm:$0xff] %v3049
    %3066 = vst [vmem:[#allocation7 + $0x70] sm:$0xff] %v3050
    %3067 = vst [vmem:[#allocation7 + $0x78] sm:$0xff] %v3051
    %v3068 = vld [vmem:[#allocation6] sm:$0xff]
    %v3069 = vld [vmem:[#allocation6 + $0x8] sm:$0xff]
    %v3070 = vld [vmem:[#allocation6 + $0x10] sm:$0xff]
    %v3071 = vld [vmem:[#allocation6 + $0x18] sm:$0xff]
    %v3072 = vld [vmem:[#allocation6 + $0x20] sm:$0xff]
    %v3073 = vld [vmem:[#allocation6 + $0x28] sm:$0xff]
    %v3074 = vld [vmem:[#allocation6 + $0x30] sm:$0xff]
    %v3075 = vld [vmem:[#allocation6 + $0x38] sm:$0xff]
    %v3076 = vld [vmem:[#allocation6 + $0x40] sm:$0xff]
    %v3077 = vld [vmem:[#allocation6 + $0x48] sm:$0xff]
    %3088 = vrot.lane.b32.xlu0 %v3068, 126
    %v3089 = vpop.permute.xlu0 %3088
    %3090 = vrot.lane.b32.xlu0 %v3069, 126
    %v3091 = vpop.permute.xlu0 %3090
    %3092 = vrot.lane.b32.xlu0 %v3070, 126
    %v3093 = vpop.permute.xlu0 %3092
    %3094 = vrot.lane.b32.xlu0 %v3071, 126
    %v3095 = vpop.permute.xlu0 %3094
    %3096 = vrot.lane.b32.xlu0 %v3072, 126
    %v3097 = vpop.permute.xlu0 %3096
    %3098 = vrot.lane.b32.xlu0 %v3073, 126
    %v3099 = vpop.permute.xlu0 %3098
    %3100 = vrot.lane.b32.xlu0 %v3074, 126
    %v3101 = vpop.permute.xlu0 %3100
    %3102 = vrot.lane.b32.xlu0 %v3075, 126
    %v3103 = vpop.permute.xlu0 %3102
    %3104 = vrot.lane.b32.xlu0 %v3076, 126
    %v3105 = vpop.permute.xlu0 %3104
    %3106 = vrot.lane.b32.xlu0 %v3077, 126
    %v3107 = vpop.permute.xlu0 %3106
    %v3108 = vsel %vm360, %v3089, %v3091
    %v3109 = vsel %vm360, %v3091, %v3093
    %v3110 = vsel %vm360, %v3093, %v3095
    %v3111 = vsel %vm360, %v3095, %v3097
    %v3112 = vsel %vm360, %v3099, %v3101
    %v3113 = vsel %vm360, %v3101, %v3103
    %v3114 = vsel %vm360, %v3103, %v3105
    %v3115 = vsel %vm360, %v3105, %v3107
    %3124 = vst [vmem:[#allocation7 + $0x80] sm:$0xff] %v3108
    %3125 = vst [vmem:[#allocation7 + $0x88] sm:$0xff] %v3109
    %3126 = vst [vmem:[#allocation7 + $0x90] sm:$0xff] %v3110
    %3127 = vst [vmem:[#allocation7 + $0x98] sm:$0xff] %v3111
    %3128 = vst [vmem:[#allocation7 + $0xa0] sm:$0xff] %v3112
    %3129 = vst [vmem:[#allocation7 + $0xa8] sm:$0xff] %v3113
    %3130 = vst [vmem:[#allocation7 + $0xb0] sm:$0xff] %v3114
    %3131 = vst [vmem:[#allocation7 + $0xb8] sm:$0xff] %v3115
    %v3132 = vld [vmem:[#allocation6] sm:$0xff]
    %v3133 = vld [vmem:[#allocation6 + $0x8] sm:$0xff]
    %v3134 = vld [vmem:[#allocation6 + $0x10] sm:$0xff]
    %v3135 = vld [vmem:[#allocation6 + $0x18] sm:$0xff]
    %v3136 = vld [vmem:[#allocation6 + $0x20] sm:$0xff]
    %v3137 = vld [vmem:[#allocation6 + $0x28] sm:$0xff]
    %v3138 = vld [vmem:[#allocation6 + $0x30] sm:$0xff]
    %v3139 = vld [vmem:[#allocation6 + $0x38] sm:$0xff]
    %v3140 = vld [vmem:[#allocation6 + $0x40] sm:$0xff]
    %v3141 = vld [vmem:[#allocation6 + $0x48] sm:$0xff]
    %3152 = vrot.lane.b32.xlu0 %v3132, 113
    %v3153 = vpop.permute.xlu0 %3152
    %3154 = vrot.lane.b32.xlu0 %v3133, 113
    %v3155 = vpop.permute.xlu0 %3154
    %3156 = vrot.lane.b32.xlu0 %v3134, 113
    %v3157 = vpop.permute.xlu0 %3156
    %3158 = vrot.lane.b32.xlu0 %v3135, 113
    %v3159 = vpop.permute.xlu0 %3158
    %3160 = vrot.lane.b32.xlu0 %v3136, 113
    %v3161 = vpop.permute.xlu0 %3160
    %3162 = vrot.lane.b32.xlu0 %v3137, 113
    %v3163 = vpop.permute.xlu0 %3162
    %3164 = vrot.lane.b32.xlu0 %v3138, 113
    %v3165 = vpop.permute.xlu0 %3164
    %3166 = vrot.lane.b32.xlu0 %v3139, 113
    %v3167 = vpop.permute.xlu0 %3166
    %3168 = vrot.lane.b32.xlu0 %v3140, 113
    %v3169 = vpop.permute.xlu0 %3168
    %3170 = vrot.lane.b32.xlu0 %v3141, 113
    %v3171 = vpop.permute.xlu0 %3170
    %vm3172 = vcmask 924672
    %v3173 = vsel %vm3172, %v3153, %v3155
    %v3174 = vsel %vm3172, %v3155, %v3157
    %v3175 = vsel %vm3172, %v3157, %v3159
    %v3176 = vsel %vm3172, %v3159, %v3161
    %v3177 = vsel %vm3172, %v3163, %v3165
    %v3178 = vsel %vm3172, %v3165, %v3167
    %v3179 = vsel %vm3172, %v3167, %v3169
    %v3180 = vsel %vm3172, %v3169, %v3171
    %3189 = vst [vmem:[#allocation7 + $0xc0] sm:$0xff] %v3173
    %3190 = vst [vmem:[#allocation7 + $0xc8] sm:$0xff] %v3174
    %3191 = vst [vmem:[#allocation7 + $0xd0] sm:$0xff] %v3175
    %3192 = vst [vmem:[#allocation7 + $0xd8] sm:$0xff] %v3176
    %3193 = vst [vmem:[#allocation7 + $0xe0] sm:$0xff] %v3177
    %3194 = vst [vmem:[#allocation7 + $0xe8] sm:$0xff] %v3178
    %3195 = vst [vmem:[#allocation7 + $0xf0] sm:$0xff] %v3179
    %3196 = vst [vmem:[#allocation7 + $0xf8] sm:$0xff] %v3180
    %v3197 = vld [vmem:[#allocation6] sm:$0xff]
    %v3198 = vld [vmem:[#allocation6 + $0x8] sm:$0xff]
    %v3199 = vld [vmem:[#allocation6 + $0x10] sm:$0xff]
    %v3200 = vld [vmem:[#allocation6 + $0x18] sm:$0xff]
    %v3201 = vld [vmem:[#allocation6 + $0x20] sm:$0xff]
    %v3202 = vld [vmem:[#allocation6 + $0x28] sm:$0xff]
    %v3203 = vld [vmem:[#allocation6 + $0x30] sm:$0xff]
    %v3204 = vld [vmem:[#allocation6 + $0x38] sm:$0xff]
    %v3205 = vld [vmem:[#allocation6 + $0x40] sm:$0xff]
    %v3206 = vld [vmem:[#allocation6 + $0x48] sm:$0xff]
    %3217 = vrot.lane.b32.xlu0 %v3197, 112
    %v3218 = vpop.permute.xlu0 %3217
    %3219 = vrot.lane.b32.xlu0 %v3198, 112
    %v3220 = vpop.permute.xlu0 %3219
    %3221 = vrot.lane.b32.xlu0 %v3199, 112
    %v3222 = vpop.permute.xlu0 %3221
    %3223 = vrot.lane.b32.xlu0 %v3200, 112
    %v3224 = vpop.permute.xlu0 %3223
    %3225 = vrot.lane.b32.xlu0 %v3201, 112
    %v3226 = vpop.permute.xlu0 %3225
    %3227 = vrot.lane.b32.xlu0 %v3202, 112
    %v3228 = vpop.permute.xlu0 %3227
    %3229 = vrot.lane.b32.xlu0 %v3203, 112
    %v3230 = vpop.permute.xlu0 %3229
    %3231 = vrot.lane.b32.xlu0 %v3204, 112
    %v3232 = vpop.permute.xlu0 %3231
    %3233 = vrot.lane.b32.xlu0 %v3205, 112
    %v3234 = vpop.permute.xlu0 %3233
    %3235 = vrot.lane.b32.xlu0 %v3206, 112
    %v3236 = vpop.permute.xlu0 %3235
    %vm3237 = vcmask 916480
    %v3238 = vsel %vm3237, %v3218, %v3220
    %v3239 = vsel %vm3237, %v3220, %v3222
    %v3240 = vsel %vm3237, %v3222, %v3224
    %v3241 = vsel %vm3237, %v3224, %v3226
    %v3242 = vsel %vm3237, %v3228, %v3230
    %v3243 = vsel %vm3237, %v3230, %v3232
    %v3244 = vsel %vm3237, %v3232, %v3234
    %v3245 = vsel %vm3237, %v3234, %v3236
    %3254 = vst [vmem:[#allocation7 + $0x100] sm:$0xff] %v3238
    %3255 = vst [vmem:[#allocation7 + $0x108] sm:$0xff] %v3239
    %3256 = vst [vmem:[#allocation7 + $0x110] sm:$0xff] %v3240
    %3257 = vst [vmem:[#allocation7 + $0x118] sm:$0xff] %v3241
    %3258 = vst [vmem:[#allocation7 + $0x120] sm:$0xff] %v3242
    %3259 = vst [vmem:[#allocation7 + $0x128] sm:$0xff] %v3243
    %3260 = vst [vmem:[#allocation7 + $0x130] sm:$0xff] %v3244
    %3261 = vst [vmem:[#allocation7 + $0x138] sm:$0xff] %v3245
    %v3262 = vld [vmem:[#allocation6] sm:$0xff]
    %v3263 = vld [vmem:[#allocation6 + $0x8] sm:$0xff]
    %v3264 = vld [vmem:[#allocation6 + $0x10] sm:$0xff]
    %v3265 = vld [vmem:[#allocation6 + $0x18] sm:$0xff]
    %v3266 = vld [vmem:[#allocation6 + $0x20] sm:$0xff]
    %v3267 = vld [vmem:[#allocation6 + $0x28] sm:$0xff]
    %v3268 = vld [vmem:[#allocation6 + $0x30] sm:$0xff]
    %v3269 = vld [vmem:[#allocation6 + $0x38] sm:$0xff]
    %v3270 = vld [vmem:[#allocation6 + $0x40] sm:$0xff]
    %v3271 = vld [vmem:[#allocation6 + $0x48] sm:$0xff]
    %3282 = vrot.lane.b32.xlu0 %v3262, 111
    %v3283 = vpop.permute.xlu0 %3282
    %3284 = vrot.lane.b32.xlu0 %v3263, 111
    %v3285 = vpop.permute.xlu0 %3284
    %3286 = vrot.lane.b32.xlu0 %v3264, 111
    %v3287 = vpop.permute.xlu0 %3286
    %3288 = vrot.lane.b32.xlu0 %v3265, 111
    %v3289 = vpop.permute.xlu0 %3288
    %3290 = vrot.lane.b32.xlu0 %v3266, 111
    %v3291 = vpop.permute.xlu0 %3290
    %3292 = vrot.lane.b32.xlu0 %v3267, 111
    %v3293 = vpop.permute.xlu0 %3292
    %3294 = vrot.lane.b32.xlu0 %v3268, 111
    %v3295 = vpop.permute.xlu0 %3294
    %3296 = vrot.lane.b32.xlu0 %v3269, 111
    %v3297 = vpop.permute.xlu0 %3296
    %3298 = vrot.lane.b32.xlu0 %v3270, 111
    %v3299 = vpop.permute.xlu0 %3298
    %3300 = vrot.lane.b32.xlu0 %v3271, 111
    %v3301 = vpop.permute.xlu0 %3300
    %vm3302 = vcmask 908288
    %v3303 = vsel %vm3302, %v3283, %v3285
    %v3304 = vsel %vm3302, %v3285, %v3287
    %v3305 = vsel %vm3302, %v3287, %v3289
    %v3306 = vsel %vm3302, %v3289, %v3291
    %v3307 = vsel %vm3302, %v3293, %v3295
    %v3308 = vsel %vm3302, %v3295, %v3297
    %v3309 = vsel %vm3302, %v3297, %v3299
    %v3310 = vsel %vm3302, %v3299, %v3301
    %3319 = vst [vmem:[#allocation7 + $0x140] sm:$0xff] %v3303
    %3320 = vst [vmem:[#allocation7 + $0x148] sm:$0xff] %v3304
    %3321 = vst [vmem:[#allocation7 + $0x150] sm:$0xff] %v3305
    %3322 = vst [vmem:[#allocation7 + $0x158] sm:$0xff] %v3306
    %3323 = vst [vmem:[#allocation7 + $0x160] sm:$0xff] %v3307
    %3324 = vst [vmem:[#allocation7 + $0x168] sm:$0xff] %v3308
    %3325 = vst [vmem:[#allocation7 + $0x170] sm:$0xff] %v3309
    %3326 = vst [vmem:[#allocation7 + $0x178] sm:$0xff] %v3310
    %v3327 = vld [vmem:[#allocation6] sm:$0xff]
    %v3328 = vld [vmem:[#allocation6 + $0x8] sm:$0xff]
    %v3329 = vld [vmem:[#allocation6 + $0x10] sm:$0xff]
    %v3330 = vld [vmem:[#allocation6 + $0x18] sm:$0xff]
    %v3331 = vld [vmem:[#allocation6 + $0x20] sm:$0xff]
    %v3332 = vld [vmem:[#allocation6 + $0x28] sm:$0xff]
    %v3333 = vld [vmem:[#allocation6 + $0x30] sm:$0xff]
    %v3334 = vld [vmem:[#allocation6 + $0x38] sm:$0xff]
    %v3335 = vld [vmem:[#allocation6 + $0x40] sm:$0xff]
    %v3336 = vld [vmem:[#allocation6 + $0x48] sm:$0xff]
    %3347 = vrot.lane.b32.xlu0 %v3327, 98
    %v3348 = vpop.permute.xlu0 %3347
    %3349 = vrot.lane.b32.xlu0 %v3328, 98
    %v3350 = vpop.permute.xlu0 %3349
    %3351 = vrot.lane.b32.xlu0 %v3329, 98
    %v3352 = vpop.permute.xlu0 %3351
    %3353 = vrot.lane.b32.xlu0 %v3330, 98
    %v3354 = vpop.permute.xlu0 %3353
    %3355 = vrot.lane.b32.xlu0 %v3331, 98
    %v3356 = vpop.permute.xlu0 %3355
    %3357 = vrot.lane.b32.xlu0 %v3332, 98
    %v3358 = vpop.permute.xlu0 %3357
    %3359 = vrot.lane.b32.xlu0 %v3333, 98
    %v3360 = vpop.permute.xlu0 %3359
    %3361 = vrot.lane.b32.xlu0 %v3334, 98
    %v3362 = vpop.permute.xlu0 %3361
    %3363 = vrot.lane.b32.xlu0 %v3335, 98
    %v3364 = vpop.permute.xlu0 %3363
    %3365 = vrot.lane.b32.xlu0 %v3336, 98
    %v3366 = vpop.permute.xlu0 %3365
    %v3367 = vsel %vm1952, %v3348, %v3350
    %v3368 = vsel %vm1952, %v3350, %v3352
    %v3369 = vsel %vm1952, %v3352, %v3354
    %v3370 = vsel %vm1952, %v3354, %v3356
    %v3371 = vsel %vm1952, %v3358, %v3360
    %v3372 = vsel %vm1952, %v3360, %v3362
    %v3373 = vsel %vm1952, %v3362, %v3364
    %v3374 = vsel %vm1952, %v3364, %v3366
    %3383 = vst [vmem:[#allocation7 + $0x180] sm:$0xff] %v3367
    %3384 = vst [vmem:[#allocation7 + $0x188] sm:$0xff] %v3368
    %3385 = vst [vmem:[#allocation7 + $0x190] sm:$0xff] %v3369
    %3386 = vst [vmem:[#allocation7 + $0x198] sm:$0xff] %v3370
    %3387 = vst [vmem:[#allocation7 + $0x1a0] sm:$0xff] %v3371
    %3388 = vst [vmem:[#allocation7 + $0x1a8] sm:$0xff] %v3372
    %3389 = vst [vmem:[#allocation7 + $0x1b0] sm:$0xff] %v3373
    %3390 = vst [vmem:[#allocation7 + $0x1b8] sm:$0xff] %v3374
    %v3391 = vld [vmem:[#allocation6] sm:$0xff]
    %v3392 = vld [vmem:[#allocation6 + $0x8] sm:$0xff]
    %v3393 = vld [vmem:[#allocation6 + $0x10] sm:$0xff]
    %v3394 = vld [vmem:[#allocation6 + $0x18] sm:$0xff]
    %v3395 = vld [vmem:[#allocation6 + $0x20] sm:$0xff]
    %v3396 = vld [vmem:[#allocation6 + $0x28] sm:$0xff]
    %v3397 = vld [vmem:[#allocation6 + $0x30] sm:$0xff]
    %v3398 = vld [vmem:[#allocation6 + $0x38] sm:$0xff]
    %v3399 = vld [vmem:[#allocation6 + $0x40] sm:$0xff]
    %v3400 = vld [vmem:[#allocation6 + $0x48] sm:$0xff]
    %3411 = vrot.lane.b32.xlu0 %v3391, 97
    %v3412 = vpop.permute.xlu0 %3411
    %3413 = vrot.lane.b32.xlu0 %v3392, 97
    %v3414 = vpop.permute.xlu0 %3413
    %3415 = vrot.lane.b32.xlu0 %v3393, 97
    %v3416 = vpop.permute.xlu0 %3415
    %3417 = vrot.lane.b32.xlu0 %v3394, 97
    %v3418 = vpop.permute.xlu0 %3417
    %3419 = vrot.lane.b32.xlu0 %v3395, 97
    %v3420 = vpop.permute.xlu0 %3419
    %3421 = vrot.lane.b32.xlu0 %v3396, 97
    %v3422 = vpop.permute.xlu0 %3421
    %3423 = vrot.lane.b32.xlu0 %v3397, 97
    %v3424 = vpop.permute.xlu0 %3423
    %3425 = vrot.lane.b32.xlu0 %v3398, 97
    %v3426 = vpop.permute.xlu0 %3425
    %3427 = vrot.lane.b32.xlu0 %v3399, 97
    %v3428 = vpop.permute.xlu0 %3427
    %3429 = vrot.lane.b32.xlu0 %v3400, 97
    %v3430 = vpop.permute.xlu0 %3429
    %vm3431 = vcmask 793600
    %v3432 = vsel %vm3431, %v3412, %v3414
    %v3433 = vsel %vm3431, %v3414, %v3416
    %v3434 = vsel %vm3431, %v3416, %v3418
    %v3435 = vsel %vm3431, %v3418, %v3420
    %v3436 = vsel %vm3431, %v3422, %v3424
    %v3437 = vsel %vm3431, %v3424, %v3426
    %v3438 = vsel %vm3431, %v3426, %v3428
    %v3439 = vsel %vm3431, %v3428, %v3430
    %3448 = vst [vmem:[#allocation7 + $0x1c0] sm:$0xff] %v3432
    %3449 = vst [vmem:[#allocation7 + $0x1c8] sm:$0xff] %v3433
    %3450 = vst [vmem:[#allocation7 + $0x1d0] sm:$0xff] %v3434
    %3451 = vst [vmem:[#allocation7 + $0x1d8] sm:$0xff] %v3435
    %3452 = vst [vmem:[#allocation7 + $0x1e0] sm:$0xff] %v3436
    %3453 = vst [vmem:[#allocation7 + $0x1e8] sm:$0xff] %v3437
    %3454 = vst [vmem:[#allocation7 + $0x1f0] sm:$0xff] %v3438
    %3455 = vst [vmem:[#allocation7 + $0x1f8] sm:$0xff] %v3439
    %v3456 = vld [vmem:[#allocation6] sm:$0xff]
    %v3457 = vld [vmem:[#allocation6 + $0x8] sm:$0xff]
    %v3458 = vld [vmem:[#allocation6 + $0x10] sm:$0xff]
    %v3459 = vld [vmem:[#allocation6 + $0x18] sm:$0xff]
    %v3460 = vld [vmem:[#allocation6 + $0x20] sm:$0xff]
    %v3461 = vld [vmem:[#allocation6 + $0x28] sm:$0xff]
    %v3462 = vld [vmem:[#allocation6 + $0x30] sm:$0xff]
    %v3463 = vld [vmem:[#allocation6 + $0x38] sm:$0xff]
    %v3464 = vld [vmem:[#allocation6 + $0x40] sm:$0xff]
    %v3465 = vld [vmem:[#allocation6 + $0x48] sm:$0xff]
    %3476 = vrot.lane.b32.xlu0 %v3456, 96
    %v3477 = vpop.permute.xlu0 %3476
    %3478 = vrot.lane.b32.xlu0 %v3457, 96
    %v3479 = vpop.permute.xlu0 %3478
    %3480 = vrot.lane.b32.xlu0 %v3458, 96
    %v3481 = vpop.permute.xlu0 %3480
    %3482 = vrot.lane.b32.xlu0 %v3459, 96
    %v3483 = vpop.permute.xlu0 %3482
    %3484 = vrot.lane.b32.xlu0 %v3460, 96
    %v3485 = vpop.permute.xlu0 %3484
    %3486 = vrot.lane.b32.xlu0 %v3461, 96
    %v3487 = vpop.permute.xlu0 %3486
    %3488 = vrot.lane.b32.xlu0 %v3462, 96
    %v3489 = vpop.permute.xlu0 %3488
    %3490 = vrot.lane.b32.xlu0 %v3463, 96
    %v3491 = vpop.permute.xlu0 %3490
    %3492 = vrot.lane.b32.xlu0 %v3464, 96
    %v3493 = vpop.permute.xlu0 %3492
    %3494 = vrot.lane.b32.xlu0 %v3465, 96
    %v3495 = vpop.permute.xlu0 %3494
    %vm3496 = vcmask 785408
    %v3497 = vsel %vm3496, %v3477, %v3479
    %v3498 = vsel %vm3496, %v3479, %v3481
    %v3499 = vsel %vm3496, %v3481, %v3483
    %v3500 = vsel %vm3496, %v3483, %v3485
    %v3501 = vsel %vm3496, %v3487, %v3489
    %v3502 = vsel %vm3496, %v3489, %v3491
    %v3503 = vsel %vm3496, %v3491, %v3493
    %v3504 = vsel %vm3496, %v3493, %v3495
    %3513 = vst [vmem:[#allocation7 + $0x200] sm:$0xff] %v3497
    %3514 = vst [vmem:[#allocation7 + $0x208] sm:$0xff] %v3498
    %3515 = vst [vmem:[#allocation7 + $0x210] sm:$0xff] %v3499
    %3516 = vst [vmem:[#allocation7 + $0x218] sm:$0xff] %v3500
    %3517 = vst [vmem:[#allocation7 + $0x220] sm:$0xff] %v3501
    %3518 = vst [vmem:[#allocation7 + $0x228] sm:$0xff] %v3502
    %3519 = vst [vmem:[#allocation7 + $0x230] sm:$0xff] %v3503
    %3520 = vst [vmem:[#allocation7 + $0x238] sm:$0xff] %v3504
    %v3521 = vld [vmem:[#allocation22] sm:$0xff]
    %v3522 = vld [vmem:[#allocation7] sm:$0xff]
    %v3523 = vld [vmem:[#allocation7 + $0x8] sm:$0xff]
    %v3524 = vld [vmem:[#allocation7 + $0x10] sm:$0xff]
    %v3525 = vld [vmem:[#allocation7 + $0x18] sm:$0xff]
    %v3526 = vld [vmem:[#allocation7 + $0x20] sm:$0xff]
    %v3527 = vld [vmem:[#allocation7 + $0x28] sm:$0xff]
    %v3528 = vld [vmem:[#allocation7 + $0x30] sm:$0xff]
    %v3529 = vld [vmem:[#allocation7 + $0x38] sm:$0xff]
    %v3530 = vld [vmem:[#allocation7 + $0x40] sm:$0xff]
    %v3531 = vld [vmem:[#allocation7 + $0x48] sm:$0xff]
    %v3532 = vld [vmem:[#allocation7 + $0x50] sm:$0xff]
    %v3533 = vld [vmem:[#allocation7 + $0x58] sm:$0xff]
    %v3534 = vld [vmem:[#allocation7 + $0x60] sm:$0xff]
    %v3535 = vld [vmem:[#allocation7 + $0x68] sm:$0xff]
    %v3536 = vld [vmem:[#allocation7 + $0x70] sm:$0xff]
    %v3537 = vld [vmem:[#allocation7 + $0x78] sm:$0xff]
    %v3538 = vld [vmem:[#allocation7 + $0x80] sm:$0xff]
    %v3539 = vld [vmem:[#allocation7 + $0x88] sm:$0xff]
    %v3540 = vld [vmem:[#allocation7 + $0x90] sm:$0xff]
    %v3541 = vld [vmem:[#allocation7 + $0x98] sm:$0xff]
    %v3542 = vld [vmem:[#allocation7 + $0xa0] sm:$0xff]
    %v3543 = vld [vmem:[#allocation7 + $0xa8] sm:$0xff]
    %v3544 = vld [vmem:[#allocation7 + $0xb0] sm:$0xff]
    %v3545 = vld [vmem:[#allocation7 + $0xb8] sm:$0xff]
    %v3546 = vld [vmem:[#allocation7 + $0xc0] sm:$0xff]
    %v3547 = vld [vmem:[#allocation7 + $0xc8] sm:$0xff]
    %v3548 = vld [vmem:[#allocation7 + $0xd0] sm:$0xff]
    %v3549 = vld [vmem:[#allocation7 + $0xd8] sm:$0xff]
    %v3550 = vld [vmem:[#allocation7 + $0xe0] sm:$0xff]
    %v3551 = vld [vmem:[#allocation7 + $0xe8] sm:$0xff]
    %v3552 = vld [vmem:[#allocation7 + $0xf0] sm:$0xff]
    %v3553 = vld [vmem:[#allocation7 + $0xf8] sm:$0xff]
    %v3554 = vld [vmem:[#allocation7 + $0x100] sm:$0xff]
    %v3555 = vld [vmem:[#allocation7 + $0x108] sm:$0xff]
    %v3556 = vld [vmem:[#allocation7 + $0x110] sm:$0xff]
    %v3557 = vld [vmem:[#allocation7 + $0x118] sm:$0xff]
    %v3558 = vld [vmem:[#allocation7 + $0x120] sm:$0xff]
    %v3559 = vld [vmem:[#allocation7 + $0x128] sm:$0xff]
    %v3560 = vld [vmem:[#allocation7 + $0x130] sm:$0xff]
    %v3561 = vld [vmem:[#allocation7 + $0x138] sm:$0xff]
    %v3562 = vld [vmem:[#allocation7 + $0x140] sm:$0xff]
    %v3563 = vld [vmem:[#allocation7 + $0x148] sm:$0xff]
    %v3564 = vld [vmem:[#allocation7 + $0x150] sm:$0xff]
    %v3565 = vld [vmem:[#allocation7 + $0x158] sm:$0xff]
    %v3566 = vld [vmem:[#allocation7 + $0x160] sm:$0xff]
    %v3567 = vld [vmem:[#allocation7 + $0x168] sm:$0xff]
    %v3568 = vld [vmem:[#allocation7 + $0x170] sm:$0xff]
    %v3569 = vld [vmem:[#allocation7 + $0x178] sm:$0xff]
    %v3570 = vld [vmem:[#allocation7 + $0x180] sm:$0xff]
    %v3571 = vld [vmem:[#allocation7 + $0x188] sm:$0xff]
    %v3572 = vld [vmem:[#allocation7 + $0x190] sm:$0xff]
    %v3573 = vld [vmem:[#allocation7 + $0x198] sm:$0xff]
    %v3574 = vld [vmem:[#allocation7 + $0x1a0] sm:$0xff]
    %v3575 = vld [vmem:[#allocation7 + $0x1a8] sm:$0xff]
    %v3576 = vld [vmem:[#allocation7 + $0x1b0] sm:$0xff]
    %v3577 = vld [vmem:[#allocation7 + $0x1b8] sm:$0xff]
    %v3578 = vld [vmem:[#allocation7 + $0x1c0] sm:$0xff]
    %v3579 = vld [vmem:[#allocation7 + $0x1c8] sm:$0xff]
    %v3580 = vld [vmem:[#allocation7 + $0x1d0] sm:$0xff]
    %v3581 = vld [vmem:[#allocation7 + $0x1d8] sm:$0xff]
    %v3582 = vld [vmem:[#allocation7 + $0x1e0] sm:$0xff]
    %v3583 = vld [vmem:[#allocation7 + $0x1e8] sm:$0xff]
    %v3584 = vld [vmem:[#allocation7 + $0x1f0] sm:$0xff]
    %v3585 = vld [vmem:[#allocation7 + $0x1f8] sm:$0xff]
    %v3586 = vld [vmem:[#allocation7 + $0x200] sm:$0xff]
    %v3587 = vld [vmem:[#allocation7 + $0x208] sm:$0xff]
    %v3588 = vld [vmem:[#allocation7 + $0x210] sm:$0xff]
    %v3589 = vld [vmem:[#allocation7 + $0x218] sm:$0xff]
    %v3590 = vld [vmem:[#allocation7 + $0x220] sm:$0xff]
    %v3591 = vld [vmem:[#allocation7 + $0x228] sm:$0xff]
    %v3592 = vld [vmem:[#allocation7 + $0x230] sm:$0xff]
    %v3593 = vld [vmem:[#allocation7 + $0x238] sm:$0xff]
    %v3594 = vpack.c.bf16 %v3526, %v3522
    %v3595 = vpack.c.bf16 %v3527, %v3523
    %v3596 = vpack.c.bf16 %v3528, %v3524
    %v3597 = vpack.c.bf16 %v3529, %v3525
    %v3598 = vpack.c.bf16 %v3534, %v3530
    %v3599 = vpack.c.bf16 %v3535, %v3531
    %v3600 = vpack.c.bf16 %v3536, %v3532
    %v3601 = vpack.c.bf16 %v3537, %v3533
    %v3602 = vpack.c.bf16 %v3542, %v3538
    %v3603 = vpack.c.bf16 %v3543, %v3539
    %v3604 = vpack.c.bf16 %v3544, %v3540
    %v3605 = vpack.c.bf16 %v3545, %v3541
    %v3606 = vpack.c.bf16 %v3550, %v3546
    %v3607 = vpack.c.bf16 %v3551, %v3547
    %v3608 = vpack.c.bf16 %v3552, %v3548
    %v3609 = vpack.c.bf16 %v3553, %v3549
    %v3610 = vpack.c.bf16 %v3558, %v3554
    %v3611 = vpack.c.bf16 %v3559, %v3555
    %v3612 = vpack.c.bf16 %v3560, %v3556
    %v3613 = vpack.c.bf16 %v3561, %v3557
    %v3614 = vpack.c.bf16 %v3566, %v3562
    %v3615 = vpack.c.bf16 %v3567, %v3563
    %v3616 = vpack.c.bf16 %v3568, %v3564
    %v3617 = vpack.c.bf16 %v3569, %v3565
    %v3618 = vpack.c.bf16 %v3574, %v3570
    %v3619 = vpack.c.bf16 %v3575, %v3571
    %v3620 = vpack.c.bf16 %v3576, %v3572
    %v3621 = vpack.c.bf16 %v3577, %v3573
    %v3622 = vpack.c.bf16 %v3582, %v3578
    %v3623 = vpack.c.bf16 %v3583, %v3579
    %v3624 = vpack.c.bf16 %v3584, %v3580
    %v3625 = vpack.c.bf16 %v3585, %v3581
    %v3626 = vpack.c.bf16 %v3590, %v3586
    %v3627 = vpack.c.bf16 %v3591, %v3587
    %v3628 = vpack.c.bf16 %v3592, %v3588
    %v3629 = vpack.c.bf16 %v3593, %v3589
    %v3631 = vunpack.c.l.b16 %v3521
    %v3632 = vunpack.c.h.b16 %v3521
    %v3633 = vpack.c.b16 %v3631, %v3631
    %v3634 = vpack.c.b16 %v3632, %v3632
    %vm3636 = vcmask 130048
    %v3638 = vsel %vm3636, %v3634, 0
    %3640 = vmatprep.subr.bf16.mxu0 %v3595
    %3641 = vmatpush1.bf16.msra.mxu0 %v3594
    %3642 = vmatprep.subr.bf16.mxu0 %v3599
    %3643 = vmatpush1.bf16.msra.mxu0 %v3598
    %3644 = vmatprep.subr.bf16.mxu0 %v3603
    %3645 = vmatpush1.bf16.msra.mxu0 %v3602
    %3646 = vmatprep.subr.bf16.mxu0 %v3607
    %3647 = vmatpush1.bf16.msra.mxu0 %v3606
    %3648 = vmatprep.subr.bf16.mxu0 %v3611
    %3649 = vmatpush1.bf16.msra.mxu0 %v3610
    %3650 = vmatprep.subr.bf16.mxu0 %v3615
    %3651 = vmatpush1.bf16.msra.mxu0 %v3614
    %3652 = vmatprep.subr.bf16.mxu0 %v3619
    %3653 = vmatpush1.bf16.msra.mxu0 %v3618
    %3654 = vmatprep.subr.bf16.mxu0 %v3623
    %3655 = vmatpush1.bf16.msra.mxu0 %v3622
    %3656 = vmatprep.subr.bf16.mxu0 %v3627
    %3657 = vmatpush1.bf16.msra.mxu0 %v3626
    %3658 = vmatprep.subr.bf16.mxu0 0
    %3659 = vmatpush1.bf16.msra.mxu0 0
    %3660 = vmatprep.subr.bf16.mxu0 0
    %3661 = vmatpush1.bf16.msra.mxu0 0
    %3662 = vmatprep.subr.bf16.mxu0 0
    %3663 = vmatpush1.bf16.msra.mxu0 0
    %3664 = vmatprep.subr.bf16.mxu0 0
    %3665 = vmatpush1.bf16.msra.mxu0 0
    %3666 = vmatprep.subr.bf16.mxu0 0
    %3667 = vmatpush1.bf16.msra.mxu0 0
    %3668 = vmatprep.subr.bf16.mxu0 0
    %3669 = vmatpush1.bf16.msra.mxu0 0
    %3670 = vmatprep.subr.bf16.mxu0 0
    %3671 = vmatpush1.bf16.msra.mxu0 0
    %3672 = vmatprep.mubr.bf16.mxu0 %v3638
    %3673 = vmatmul.mubr.bf16.gmra.mrb[0].mxu0 %v3633
    %v3674 = vpop.f32.mrb[0].mxu0
    %v3675 = vadd.f32 0.0, %v3674
    %v3676 = vpop.f32.mrb[0].mxu0
    %v3677 = vadd.f32 0.0, %v3676
    %v3678 = vpop.f32.mrb[0].mxu0
    %v3679 = vpop.f32.mrb[0].mxu0
    %3680 = vdwg.mxu0
    %3681 = vmatprep.subr.bf16.mxu0 %v3597
    %3682 = vmatpush1.bf16.msra.mxu0 %v3596
    %3683 = vmatprep.subr.bf16.mxu0 %v3601
    %3684 = vmatpush1.bf16.msra.mxu0 %v3600
    %3685 = vmatprep.subr.bf16.mxu0 %v3605
    %3686 = vmatpush1.bf16.msra.mxu0 %v3604
    %3687 = vmatprep.subr.bf16.mxu0 %v3609
    %3688 = vmatpush1.bf16.msra.mxu0 %v3608
    %3689 = vmatprep.subr.bf16.mxu0 %v3613
    %3690 = vmatpush1.bf16.msra.mxu0 %v3612
    %3691 = vmatprep.subr.bf16.mxu0 %v3617
    %3692 = vmatpush1.bf16.msra.mxu0 %v3616
    %3693 = vmatprep.subr.bf16.mxu0 %v3621
    %3694 = vmatpush1.bf16.msra.mxu0 %v3620
    %3695 = vmatprep.subr.bf16.mxu0 %v3625
    %3696 = vmatpush1.bf16.msra.mxu0 %v3624
    %3697 = vmatprep.subr.bf16.mxu0 %v3629
    %3698 = vmatpush1.bf16.msra.mxu0 %v3628
    %3699 = vmatprep.subr.bf16.mxu0 0
    %3700 = vmatpush1.bf16.msra.mxu0 0
    %3701 = vmatprep.subr.bf16.mxu0 0
    %3702 = vmatpush1.bf16.msra.mxu0 0
    %3703 = vmatprep.subr.bf16.mxu0 0
    %3704 = vmatpush1.bf16.msra.mxu0 0
    %3705 = vmatprep.subr.bf16.mxu0 0
    %3706 = vmatpush1.bf16.msra.mxu0 0
    %3707 = vmatprep.subr.bf16.mxu0 0
    %3708 = vmatpush1.bf16.msra.mxu0 0
    %3709 = vmatprep.subr.bf16.mxu0 0
    %3710 = vmatpush1.bf16.msra.mxu0 0
    %3711 = vmatprep.subr.bf16.mxu0 0
    %3712 = vmatpush1.bf16.msra.mxu0 0
    %3713 = vmatprep.mubr.bf16.mxu0 %v3638
    %3714 = vmatmul.mubr.bf16.gmra.mrb[0].mxu0 %v3633
    %v3715 = vpop.f32.mrb[0].mxu0
    %v3716 = vadd.f32 0.0, %v3715
    %v3717 = vpop.f32.mrb[0].mxu0
    %v3718 = vadd.f32 0.0, %v3717
    %v3719 = vpop.f32.mrb[0].mxu0
    %v3720 = vpop.f32.mrb[0].mxu0
    %3721 = vdwg.mxu0
    %v3722 = vld [vmem:[#allocation28] sm:$0xf]
    %v3724 = vlaneseq
    %v3725 = vshrl.u32 %v3724, 7
    %v3726 = vsub.s32 0, %v3725
    %v3727 = vrot.slane %v3722, %v3726
    %v3728 = vlaneseq
    %v3729 = vshrl.u32 %v3728, 7
    %v3730 = vsub.s32 1, %v3729
    %v3731 = vrot.slane %v3722, %v3730
    %v3732 = vlaneseq
    %v3733 = vshrl.u32 %v3732, 7
    %v3734 = vsub.s32 2, %v3733
    %v3735 = vrot.slane %v3722, %v3734
    %v3736 = vlaneseq
    %v3737 = vshrl.u32 %v3736, 7
    %v3738 = vsub.s32 3, %v3737
    %v3739 = vrot.slane %v3722, %v3738
    %v3744 = vmul.f32 %v3675, %v3727
    %v3745 = vmul.f32 %v3677, %v3731
    %v3746 = vmul.f32 %v3716, %v3735
    %v3747 = vmul.f32 %v3718, %v3739
    %v3748 = vadd.f32 %v3744, %v3745
    %v3749 = vadd.f32 %v3748, %v3746
    %v3750 = vadd.f32 %v3749, %v3747
    %3751 = vadd.xlane.f32.xlu0 %v3750
    %v3752 = vpop.xlane.xlu0 %3751
    %v3753 = vmul.f32 %v3752, 0.00295858
    %v3754 = vmul.f32 %v3744, %v3675
    %v3755 = vmul.f32 %v3745, %v3677
    %v3756 = vmul.f32 %v3746, %v3716
    %v3757 = vmul.f32 %v3747, %v3718
    %v3758 = vadd.f32 %v3754, %v3755
    %v3759 = vadd.f32 %v3758, %v3756
    %v3760 = vadd.f32 %v3759, %v3757
    %3761 = vadd.xlane.f32.xlu0 %v3760
    %v3762 = vpop.xlane.xlu0 %3761
    %v3763 = vmul.f32 %v3762, 0.00295858
    %v3764 = vmul.f32 %v3753, %v3753
    %v3765 = vsub.f32 %v3763, %v3764
    %v3766 = vmax.f32 %v3765, 0.0
    %v3767 = vsub.f32 %v3675, %v3753
    %v3768 = vsub.f32 %v3677, %v3753
    %v3769 = vsub.f32 %v3716, %v3753
    %v3770 = vsub.f32 %v3718, %v3753
    %v3771 = vadd.f32 %v3766, 1e-05
    %v3772 = vrsqrt.pop %v3771
    %v3773 = vmul.f32 %v3767, %v3772
    %v3774 = vmul.f32 %v3768, %v3772
    %v3775 = vmul.f32 %v3769, %v3772
    %v3776 = vmul.f32 %v3770, %v3772
    %v3777 = vmax.f32 %v3773, 0.0
    %v3778 = vmax.f32 %v3774, 0.0
    %v3779 = vmax.f32 %v3775, 0.0
    %v3780 = vmax.f32 %v3776, 0.0
    %v3781 = vpack.c.bf16 %v3777, %v3777
    %v3782 = vpack.c.bf16 %v3778, %v3778
    %v3783 = vpack.c.bf16 %v3779, %v3779
    %v3784 = vpack.c.bf16 %v3780, %v3780
    %v3785 = vld [vmem:[#allocation18] sm:$0xff]
    %v3786 = vld [vmem:[#allocation18 + $0x8] sm:$0xff]
    %v3787 = vld [vmem:[#allocation18 + $0x10] sm:$0xff]
    %v3788 = vld [vmem:[#allocation18 + $0x18] sm:$0xff]
    %v3789 = vld [vmem:[#allocation18 + $0x20] sm:$0xff]
    %v3790 = vld [vmem:[#allocation18 + $0x28] sm:$0xff]
    %v3791 = vld [vmem:[#allocation18 + $0x30] sm:$0xff]
    %v3792 = vld [vmem:[#allocation18 + $0x38] sm:$0xff]
    %v3793 = vld [vmem:[#allocation18 + $0x40] sm:$0xf]
    %v3794 = vld [vmem:[#allocation18 + $0x44] sm:$0xff]
    %v3795 = vld [vmem:[#allocation18 + $0x4c] sm:$0xff]
    %v3796 = vld [vmem:[#allocation18 + $0x54] sm:$0xff]
    %v3797 = vld [vmem:[#allocation18 + $0x5c] sm:$0xff]
    %v3798 = vld [vmem:[#allocation18 + $0x64] sm:$0xff]
    %v3799 = vld [vmem:[#allocation18 + $0x6c] sm:$0xff]
    %v3800 = vld [vmem:[#allocation18 + $0x74] sm:$0xff]
    %v3801 = vld [vmem:[#allocation18 + $0x7c] sm:$0xff]
    %v3802 = vld [vmem:[#allocation18 + $0x84] sm:$0xf]
    %v3803 = vld [vmem:[#allocation18 + $0x88] sm:$0xff]
    %v3804 = vld [vmem:[#allocation18 + $0x90] sm:$0xff]
    %v3805 = vld [vmem:[#allocation18 + $0x98] sm:$0xff]
    %v3806 = vld [vmem:[#allocation18 + $0xa0] sm:$0xff]
    %v3807 = vld [vmem:[#allocation18 + $0xa8] sm:$0xff]
    %v3808 = vld [vmem:[#allocation18 + $0xb0] sm:$0xff]
    %v3809 = vld [vmem:[#allocation18 + $0xb8] sm:$0xff]
    %v3810 = vld [vmem:[#allocation18 + $0xc0] sm:$0xff]
    %v3811 = vld [vmem:[#allocation18 + $0xc8] sm:$0xf]
    %v3812 = vld [vmem:[#allocation18 + $0xcc] sm:$0xff]
    %v3813 = vld [vmem:[#allocation18 + $0xd4] sm:$0xff]
    %v3814 = vld [vmem:[#allocation18 + $0xdc] sm:$0xff]
    %v3815 = vld [vmem:[#allocation18 + $0xe4] sm:$0xff]
    %v3816 = vld [vmem:[#allocation18 + $0xec] sm:$0xff]
    %v3817 = vld [vmem:[#allocation18 + $0xf4] sm:$0xff]
    %v3818 = vld [vmem:[#allocation18 + $0xfc] sm:$0xff]
    %v3819 = vld [vmem:[#allocation18 + $0x104] sm:$0xff]
    %v3820 = vld [vmem:[#allocation18 + $0x10c] sm:$0xf]
    %v3821 = vld [vmem:[#allocation18 + $0x110] sm:$0xff]
    %v3822 = vld [vmem:[#allocation18 + $0x118] sm:$0xff]
    %v3823 = vld [vmem:[#allocation18 + $0x120] sm:$0xff]
    %v3824 = vld [vmem:[#allocation18 + $0x128] sm:$0xff]
    %v3825 = vld [vmem:[#allocation18 + $0x130] sm:$0xff]
    %v3826 = vld [vmem:[#allocation18 + $0x138] sm:$0xff]
    %v3827 = vld [vmem:[#allocation18 + $0x140] sm:$0xff]
    %v3828 = vld [vmem:[#allocation18 + $0x148] sm:$0xff]
    %v3829 = vld [vmem:[#allocation18 + $0x150] sm:$0xf]
    %v3830 = vld [vmem:[#allocation18 + $0x154] sm:$0xff]
    %v3831 = vld [vmem:[#allocation18 + $0x15c] sm:$0xff]
    %v3832 = vld [vmem:[#allocation18 + $0x164] sm:$0xff]
    %v3833 = vld [vmem:[#allocation18 + $0x16c] sm:$0xff]
    %v3834 = vld [vmem:[#allocation18 + $0x174] sm:$0xff]
    %v3835 = vld [vmem:[#allocation18 + $0x17c] sm:$0xff]
    %v3836 = vld [vmem:[#allocation18 + $0x184] sm:$0xff]
    %v3837 = vld [vmem:[#allocation18 + $0x18c] sm:$0xff]
    %v3838 = vld [vmem:[#allocation18 + $0x194] sm:$0xf]
    %v3839 = vld [vmem:[#allocation18 + $0x198] sm:$0xff]
    %v3840 = vld [vmem:[#allocation18 + $0x1a0] sm:$0xff]
    %v3841 = vld [vmem:[#allocation18 + $0x1a8] sm:$0xff]
    %v3842 = vld [vmem:[#allocation18 + $0x1b0] sm:$0xff]
    %v3843 = vld [vmem:[#allocation18 + $0x1b8] sm:$0xff]
    %v3844 = vld [vmem:[#allocation18 + $0x1c0] sm:$0xff]
    %v3845 = vld [vmem:[#allocation18 + $0x1c8] sm:$0xff]
    %v3846 = vld [vmem:[#allocation18 + $0x1d0] sm:$0xff]
    %v3847 = vld [vmem:[#allocation18 + $0x1d8] sm:$0xf]
    %v3848 = vld [vmem:[#allocation18 + $0x1dc] sm:$0xff]
    %v3849 = vld [vmem:[#allocation18 + $0x1e4] sm:$0xff]
    %v3850 = vld [vmem:[#allocation18 + $0x1ec] sm:$0xff]
    %v3851 = vld [vmem:[#allocation18 + $0x1f4] sm:$0xff]
    %v3852 = vld [vmem:[#allocation18 + $0x1fc] sm:$0xff]
    %v3853 = vld [vmem:[#allocation18 + $0x204] sm:$0xff]
    %v3854 = vld [vmem:[#allocation18 + $0x20c] sm:$0xff]
    %v3855 = vld [vmem:[#allocation18 + $0x214] sm:$0xff]
    %v3856 = vld [vmem:[#allocation18 + $0x21c] sm:$0xf]
    %v3857 = vld [vmem:[#allocation18 + $0x220] sm:$0xff]
    %v3858 = vld [vmem:[#allocation18 + $0x228] sm:$0xff]
    %v3859 = vld [vmem:[#allocation18 + $0x230] sm:$0xff]
    %v3860 = vld [vmem:[#allocation18 + $0x238] sm:$0xff]
    %v3861 = vld [vmem:[#allocation18 + $0x240] sm:$0xff]
    %v3862 = vld [vmem:[#allocation18 + $0x248] sm:$0xff]
    %v3863 = vld [vmem:[#allocation18 + $0x250] sm:$0xff]
    %v3864 = vld [vmem:[#allocation18 + $0x258] sm:$0xff]
    %v3865 = vld [vmem:[#allocation18 + $0x260] sm:$0xf]
    %v3866 = vld [vmem:[#allocation18 + $0x264] sm:$0xff]
    %v3867 = vld [vmem:[#allocation18 + $0x26c] sm:$0xff]
    %v3868 = vld [vmem:[#allocation18 + $0x274] sm:$0xff]
    %v3869 = vld [vmem:[#allocation18 + $0x27c] sm:$0xff]
    %v3870 = vld [vmem:[#allocation18 + $0x284] sm:$0xff]
    %v3871 = vld [vmem:[#allocation18 + $0x28c] sm:$0xff]
    %v3872 = vld [vmem:[#allocation18 + $0x294] sm:$0xff]
    %v3873 = vld [vmem:[#allocation18 + $0x29c] sm:$0xff]
    %v3874 = vld [vmem:[#allocation18 + $0x2a4] sm:$0xf]
    %v3875 = vld [vmem:[#allocation18 + $0x2a8] sm:$0xff]
    %v3876 = vld [vmem:[#allocation18 + $0x2b0] sm:$0xff]
    %v3877 = vld [vmem:[#allocation18 + $0x2b8] sm:$0xff]
    %v3878 = vld [vmem:[#allocation18 + $0x2c0] sm:$0xff]
    %v3879 = vld [vmem:[#allocation18 + $0x2c8] sm:$0xff]
    %v3880 = vld [vmem:[#allocation18 + $0x2d0] sm:$0xff]
    %v3881 = vld [vmem:[#allocation18 + $0x2d8] sm:$0xff]
    %v3882 = vld [vmem:[#allocation18 + $0x2e0] sm:$0xff]
    %v3883 = vld [vmem:[#allocation18 + $0x2e8] sm:$0xf]
    %v3884 = vld [vmem:[#allocation18 + $0x2ec] sm:$0xff]
    %v3885 = vld [vmem:[#allocation18 + $0x2f4] sm:$0xff]
    %v3886 = vld [vmem:[#allocation18 + $0x2fc] sm:$0xff]
    %v3887 = vld [vmem:[#allocation18 + $0x304] sm:$0xff]
    %v3888 = vld [vmem:[#allocation18 + $0x30c] sm:$0xff]
    %v3889 = vld [vmem:[#allocation18 + $0x314] sm:$0xff]
    %v3890 = vld [vmem:[#allocation18 + $0x31c] sm:$0xff]
    %v3891 = vld [vmem:[#allocation18 + $0x324] sm:$0xff]
    %v3892 = vld [vmem:[#allocation18 + $0x32c] sm:$0xf]
    %v3893 = vld [vmem:[#allocation18 + $0x330] sm:$0xff]
    %v3894 = vld [vmem:[#allocation18 + $0x338] sm:$0xff]
    %v3895 = vld [vmem:[#allocation18 + $0x340] sm:$0xff]
    %v3896 = vld [vmem:[#allocation18 + $0x348] sm:$0xff]
    %v3897 = vld [vmem:[#allocation18 + $0x350] sm:$0xff]
    %v3898 = vld [vmem:[#allocation18 + $0x358] sm:$0xff]
    %v3899 = vld [vmem:[#allocation18 + $0x360] sm:$0xff]
    %v3900 = vld [vmem:[#allocation18 + $0x368] sm:$0xff]
    %v3901 = vld [vmem:[#allocation18 + $0x370] sm:$0xf]
    %v3902 = vld [vmem:[#allocation18 + $0x374] sm:$0xff]
    %v3903 = vld [vmem:[#allocation18 + $0x37c] sm:$0xff]
    %v3904 = vld [vmem:[#allocation18 + $0x384] sm:$0xff]
    %v3905 = vld [vmem:[#allocation18 + $0x38c] sm:$0xff]
    %v3906 = vld [vmem:[#allocation18 + $0x394] sm:$0xff]
    %v3907 = vld [vmem:[#allocation18 + $0x39c] sm:$0xff]
    %v3908 = vld [vmem:[#allocation18 + $0x3a4] sm:$0xff]
    %v3909 = vld [vmem:[#allocation18 + $0x3ac] sm:$0xff]
    %v3910 = vld [vmem:[#allocation18 + $0x3b4] sm:$0xf]
    %v3911 = vld [vmem:[#allocation18 + $0x3b8] sm:$0xff]
    %v3912 = vld [vmem:[#allocation18 + $0x3c0] sm:$0xff]
    %v3913 = vld [vmem:[#allocation18 + $0x3c8] sm:$0xff]
    %v3914 = vld [vmem:[#allocation18 + $0x3d0] sm:$0xff]
    %v3915 = vld [vmem:[#allocation18 + $0x3d8] sm:$0xff]
    %v3916 = vld [vmem:[#allocation18 + $0x3e0] sm:$0xff]
    %v3917 = vld [vmem:[#allocation18 + $0x3e8] sm:$0xff]
    %v3918 = vld [vmem:[#allocation18 + $0x3f0] sm:$0xff]
    %v3919 = vld [vmem:[#allocation18 + $0x3f8] sm:$0xf]
    %v3920 = vld [vmem:[#allocation18 + $0x3fc] sm:$0xff]
    %v3921 = vld [vmem:[#allocation18 + $0x404] sm:$0xff]
    %v3922 = vld [vmem:[#allocation18 + $0x40c] sm:$0xff]
    %v3923 = vld [vmem:[#allocation18 + $0x414] sm:$0xff]
    %v3924 = vld [vmem:[#allocation18 + $0x41c] sm:$0xff]
    %v3925 = vld [vmem:[#allocation18 + $0x424] sm:$0xff]
    %v3926 = vld [vmem:[#allocation18 + $0x42c] sm:$0xff]
    %v3927 = vld [vmem:[#allocation18 + $0x434] sm:$0xff]
    %v3928 = vld [vmem:[#allocation18 + $0x43c] sm:$0xf]
    %v3929 = vld [vmem:[#allocation18 + $0x440] sm:$0xff]
    %v3930 = vld [vmem:[#allocation18 + $0x448] sm:$0xff]
    %v3931 = vld [vmem:[#allocation18 + $0x450] sm:$0xff]
    %v3932 = vld [vmem:[#allocation18 + $0x458] sm:$0xff]
    %v3933 = vld [vmem:[#allocation18 + $0x460] sm:$0xff]
    %v3934 = vld [vmem:[#allocation18 + $0x468] sm:$0xff]
    %v3935 = vld [vmem:[#allocation18 + $0x470] sm:$0xff]
    %v3936 = vld [vmem:[#allocation18 + $0x478] sm:$0xff]
    %v3937 = vld [vmem:[#allocation18 + $0x480] sm:$0xf]
    %v3938 = vld [vmem:[#allocation18 + $0x484] sm:$0xff]
    %v3939 = vld [vmem:[#allocation18 + $0x48c] sm:$0xff]
    %v3940 = vld [vmem:[#allocation18 + $0x494] sm:$0xff]
    %v3941 = vld [vmem:[#allocation18 + $0x49c] sm:$0xff]
    %v3942 = vld [vmem:[#allocation18 + $0x4a4] sm:$0xff]
    %v3943 = vld [vmem:[#allocation18 + $0x4ac] sm:$0xff]
    %v3944 = vld [vmem:[#allocation18 + $0x4b4] sm:$0xff]
    %v3945 = vld [vmem:[#allocation18 + $0x4bc] sm:$0xff]
    %v3946 = vld [vmem:[#allocation18 + $0x4c4] sm:$0xf]
    %v3947 = vld [vmem:[#allocation18 + $0x4c8] sm:$0xff]
    %v3948 = vld [vmem:[#allocation18 + $0x4d0] sm:$0xff]
    %v3949 = vld [vmem:[#allocation18 + $0x4d8] sm:$0xff]
    %v3950 = vld [vmem:[#allocation18 + $0x4e0] sm:$0xff]
    %v3951 = vld [vmem:[#allocation18 + $0x4e8] sm:$0xff]
    %v3952 = vld [vmem:[#allocation18 + $0x4f0] sm:$0xff]
    %v3953 = vld [vmem:[#allocation18 + $0x4f8] sm:$0xff]
    %v3954 = vld [vmem:[#allocation18 + $0x500] sm:$0xff]
    %v3955 = vld [vmem:[#allocation18 + $0x508] sm:$0xf]
    %v3956 = vld [vmem:[#allocation18 + $0x50c] sm:$0xff]
    %v3957 = vld [vmem:[#allocation18 + $0x514] sm:$0xff]
    %v3958 = vld [vmem:[#allocation18 + $0x51c] sm:$0xff]
    %v3959 = vld [vmem:[#allocation18 + $0x524] sm:$0xff]
    %v3960 = vld [vmem:[#allocation18 + $0x52c] sm:$0xff]
    %v3961 = vld [vmem:[#allocation18 + $0x534] sm:$0xff]
    %v3962 = vld [vmem:[#allocation18 + $0x53c] sm:$0xff]
    %v3963 = vld [vmem:[#allocation18 + $0x544] sm:$0xff]
    %v3964 = vld [vmem:[#allocation18 + $0x54c] sm:$0xf]
    %v3965 = vld [vmem:[#allocation18 + $0x550] sm:$0xff]
    %v3966 = vld [vmem:[#allocation18 + $0x558] sm:$0xff]
    %v3967 = vld [vmem:[#allocation18 + $0x560] sm:$0xff]
    %v3968 = vld [vmem:[#allocation18 + $0x568] sm:$0xff]
    %v3969 = vld [vmem:[#allocation18 + $0x570] sm:$0xff]
    %v3970 = vld [vmem:[#allocation18 + $0x578] sm:$0xff]
    %v3971 = vld [vmem:[#allocation18 + $0x580] sm:$0xff]
    %v3972 = vld [vmem:[#allocation18 + $0x588] sm:$0xff]
    %v3973 = vld [vmem:[#allocation18 + $0x590] sm:$0xf]
    %v3974 = vld [vmem:[#allocation18 + $0x594] sm:$0xff]
    %v3975 = vld [vmem:[#allocation18 + $0x59c] sm:$0xff]
    %v3976 = vld [vmem:[#allocation18 + $0x5a4] sm:$0xff]
    %v3977 = vld [vmem:[#allocation18 + $0x5ac] sm:$0xff]
    %v3978 = vld [vmem:[#allocation18 + $0x5b4] sm:$0xff]
    %v3979 = vld [vmem:[#allocation18 + $0x5bc] sm:$0xff]
    %v3980 = vld [vmem:[#allocation18 + $0x5c4] sm:$0xff]
    %v3981 = vld [vmem:[#allocation18 + $0x5cc] sm:$0xff]
    %v3982 = vld [vmem:[#allocation18 + $0x5d4] sm:$0xf]
    %v3983 = vld [vmem:[#allocation18 + $0x5d8] sm:$0xff]
    %v3984 = vld [vmem:[#allocation18 + $0x5e0] sm:$0xff]
    %v3985 = vld [vmem:[#allocation18 + $0x5e8] sm:$0xff]
    %v3986 = vld [vmem:[#allocation18 + $0x5f0] sm:$0xff]
    %v3987 = vld [vmem:[#allocation18 + $0x5f8] sm:$0xff]
    %v3988 = vld [vmem:[#allocation18 + $0x600] sm:$0xff]
    %v3989 = vld [vmem:[#allocation18 + $0x608] sm:$0xff]
    %v3990 = vld [vmem:[#allocation18 + $0x610] sm:$0xff]
    %v3991 = vld [vmem:[#allocation18 + $0x618] sm:$0xf]
    %v3992 = vld [vmem:[#allocation18 + $0x61c] sm:$0xff]
    %v3993 = vld [vmem:[#allocation18 + $0x624] sm:$0xff]
    %v3994 = vld [vmem:[#allocation18 + $0x62c] sm:$0xff]
    %v3995 = vld [vmem:[#allocation18 + $0x634] sm:$0xff]
    %v3996 = vld [vmem:[#allocation18 + $0x63c] sm:$0xff]
    %v3997 = vld [vmem:[#allocation18 + $0x644] sm:$0xff]
    %v3998 = vld [vmem:[#allocation18 + $0x64c] sm:$0xff]
    %v3999 = vld [vmem:[#allocation18 + $0x654] sm:$0xff]
    %v4000 = vld [vmem:[#allocation18 + $0x65c] sm:$0xf]
    %v4001 = vld [vmem:[#allocation18 + $0x660] sm:$0xff]
    %v4002 = vld [vmem:[#allocation18 + $0x668] sm:$0xff]
    %v4003 = vld [vmem:[#allocation18 + $0x670] sm:$0xff]
    %v4004 = vld [vmem:[#allocation18 + $0x678] sm:$0xff]
    %v4005 = vld [vmem:[#allocation18 + $0x680] sm:$0xff]
    %v4006 = vld [vmem:[#allocation18 + $0x688] sm:$0xff]
    %v4007 = vld [vmem:[#allocation18 + $0x690] sm:$0xff]
    %v4008 = vld [vmem:[#allocation18 + $0x698] sm:$0xff]
    %v4009 = vld [vmem:[#allocation18 + $0x6a0] sm:$0xf]
    %v4010 = vld [vmem:[#allocation18 + $0x6a4] sm:$0xff]
    %v4011 = vld [vmem:[#allocation18 + $0x6ac] sm:$0xff]
    %v4012 = vld [vmem:[#allocation18 + $0x6b4] sm:$0xff]
    %v4013 = vld [vmem:[#allocation18 + $0x6bc] sm:$0xff]
    %v4014 = vld [vmem:[#allocation18 + $0x6c4] sm:$0xff]
    %v4015 = vld [vmem:[#allocation18 + $0x6cc] sm:$0xff]
    %v4016 = vld [vmem:[#allocation18 + $0x6d4] sm:$0xff]
    %v4017 = vld [vmem:[#allocation18 + $0x6dc] sm:$0xff]
    %v4018 = vld [vmem:[#allocation18 + $0x6e4] sm:$0xf]
    %v4019 = vld [vmem:[#allocation18 + $0x6e8] sm:$0xff]
    %v4020 = vld [vmem:[#allocation18 + $0x6f0] sm:$0xff]
    %v4021 = vld [vmem:[#allocation18 + $0x6f8] sm:$0xff]
    %v4022 = vld [vmem:[#allocation18 + $0x700] sm:$0xff]
    %v4023 = vld [vmem:[#allocation18 + $0x708] sm:$0xff]
    %v4024 = vld [vmem:[#allocation18 + $0x710] sm:$0xff]
    %v4025 = vld [vmem:[#allocation18 + $0x718] sm:$0xff]
    %v4026 = vld [vmem:[#allocation18 + $0x720] sm:$0xff]
    %v4027 = vld [vmem:[#allocation18 + $0x728] sm:$0xf]
    %v4028 = vld [vmem:[#allocation18 + $0x72c] sm:$0xff]
    %v4029 = vld [vmem:[#allocation18 + $0x734] sm:$0xff]
    %v4030 = vld [vmem:[#allocation18 + $0x73c] sm:$0xff]
    %v4031 = vld [vmem:[#allocation18 + $0x744] sm:$0xff]
    %v4032 = vld [vmem:[#allocation18 + $0x74c] sm:$0xff]
    %v4033 = vld [vmem:[#allocation18 + $0x754] sm:$0xff]
    %v4034 = vld [vmem:[#allocation18 + $0x75c] sm:$0xff]
    %v4035 = vld [vmem:[#allocation18 + $0x764] sm:$0xff]
    %v4036 = vld [vmem:[#allocation18 + $0x76c] sm:$0xf]
    %v4037 = vld [vmem:[#allocation18 + $0x770] sm:$0xff]
    %v4038 = vld [vmem:[#allocation18 + $0x778] sm:$0xff]
    %v4039 = vld [vmem:[#allocation18 + $0x780] sm:$0xff]
    %v4040 = vld [vmem:[#allocation18 + $0x788] sm:$0xff]
    %v4041 = vld [vmem:[#allocation18 + $0x790] sm:$0xff]
    %v4042 = vld [vmem:[#allocation18 + $0x798] sm:$0xff]
    %v4043 = vld [vmem:[#allocation18 + $0x7a0] sm:$0xff]
    %v4044 = vld [vmem:[#allocation18 + $0x7a8] sm:$0xff]
    %v4045 = vld [vmem:[#allocation18 + $0x7b0] sm:$0xf]
    %v4046 = vld [vmem:[#allocation18 + $0x7b4] sm:$0xff]
    %v4047 = vld [vmem:[#allocation18 + $0x7bc] sm:$0xff]
    %v4048 = vld [vmem:[#allocation18 + $0x7c4] sm:$0xff]
    %v4049 = vld [vmem:[#allocation18 + $0x7cc] sm:$0xff]
    %v4050 = vld [vmem:[#allocation18 + $0x7d4] sm:$0xff]
    %v4051 = vld [vmem:[#allocation18 + $0x7dc] sm:$0xff]
    %v4052 = vld [vmem:[#allocation18 + $0x7e4] sm:$0xff]
    %v4053 = vld [vmem:[#allocation18 + $0x7ec] sm:$0xff]
    %v4054 = vld [vmem:[#allocation18 + $0x7f4] sm:$0xf]
    %v4055 = vld [vmem:[#allocation18 + $0x7f8] sm:$0xff]
    %v4056 = vld [vmem:[#allocation18 + $0x800] sm:$0xff]
    %v4057 = vld [vmem:[#allocation18 + $0x808] sm:$0xff]
    %v4058 = vld [vmem:[#allocation18 + $0x810] sm:$0xff]
    %v4059 = vld [vmem:[#allocation18 + $0x818] sm:$0xff]
    %v4060 = vld [vmem:[#allocation18 + $0x820] sm:$0xff]
    %v4061 = vld [vmem:[#allocation18 + $0x828] sm:$0xff]
    %v4062 = vld [vmem:[#allocation18 + $0x830] sm:$0xff]
    %v4063 = vld [vmem:[#allocation18 + $0x838] sm:$0xf]
    %v4064 = vld [vmem:[#allocation18 + $0x83c] sm:$0xff]
    %v4065 = vld [vmem:[#allocation18 + $0x844] sm:$0xff]
    %v4066 = vld [vmem:[#allocation18 + $0x84c] sm:$0xff]
    %v4067 = vld [vmem:[#allocation18 + $0x854] sm:$0xff]
    %v4068 = vld [vmem:[#allocation18 + $0x85c] sm:$0xff]
    %v4069 = vld [vmem:[#allocation18 + $0x864] sm:$0xff]
    %v4070 = vld [vmem:[#allocation18 + $0x86c] sm:$0xff]
    %v4071 = vld [vmem:[#allocation18 + $0x874] sm:$0xff]
    %v4072 = vld [vmem:[#allocation18 + $0x87c] sm:$0xf]
    %v4073 = vld [vmem:[#allocation18 + $0x880] sm:$0xff]
    %v4074 = vld [vmem:[#allocation18 + $0x888] sm:$0xff]
    %v4075 = vld [vmem:[#allocation18 + $0x890] sm:$0xff]
    %v4076 = vld [vmem:[#allocation18 + $0x898] sm:$0xff]
    %v4077 = vld [vmem:[#allocation18 + $0x8a0] sm:$0xff]
    %v4078 = vld [vmem:[#allocation18 + $0x8a8] sm:$0xff]
    %v4079 = vld [vmem:[#allocation18 + $0x8b0] sm:$0xff]
    %v4080 = vld [vmem:[#allocation18 + $0x8b8] sm:$0xff]
    %v4081 = vld [vmem:[#allocation18 + $0x8c0] sm:$0xf]
    %v4082 = vld [vmem:[#allocation18 + $0x8c4] sm:$0xff]
    %v4083 = vld [vmem:[#allocation18 + $0x8cc] sm:$0xff]
    %v4084 = vld [vmem:[#allocation18 + $0x8d4] sm:$0xff]
    %v4085 = vld [vmem:[#allocation18 + $0x8dc] sm:$0xff]
    %v4086 = vld [vmem:[#allocation18 + $0x8e4] sm:$0xff]
    %v4087 = vld [vmem:[#allocation18 + $0x8ec] sm:$0xff]
    %v4088 = vld [vmem:[#allocation18 + $0x8f4] sm:$0xff]
    %v4089 = vld [vmem:[#allocation18 + $0x8fc] sm:$0xff]
    %v4090 = vld [vmem:[#allocation18 + $0x904] sm:$0xf]
    %v4091 = vld [vmem:[#allocation18 + $0x908] sm:$0xff]
    %v4092 = vld [vmem:[#allocation18 + $0x910] sm:$0xff]
    %v4093 = vld [vmem:[#allocation18 + $0x918] sm:$0xff]
    %v4094 = vld [vmem:[#allocation18 + $0x920] sm:$0xff]
    %v4095 = vld [vmem:[#allocation18 + $0x928] sm:$0xff]
    %v4096 = vld [vmem:[#allocation18 + $0x930] sm:$0xff]
    %v4097 = vld [vmem:[#allocation18 + $0x938] sm:$0xff]
    %v4098 = vld [vmem:[#allocation18 + $0x940] sm:$0xff]
    %v4099 = vld [vmem:[#allocation18 + $0x948] sm:$0xf]
    %v4100 = vld [vmem:[#allocation18 + $0x94c] sm:$0xff]
    %v4101 = vld [vmem:[#allocation18 + $0x954] sm:$0xff]
    %v4102 = vld [vmem:[#allocation18 + $0x95c] sm:$0xff]
    %v4103 = vld [vmem:[#allocation18 + $0x964] sm:$0xff]
    %v4104 = vld [vmem:[#allocation18 + $0x96c] sm:$0xff]
    %v4105 = vld [vmem:[#allocation18 + $0x974] sm:$0xff]
    %v4106 = vld [vmem:[#allocation18 + $0x97c] sm:$0xff]
    %v4107 = vld [vmem:[#allocation18 + $0x984] sm:$0xff]
    %v4108 = vld [vmem:[#allocation18 + $0x98c] sm:$0xf]
    %v4109 = vld [vmem:[#allocation18 + $0x990] sm:$0xff]
    %v4110 = vld [vmem:[#allocation18 + $0x998] sm:$0xff]
    %v4111 = vld [vmem:[#allocation18 + $0x9a0] sm:$0xff]
    %v4112 = vld [vmem:[#allocation18 + $0x9a8] sm:$0xff]
    %v4113 = vld [vmem:[#allocation18 + $0x9b0] sm:$0xff]
    %v4114 = vld [vmem:[#allocation18 + $0x9b8] sm:$0xff]
    %v4115 = vld [vmem:[#allocation18 + $0x9c0] sm:$0xff]
    %v4116 = vld [vmem:[#allocation18 + $0x9c8] sm:$0xff]
    %v4117 = vld [vmem:[#allocation18 + $0x9d0] sm:$0xf]
    %v4118 = vld [vmem:[#allocation18 + $0x9d4] sm:$0xff]
    %v4119 = vld [vmem:[#allocation18 + $0x9dc] sm:$0xff]
    %v4120 = vld [vmem:[#allocation18 + $0x9e4] sm:$0xff]
    %v4121 = vld [vmem:[#allocation18 + $0x9ec] sm:$0xff]
    %v4122 = vld [vmem:[#allocation18 + $0x9f4] sm:$0xff]
    %v4123 = vld [vmem:[#allocation18 + $0x9fc] sm:$0xff]
    %v4124 = vld [vmem:[#allocation18 + $0xa04] sm:$0xff]
    %v4125 = vld [vmem:[#allocation18 + $0xa0c] sm:$0xff]
    %v4126 = vld [vmem:[#allocation18 + $0xa14] sm:$0xf]
    %v4127 = vld [vmem:[#allocation18 + $0xa18] sm:$0xff]
    %v4128 = vld [vmem:[#allocation18 + $0xa20] sm:$0xff]
    %v4129 = vld [vmem:[#allocation18 + $0xa28] sm:$0xff]
    %v4130 = vld [vmem:[#allocation18 + $0xa30] sm:$0xff]
    %v4131 = vld [vmem:[#allocation18 + $0xa38] sm:$0xff]
    %v4132 = vld [vmem:[#allocation18 + $0xa40] sm:$0xff]
    %v4133 = vld [vmem:[#allocation18 + $0xa48] sm:$0xff]
    %v4134 = vld [vmem:[#allocation18 + $0xa50] sm:$0xff]
    %v4135 = vld [vmem:[#allocation18 + $0xa58] sm:$0xf]
    %v4136 = vld [vmem:[#allocation18 + $0xa5c] sm:$0xff]
    %v4137 = vld [vmem:[#allocation18 + $0xa64] sm:$0xff]
    %v4138 = vld [vmem:[#allocation18 + $0xa6c] sm:$0xff]
    %v4139 = vld [vmem:[#allocation18 + $0xa74] sm:$0xff]
    %v4140 = vld [vmem:[#allocation18 + $0xa7c] sm:$0xff]
    %v4141 = vld [vmem:[#allocation18 + $0xa84] sm:$0xff]
    %v4142 = vld [vmem:[#allocation18 + $0xa8c] sm:$0xff]
    %v4143 = vld [vmem:[#allocation18 + $0xa94] sm:$0xff]
    %v4144 = vld [vmem:[#allocation18 + $0xa9c] sm:$0xf]
    %v4145 = vld [vmem:[#allocation18 + $0xaa0] sm:$0xff]
    %v4146 = vld [vmem:[#allocation18 + $0xaa8] sm:$0xff]
    %v4147 = vld [vmem:[#allocation18 + $0xab0] sm:$0xff]
    %v4148 = vld [vmem:[#allocation18 + $0xab8] sm:$0xff]
    %v4149 = vld [vmem:[#allocation18 + $0xac0] sm:$0xff]
    %v4150 = vld [vmem:[#allocation18 + $0xac8] sm:$0xff]
    %v4151 = vld [vmem:[#allocation18 + $0xad0] sm:$0xff]
    %v4152 = vld [vmem:[#allocation18 + $0xad8] sm:$0xff]
    %v4153 = vld [vmem:[#allocation18 + $0xae0] sm:$0xf]
    %v4154 = vld [vmem:[#allocation18 + $0xae4] sm:$0xff]
    %v4155 = vld [vmem:[#allocation18 + $0xaec] sm:$0xff]
    %v4156 = vld [vmem:[#allocation18 + $0xaf4] sm:$0xff]
    %v4157 = vld [vmem:[#allocation18 + $0xafc] sm:$0xff]
    %v4158 = vld [vmem:[#allocation18 + $0xb04] sm:$0xff]
    %v4159 = vld [vmem:[#allocation18 + $0xb0c] sm:$0xff]
    %v4160 = vld [vmem:[#allocation18 + $0xb14] sm:$0xff]
    %v4161 = vld [vmem:[#allocation18 + $0xb1c] sm:$0xff]
    %v4162 = vld [vmem:[#allocation18 + $0xb24] sm:$0xf]
    %v4163 = vld [vmem:[#allocation18 + $0xb28] sm:$0xff]
    %v4164 = vld [vmem:[#allocation18 + $0xb30] sm:$0xff]
    %v4165 = vld [vmem:[#allocation18 + $0xb38] sm:$0xff]
    %v4166 = vld [vmem:[#allocation18 + $0xb40] sm:$0xff]
    %v4167 = vld [vmem:[#allocation18 + $0xb48] sm:$0xff]
    %v4168 = vld [vmem:[#allocation18 + $0xb50] sm:$0xff]
    %v4169 = vld [vmem:[#allocation18 + $0xb58] sm:$0xff]
    %v4170 = vld [vmem:[#allocation18 + $0xb60] sm:$0xff]
    %v4171 = vld [vmem:[#allocation18 + $0xb68] sm:$0xf]
    %v4172 = vld [vmem:[#allocation18 + $0xb6c] sm:$0xff]
    %v4173 = vld [vmem:[#allocation18 + $0xb74] sm:$0xff]
    %v4174 = vld [vmem:[#allocation18 + $0xb7c] sm:$0xff]
    %v4175 = vld [vmem:[#allocation18 + $0xb84] sm:$0xff]
    %v4176 = vld [vmem:[#allocation18 + $0xb8c] sm:$0xff]
    %v4177 = vld [vmem:[#allocation18 + $0xb94] sm:$0xff]
    %v4178 = vld [vmem:[#allocation18 + $0xb9c] sm:$0xff]
    %v4179 = vld [vmem:[#allocation18 + $0xba4] sm:$0xff]
    %v4180 = vld [vmem:[#allocation18 + $0xbac] sm:$0xf]
    %v4181 = vld [vmem:[#allocation18 + $0xbb0] sm:$0xff]
    %v4182 = vld [vmem:[#allocation18 + $0xbb8] sm:$0xff]
    %v4183 = vld [vmem:[#allocation18 + $0xbc0] sm:$0xff]
    %v4184 = vld [vmem:[#allocation18 + $0xbc8] sm:$0xff]
    %v4185 = vld [vmem:[#allocation18 + $0xbd0] sm:$0xff]
    %v4186 = vld [vmem:[#allocation18 + $0xbd8] sm:$0xff]
    %v4187 = vld [vmem:[#allocation18 + $0xbe0] sm:$0xff]
    %v4188 = vld [vmem:[#allocation18 + $0xbe8] sm:$0xff]
    %v4189 = vld [vmem:[#allocation18 + $0xbf0] sm:$0xf]
    %v4190 = vld [vmem:[#allocation18 + $0xbf4] sm:$0xff]
    %v4191 = vld [vmem:[#allocation18 + $0xbfc] sm:$0xff]
    %v4192 = vld [vmem:[#allocation18 + $0xc04] sm:$0xff]
    %v4193 = vld [vmem:[#allocation18 + $0xc0c] sm:$0xff]
    %v4194 = vld [vmem:[#allocation18 + $0xc14] sm:$0xff]
    %v4195 = vld [vmem:[#allocation18 + $0xc1c] sm:$0xff]
    %v4196 = vld [vmem:[#allocation18 + $0xc24] sm:$0xff]
    %v4197 = vld [vmem:[#allocation18 + $0xc2c] sm:$0xff]
    %v4198 = vld [vmem:[#allocation18 + $0xc34] sm:$0xf]
    %v4199 = vld [vmem:[#allocation18 + $0xc38] sm:$0xff]
    %v4200 = vld [vmem:[#allocation18 + $0xc40] sm:$0xff]
    %v4201 = vld [vmem:[#allocation18 + $0xc48] sm:$0xff]
    %v4202 = vld [vmem:[#allocation18 + $0xc50] sm:$0xff]
    %v4203 = vld [vmem:[#allocation18 + $0xc58] sm:$0xff]
    %v4204 = vld [vmem:[#allocation18 + $0xc60] sm:$0xff]
    %v4205 = vld [vmem:[#allocation18 + $0xc68] sm:$0xff]
    %v4206 = vld [vmem:[#allocation18 + $0xc70] sm:$0xff]
    %v4207 = vld [vmem:[#allocation18 + $0xc78] sm:$0xf]
    %v4208 = vld [vmem:[#allocation18 + $0xc7c] sm:$0xff]
    %v4209 = vld [vmem:[#allocation18 + $0xc84] sm:$0xff]
    %v4210 = vld [vmem:[#allocation18 + $0xc8c] sm:$0xff]
    %v4211 = vld [vmem:[#allocation18 + $0xc94] sm:$0xff]
    %v4212 = vld [vmem:[#allocation18 + $0xc9c] sm:$0xff]
    %v4213 = vld [vmem:[#allocation18 + $0xca4] sm:$0xff]
    %v4214 = vld [vmem:[#allocation18 + $0xcac] sm:$0xff]
    %v4215 = vld [vmem:[#allocation18 + $0xcb4] sm:$0xff]
    %v4216 = vld [vmem:[#allocation18 + $0xcbc] sm:$0xf]
    %v4217 = vld [vmem:[#allocation18 + $0xcc0] sm:$0xff]
    %v4218 = vld [vmem:[#allocation18 + $0xcc8] sm:$0xff]
    %v4219 = vld [vmem:[#allocation18 + $0xcd0] sm:$0xff]
    %v4220 = vld [vmem:[#allocation18 + $0xcd8] sm:$0xff]
    %v4221 = vld [vmem:[#allocation18 + $0xce0] sm:$0xff]
    %v4222 = vld [vmem:[#allocation18 + $0xce8] sm:$0xff]
    %v4223 = vld [vmem:[#allocation18 + $0xcf0] sm:$0xff]
    %v4224 = vld [vmem:[#allocation18 + $0xcf8] sm:$0xff]
    %v4225 = vld [vmem:[#allocation18 + $0xd00] sm:$0xf]
    %v4226 = vld [vmem:[#allocation18 + $0xd04] sm:$0xff]
    %v4227 = vld [vmem:[#allocation18 + $0xd0c] sm:$0xff]
    %v4228 = vld [vmem:[#allocation18 + $0xd14] sm:$0xff]
    %v4229 = vld [vmem:[#allocation18 + $0xd1c] sm:$0xff]
    %v4230 = vld [vmem:[#allocation18 + $0xd24] sm:$0xff]
    %v4231 = vld [vmem:[#allocation18 + $0xd2c] sm:$0xff]
    %v4232 = vld [vmem:[#allocation18 + $0xd34] sm:$0xff]
    %v4233 = vld [vmem:[#allocation18 + $0xd3c] sm:$0xff]
    %v4234 = vld [vmem:[#allocation18 + $0xd44] sm:$0xf]
    %v4235 = vld [vmem:[#allocation18 + $0xd48] sm:$0xff]
    %v4236 = vld [vmem:[#allocation18 + $0xd50] sm:$0xff]
    %v4237 = vld [vmem:[#allocation18 + $0xd58] sm:$0xff]
    %v4238 = vld [vmem:[#allocation18 + $0xd60] sm:$0xff]
    %v4239 = vld [vmem:[#allocation18 + $0xd68] sm:$0xff]
    %v4240 = vld [vmem:[#allocation18 + $0xd70] sm:$0xff]
    %v4241 = vld [vmem:[#allocation18 + $0xd78] sm:$0xff]
    %v4242 = vld [vmem:[#allocation18 + $0xd80] sm:$0xff]
    %v4243 = vld [vmem:[#allocation18 + $0xd88] sm:$0xf]
    %v4244 = vld [vmem:[#allocation18 + $0xd8c] sm:$0xff]
    %v4245 = vld [vmem:[#allocation18 + $0xd94] sm:$0xff]
    %v4246 = vld [vmem:[#allocation18 + $0xd9c] sm:$0xff]
    %v4247 = vld [vmem:[#allocation18 + $0xda4] sm:$0xff]
    %v4248 = vld [vmem:[#allocation18 + $0xdac] sm:$0xff]
    %v4249 = vld [vmem:[#allocation18 + $0xdb4] sm:$0xff]
    %v4250 = vld [vmem:[#allocation18 + $0xdbc] sm:$0xff]
    %v4251 = vld [vmem:[#allocation18 + $0xdc4] sm:$0xff]
    %v4252 = vld [vmem:[#allocation18 + $0xdcc] sm:$0xf]
    %v4253 = vld [vmem:[#allocation18 + $0xdd0] sm:$0xff]
    %v4254 = vld [vmem:[#allocation18 + $0xdd8] sm:$0xff]
    %v4255 = vld [vmem:[#allocation18 + $0xde0] sm:$0xff]
    %v4256 = vld [vmem:[#allocation18 + $0xde8] sm:$0xff]
    %v4257 = vld [vmem:[#allocation18 + $0xdf0] sm:$0xff]
    %v4258 = vld [vmem:[#allocation18 + $0xdf8] sm:$0xff]
    %v4259 = vld [vmem:[#allocation18 + $0xe00] sm:$0xff]
    %v4260 = vld [vmem:[#allocation18 + $0xe08] sm:$0xff]
    %v4261 = vld [vmem:[#allocation18 + $0xe10] sm:$0xf]
    %v4262 = vld [vmem:[#allocation18 + $0xe14] sm:$0xff]
    %v4263 = vld [vmem:[#allocation18 + $0xe1c] sm:$0xff]
    %v4264 = vld [vmem:[#allocation18 + $0xe24] sm:$0xff]
    %v4265 = vld [vmem:[#allocation18 + $0xe2c] sm:$0xff]
    %v4266 = vld [vmem:[#allocation18 + $0xe34] sm:$0xff]
    %v4267 = vld [vmem:[#allocation18 + $0xe3c] sm:$0xff]
    %v4268 = vld [vmem:[#allocation18 + $0xe44] sm:$0xff]
    %v4269 = vld [vmem:[#allocation18 + $0xe4c] sm:$0xff]
    %v4270 = vld [vmem:[#allocation18 + $0xe54] sm:$0xf]
    %v4271 = vld [vmem:[#allocation18 + $0xe58] sm:$0xff]
    %v4272 = vld [vmem:[#allocation18 + $0xe60] sm:$0xff]
    %v4273 = vld [vmem:[#allocation18 + $0xe68] sm:$0xff]
    %v4274 = vld [vmem:[#allocation18 + $0xe70] sm:$0xff]
    %v4275 = vld [vmem:[#allocation18 + $0xe78] sm:$0xff]
    %v4276 = vld [vmem:[#allocation18 + $0xe80] sm:$0xff]
    %v4277 = vld [vmem:[#allocation18 + $0xe88] sm:$0xff]
    %v4278 = vld [vmem:[#allocation18 + $0xe90] sm:$0xff]
    %v4279 = vld [vmem:[#allocation18 + $0xe98] sm:$0xf]
    %v4280 = vld [vmem:[#allocation18 + $0xe9c] sm:$0xff]
    %v4281 = vld [vmem:[#allocation18 + $0xea4] sm:$0xff]
    %v4282 = vld [vmem:[#allocation18 + $0xeac] sm:$0xff]
    %v4283 = vld [vmem:[#allocation18 + $0xeb4] sm:$0xff]
    %v4284 = vld [vmem:[#allocation18 + $0xebc] sm:$0xff]
    %v4285 = vld [vmem:[#allocation18 + $0xec4] sm:$0xff]
    %v4286 = vld [vmem:[#allocation18 + $0xecc] sm:$0xff]
    %v4287 = vld [vmem:[#allocation18 + $0xed4] sm:$0xff]
    %v4288 = vld [vmem:[#allocation18 + $0xedc] sm:$0xf]
    %v4289 = vld [vmem:[#allocation18 + $0xee0] sm:$0xff]
    %v4290 = vld [vmem:[#allocation18 + $0xee8] sm:$0xff]
    %v4291 = vld [vmem:[#allocation18 + $0xef0] sm:$0xff]
    %v4292 = vld [vmem:[#allocation18 + $0xef8] sm:$0xff]
    %v4293 = vld [vmem:[#allocation18 + $0xf00] sm:$0xff]
    %v4294 = vld [vmem:[#allocation18 + $0xf08] sm:$0xff]
    %v4295 = vld [vmem:[#allocation18 + $0xf10] sm:$0xff]
    %v4296 = vld [vmem:[#allocation18 + $0xf18] sm:$0xff]
    %v4297 = vld [vmem:[#allocation18 + $0xf20] sm:$0xf]
    %v4298 = vld [vmem:[#allocation18 + $0xf24] sm:$0xff]
    %v4299 = vld [vmem:[#allocation18 + $0xf2c] sm:$0xff]
    %v4300 = vld [vmem:[#allocation18 + $0xf34] sm:$0xff]
    %v4301 = vld [vmem:[#allocation18 + $0xf3c] sm:$0xff]
    %v4302 = vld [vmem:[#allocation18 + $0xf44] sm:$0xff]
    %v4303 = vld [vmem:[#allocation18 + $0xf4c] sm:$0xff]
    %v4304 = vld [vmem:[#allocation18 + $0xf54] sm:$0xff]
    %v4305 = vld [vmem:[#allocation18 + $0xf5c] sm:$0xff]
    %v4306 = vld [vmem:[#allocation18 + $0xf64] sm:$0xf]
    %v4307 = vld [vmem:[#allocation18 + $0xf68] sm:$0xff]
    %v4308 = vld [vmem:[#allocation18 + $0xf70] sm:$0xff]
    %v4309 = vld [vmem:[#allocation18 + $0xf78] sm:$0xff]
    %v4310 = vld [vmem:[#allocation18 + $0xf80] sm:$0xff]
    %v4311 = vld [vmem:[#allocation18 + $0xf88] sm:$0xff]
    %v4312 = vld [vmem:[#allocation18 + $0xf90] sm:$0xff]
    %v4313 = vld [vmem:[#allocation18 + $0xf98] sm:$0xff]
    %v4314 = vld [vmem:[#allocation18 + $0xfa0] sm:$0xff]
    %v4315 = vld [vmem:[#allocation18 + $0xfa8] sm:$0xf]
    %v4316 = vld [vmem:[#allocation18 + $0xfac] sm:$0xff]
    %v4317 = vld [vmem:[#allocation18 + $0xfb4] sm:$0xff]
    %v4318 = vld [vmem:[#allocation18 + $0xfbc] sm:$0xff]
    %v4319 = vld [vmem:[#allocation18 + $0xfc4] sm:$0xff]
    %v4320 = vld [vmem:[#allocation18 + $0xfcc] sm:$0xff]
    %v4321 = vld [vmem:[#allocation18 + $0xfd4] sm:$0xff]
    %v4322 = vld [vmem:[#allocation18 + $0xfdc] sm:$0xff]
    %v4323 = vld [vmem:[#allocation18 + $0xfe4] sm:$0xff]
    %v4324 = vld [vmem:[#allocation18 + $0xfec] sm:$0xf]
    %v4325 = vld [vmem:[#allocation18 + $0xff0] sm:$0xff]
    %v4326 = vld [vmem:[#allocation18 + $0xff8] sm:$0xff]
    %v4327 = vld [vmem:[#allocation18 + $0x1000] sm:$0xff]
    %v4328 = vld [vmem:[#allocation18 + $0x1008] sm:$0xff]
    %v4329 = vld [vmem:[#allocation18 + $0x1010] sm:$0xff]
    %v4330 = vld [vmem:[#allocation18 + $0x1018] sm:$0xff]
    %v4331 = vld [vmem:[#allocation18 + $0x1020] sm:$0xff]
    %v4332 = vld [vmem:[#allocation18 + $0x1028] sm:$0xff]
    %v4333 = vld [vmem:[#allocation18 + $0x1030] sm:$0xf]
    %v4334 = vld [vmem:[#allocation18 + $0x1034] sm:$0xff]
    %v4335 = vld [vmem:[#allocation18 + $0x103c] sm:$0xff]
    %v4336 = vld [vmem:[#allocation18 + $0x1044] sm:$0xff]
    %v4337 = vld [vmem:[#allocation18 + $0x104c] sm:$0xff]
    %v4338 = vld [vmem:[#allocation18 + $0x1054] sm:$0xff]
    %v4339 = vld [vmem:[#allocation18 + $0x105c] sm:$0xff]
    %v4340 = vld [vmem:[#allocation18 + $0x1064] sm:$0xff]
    %v4341 = vld [vmem:[#allocation18 + $0x106c] sm:$0xff]
    %v4342 = vld [vmem:[#allocation18 + $0x1074] sm:$0xf]
    %v4343 = vld [vmem:[#allocation18 + $0x1078] sm:$0xff]
    %v4344 = vld [vmem:[#allocation18 + $0x1080] sm:$0xff]
    %v4345 = vld [vmem:[#allocation18 + $0x1088] sm:$0xff]
    %v4346 = vld [vmem:[#allocation18 + $0x1090] sm:$0xff]
    %v4347 = vld [vmem:[#allocation18 + $0x1098] sm:$0xff]
    %v4348 = vld [vmem:[#allocation18 + $0x10a0] sm:$0xff]
    %v4349 = vld [vmem:[#allocation18 + $0x10a8] sm:$0xff]
    %v4350 = vld [vmem:[#allocation18 + $0x10b0] sm:$0xff]
    %v4351 = vld [vmem:[#allocation18 + $0x10b8] sm:$0xf]
    %v4352 = vld [vmem:[#allocation18 + $0x10bc] sm:$0xff]
    %v4353 = vld [vmem:[#allocation18 + $0x10c4] sm:$0xff]
    %v4354 = vld [vmem:[#allocation18 + $0x10cc] sm:$0xff]
    %v4355 = vld [vmem:[#allocation18 + $0x10d4] sm:$0xff]
    %v4356 = vld [vmem:[#allocation18 + $0x10dc] sm:$0xff]
    %v4357 = vld [vmem:[#allocation18 + $0x10e4] sm:$0xff]
    %v4358 = vld [vmem:[#allocation18 + $0x10ec] sm:$0xff]
    %v4359 = vld [vmem:[#allocation18 + $0x10f4] sm:$0xff]
    %v4360 = vld [vmem:[#allocation18 + $0x10fc] sm:$0xf]
    %v4937 = vunpack.c.l.b16 %v3785
    %v4938 = vunpack.c.h.b16 %v3785
    %v4939 = vunpack.c.l.b16 %v3786
    %v4940 = vunpack.c.h.b16 %v3786
    %v4941 = vunpack.c.l.b16 %v3787
    %v4942 = vunpack.c.h.b16 %v3787
    %v4943 = vunpack.c.l.b16 %v3788
    %v4944 = vunpack.c.h.b16 %v3788
    %v4945 = vunpack.c.l.b16 %v3789
    %v4946 = vunpack.c.h.b16 %v3789
    %v4947 = vunpack.c.l.b16 %v3790
    %v4948 = vunpack.c.h.b16 %v3790
    %v4949 = vunpack.c.l.b16 %v3791
    %v4950 = vunpack.c.h.b16 %v3791
    %v4951 = vunpack.c.l.b16 %v3792
    %v4952 = vunpack.c.h.b16 %v3792
    %v4953 = vunpack.c.l.b16 %v3793
    %v4954 = vunpack.c.l.b16 %v3794
    %v4955 = vunpack.c.h.b16 %v3794
    %v4956 = vunpack.c.l.b16 %v3795
    %v4957 = vunpack.c.h.b16 %v3795
    %v4958 = vunpack.c.l.b16 %v3796
    %v4959 = vunpack.c.h.b16 %v3796
    %v4960 = vunpack.c.l.b16 %v3797
    %v4961 = vunpack.c.h.b16 %v3797
    %v4962 = vunpack.c.l.b16 %v3798
    %v4963 = vunpack.c.h.b16 %v3798
    %v4964 = vunpack.c.l.b16 %v3799
    %v4965 = vunpack.c.h.b16 %v3799
    %v4966 = vunpack.c.l.b16 %v3800
    %v4967 = vunpack.c.h.b16 %v3800
    %v4968 = vunpack.c.l.b16 %v3801
    %v4969 = vunpack.c.h.b16 %v3801
    %v4970 = vunpack.c.l.b16 %v3802
    %v4971 = vunpack.c.l.b16 %v3803
    %v4972 = vunpack.c.h.b16 %v3803
    %v4973 = vunpack.c.l.b16 %v3804
    %v4974 = vunpack.c.h.b16 %v3804
    %v4975 = vunpack.c.l.b16 %v3805
    %v4976 = vunpack.c.h.b16 %v3805
    %v4977 = vunpack.c.l.b16 %v3806
    %v4978 = vunpack.c.h.b16 %v3806
    %v4979 = vunpack.c.l.b16 %v3807
    %v4980 = vunpack.c.h.b16 %v3807
    %v4981 = vunpack.c.l.b16 %v3808
    %v4982 = vunpack.c.h.b16 %v3808
    %v4983 = vunpack.c.l.b16 %v3809
    %v4984 = vunpack.c.h.b16 %v3809
    %v4985 = vunpack.c.l.b16 %v3810
    %v4986 = vunpack.c.h.b16 %v3810
    %v4987 = vunpack.c.l.b16 %v3811
    %v4988 = vunpack.c.l.b16 %v3812
    %v4989 = vunpack.c.h.b16 %v3812
    %v4990 = vunpack.c.l.b16 %v3813
    %v4991 = vunpack.c.h.b16 %v3813
    %v4992 = vunpack.c.l.b16 %v3814
    %v4993 = vunpack.c.h.b16 %v3814
    %v4994 = vunpack.c.l.b16 %v3815
    %v4995 = vunpack.c.h.b16 %v3815
    %v4996 = vunpack.c.l.b16 %v3816
    %v4997 = vunpack.c.h.b16 %v3816
    %v4998 = vunpack.c.l.b16 %v3817
    %v4999 = vunpack.c.h.b16 %v3817
    %v5000 = vunpack.c.l.b16 %v3818
    %v5001 = vunpack.c.h.b16 %v3818
    %v5002 = vunpack.c.l.b16 %v3819
    %v5003 = vunpack.c.h.b16 %v3819
    %v5004 = vunpack.c.l.b16 %v3820
    %v5005 = vunpack.c.l.b16 %v3821
    %v5006 = vunpack.c.h.b16 %v3821
    %v5007 = vunpack.c.l.b16 %v3822
    %v5008 = vunpack.c.h.b16 %v3822
    %v5009 = vunpack.c.l.b16 %v3823
    %v5010 = vunpack.c.h.b16 %v3823
    %v5011 = vunpack.c.l.b16 %v3824
    %v5012 = vunpack.c.h.b16 %v3824
    %v5013 = vunpack.c.l.b16 %v3825
    %v5014 = vunpack.c.h.b16 %v3825
    %v5015 = vunpack.c.l.b16 %v3826
    %v5016 = vunpack.c.h.b16 %v3826
    %v5017 = vunpack.c.l.b16 %v3827
    %v5018 = vunpack.c.h.b16 %v3827
    %v5019 = vunpack.c.l.b16 %v3828
    %v5020 = vunpack.c.h.b16 %v3828
    %v5021 = vunpack.c.l.b16 %v3829
    %v5022 = vunpack.c.l.b16 %v3830
    %v5023 = vunpack.c.h.b16 %v3830
    %v5024 = vunpack.c.l.b16 %v3831
    %v5025 = vunpack.c.h.b16 %v3831
    %v5026 = vunpack.c.l.b16 %v3832
    %v5027 = vunpack.c.h.b16 %v3832
    %v5028 = vunpack.c.l.b16 %v3833
    %v5029 = vunpack.c.h.b16 %v3833
    %v5030 = vunpack.c.l.b16 %v3834
    %v5031 = vunpack.c.h.b16 %v3834
    %v5032 = vunpack.c.l.b16 %v3835
    %v5033 = vunpack.c.h.b16 %v3835
    %v5034 = vunpack.c.l.b16 %v3836
    %v5035 = vunpack.c.h.b16 %v3836
    %v5036 = vunpack.c.l.b16 %v3837
    %v5037 = vunpack.c.h.b16 %v3837
    %v5038 = vunpack.c.l.b16 %v3838
    %v5039 = vunpack.c.l.b16 %v3839
    %v5040 = vunpack.c.h.b16 %v3839
    %v5041 = vunpack.c.l.b16 %v3840
    %v5042 = vunpack.c.h.b16 %v3840
    %v5043 = vunpack.c.l.b16 %v3841
    %v5044 = vunpack.c.h.b16 %v3841
    %v5045 = vunpack.c.l.b16 %v3842
    %v5046 = vunpack.c.h.b16 %v3842
    %v5047 = vunpack.c.l.b16 %v3843
    %v5048 = vunpack.c.h.b16 %v3843
    %v5049 = vunpack.c.l.b16 %v3844
    %v5050 = vunpack.c.h.b16 %v3844
    %v5051 = vunpack.c.l.b16 %v3845
    %v5052 = vunpack.c.h.b16 %v3845
    %v5053 = vunpack.c.l.b16 %v3846
    %v5054 = vunpack.c.h.b16 %v3846
    %v5055 = vunpack.c.l.b16 %v3847
    %v5056 = vunpack.c.l.b16 %v3848
    %v5057 = vunpack.c.h.b16 %v3848
    %v5058 = vunpack.c.l.b16 %v3849
    %v5059 = vunpack.c.h.b16 %v3849
    %v5060 = vunpack.c.l.b16 %v3850
    %v5061 = vunpack.c.h.b16 %v3850
    %v5062 = vunpack.c.l.b16 %v3851
    %v5063 = vunpack.c.h.b16 %v3851
    %v5064 = vunpack.c.l.b16 %v3852
    %v5065 = vunpack.c.h.b16 %v3852
    %v5066 = vunpack.c.l.b16 %v3853
    %v5067 = vunpack.c.h.b16 %v3853
    %v5068 = vunpack.c.l.b16 %v3854
    %v5069 = vunpack.c.h.b16 %v3854
    %v5070 = vunpack.c.l.b16 %v3855
    %v5071 = vunpack.c.h.b16 %v3855
    %v5072 = vunpack.c.l.b16 %v3856
    %v5073 = vunpack.c.l.b16 %v3857
    %v5074 = vunpack.c.h.b16 %v3857
    %v5075 = vunpack.c.l.b16 %v3858
    %v5076 = vunpack.c.h.b16 %v3858
    %v5077 = vunpack.c.l.b16 %v3859
    %v5078 = vunpack.c.h.b16 %v3859
    %v5079 = vunpack.c.l.b16 %v3860
    %v5080 = vunpack.c.h.b16 %v3860
    %v5081 = vunpack.c.l.b16 %v3861
    %v5082 = vunpack.c.h.b16 %v3861
    %v5083 = vunpack.c.l.b16 %v3862
    %v5084 = vunpack.c.h.b16 %v3862
    %v5085 = vunpack.c.l.b16 %v3863
    %v5086 = vunpack.c.h.b16 %v3863
    %v5087 = vunpack.c.l.b16 %v3864
    %v5088 = vunpack.c.h.b16 %v3864
    %v5089 = vunpack.c.l.b16 %v3865
    %v5090 = vunpack.c.l.b16 %v3866
    %v5091 = vunpack.c.h.b16 %v3866
    %v5092 = vunpack.c.l.b16 %v3867
    %v5093 = vunpack.c.h.b16 %v3867
    %v5094 = vunpack.c.l.b16 %v3868
    %v5095 = vunpack.c.h.b16 %v3868
    %v5096 = vunpack.c.l.b16 %v3869
    %v5097 = vunpack.c.h.b16 %v3869
    %v5098 = vunpack.c.l.b16 %v3870
    %v5099 = vunpack.c.h.b16 %v3870
    %v5100 = vunpack.c.l.b16 %v3871
    %v5101 = vunpack.c.h.b16 %v3871
    %v5102 = vunpack.c.l.b16 %v3872
    %v5103 = vunpack.c.h.b16 %v3872
    %v5104 = vunpack.c.l.b16 %v3873
    %v5105 = vunpack.c.h.b16 %v3873
    %v5106 = vunpack.c.l.b16 %v3874
    %v5107 = vunpack.c.l.b16 %v3875
    %v5108 = vunpack.c.h.b16 %v3875
    %v5109 = vunpack.c.l.b16 %v3876
    %v5110 = vunpack.c.h.b16 %v3876
    %v5111 = vunpack.c.l.b16 %v3877
    %v5112 = vunpack.c.h.b16 %v3877
    %v5113 = vunpack.c.l.b16 %v3878
    %v5114 = vunpack.c.h.b16 %v3878
    %v5115 = vunpack.c.l.b16 %v3879
    %v5116 = vunpack.c.h.b16 %v3879
    %v5117 = vunpack.c.l.b16 %v3880
    %v5118 = vunpack.c.h.b16 %v3880
    %v5119 = vunpack.c.l.b16 %v3881
    %v5120 = vunpack.c.h.b16 %v3881
    %v5121 = vunpack.c.l.b16 %v3882
    %v5122 = vunpack.c.h.b16 %v3882
    %v5123 = vunpack.c.l.b16 %v3883
    %v5124 = vunpack.c.l.b16 %v3884
    %v5125 = vunpack.c.h.b16 %v3884
    %v5126 = vunpack.c.l.b16 %v3885
    %v5127 = vunpack.c.h.b16 %v3885
    %v5128 = vunpack.c.l.b16 %v3886
    %v5129 = vunpack.c.h.b16 %v3886
    %v5130 = vunpack.c.l.b16 %v3887
    %v5131 = vunpack.c.h.b16 %v3887
    %v5132 = vunpack.c.l.b16 %v3888
    %v5133 = vunpack.c.h.b16 %v3888
    %v5134 = vunpack.c.l.b16 %v3889
    %v5135 = vunpack.c.h.b16 %v3889
    %v5136 = vunpack.c.l.b16 %v3890
    %v5137 = vunpack.c.h.b16 %v3890
    %v5138 = vunpack.c.l.b16 %v3891
    %v5139 = vunpack.c.h.b16 %v3891
    %v5140 = vunpack.c.l.b16 %v3892
    %v5141 = vunpack.c.l.b16 %v3893
    %v5142 = vunpack.c.h.b16 %v3893
    %v5143 = vunpack.c.l.b16 %v3894
    %v5144 = vunpack.c.h.b16 %v3894
    %v5145 = vunpack.c.l.b16 %v3895
    %v5146 = vunpack.c.h.b16 %v3895
    %v5147 = vunpack.c.l.b16 %v3896
    %v5148 = vunpack.c.h.b16 %v3896
    %v5149 = vunpack.c.l.b16 %v3897
    %v5150 = vunpack.c.h.b16 %v3897
    %v5151 = vunpack.c.l.b16 %v3898
    %v5152 = vunpack.c.h.b16 %v3898
    %v5153 = vunpack.c.l.b16 %v3899
    %v5154 = vunpack.c.h.b16 %v3899
    %v5155 = vunpack.c.l.b16 %v3900
    %v5156 = vunpack.c.h.b16 %v3900
    %v5157 = vunpack.c.l.b16 %v3901
    %v5158 = vunpack.c.l.b16 %v3902
    %v5159 = vunpack.c.h.b16 %v3902
    %v5160 = vunpack.c.l.b16 %v3903
    %v5161 = vunpack.c.h.b16 %v3903
    %v5162 = vunpack.c.l.b16 %v3904
    %v5163 = vunpack.c.h.b16 %v3904
    %v5164 = vunpack.c.l.b16 %v3905
    %v5165 = vunpack.c.h.b16 %v3905
    %v5166 = vunpack.c.l.b16 %v3906
    %v5167 = vunpack.c.h.b16 %v3906
    %v5168 = vunpack.c.l.b16 %v3907
    %v5169 = vunpack.c.h.b16 %v3907
    %v5170 = vunpack.c.l.b16 %v3908
    %v5171 = vunpack.c.h.b16 %v3908
    %v5172 = vunpack.c.l.b16 %v3909
    %v5173 = vunpack.c.h.b16 %v3909
    %v5174 = vunpack.c.l.b16 %v3910
    %v5175 = vunpack.c.l.b16 %v3911
    %v5176 = vunpack.c.h.b16 %v3911
    %v5177 = vunpack.c.l.b16 %v3912
    %v5178 = vunpack.c.h.b16 %v3912
    %v5179 = vunpack.c.l.b16 %v3913
    %v5180 = vunpack.c.h.b16 %v3913
    %v5181 = vunpack.c.l.b16 %v3914
    %v5182 = vunpack.c.h.b16 %v3914
    %v5183 = vunpack.c.l.b16 %v3915
    %v5184 = vunpack.c.h.b16 %v3915
    %v5185 = vunpack.c.l.b16 %v3916
    %v5186 = vunpack.c.h.b16 %v3916
    %v5187 = vunpack.c.l.b16 %v3917
    %v5188 = vunpack.c.h.b16 %v3917
    %v5189 = vunpack.c.l.b16 %v3918
    %v5190 = vunpack.c.h.b16 %v3918
    %v5191 = vunpack.c.l.b16 %v3919
    %v5192 = vunpack.c.l.b16 %v3920
    %v5193 = vunpack.c.h.b16 %v3920
    %v5194 = vunpack.c.l.b16 %v3921
    %v5195 = vunpack.c.h.b16 %v3921
    %v5196 = vunpack.c.l.b16 %v3922
    %v5197 = vunpack.c.h.b16 %v3922
    %v5198 = vunpack.c.l.b16 %v3923
    %v5199 = vunpack.c.h.b16 %v3923
    %v5200 = vunpack.c.l.b16 %v3924
    %v5201 = vunpack.c.h.b16 %v3924
    %v5202 = vunpack.c.l.b16 %v3925
    %v5203 = vunpack.c.h.b16 %v3925
    %v5204 = vunpack.c.l.b16 %v3926
    %v5205 = vunpack.c.h.b16 %v3926
    %v5206 = vunpack.c.l.b16 %v3927
    %v5207 = vunpack.c.h.b16 %v3927
    %v5208 = vunpack.c.l.b16 %v3928
    %v5209 = vunpack.c.l.b16 %v3929
    %v5210 = vunpack.c.h.b16 %v3929
    %v5211 = vunpack.c.l.b16 %v3930
    %v5212 = vunpack.c.h.b16 %v3930
    %v5213 = vunpack.c.l.b16 %v3931
    %v5214 = vunpack.c.h.b16 %v3931
    %v5215 = vunpack.c.l.b16 %v3932
    %v5216 = vunpack.c.h.b16 %v3932
    %v5217 = vunpack.c.l.b16 %v3933
    %v5218 = vunpack.c.h.b16 %v3933
    %v5219 = vunpack.c.l.b16 %v3934
    %v5220 = vunpack.c.h.b16 %v3934
    %v5221 = vunpack.c.l.b16 %v3935
    %v5222 = vunpack.c.h.b16 %v3935
    %v5223 = vunpack.c.l.b16 %v3936
    %v5224 = vunpack.c.h.b16 %v3936
    %v5225 = vunpack.c.l.b16 %v3937
    %v5226 = vunpack.c.l.b16 %v3938
    %v5227 = vunpack.c.h.b16 %v3938
    %v5228 = vunpack.c.l.b16 %v3939
    %v5229 = vunpack.c.h.b16 %v3939
    %v5230 = vunpack.c.l.b16 %v3940
    %v5231 = vunpack.c.h.b16 %v3940
    %v5232 = vunpack.c.l.b16 %v3941
    %v5233 = vunpack.c.h.b16 %v3941
    %v5234 = vunpack.c.l.b16 %v3942
    %v5235 = vunpack.c.h.b16 %v3942
    %v5236 = vunpack.c.l.b16 %v3943
    %v5237 = vunpack.c.h.b16 %v3943
    %v5238 = vunpack.c.l.b16 %v3944
    %v5239 = vunpack.c.h.b16 %v3944
    %v5240 = vunpack.c.l.b16 %v3945
    %v5241 = vunpack.c.h.b16 %v3945
    %v5242 = vunpack.c.l.b16 %v3946
    %v5243 = vunpack.c.l.b16 %v3947
    %v5244 = vunpack.c.h.b16 %v3947
    %v5245 = vunpack.c.l.b16 %v3948
    %v5246 = vunpack.c.h.b16 %v3948
    %v5247 = vunpack.c.l.b16 %v3949
    %v5248 = vunpack.c.h.b16 %v3949
    %v5249 = vunpack.c.l.b16 %v3950
    %v5250 = vunpack.c.h.b16 %v3950
    %v5251 = vunpack.c.l.b16 %v3951
    %v5252 = vunpack.c.h.b16 %v3951
    %v5253 = vunpack.c.l.b16 %v3952
    %v5254 = vunpack.c.h.b16 %v3952
    %v5255 = vunpack.c.l.b16 %v3953
    %v5256 = vunpack.c.h.b16 %v3953
    %v5257 = vunpack.c.l.b16 %v3954
    %v5258 = vunpack.c.h.b16 %v3954
    %v5259 = vunpack.c.l.b16 %v3955
    %v5260 = vunpack.c.l.b16 %v3956
    %v5261 = vunpack.c.h.b16 %v3956
    %v5262 = vunpack.c.l.b16 %v3957
    %v5263 = vunpack.c.h.b16 %v3957
    %v5264 = vunpack.c.l.b16 %v3958
    %v5265 = vunpack.c.h.b16 %v3958
    %v5266 = vunpack.c.l.b16 %v3959
    %v5267 = vunpack.c.h.b16 %v3959
    %v5268 = vunpack.c.l.b16 %v3960
    %v5269 = vunpack.c.h.b16 %v3960
    %v5270 = vunpack.c.l.b16 %v3961
    %v5271 = vunpack.c.h.b16 %v3961
    %v5272 = vunpack.c.l.b16 %v3962
    %v5273 = vunpack.c.h.b16 %v3962
    %v5274 = vunpack.c.l.b16 %v3963
    %v5275 = vunpack.c.h.b16 %v3963
    %v5276 = vunpack.c.l.b16 %v3964
    %v5277 = vunpack.c.l.b16 %v3965
    %v5278 = vunpack.c.h.b16 %v3965
    %v5279 = vunpack.c.l.b16 %v3966
    %v5280 = vunpack.c.h.b16 %v3966
    %v5281 = vunpack.c.l.b16 %v3967
    %v5282 = vunpack.c.h.b16 %v3967
    %v5283 = vunpack.c.l.b16 %v3968
    %v5284 = vunpack.c.h.b16 %v3968
    %v5285 = vunpack.c.l.b16 %v3969
    %v5286 = vunpack.c.h.b16 %v3969
    %v5287 = vunpack.c.l.b16 %v3970
    %v5288 = vunpack.c.h.b16 %v3970
    %v5289 = vunpack.c.l.b16 %v3971
    %v5290 = vunpack.c.h.b16 %v3971
    %v5291 = vunpack.c.l.b16 %v3972
    %v5292 = vunpack.c.h.b16 %v3972
    %v5293 = vunpack.c.l.b16 %v3973
    %v5294 = vunpack.c.l.b16 %v3974
    %v5295 = vunpack.c.h.b16 %v3974
    %v5296 = vunpack.c.l.b16 %v3975
    %v5297 = vunpack.c.h.b16 %v3975
    %v5298 = vunpack.c.l.b16 %v3976
    %v5299 = vunpack.c.h.b16 %v3976
    %v5300 = vunpack.c.l.b16 %v3977
    %v5301 = vunpack.c.h.b16 %v3977
    %v5302 = vunpack.c.l.b16 %v3978
    %v5303 = vunpack.c.h.b16 %v3978
    %v5304 = vunpack.c.l.b16 %v3979
    %v5305 = vunpack.c.h.b16 %v3979
    %v5306 = vunpack.c.l.b16 %v3980
    %v5307 = vunpack.c.h.b16 %v3980
    %v5308 = vunpack.c.l.b16 %v3981
    %v5309 = vunpack.c.h.b16 %v3981
    %v5310 = vunpack.c.l.b16 %v3982
    %v5311 = vunpack.c.l.b16 %v3983
    %v5312 = vunpack.c.h.b16 %v3983
    %v5313 = vunpack.c.l.b16 %v3984
    %v5314 = vunpack.c.h.b16 %v3984
    %v5315 = vunpack.c.l.b16 %v3985
    %v5316 = vunpack.c.h.b16 %v3985
    %v5317 = vunpack.c.l.b16 %v3986
    %v5318 = vunpack.c.h.b16 %v3986
    %v5319 = vunpack.c.l.b16 %v3987
    %v5320 = vunpack.c.h.b16 %v3987
    %v5321 = vunpack.c.l.b16 %v3988
    %v5322 = vunpack.c.h.b16 %v3988
    %v5323 = vunpack.c.l.b16 %v3989
    %v5324 = vunpack.c.h.b16 %v3989
    %v5325 = vunpack.c.l.b16 %v3990
    %v5326 = vunpack.c.h.b16 %v3990
    %v5327 = vunpack.c.l.b16 %v3991
    %v5328 = vunpack.c.l.b16 %v3992
    %v5329 = vunpack.c.h.b16 %v3992
    %v5330 = vunpack.c.l.b16 %v3993
    %v5331 = vunpack.c.h.b16 %v3993
    %v5332 = vunpack.c.l.b16 %v3994
    %v5333 = vunpack.c.h.b16 %v3994
    %v5334 = vunpack.c.l.b16 %v3995
    %v5335 = vunpack.c.h.b16 %v3995
    %v5336 = vunpack.c.l.b16 %v3996
    %v5337 = vunpack.c.h.b16 %v3996
    %v5338 = vunpack.c.l.b16 %v3997
    %v5339 = vunpack.c.h.b16 %v3997
    %v5340 = vunpack.c.l.b16 %v3998
    %v5341 = vunpack.c.h.b16 %v3998
    %v5342 = vunpack.c.l.b16 %v3999
    %v5343 = vunpack.c.h.b16 %v3999
    %v5344 = vunpack.c.l.b16 %v4000
    %v5345 = vunpack.c.l.b16 %v4001
    %v5346 = vunpack.c.h.b16 %v4001
    %v5347 = vunpack.c.l.b16 %v4002
    %v5348 = vunpack.c.h.b16 %v4002
    %v5349 = vunpack.c.l.b16 %v4003
    %v5350 = vunpack.c.h.b16 %v4003
    %v5351 = vunpack.c.l.b16 %v4004
    %v5352 = vunpack.c.h.b16 %v4004
    %v5353 = vunpack.c.l.b16 %v4005
    %v5354 = vunpack.c.h.b16 %v4005
    %v5355 = vunpack.c.l.b16 %v4006
    %v5356 = vunpack.c.h.b16 %v4006
    %v5357 = vunpack.c.l.b16 %v4007
    %v5358 = vunpack.c.h.b16 %v4007
    %v5359 = vunpack.c.l.b16 %v4008
    %v5360 = vunpack.c.h.b16 %v4008
    %v5361 = vunpack.c.l.b16 %v4009
    %v5362 = vunpack.c.l.b16 %v4010
    %v5363 = vunpack.c.h.b16 %v4010
    %v5364 = vunpack.c.l.b16 %v4011
    %v5365 = vunpack.c.h.b16 %v4011
    %v5366 = vunpack.c.l.b16 %v4012
    %v5367 = vunpack.c.h.b16 %v4012
    %v5368 = vunpack.c.l.b16 %v4013
    %v5369 = vunpack.c.h.b16 %v4013
    %v5370 = vunpack.c.l.b16 %v4014
    %v5371 = vunpack.c.h.b16 %v4014
    %v5372 = vunpack.c.l.b16 %v4015
    %v5373 = vunpack.c.h.b16 %v4015
    %v5374 = vunpack.c.l.b16 %v4016
    %v5375 = vunpack.c.h.b16 %v4016
    %v5376 = vunpack.c.l.b16 %v4017
    %v5377 = vunpack.c.h.b16 %v4017
    %v5378 = vunpack.c.l.b16 %v4018
    %v5379 = vunpack.c.l.b16 %v4019
    %v5380 = vunpack.c.h.b16 %v4019
    %v5381 = vunpack.c.l.b16 %v4020
    %v5382 = vunpack.c.h.b16 %v4020
    %v5383 = vunpack.c.l.b16 %v4021
    %v5384 = vunpack.c.h.b16 %v4021
    %v5385 = vunpack.c.l.b16 %v4022
    %v5386 = vunpack.c.h.b16 %v4022
    %v5387 = vunpack.c.l.b16 %v4023
    %v5388 = vunpack.c.h.b16 %v4023
    %v5389 = vunpack.c.l.b16 %v4024
    %v5390 = vunpack.c.h.b16 %v4024
    %v5391 = vunpack.c.l.b16 %v4025
    %v5392 = vunpack.c.h.b16 %v4025
    %v5393 = vunpack.c.l.b16 %v4026
    %v5394 = vunpack.c.h.b16 %v4026
    %v5395 = vunpack.c.l.b16 %v4027
    %v5396 = vunpack.c.l.b16 %v4028
    %v5397 = vunpack.c.h.b16 %v4028
    %v5398 = vunpack.c.l.b16 %v4029
    %v5399 = vunpack.c.h.b16 %v4029
    %v5400 = vunpack.c.l.b16 %v4030
    %v5401 = vunpack.c.h.b16 %v4030
    %v5402 = vunpack.c.l.b16 %v4031
    %v5403 = vunpack.c.h.b16 %v4031
    %v5404 = vunpack.c.l.b16 %v4032
    %v5405 = vunpack.c.h.b16 %v4032
    %v5406 = vunpack.c.l.b16 %v4033
    %v5407 = vunpack.c.h.b16 %v4033
    %v5408 = vunpack.c.l.b16 %v4034
    %v5409 = vunpack.c.h.b16 %v4034
    %v5410 = vunpack.c.l.b16 %v4035
    %v5411 = vunpack.c.h.b16 %v4035
    %v5412 = vunpack.c.l.b16 %v4036
    %v5413 = vunpack.c.l.b16 %v4037
    %v5414 = vunpack.c.h.b16 %v4037
    %v5415 = vunpack.c.l.b16 %v4038
    %v5416 = vunpack.c.h.b16 %v4038
    %v5417 = vunpack.c.l.b16 %v4039
    %v5418 = vunpack.c.h.b16 %v4039
    %v5419 = vunpack.c.l.b16 %v4040
    %v5420 = vunpack.c.h.b16 %v4040
    %v5421 = vunpack.c.l.b16 %v4041
    %v5422 = vunpack.c.h.b16 %v4041
    %v5423 = vunpack.c.l.b16 %v4042
    %v5424 = vunpack.c.h.b16 %v4042
    %v5425 = vunpack.c.l.b16 %v4043
    %v5426 = vunpack.c.h.b16 %v4043
    %v5427 = vunpack.c.l.b16 %v4044
    %v5428 = vunpack.c.h.b16 %v4044
    %v5429 = vunpack.c.l.b16 %v4045
    %v5430 = vunpack.c.l.b16 %v4046
    %v5431 = vunpack.c.h.b16 %v4046
    %v5432 = vunpack.c.l.b16 %v4047
    %v5433 = vunpack.c.h.b16 %v4047
    %v5434 = vunpack.c.l.b16 %v4048
    %v5435 = vunpack.c.h.b16 %v4048
    %v5436 = vunpack.c.l.b16 %v4049
    %v5437 = vunpack.c.h.b16 %v4049
    %v5438 = vunpack.c.l.b16 %v4050
    %v5439 = vunpack.c.h.b16 %v4050
    %v5440 = vunpack.c.l.b16 %v4051
    %v5441 = vunpack.c.h.b16 %v4051
    %v5442 = vunpack.c.l.b16 %v4052
    %v5443 = vunpack.c.h.b16 %v4052
    %v5444 = vunpack.c.l.b16 %v4053
    %v5445 = vunpack.c.h.b16 %v4053
    %v5446 = vunpack.c.l.b16 %v4054
    %v5447 = vunpack.c.l.b16 %v4055
    %v5448 = vunpack.c.h.b16 %v4055
    %v5449 = vunpack.c.l.b16 %v4056
    %v5450 = vunpack.c.h.b16 %v4056
    %v5451 = vunpack.c.l.b16 %v4057
    %v5452 = vunpack.c.h.b16 %v4057
    %v5453 = vunpack.c.l.b16 %v4058
    %v5454 = vunpack.c.h.b16 %v4058
    %v5455 = vunpack.c.l.b16 %v4059
    %v5456 = vunpack.c.h.b16 %v4059
    %v5457 = vunpack.c.l.b16 %v4060
    %v5458 = vunpack.c.h.b16 %v4060
    %v5459 = vunpack.c.l.b16 %v4061
    %v5460 = vunpack.c.h.b16 %v4061
    %v5461 = vunpack.c.l.b16 %v4062
    %v5462 = vunpack.c.h.b16 %v4062
    %v5463 = vunpack.c.l.b16 %v4063
    %v5464 = vunpack.c.l.b16 %v4064
    %v5465 = vunpack.c.h.b16 %v4064
    %v5466 = vunpack.c.l.b16 %v4065
    %v5467 = vunpack.c.h.b16 %v4065
    %v5468 = vunpack.c.l.b16 %v4066
    %v5469 = vunpack.c.h.b16 %v4066
    %v5470 = vunpack.c.l.b16 %v4067
    %v5471 = vunpack.c.h.b16 %v4067
    %v5472 = vunpack.c.l.b16 %v4068
    %v5473 = vunpack.c.h.b16 %v4068
    %v5474 = vunpack.c.l.b16 %v4069
    %v5475 = vunpack.c.h.b16 %v4069
    %v5476 = vunpack.c.l.b16 %v4070
    %v5477 = vunpack.c.h.b16 %v4070
    %v5478 = vunpack.c.l.b16 %v4071
    %v5479 = vunpack.c.h.b16 %v4071
    %v5480 = vunpack.c.l.b16 %v4072
    %v5481 = vunpack.c.l.b16 %v4073
    %v5482 = vunpack.c.h.b16 %v4073
    %v5483 = vunpack.c.l.b16 %v4074
    %v5484 = vunpack.c.h.b16 %v4074
    %v5485 = vunpack.c.l.b16 %v4075
    %v5486 = vunpack.c.h.b16 %v4075
    %v5487 = vunpack.c.l.b16 %v4076
    %v5488 = vunpack.c.h.b16 %v4076
    %v5489 = vunpack.c.l.b16 %v4077
    %v5490 = vunpack.c.h.b16 %v4077
    %v5491 = vunpack.c.l.b16 %v4078
    %v5492 = vunpack.c.h.b16 %v4078
    %v5493 = vunpack.c.l.b16 %v4079
    %v5494 = vunpack.c.h.b16 %v4079
    %v5495 = vunpack.c.l.b16 %v4080
    %v5496 = vunpack.c.h.b16 %v4080
    %v5497 = vunpack.c.l.b16 %v4081
    %v5498 = vunpack.c.l.b16 %v4082
    %v5499 = vunpack.c.h.b16 %v4082
    %v5500 = vunpack.c.l.b16 %v4083
    %v5501 = vunpack.c.h.b16 %v4083
    %v5502 = vunpack.c.l.b16 %v4084
    %v5503 = vunpack.c.h.b16 %v4084
    %v5504 = vunpack.c.l.b16 %v4085
    %v5505 = vunpack.c.h.b16 %v4085
    %v5506 = vunpack.c.l.b16 %v4086
    %v5507 = vunpack.c.h.b16 %v4086
    %v5508 = vunpack.c.l.b16 %v4087
    %v5509 = vunpack.c.h.b16 %v4087
    %v5510 = vunpack.c.l.b16 %v4088
    %v5511 = vunpack.c.h.b16 %v4088
    %v5512 = vunpack.c.l.b16 %v4089
    %v5513 = vunpack.c.h.b16 %v4089
    %v5514 = vunpack.c.l.b16 %v4090
    %v5515 = vunpack.c.l.b16 %v4091
    %v5516 = vunpack.c.h.b16 %v4091
    %v5517 = vunpack.c.l.b16 %v4092
    %v5518 = vunpack.c.h.b16 %v4092
    %v5519 = vunpack.c.l.b16 %v4093
    %v5520 = vunpack.c.h.b16 %v4093
    %v5521 = vunpack.c.l.b16 %v4094
    %v5522 = vunpack.c.h.b16 %v4094
    %v5523 = vunpack.c.l.b16 %v4095
    %v5524 = vunpack.c.h.b16 %v4095
    %v5525 = vunpack.c.l.b16 %v4096
    %v5526 = vunpack.c.h.b16 %v4096
    %v5527 = vunpack.c.l.b16 %v4097
    %v5528 = vunpack.c.h.b16 %v4097
    %v5529 = vunpack.c.l.b16 %v4098
    %v5530 = vunpack.c.h.b16 %v4098
    %v5531 = vunpack.c.l.b16 %v4099
    %v5532 = vunpack.c.l.b16 %v4100
    %v5533 = vunpack.c.h.b16 %v4100
    %v5534 = vunpack.c.l.b16 %v4101
    %v5535 = vunpack.c.h.b16 %v4101
    %v5536 = vunpack.c.l.b16 %v4102
    %v5537 = vunpack.c.h.b16 %v4102
    %v5538 = vunpack.c.l.b16 %v4103
    %v5539 = vunpack.c.h.b16 %v4103
    %v5540 = vunpack.c.l.b16 %v4104
    %v5541 = vunpack.c.h.b16 %v4104
    %v5542 = vunpack.c.l.b16 %v4105
    %v5543 = vunpack.c.h.b16 %v4105
    %v5544 = vunpack.c.l.b16 %v4106
    %v5545 = vunpack.c.h.b16 %v4106
    %v5546 = vunpack.c.l.b16 %v4107
    %v5547 = vunpack.c.h.b16 %v4107
    %v5548 = vunpack.c.l.b16 %v4108
    %v5549 = vunpack.c.l.b16 %v4109
    %v5550 = vunpack.c.h.b16 %v4109
    %v5551 = vunpack.c.l.b16 %v4110
    %v5552 = vunpack.c.h.b16 %v4110
    %v5553 = vunpack.c.l.b16 %v4111
    %v5554 = vunpack.c.h.b16 %v4111
    %v5555 = vunpack.c.l.b16 %v4112
    %v5556 = vunpack.c.h.b16 %v4112
    %v5557 = vunpack.c.l.b16 %v4113
    %v5558 = vunpack.c.h.b16 %v4113
    %v5559 = vunpack.c.l.b16 %v4114
    %v5560 = vunpack.c.h.b16 %v4114
    %v5561 = vunpack.c.l.b16 %v4115
    %v5562 = vunpack.c.h.b16 %v4115
    %v5563 = vunpack.c.l.b16 %v4116
    %v5564 = vunpack.c.h.b16 %v4116
    %v5565 = vunpack.c.l.b16 %v4117
    %v5566 = vunpack.c.l.b16 %v4118
    %v5567 = vunpack.c.h.b16 %v4118
    %v5568 = vunpack.c.l.b16 %v4119
    %v5569 = vunpack.c.h.b16 %v4119
    %v5570 = vunpack.c.l.b16 %v4120
    %v5571 = vunpack.c.h.b16 %v4120
    %v5572 = vunpack.c.l.b16 %v4121
    %v5573 = vunpack.c.h.b16 %v4121
    %v5574 = vunpack.c.l.b16 %v4122
    %v5575 = vunpack.c.h.b16 %v4122
    %v5576 = vunpack.c.l.b16 %v4123
    %v5577 = vunpack.c.h.b16 %v4123
    %v5578 = vunpack.c.l.b16 %v4124
    %v5579 = vunpack.c.h.b16 %v4124
    %v5580 = vunpack.c.l.b16 %v4125
    %v5581 = vunpack.c.h.b16 %v4125
    %v5582 = vunpack.c.l.b16 %v4126
    %v5583 = vunpack.c.l.b16 %v4127
    %v5584 = vunpack.c.h.b16 %v4127
    %v5585 = vunpack.c.l.b16 %v4128
    %v5586 = vunpack.c.h.b16 %v4128
    %v5587 = vunpack.c.l.b16 %v4129
    %v5588 = vunpack.c.h.b16 %v4129
    %v5589 = vunpack.c.l.b16 %v4130
    %v5590 = vunpack.c.h.b16 %v4130
    %v5591 = vunpack.c.l.b16 %v4131
    %v5592 = vunpack.c.h.b16 %v4131
    %v5593 = vunpack.c.l.b16 %v4132
    %v5594 = vunpack.c.h.b16 %v4132
    %v5595 = vunpack.c.l.b16 %v4133
    %v5596 = vunpack.c.h.b16 %v4133
    %v5597 = vunpack.c.l.b16 %v4134
    %v5598 = vunpack.c.h.b16 %v4134
    %v5599 = vunpack.c.l.b16 %v4135
    %v5600 = vunpack.c.l.b16 %v4136
    %v5601 = vunpack.c.h.b16 %v4136
    %v5602 = vunpack.c.l.b16 %v4137
    %v5603 = vunpack.c.h.b16 %v4137
    %v5604 = vunpack.c.l.b16 %v4138
    %v5605 = vunpack.c.h.b16 %v4138
    %v5606 = vunpack.c.l.b16 %v4139
    %v5607 = vunpack.c.h.b16 %v4139
    %v5608 = vunpack.c.l.b16 %v4140
    %v5609 = vunpack.c.h.b16 %v4140
    %v5610 = vunpack.c.l.b16 %v4141
    %v5611 = vunpack.c.h.b16 %v4141
    %v5612 = vunpack.c.l.b16 %v4142
    %v5613 = vunpack.c.h.b16 %v4142
    %v5614 = vunpack.c.l.b16 %v4143
    %v5615 = vunpack.c.h.b16 %v4143
    %v5616 = vunpack.c.l.b16 %v4144
    %v5617 = vunpack.c.l.b16 %v4145
    %v5618 = vunpack.c.h.b16 %v4145
    %v5619 = vunpack.c.l.b16 %v4146
    %v5620 = vunpack.c.h.b16 %v4146
    %v5621 = vunpack.c.l.b16 %v4147
    %v5622 = vunpack.c.h.b16 %v4147
    %v5623 = vunpack.c.l.b16 %v4148
    %v5624 = vunpack.c.h.b16 %v4148
    %v5625 = vunpack.c.l.b16 %v4149
    %v5626 = vunpack.c.h.b16 %v4149
    %v5627 = vunpack.c.l.b16 %v4150
    %v5628 = vunpack.c.h.b16 %v4150
    %v5629 = vunpack.c.l.b16 %v4151
    %v5630 = vunpack.c.h.b16 %v4151
    %v5631 = vunpack.c.l.b16 %v4152
    %v5632 = vunpack.c.h.b16 %v4152
    %v5633 = vunpack.c.l.b16 %v4153
    %v5634 = vunpack.c.l.b16 %v4154
    %v5635 = vunpack.c.h.b16 %v4154
    %v5636 = vunpack.c.l.b16 %v4155
    %v5637 = vunpack.c.h.b16 %v4155
    %v5638 = vunpack.c.l.b16 %v4156
    %v5639 = vunpack.c.h.b16 %v4156
    %v5640 = vunpack.c.l.b16 %v4157
    %v5641 = vunpack.c.h.b16 %v4157
    %v5642 = vunpack.c.l.b16 %v4158
    %v5643 = vunpack.c.h.b16 %v4158
    %v5644 = vunpack.c.l.b16 %v4159
    %v5645 = vunpack.c.h.b16 %v4159
    %v5646 = vunpack.c.l.b16 %v4160
    %v5647 = vunpack.c.h.b16 %v4160
    %v5648 = vunpack.c.l.b16 %v4161
    %v5649 = vunpack.c.h.b16 %v4161
    %v5650 = vunpack.c.l.b16 %v4162
    %v5651 = vunpack.c.l.b16 %v4163
    %v5652 = vunpack.c.h.b16 %v4163
    %v5653 = vunpack.c.l.b16 %v4164
    %v5654 = vunpack.c.h.b16 %v4164
    %v5655 = vunpack.c.l.b16 %v4165
    %v5656 = vunpack.c.h.b16 %v4165
    %v5657 = vunpack.c.l.b16 %v4166
    %v5658 = vunpack.c.h.b16 %v4166
    %v5659 = vunpack.c.l.b16 %v4167
    %v5660 = vunpack.c.h.b16 %v4167
    %v5661 = vunpack.c.l.b16 %v4168
    %v5662 = vunpack.c.h.b16 %v4168
    %v5663 = vunpack.c.l.b16 %v4169
    %v5664 = vunpack.c.h.b16 %v4169
    %v5665 = vunpack.c.l.b16 %v4170
    %v5666 = vunpack.c.h.b16 %v4170
    %v5667 = vunpack.c.l.b16 %v4171
    %v5668 = vunpack.c.l.b16 %v4172
    %v5669 = vunpack.c.h.b16 %v4172
    %v5670 = vunpack.c.l.b16 %v4173
    %v5671 = vunpack.c.h.b16 %v4173
    %v5672 = vunpack.c.l.b16 %v4174
    %v5673 = vunpack.c.h.b16 %v4174
    %v5674 = vunpack.c.l.b16 %v4175
    %v5675 = vunpack.c.h.b16 %v4175
    %v5676 = vunpack.c.l.b16 %v4176
    %v5677 = vunpack.c.h.b16 %v4176
    %v5678 = vunpack.c.l.b16 %v4177
    %v5679 = vunpack.c.h.b16 %v4177
    %v5680 = vunpack.c.l.b16 %v4178
    %v5681 = vunpack.c.h.b16 %v4178
    %v5682 = vunpack.c.l.b16 %v4179
    %v5683 = vunpack.c.h.b16 %v4179
    %v5684 = vunpack.c.l.b16 %v4180
    %v5685 = vunpack.c.l.b16 %v4181
    %v5686 = vunpack.c.h.b16 %v4181
    %v5687 = vunpack.c.l.b16 %v4182
    %v5688 = vunpack.c.h.b16 %v4182
    %v5689 = vunpack.c.l.b16 %v4183
    %v5690 = vunpack.c.h.b16 %v4183
    %v5691 = vunpack.c.l.b16 %v4184
    %v5692 = vunpack.c.h.b16 %v4184
    %v5693 = vunpack.c.l.b16 %v4185
    %v5694 = vunpack.c.h.b16 %v4185
    %v5695 = vunpack.c.l.b16 %v4186
    %v5696 = vunpack.c.h.b16 %v4186
    %v5697 = vunpack.c.l.b16 %v4187
    %v5698 = vunpack.c.h.b16 %v4187
    %v5699 = vunpack.c.l.b16 %v4188
    %v5700 = vunpack.c.h.b16 %v4188
    %v5701 = vunpack.c.l.b16 %v4189
    %v5702 = vunpack.c.l.b16 %v4190
    %v5703 = vunpack.c.h.b16 %v4190
    %v5704 = vunpack.c.l.b16 %v4191
    %v5705 = vunpack.c.h.b16 %v4191
    %v5706 = vunpack.c.l.b16 %v4192
    %v5707 = vunpack.c.h.b16 %v4192
    %v5708 = vunpack.c.l.b16 %v4193
    %v5709 = vunpack.c.h.b16 %v4193
    %v5710 = vunpack.c.l.b16 %v4194
    %v5711 = vunpack.c.h.b16 %v4194
    %v5712 = vunpack.c.l.b16 %v4195
    %v5713 = vunpack.c.h.b16 %v4195
    %v5714 = vunpack.c.l.b16 %v4196
    %v5715 = vunpack.c.h.b16 %v4196
    %v5716 = vunpack.c.l.b16 %v4197
    %v5717 = vunpack.c.h.b16 %v4197
    %v5718 = vunpack.c.l.b16 %v4198
    %v5719 = vunpack.c.l.b16 %v4199
    %v5720 = vunpack.c.h.b16 %v4199
    %v5721 = vunpack.c.l.b16 %v4200
    %v5722 = vunpack.c.h.b16 %v4200
    %v5723 = vunpack.c.l.b16 %v4201
    %v5724 = vunpack.c.h.b16 %v4201
    %v5725 = vunpack.c.l.b16 %v4202
    %v5726 = vunpack.c.h.b16 %v4202
    %v5727 = vunpack.c.l.b16 %v4203
    %v5728 = vunpack.c.h.b16 %v4203
    %v5729 = vunpack.c.l.b16 %v4204
    %v5730 = vunpack.c.h.b16 %v4204
    %v5731 = vunpack.c.l.b16 %v4205
    %v5732 = vunpack.c.h.b16 %v4205
    %v5733 = vunpack.c.l.b16 %v4206
    %v5734 = vunpack.c.h.b16 %v4206
    %v5735 = vunpack.c.l.b16 %v4207
    %v5736 = vunpack.c.l.b16 %v4208
    %v5737 = vunpack.c.h.b16 %v4208
    %v5738 = vunpack.c.l.b16 %v4209
    %v5739 = vunpack.c.h.b16 %v4209
    %v5740 = vunpack.c.l.b16 %v4210
    %v5741 = vunpack.c.h.b16 %v4210
    %v5742 = vunpack.c.l.b16 %v4211
    %v5743 = vunpack.c.h.b16 %v4211
    %v5744 = vunpack.c.l.b16 %v4212
    %v5745 = vunpack.c.h.b16 %v4212
    %v5746 = vunpack.c.l.b16 %v4213
    %v5747 = vunpack.c.h.b16 %v4213
    %v5748 = vunpack.c.l.b16 %v4214
    %v5749 = vunpack.c.h.b16 %v4214
    %v5750 = vunpack.c.l.b16 %v4215
    %v5751 = vunpack.c.h.b16 %v4215
    %v5752 = vunpack.c.l.b16 %v4216
    %v5753 = vunpack.c.l.b16 %v4217
    %v5754 = vunpack.c.h.b16 %v4217
    %v5755 = vunpack.c.l.b16 %v4218
    %v5756 = vunpack.c.h.b16 %v4218
    %v5757 = vunpack.c.l.b16 %v4219
    %v5758 = vunpack.c.h.b16 %v4219
    %v5759 = vunpack.c.l.b16 %v4220
    %v5760 = vunpack.c.h.b16 %v4220
    %v5761 = vunpack.c.l.b16 %v4221
    %v5762 = vunpack.c.h.b16 %v4221
    %v5763 = vunpack.c.l.b16 %v4222
    %v5764 = vunpack.c.h.b16 %v4222
    %v5765 = vunpack.c.l.b16 %v4223
    %v5766 = vunpack.c.h.b16 %v4223
    %v5767 = vunpack.c.l.b16 %v4224
    %v5768 = vunpack.c.h.b16 %v4224
    %v5769 = vunpack.c.l.b16 %v4225
    %v5770 = vunpack.c.l.b16 %v4226
    %v5771 = vunpack.c.h.b16 %v4226
    %v5772 = vunpack.c.l.b16 %v4227
    %v5773 = vunpack.c.h.b16 %v4227
    %v5774 = vunpack.c.l.b16 %v4228
    %v5775 = vunpack.c.h.b16 %v4228
    %v5776 = vunpack.c.l.b16 %v4229
    %v5777 = vunpack.c.h.b16 %v4229
    %v5778 = vunpack.c.l.b16 %v4230
    %v5779 = vunpack.c.h.b16 %v4230
    %v5780 = vunpack.c.l.b16 %v4231
    %v5781 = vunpack.c.h.b16 %v4231
    %v5782 = vunpack.c.l.b16 %v4232
    %v5783 = vunpack.c.h.b16 %v4232
    %v5784 = vunpack.c.l.b16 %v4233
    %v5785 = vunpack.c.h.b16 %v4233
    %v5786 = vunpack.c.l.b16 %v4234
    %v5787 = vunpack.c.l.b16 %v4235
    %v5788 = vunpack.c.h.b16 %v4235
    %v5789 = vunpack.c.l.b16 %v4236
    %v5790 = vunpack.c.h.b16 %v4236
    %v5791 = vunpack.c.l.b16 %v4237
    %v5792 = vunpack.c.h.b16 %v4237
    %v5793 = vunpack.c.l.b16 %v4238
    %v5794 = vunpack.c.h.b16 %v4238
    %v5795 = vunpack.c.l.b16 %v4239
    %v5796 = vunpack.c.h.b16 %v4239
    %v5797 = vunpack.c.l.b16 %v4240
    %v5798 = vunpack.c.h.b16 %v4240
    %v5799 = vunpack.c.l.b16 %v4241
    %v5800 = vunpack.c.h.b16 %v4241
    %v5801 = vunpack.c.l.b16 %v4242
    %v5802 = vunpack.c.h.b16 %v4242
    %v5803 = vunpack.c.l.b16 %v4243
    %v5804 = vunpack.c.l.b16 %v4244
    %v5805 = vunpack.c.h.b16 %v4244
    %v5806 = vunpack.c.l.b16 %v4245
    %v5807 = vunpack.c.h.b16 %v4245
    %v5808 = vunpack.c.l.b16 %v4246
    %v5809 = vunpack.c.h.b16 %v4246
    %v5810 = vunpack.c.l.b16 %v4247
    %v5811 = vunpack.c.h.b16 %v4247
    %v5812 = vunpack.c.l.b16 %v4248
    %v5813 = vunpack.c.h.b16 %v4248
    %v5814 = vunpack.c.l.b16 %v4249
    %v5815 = vunpack.c.h.b16 %v4249
    %v5816 = vunpack.c.l.b16 %v4250
    %v5817 = vunpack.c.h.b16 %v4250
    %v5818 = vunpack.c.l.b16 %v4251
    %v5819 = vunpack.c.h.b16 %v4251
    %v5820 = vunpack.c.l.b16 %v4252
    %v5821 = vunpack.c.l.b16 %v4253
    %v5822 = vunpack.c.h.b16 %v4253
    %v5823 = vunpack.c.l.b16 %v4254
    %v5824 = vunpack.c.h.b16 %v4254
    %v5825 = vunpack.c.l.b16 %v4255
    %v5826 = vunpack.c.h.b16 %v4255
    %v5827 = vunpack.c.l.b16 %v4256
    %v5828 = vunpack.c.h.b16 %v4256
    %v5829 = vunpack.c.l.b16 %v4257
    %v5830 = vunpack.c.h.b16 %v4257
    %v5831 = vunpack.c.l.b16 %v4258
    %v5832 = vunpack.c.h.b16 %v4258
    %v5833 = vunpack.c.l.b16 %v4259
    %v5834 = vunpack.c.h.b16 %v4259
    %v5835 = vunpack.c.l.b16 %v4260
    %v5836 = vunpack.c.h.b16 %v4260
    %v5837 = vunpack.c.l.b16 %v4261
    %v5838 = vunpack.c.l.b16 %v4262
    %v5839 = vunpack.c.h.b16 %v4262
    %v5840 = vunpack.c.l.b16 %v4263
    %v5841 = vunpack.c.h.b16 %v4263
    %v5842 = vunpack.c.l.b16 %v4264
    %v5843 = vunpack.c.h.b16 %v4264
    %v5844 = vunpack.c.l.b16 %v4265
    %v5845 = vunpack.c.h.b16 %v4265
    %v5846 = vunpack.c.l.b16 %v4266
    %v5847 = vunpack.c.h.b16 %v4266
    %v5848 = vunpack.c.l.b16 %v4267
    %v5849 = vunpack.c.h.b16 %v4267
    %v5850 = vunpack.c.l.b16 %v4268
    %v5851 = vunpack.c.h.b16 %v4268
    %v5852 = vunpack.c.l.b16 %v4269
    %v5853 = vunpack.c.h.b16 %v4269
    %v5854 = vunpack.c.l.b16 %v4270
    %v5855 = vunpack.c.l.b16 %v4271
    %v5856 = vunpack.c.h.b16 %v4271
    %v5857 = vunpack.c.l.b16 %v4272
    %v5858 = vunpack.c.h.b16 %v4272
    %v5859 = vunpack.c.l.b16 %v4273
    %v5860 = vunpack.c.h.b16 %v4273
    %v5861 = vunpack.c.l.b16 %v4274
    %v5862 = vunpack.c.h.b16 %v4274
    %v5863 = vunpack.c.l.b16 %v4275
    %v5864 = vunpack.c.h.b16 %v4275
    %v5865 = vunpack.c.l.b16 %v4276
    %v5866 = vunpack.c.h.b16 %v4276
    %v5867 = vunpack.c.l.b16 %v4277
    %v5868 = vunpack.c.h.b16 %v4277
    %v5869 = vunpack.c.l.b16 %v4278
    %v5870 = vunpack.c.h.b16 %v4278
    %v5871 = vunpack.c.l.b16 %v4279
    %v5872 = vunpack.c.l.b16 %v4280
    %v5873 = vunpack.c.h.b16 %v4280
    %v5874 = vunpack.c.l.b16 %v4281
    %v5875 = vunpack.c.h.b16 %v4281
    %v5876 = vunpack.c.l.b16 %v4282
    %v5877 = vunpack.c.h.b16 %v4282
    %v5878 = vunpack.c.l.b16 %v4283
    %v5879 = vunpack.c.h.b16 %v4283
    %v5880 = vunpack.c.l.b16 %v4284
    %v5881 = vunpack.c.h.b16 %v4284
    %v5882 = vunpack.c.l.b16 %v4285
    %v5883 = vunpack.c.h.b16 %v4285
    %v5884 = vunpack.c.l.b16 %v4286
    %v5885 = vunpack.c.h.b16 %v4286
    %v5886 = vunpack.c.l.b16 %v4287
    %v5887 = vunpack.c.h.b16 %v4287
    %v5888 = vunpack.c.l.b16 %v4288
    %v5889 = vunpack.c.l.b16 %v4289
    %v5890 = vunpack.c.h.b16 %v4289
    %v5891 = vunpack.c.l.b16 %v4290
    %v5892 = vunpack.c.h.b16 %v4290
    %v5893 = vunpack.c.l.b16 %v4291
    %v5894 = vunpack.c.h.b16 %v4291
    %v5895 = vunpack.c.l.b16 %v4292
    %v5896 = vunpack.c.h.b16 %v4292
    %v5897 = vunpack.c.l.b16 %v4293
    %v5898 = vunpack.c.h.b16 %v4293
    %v5899 = vunpack.c.l.b16 %v4294
    %v5900 = vunpack.c.h.b16 %v4294
    %v5901 = vunpack.c.l.b16 %v4295
    %v5902 = vunpack.c.h.b16 %v4295
    %v5903 = vunpack.c.l.b16 %v4296
    %v5904 = vunpack.c.h.b16 %v4296
    %v5905 = vunpack.c.l.b16 %v4297
    %v5906 = vunpack.c.l.b16 %v4298
    %v5907 = vunpack.c.h.b16 %v4298
    %v5908 = vunpack.c.l.b16 %v4299
    %v5909 = vunpack.c.h.b16 %v4299
    %v5910 = vunpack.c.l.b16 %v4300
    %v5911 = vunpack.c.h.b16 %v4300
    %v5912 = vunpack.c.l.b16 %v4301
    %v5913 = vunpack.c.h.b16 %v4301
    %v5914 = vunpack.c.l.b16 %v4302
    %v5915 = vunpack.c.h.b16 %v4302
    %v5916 = vunpack.c.l.b16 %v4303
    %v5917 = vunpack.c.h.b16 %v4303
    %v5918 = vunpack.c.l.b16 %v4304
    %v5919 = vunpack.c.h.b16 %v4304
    %v5920 = vunpack.c.l.b16 %v4305
    %v5921 = vunpack.c.h.b16 %v4305
    %v5922 = vunpack.c.l.b16 %v4306
    %v5923 = vunpack.c.l.b16 %v4307
    %v5924 = vunpack.c.h.b16 %v4307
    %v5925 = vunpack.c.l.b16 %v4308
    %v5926 = vunpack.c.h.b16 %v4308
    %v5927 = vunpack.c.l.b16 %v4309
    %v5928 = vunpack.c.h.b16 %v4309
    %v5929 = vunpack.c.l.b16 %v4310
    %v5930 = vunpack.c.h.b16 %v4310
    %v5931 = vunpack.c.l.b16 %v4311
    %v5932 = vunpack.c.h.b16 %v4311
    %v5933 = vunpack.c.l.b16 %v4312
    %v5934 = vunpack.c.h.b16 %v4312
    %v5935 = vunpack.c.l.b16 %v4313
    %v5936 = vunpack.c.h.b16 %v4313
    %v5937 = vunpack.c.l.b16 %v4314
    %v5938 = vunpack.c.h.b16 %v4314
    %v5939 = vunpack.c.l.b16 %v4315
    %v5940 = vunpack.c.l.b16 %v4316
    %v5941 = vunpack.c.h.b16 %v4316
    %v5942 = vunpack.c.l.b16 %v4317
    %v5943 = vunpack.c.h.b16 %v4317
    %v5944 = vunpack.c.l.b16 %v4318
    %v5945 = vunpack.c.h.b16 %v4318
    %v5946 = vunpack.c.l.b16 %v4319
    %v5947 = vunpack.c.h.b16 %v4319
    %v5948 = vunpack.c.l.b16 %v4320
    %v5949 = vunpack.c.h.b16 %v4320
    %v5950 = vunpack.c.l.b16 %v4321
    %v5951 = vunpack.c.h.b16 %v4321
    %v5952 = vunpack.c.l.b16 %v4322
    %v5953 = vunpack.c.h.b16 %v4322
    %v5954 = vunpack.c.l.b16 %v4323
    %v5955 = vunpack.c.h.b16 %v4323
    %v5956 = vunpack.c.l.b16 %v4324
    %v5957 = vunpack.c.l.b16 %v4325
    %v5958 = vunpack.c.h.b16 %v4325
    %v5959 = vunpack.c.l.b16 %v4326
    %v5960 = vunpack.c.h.b16 %v4326
    %v5961 = vunpack.c.l.b16 %v4327
    %v5962 = vunpack.c.h.b16 %v4327
    %v5963 = vunpack.c.l.b16 %v4328
    %v5964 = vunpack.c.h.b16 %v4328
    %v5965 = vunpack.c.l.b16 %v4329
    %v5966 = vunpack.c.h.b16 %v4329
    %v5967 = vunpack.c.l.b16 %v4330
    %v5968 = vunpack.c.h.b16 %v4330
    %v5969 = vunpack.c.l.b16 %v4331
    %v5970 = vunpack.c.h.b16 %v4331
    %v5971 = vunpack.c.l.b16 %v4332
    %v5972 = vunpack.c.h.b16 %v4332
    %v5973 = vunpack.c.l.b16 %v4333
    %v5974 = vunpack.c.l.b16 %v4334
    %v5975 = vunpack.c.h.b16 %v4334
    %v5976 = vunpack.c.l.b16 %v4335
    %v5977 = vunpack.c.h.b16 %v4335
    %v5978 = vunpack.c.l.b16 %v4336
    %v5979 = vunpack.c.h.b16 %v4336
    %v5980 = vunpack.c.l.b16 %v4337
    %v5981 = vunpack.c.h.b16 %v4337
    %v5982 = vunpack.c.l.b16 %v4338
    %v5983 = vunpack.c.h.b16 %v4338
    %v5984 = vunpack.c.l.b16 %v4339
    %v5985 = vunpack.c.h.b16 %v4339
    %v5986 = vunpack.c.l.b16 %v4340
    %v5987 = vunpack.c.h.b16 %v4340
    %v5988 = vunpack.c.l.b16 %v4341
    %v5989 = vunpack.c.h.b16 %v4341
    %v5990 = vunpack.c.l.b16 %v4342
    %v5991 = vunpack.c.l.b16 %v4343
    %v5992 = vunpack.c.h.b16 %v4343
    %v5993 = vunpack.c.l.b16 %v4344
    %v5994 = vunpack.c.h.b16 %v4344
    %v5995 = vunpack.c.l.b16 %v4345
    %v5996 = vunpack.c.h.b16 %v4345
    %v5997 = vunpack.c.l.b16 %v4346
    %v5998 = vunpack.c.h.b16 %v4346
    %v5999 = vunpack.c.l.b16 %v4347
    %v6000 = vunpack.c.h.b16 %v4347
    %v6001 = vunpack.c.l.b16 %v4348
    %v6002 = vunpack.c.h.b16 %v4348
    %v6003 = vunpack.c.l.b16 %v4349
    %v6004 = vunpack.c.h.b16 %v4349
    %v6005 = vunpack.c.l.b16 %v4350
    %v6006 = vunpack.c.h.b16 %v4350
    %v6007 = vunpack.c.l.b16 %v4351
    %v6008 = vunpack.c.l.b16 %v4352
    %v6009 = vunpack.c.h.b16 %v4352
    %v6010 = vunpack.c.l.b16 %v4353
    %v6011 = vunpack.c.h.b16 %v4353
    %v6012 = vunpack.c.l.b16 %v4354
    %v6013 = vunpack.c.h.b16 %v4354
    %v6014 = vunpack.c.l.b16 %v4355
    %v6015 = vunpack.c.h.b16 %v4355
    %v6016 = vunpack.c.l.b16 %v4356
    %v6017 = vunpack.c.h.b16 %v4356
    %v6018 = vunpack.c.l.b16 %v4357
    %v6019 = vunpack.c.h.b16 %v4357
    %v6020 = vunpack.c.l.b16 %v4358
    %v6021 = vunpack.c.h.b16 %v4358
    %v6022 = vunpack.c.l.b16 %v4359
    %v6023 = vunpack.c.h.b16 %v4359
    %v6024 = vunpack.c.l.b16 %v4360
    %v6025 = vpack.c.b16 %v4954, %v4937
    %v6026 = vpack.c.b16 %v4955, %v4938
    %v6027 = vpack.c.b16 %v4956, %v4939
    %v6028 = vpack.c.b16 %v4957, %v4940
    %v6029 = vpack.c.b16 %v4958, %v4941
    %v6030 = vpack.c.b16 %v4959, %v4942
    %v6031 = vpack.c.b16 %v4960, %v4943
    %v6032 = vpack.c.b16 %v4961, %v4944
    %v6033 = vpack.c.b16 %v4962, %v4945
    %v6034 = vpack.c.b16 %v4963, %v4946
    %v6035 = vpack.c.b16 %v4964, %v4947
    %v6036 = vpack.c.b16 %v4965, %v4948
    %v6037 = vpack.c.b16 %v4966, %v4949
    %v6038 = vpack.c.b16 %v4967, %v4950
    %v6039 = vpack.c.b16 %v4968, %v4951
    %v6040 = vpack.c.b16 %v4969, %v4952
    %v6041 = vpack.c.b16 %v4970, %v4953
    %v6042 = vpack.c.b16 %v4988, %v4971
    %v6043 = vpack.c.b16 %v4989, %v4972
    %v6044 = vpack.c.b16 %v4990, %v4973
    %v6045 = vpack.c.b16 %v4991, %v4974
    %v6046 = vpack.c.b16 %v4992, %v4975
    %v6047 = vpack.c.b16 %v4993, %v4976
    %v6048 = vpack.c.b16 %v4994, %v4977
    %v6049 = vpack.c.b16 %v4995, %v4978
    %v6050 = vpack.c.b16 %v4996, %v4979
    %v6051 = vpack.c.b16 %v4997, %v4980
    %v6052 = vpack.c.b16 %v4998, %v4981
    %v6053 = vpack.c.b16 %v4999, %v4982
    %v6054 = vpack.c.b16 %v5000, %v4983
    %v6055 = vpack.c.b16 %v5001, %v4984
    %v6056 = vpack.c.b16 %v5002, %v4985
    %v6057 = vpack.c.b16 %v5003, %v4986
    %v6058 = vpack.c.b16 %v5004, %v4987
    %v6059 = vpack.c.b16 %v5022, %v5005
    %v6060 = vpack.c.b16 %v5023, %v5006
    %v6061 = vpack.c.b16 %v5024, %v5007
    %v6062 = vpack.c.b16 %v5025, %v5008
    %v6063 = vpack.c.b16 %v5026, %v5009
    %v6064 = vpack.c.b16 %v5027, %v5010
    %v6065 = vpack.c.b16 %v5028, %v5011
    %v6066 = vpack.c.b16 %v5029, %v5012
    %v6067 = vpack.c.b16 %v5030, %v5013
    %v6068 = vpack.c.b16 %v5031, %v5014
    %v6069 = vpack.c.b16 %v5032, %v5015
    %v6070 = vpack.c.b16 %v5033, %v5016
    %v6071 = vpack.c.b16 %v5034, %v5017
    %v6072 = vpack.c.b16 %v5035, %v5018
    %v6073 = vpack.c.b16 %v5036, %v5019
    %v6074 = vpack.c.b16 %v5037, %v5020
    %v6075 = vpack.c.b16 %v5038, %v5021
    %v6076 = vpack.c.b16 %v5056, %v5039
    %v6077 = vpack.c.b16 %v5057, %v5040
    %v6078 = vpack.c.b16 %v5058, %v5041
    %v6079 = vpack.c.b16 %v5059, %v5042
    %v6080 = vpack.c.b16 %v5060, %v5043
    %v6081 = vpack.c.b16 %v5061, %v5044
    %v6082 = vpack.c.b16 %v5062, %v5045
    %v6083 = vpack.c.b16 %v5063, %v5046
    %v6084 = vpack.c.b16 %v5064, %v5047
    %v6085 = vpack.c.b16 %v5065, %v5048
    %v6086 = vpack.c.b16 %v5066, %v5049
    %v6087 = vpack.c.b16 %v5067, %v5050
    %v6088 = vpack.c.b16 %v5068, %v5051
    %v6089 = vpack.c.b16 %v5069, %v5052
    %v6090 = vpack.c.b16 %v5070, %v5053
    %v6091 = vpack.c.b16 %v5071, %v5054
    %v6092 = vpack.c.b16 %v5072, %v5055
    %v6093 = vpack.c.b16 %v5090, %v5073
    %v6094 = vpack.c.b16 %v5091, %v5074
    %v6095 = vpack.c.b16 %v5092, %v5075
    %v6096 = vpack.c.b16 %v5093, %v5076
    %v6097 = vpack.c.b16 %v5094, %v5077
    %v6098 = vpack.c.b16 %v5095, %v5078
    %v6099 = vpack.c.b16 %v5096, %v5079
    %v6100 = vpack.c.b16 %v5097, %v5080
    %v6101 = vpack.c.b16 %v5098, %v5081
    %v6102 = vpack.c.b16 %v5099, %v5082
    %v6103 = vpack.c.b16 %v5100, %v5083
    %v6104 = vpack.c.b16 %v5101, %v5084
    %v6105 = vpack.c.b16 %v5102, %v5085
    %v6106 = vpack.c.b16 %v5103, %v5086
    %v6107 = vpack.c.b16 %v5104, %v5087
    %v6108 = vpack.c.b16 %v5105, %v5088
    %v6109 = vpack.c.b16 %v5106, %v5089
    %v6110 = vpack.c.b16 %v5124, %v5107
    %v6111 = vpack.c.b16 %v5125, %v5108
    %v6112 = vpack.c.b16 %v5126, %v5109
    %v6113 = vpack.c.b16 %v5127, %v5110
    %v6114 = vpack.c.b16 %v5128, %v5111
    %v6115 = vpack.c.b16 %v5129, %v5112
    %v6116 = vpack.c.b16 %v5130, %v5113
    %v6117 = vpack.c.b16 %v5131, %v5114
    %v6118 = vpack.c.b16 %v5132, %v5115
    %v6119 = vpack.c.b16 %v5133, %v5116
    %v6120 = vpack.c.b16 %v5134, %v5117
    %v6121 = vpack.c.b16 %v5135, %v5118
    %v6122 = vpack.c.b16 %v5136, %v5119
    %v6123 = vpack.c.b16 %v5137, %v5120
    %v6124 = vpack.c.b16 %v5138, %v5121
    %v6125 = vpack.c.b16 %v5139, %v5122
    %v6126 = vpack.c.b16 %v5140, %v5123
    %v6127 = vpack.c.b16 %v5158, %v5141
    %v6128 = vpack.c.b16 %v5159, %v5142
    %v6129 = vpack.c.b16 %v5160, %v5143
    %v6130 = vpack.c.b16 %v5161, %v5144
    %v6131 = vpack.c.b16 %v5162, %v5145
    %v6132 = vpack.c.b16 %v5163, %v5146
    %v6133 = vpack.c.b16 %v5164, %v5147
    %v6134 = vpack.c.b16 %v5165, %v5148
    %v6135 = vpack.c.b16 %v5166, %v5149
    %v6136 = vpack.c.b16 %v5167, %v5150
    %v6137 = vpack.c.b16 %v5168, %v5151
    %v6138 = vpack.c.b16 %v5169, %v5152
    %v6139 = vpack.c.b16 %v5170, %v5153
    %v6140 = vpack.c.b16 %v5171, %v5154
    %v6141 = vpack.c.b16 %v5172, %v5155
    %v6142 = vpack.c.b16 %v5173, %v5156
    %v6143 = vpack.c.b16 %v5174, %v5157
    %v6144 = vpack.c.b16 %v5192, %v5175
    %v6145 = vpack.c.b16 %v5193, %v5176
    %v6146 = vpack.c.b16 %v5194, %v5177
    %v6147 = vpack.c.b16 %v5195, %v5178
    %v6148 = vpack.c.b16 %v5196, %v5179
    %v6149 = vpack.c.b16 %v5197, %v5180
    %v6150 = vpack.c.b16 %v5198, %v5181
    %v6151 = vpack.c.b16 %v5199, %v5182
    %v6152 = vpack.c.b16 %v5200, %v5183
    %v6153 = vpack.c.b16 %v5201, %v5184
    %v6154 = vpack.c.b16 %v5202, %v5185
    %v6155 = vpack.c.b16 %v5203, %v5186
    %v6156 = vpack.c.b16 %v5204, %v5187
    %v6157 = vpack.c.b16 %v5205, %v5188
    %v6158 = vpack.c.b16 %v5206, %v5189
    %v6159 = vpack.c.b16 %v5207, %v5190
    %v6160 = vpack.c.b16 %v5208, %v5191
    %v6161 = vpack.c.b16 %v5226, %v5209
    %v6162 = vpack.c.b16 %v5227, %v5210
    %v6163 = vpack.c.b16 %v5228, %v5211
    %v6164 = vpack.c.b16 %v5229, %v5212
    %v6165 = vpack.c.b16 %v5230, %v5213
    %v6166 = vpack.c.b16 %v5231, %v5214
    %v6167 = vpack.c.b16 %v5232, %v5215
    %v6168 = vpack.c.b16 %v5233, %v5216
    %v6169 = vpack.c.b16 %v5234, %v5217
    %v6170 = vpack.c.b16 %v5235, %v5218
    %v6171 = vpack.c.b16 %v5236, %v5219
    %v6172 = vpack.c.b16 %v5237, %v5220
    %v6173 = vpack.c.b16 %v5238, %v5221
    %v6174 = vpack.c.b16 %v5239, %v5222
    %v6175 = vpack.c.b16 %v5240, %v5223
    %v6176 = vpack.c.b16 %v5241, %v5224
    %v6177 = vpack.c.b16 %v5242, %v5225
    %v6178 = vpack.c.b16 %v5260, %v5243
    %v6179 = vpack.c.b16 %v5261, %v5244
    %v6180 = vpack.c.b16 %v5262, %v5245
    %v6181 = vpack.c.b16 %v5263, %v5246
    %v6182 = vpack.c.b16 %v5264, %v5247
    %v6183 = vpack.c.b16 %v5265, %v5248
    %v6184 = vpack.c.b16 %v5266, %v5249
    %v6185 = vpack.c.b16 %v5267, %v5250
    %v6186 = vpack.c.b16 %v5268, %v5251
    %v6187 = vpack.c.b16 %v5269, %v5252
    %v6188 = vpack.c.b16 %v5270, %v5253
    %v6189 = vpack.c.b16 %v5271, %v5254
    %v6190 = vpack.c.b16 %v5272, %v5255
    %v6191 = vpack.c.b16 %v5273, %v5256
    %v6192 = vpack.c.b16 %v5274, %v5257
    %v6193 = vpack.c.b16 %v5275, %v5258
    %v6194 = vpack.c.b16 %v5276, %v5259
    %v6195 = vpack.c.b16 %v5294, %v5277
    %v6196 = vpack.c.b16 %v5295, %v5278
    %v6197 = vpack.c.b16 %v5296, %v5279
    %v6198 = vpack.c.b16 %v5297, %v5280
    %v6199 = vpack.c.b16 %v5298, %v5281
    %v6200 = vpack.c.b16 %v5299, %v5282
    %v6201 = vpack.c.b16 %v5300, %v5283
    %v6202 = vpack.c.b16 %v5301, %v5284
    %v6203 = vpack.c.b16 %v5302, %v5285
    %v6204 = vpack.c.b16 %v5303, %v5286
    %v6205 = vpack.c.b16 %v5304, %v5287
    %v6206 = vpack.c.b16 %v5305, %v5288
    %v6207 = vpack.c.b16 %v5306, %v5289
    %v6208 = vpack.c.b16 %v5307, %v5290
    %v6209 = vpack.c.b16 %v5308, %v5291
    %v6210 = vpack.c.b16 %v5309, %v5292
    %v6211 = vpack.c.b16 %v5310, %v5293
    %v6212 = vpack.c.b16 %v5328, %v5311
    %v6213 = vpack.c.b16 %v5329, %v5312
    %v6214 = vpack.c.b16 %v5330, %v5313
    %v6215 = vpack.c.b16 %v5331, %v5314
    %v6216 = vpack.c.b16 %v5332, %v5315
    %v6217 = vpack.c.b16 %v5333, %v5316
    %v6218 = vpack.c.b16 %v5334, %v5317
    %v6219 = vpack.c.b16 %v5335, %v5318
    %v6220 = vpack.c.b16 %v5336, %v5319
    %v6221 = vpack.c.b16 %v5337, %v5320
    %v6222 = vpack.c.b16 %v5338, %v5321
    %v6223 = vpack.c.b16 %v5339, %v5322
    %v6224 = vpack.c.b16 %v5340, %v5323
    %v6225 = vpack.c.b16 %v5341, %v5324
    %v6226 = vpack.c.b16 %v5342, %v5325
    %v6227 = vpack.c.b16 %v5343, %v5326
    %v6228 = vpack.c.b16 %v5344, %v5327
    %v6229 = vpack.c.b16 %v5362, %v5345
    %v6230 = vpack.c.b16 %v5363, %v5346
    %v6231 = vpack.c.b16 %v5364, %v5347
    %v6232 = vpack.c.b16 %v5365, %v5348
    %v6233 = vpack.c.b16 %v5366, %v5349
    %v6234 = vpack.c.b16 %v5367, %v5350
    %v6235 = vpack.c.b16 %v5368, %v5351
    %v6236 = vpack.c.b16 %v5369, %v5352
    %v6237 = vpack.c.b16 %v5370, %v5353
    %v6238 = vpack.c.b16 %v5371, %v5354
    %v6239 = vpack.c.b16 %v5372, %v5355
    %v6240 = vpack.c.b16 %v5373, %v5356
    %v6241 = vpack.c.b16 %v5374, %v5357
    %v6242 = vpack.c.b16 %v5375, %v5358
    %v6243 = vpack.c.b16 %v5376, %v5359
    %v6244 = vpack.c.b16 %v5377, %v5360
    %v6245 = vpack.c.b16 %v5378, %v5361
    %v6246 = vpack.c.b16 %v5396, %v5379
    %v6247 = vpack.c.b16 %v5397, %v5380
    %v6248 = vpack.c.b16 %v5398, %v5381
    %v6249 = vpack.c.b16 %v5399, %v5382
    %v6250 = vpack.c.b16 %v5400, %v5383
    %v6251 = vpack.c.b16 %v5401, %v5384
    %v6252 = vpack.c.b16 %v5402, %v5385
    %v6253 = vpack.c.b16 %v5403, %v5386
    %v6254 = vpack.c.b16 %v5404, %v5387
    %v6255 = vpack.c.b16 %v5405, %v5388
    %v6256 = vpack.c.b16 %v5406, %v5389
    %v6257 = vpack.c.b16 %v5407, %v5390
    %v6258 = vpack.c.b16 %v5408, %v5391
    %v6259 = vpack.c.b16 %v5409, %v5392
    %v6260 = vpack.c.b16 %v5410, %v5393
    %v6261 = vpack.c.b16 %v5411, %v5394
    %v6262 = vpack.c.b16 %v5412, %v5395
    %v6263 = vpack.c.b16 %v5430, %v5413
    %v6264 = vpack.c.b16 %v5431, %v5414
    %v6265 = vpack.c.b16 %v5432, %v5415
    %v6266 = vpack.c.b16 %v5433, %v5416
    %v6267 = vpack.c.b16 %v5434, %v5417
    %v6268 = vpack.c.b16 %v5435, %v5418
    %v6269 = vpack.c.b16 %v5436, %v5419
    %v6270 = vpack.c.b16 %v5437, %v5420
    %v6271 = vpack.c.b16 %v5438, %v5421
    %v6272 = vpack.c.b16 %v5439, %v5422
    %v6273 = vpack.c.b16 %v5440, %v5423
    %v6274 = vpack.c.b16 %v5441, %v5424
    %v6275 = vpack.c.b16 %v5442, %v5425
    %v6276 = vpack.c.b16 %v5443, %v5426
    %v6277 = vpack.c.b16 %v5444, %v5427
    %v6278 = vpack.c.b16 %v5445, %v5428
    %v6279 = vpack.c.b16 %v5446, %v5429
    %v6280 = vpack.c.b16 %v5464, %v5447
    %v6281 = vpack.c.b16 %v5465, %v5448
    %v6282 = vpack.c.b16 %v5466, %v5449
    %v6283 = vpack.c.b16 %v5467, %v5450
    %v6284 = vpack.c.b16 %v5468, %v5451
    %v6285 = vpack.c.b16 %v5469, %v5452
    %v6286 = vpack.c.b16 %v5470, %v5453
    %v6287 = vpack.c.b16 %v5471, %v5454
    %v6288 = vpack.c.b16 %v5472, %v5455
    %v6289 = vpack.c.b16 %v5473, %v5456
    %v6290 = vpack.c.b16 %v5474, %v5457
    %v6291 = vpack.c.b16 %v5475, %v5458
    %v6292 = vpack.c.b16 %v5476, %v5459
    %v6293 = vpack.c.b16 %v5477, %v5460
    %v6294 = vpack.c.b16 %v5478, %v5461
    %v6295 = vpack.c.b16 %v5479, %v5462
    %v6296 = vpack.c.b16 %v5480, %v5463
    %v6297 = vpack.c.b16 %v5498, %v5481
    %v6298 = vpack.c.b16 %v5499, %v5482
    %v6299 = vpack.c.b16 %v5500, %v5483
    %v6300 = vpack.c.b16 %v5501, %v5484
    %v6301 = vpack.c.b16 %v5502, %v5485
    %v6302 = vpack.c.b16 %v5503, %v5486
    %v6303 = vpack.c.b16 %v5504, %v5487
    %v6304 = vpack.c.b16 %v5505, %v5488
    %v6305 = vpack.c.b16 %v5506, %v5489
    %v6306 = vpack.c.b16 %v5507, %v5490
    %v6307 = vpack.c.b16 %v5508, %v5491
    %v6308 = vpack.c.b16 %v5509, %v5492
    %v6309 = vpack.c.b16 %v5510, %v5493
    %v6310 = vpack.c.b16 %v5511, %v5494
    %v6311 = vpack.c.b16 %v5512, %v5495
    %v6312 = vpack.c.b16 %v5513, %v5496
    %v6313 = vpack.c.b16 %v5514, %v5497
    %v6314 = vpack.c.b16 %v5532, %v5515
    %v6315 = vpack.c.b16 %v5533, %v5516
    %v6316 = vpack.c.b16 %v5534, %v5517
    %v6317 = vpack.c.b16 %v5535, %v5518
    %v6318 = vpack.c.b16 %v5536, %v5519
    %v6319 = vpack.c.b16 %v5537, %v5520
    %v6320 = vpack.c.b16 %v5538, %v5521
    %v6321 = vpack.c.b16 %v5539, %v5522
    %v6322 = vpack.c.b16 %v5540, %v5523
    %v6323 = vpack.c.b16 %v5541, %v5524
    %v6324 = vpack.c.b16 %v5542, %v5525
    %v6325 = vpack.c.b16 %v5543, %v5526
    %v6326 = vpack.c.b16 %v5544, %v5527
    %v6327 = vpack.c.b16 %v5545, %v5528
    %v6328 = vpack.c.b16 %v5546, %v5529
    %v6329 = vpack.c.b16 %v5547, %v5530
    %v6330 = vpack.c.b16 %v5548, %v5531
    %v6331 = vpack.c.b16 %v5566, %v5549
    %v6332 = vpack.c.b16 %v5567, %v5550
    %v6333 = vpack.c.b16 %v5568, %v5551
    %v6334 = vpack.c.b16 %v5569, %v5552
    %v6335 = vpack.c.b16 %v5570, %v5553
    %v6336 = vpack.c.b16 %v5571, %v5554
    %v6337 = vpack.c.b16 %v5572, %v5555
    %v6338 = vpack.c.b16 %v5573, %v5556
    %v6339 = vpack.c.b16 %v5574, %v5557
    %v6340 = vpack.c.b16 %v5575, %v5558
    %v6341 = vpack.c.b16 %v5576, %v5559
    %v6342 = vpack.c.b16 %v5577, %v5560
    %v6343 = vpack.c.b16 %v5578, %v5561
    %v6344 = vpack.c.b16 %v5579, %v5562
    %v6345 = vpack.c.b16 %v5580, %v5563
    %v6346 = vpack.c.b16 %v5581, %v5564
    %v6347 = vpack.c.b16 %v5582, %v5565
    %v6348 = vpack.c.b16 %v5600, %v5583
    %v6349 = vpack.c.b16 %v5601, %v5584
    %v6350 = vpack.c.b16 %v5602, %v5585
    %v6351 = vpack.c.b16 %v5603, %v5586
    %v6352 = vpack.c.b16 %v5604, %v5587
    %v6353 = vpack.c.b16 %v5605, %v5588
    %v6354 = vpack.c.b16 %v5606, %v5589
    %v6355 = vpack.c.b16 %v5607, %v5590
    %v6356 = vpack.c.b16 %v5608, %v5591
    %v6357 = vpack.c.b16 %v5609, %v5592
    %v6358 = vpack.c.b16 %v5610, %v5593
    %v6359 = vpack.c.b16 %v5611, %v5594
    %v6360 = vpack.c.b16 %v5612, %v5595
    %v6361 = vpack.c.b16 %v5613, %v5596
    %v6362 = vpack.c.b16 %v5614, %v5597
    %v6363 = vpack.c.b16 %v5615, %v5598
    %v6364 = vpack.c.b16 %v5616, %v5599
    %v6365 = vpack.c.b16 %v5634, %v5617
    %v6366 = vpack.c.b16 %v5635, %v5618
    %v6367 = vpack.c.b16 %v5636, %v5619
    %v6368 = vpack.c.b16 %v5637, %v5620
    %v6369 = vpack.c.b16 %v5638, %v5621
    %v6370 = vpack.c.b16 %v5639, %v5622
    %v6371 = vpack.c.b16 %v5640, %v5623
    %v6372 = vpack.c.b16 %v5641, %v5624
    %v6373 = vpack.c.b16 %v5642, %v5625
    %v6374 = vpack.c.b16 %v5643, %v5626
    %v6375 = vpack.c.b16 %v5644, %v5627
    %v6376 = vpack.c.b16 %v5645, %v5628
    %v6377 = vpack.c.b16 %v5646, %v5629
    %v6378 = vpack.c.b16 %v5647, %v5630
    %v6379 = vpack.c.b16 %v5648, %v5631
    %v6380 = vpack.c.b16 %v5649, %v5632
    %v6381 = vpack.c.b16 %v5650, %v5633
    %v6382 = vpack.c.b16 %v5668, %v5651
    %v6383 = vpack.c.b16 %v5669, %v5652
    %v6384 = vpack.c.b16 %v5670, %v5653
    %v6385 = vpack.c.b16 %v5671, %v5654
    %v6386 = vpack.c.b16 %v5672, %v5655
    %v6387 = vpack.c.b16 %v5673, %v5656
    %v6388 = vpack.c.b16 %v5674, %v5657
    %v6389 = vpack.c.b16 %v5675, %v5658
    %v6390 = vpack.c.b16 %v5676, %v5659
    %v6391 = vpack.c.b16 %v5677, %v5660
    %v6392 = vpack.c.b16 %v5678, %v5661
    %v6393 = vpack.c.b16 %v5679, %v5662
    %v6394 = vpack.c.b16 %v5680, %v5663
    %v6395 = vpack.c.b16 %v5681, %v5664
    %v6396 = vpack.c.b16 %v5682, %v5665
    %v6397 = vpack.c.b16 %v5683, %v5666
    %v6398 = vpack.c.b16 %v5684, %v5667
    %v6399 = vpack.c.b16 %v5702, %v5685
    %v6400 = vpack.c.b16 %v5703, %v5686
    %v6401 = vpack.c.b16 %v5704, %v5687
    %v6402 = vpack.c.b16 %v5705, %v5688
    %v6403 = vpack.c.b16 %v5706, %v5689
    %v6404 = vpack.c.b16 %v5707, %v5690
    %v6405 = vpack.c.b16 %v5708, %v5691
    %v6406 = vpack.c.b16 %v5709, %v5692
    %v6407 = vpack.c.b16 %v5710, %v5693
    %v6408 = vpack.c.b16 %v5711, %v5694
    %v6409 = vpack.c.b16 %v5712, %v5695
    %v6410 = vpack.c.b16 %v5713, %v5696
    %v6411 = vpack.c.b16 %v5714, %v5697
    %v6412 = vpack.c.b16 %v5715, %v5698
    %v6413 = vpack.c.b16 %v5716, %v5699
    %v6414 = vpack.c.b16 %v5717, %v5700
    %v6415 = vpack.c.b16 %v5718, %v5701
    %v6416 = vpack.c.b16 %v5736, %v5719
    %v6417 = vpack.c.b16 %v5737, %v5720
    %v6418 = vpack.c.b16 %v5738, %v5721
    %v6419 = vpack.c.b16 %v5739, %v5722
    %v6420 = vpack.c.b16 %v5740, %v5723
    %v6421 = vpack.c.b16 %v5741, %v5724
    %v6422 = vpack.c.b16 %v5742, %v5725
    %v6423 = vpack.c.b16 %v5743, %v5726
    %v6424 = vpack.c.b16 %v5744, %v5727
    %v6425 = vpack.c.b16 %v5745, %v5728
    %v6426 = vpack.c.b16 %v5746, %v5729
    %v6427 = vpack.c.b16 %v5747, %v5730
    %v6428 = vpack.c.b16 %v5748, %v5731
    %v6429 = vpack.c.b16 %v5749, %v5732
    %v6430 = vpack.c.b16 %v5750, %v5733
    %v6431 = vpack.c.b16 %v5751, %v5734
    %v6432 = vpack.c.b16 %v5752, %v5735
    %v6433 = vpack.c.b16 %v5770, %v5753
    %v6434 = vpack.c.b16 %v5771, %v5754
    %v6435 = vpack.c.b16 %v5772, %v5755
    %v6436 = vpack.c.b16 %v5773, %v5756
    %v6437 = vpack.c.b16 %v5774, %v5757
    %v6438 = vpack.c.b16 %v5775, %v5758
    %v6439 = vpack.c.b16 %v5776, %v5759
    %v6440 = vpack.c.b16 %v5777, %v5760
    %v6441 = vpack.c.b16 %v5778, %v5761
    %v6442 = vpack.c.b16 %v5779, %v5762
    %v6443 = vpack.c.b16 %v5780, %v5763
    %v6444 = vpack.c.b16 %v5781, %v5764
    %v6445 = vpack.c.b16 %v5782, %v5765
    %v6446 = vpack.c.b16 %v5783, %v5766
    %v6447 = vpack.c.b16 %v5784, %v5767
    %v6448 = vpack.c.b16 %v5785, %v5768
    %v6449 = vpack.c.b16 %v5786, %v5769
    %v6450 = vpack.c.b16 %v5804, %v5787
    %v6451 = vpack.c.b16 %v5805, %v5788
    %v6452 = vpack.c.b16 %v5806, %v5789
    %v6453 = vpack.c.b16 %v5807, %v5790
    %v6454 = vpack.c.b16 %v5808, %v5791
    %v6455 = vpack.c.b16 %v5809, %v5792
    %v6456 = vpack.c.b16 %v5810, %v5793
    %v6457 = vpack.c.b16 %v5811, %v5794
    %v6458 = vpack.c.b16 %v5812, %v5795
    %v6459 = vpack.c.b16 %v5813, %v5796
    %v6460 = vpack.c.b16 %v5814, %v5797
    %v6461 = vpack.c.b16 %v5815, %v5798
    %v6462 = vpack.c.b16 %v5816, %v5799
    %v6463 = vpack.c.b16 %v5817, %v5800
    %v6464 = vpack.c.b16 %v5818, %v5801
    %v6465 = vpack.c.b16 %v5819, %v5802
    %v6466 = vpack.c.b16 %v5820, %v5803
    %v6467 = vpack.c.b16 %v5838, %v5821
    %v6468 = vpack.c.b16 %v5839, %v5822
    %v6469 = vpack.c.b16 %v5840, %v5823
    %v6470 = vpack.c.b16 %v5841, %v5824
    %v6471 = vpack.c.b16 %v5842, %v5825
    %v6472 = vpack.c.b16 %v5843, %v5826
    %v6473 = vpack.c.b16 %v5844, %v5827
    %v6474 = vpack.c.b16 %v5845, %v5828
    %v6475 = vpack.c.b16 %v5846, %v5829
    %v6476 = vpack.c.b16 %v5847, %v5830
    %v6477 = vpack.c.b16 %v5848, %v5831
    %v6478 = vpack.c.b16 %v5849, %v5832
    %v6479 = vpack.c.b16 %v5850, %v5833
    %v6480 = vpack.c.b16 %v5851, %v5834
    %v6481 = vpack.c.b16 %v5852, %v5835
    %v6482 = vpack.c.b16 %v5853, %v5836
    %v6483 = vpack.c.b16 %v5854, %v5837
    %v6484 = vpack.c.b16 %v5872, %v5855
    %v6485 = vpack.c.b16 %v5873, %v5856
    %v6486 = vpack.c.b16 %v5874, %v5857
    %v6487 = vpack.c.b16 %v5875, %v5858
    %v6488 = vpack.c.b16 %v5876, %v5859
    %v6489 = vpack.c.b16 %v5877, %v5860
    %v6490 = vpack.c.b16 %v5878, %v5861
    %v6491 = vpack.c.b16 %v5879, %v5862
    %v6492 = vpack.c.b16 %v5880, %v5863
    %v6493 = vpack.c.b16 %v5881, %v5864
    %v6494 = vpack.c.b16 %v5882, %v5865
    %v6495 = vpack.c.b16 %v5883, %v5866
    %v6496 = vpack.c.b16 %v5884, %v5867
    %v6497 = vpack.c.b16 %v5885, %v5868
    %v6498 = vpack.c.b16 %v5886, %v5869
    %v6499 = vpack.c.b16 %v5887, %v5870
    %v6500 = vpack.c.b16 %v5888, %v5871
    %v6501 = vpack.c.b16 %v5906, %v5889
    %v6502 = vpack.c.b16 %v5907, %v5890
    %v6503 = vpack.c.b16 %v5908, %v5891
    %v6504 = vpack.c.b16 %v5909, %v5892
    %v6505 = vpack.c.b16 %v5910, %v5893
    %v6506 = vpack.c.b16 %v5911, %v5894
    %v6507 = vpack.c.b16 %v5912, %v5895
    %v6508 = vpack.c.b16 %v5913, %v5896
    %v6509 = vpack.c.b16 %v5914, %v5897
    %v6510 = vpack.c.b16 %v5915, %v5898
    %v6511 = vpack.c.b16 %v5916, %v5899
    %v6512 = vpack.c.b16 %v5917, %v5900
    %v6513 = vpack.c.b16 %v5918, %v5901
    %v6514 = vpack.c.b16 %v5919, %v5902
    %v6515 = vpack.c.b16 %v5920, %v5903
    %v6516 = vpack.c.b16 %v5921, %v5904
    %v6517 = vpack.c.b16 %v5922, %v5905
    %v6518 = vpack.c.b16 %v5940, %v5923
    %v6519 = vpack.c.b16 %v5941, %v5924
    %v6520 = vpack.c.b16 %v5942, %v5925
    %v6521 = vpack.c.b16 %v5943, %v5926
    %v6522 = vpack.c.b16 %v5944, %v5927
    %v6523 = vpack.c.b16 %v5945, %v5928
    %v6524 = vpack.c.b16 %v5946, %v5929
    %v6525 = vpack.c.b16 %v5947, %v5930
    %v6526 = vpack.c.b16 %v5948, %v5931
    %v6527 = vpack.c.b16 %v5949, %v5932
    %v6528 = vpack.c.b16 %v5950, %v5933
    %v6529 = vpack.c.b16 %v5951, %v5934
    %v6530 = vpack.c.b16 %v5952, %v5935
    %v6531 = vpack.c.b16 %v5953, %v5936
    %v6532 = vpack.c.b16 %v5954, %v5937
    %v6533 = vpack.c.b16 %v5955, %v5938
    %v6534 = vpack.c.b16 %v5956, %v5939
    %v6535 = vpack.c.b16 %v5974, %v5957
    %v6536 = vpack.c.b16 %v5975, %v5958
    %v6537 = vpack.c.b16 %v5976, %v5959
    %v6538 = vpack.c.b16 %v5977, %v5960
    %v6539 = vpack.c.b16 %v5978, %v5961
    %v6540 = vpack.c.b16 %v5979, %v5962
    %v6541 = vpack.c.b16 %v5980, %v5963
    %v6542 = vpack.c.b16 %v5981, %v5964
    %v6543 = vpack.c.b16 %v5982, %v5965
    %v6544 = vpack.c.b16 %v5983, %v5966
    %v6545 = vpack.c.b16 %v5984, %v5967
    %v6546 = vpack.c.b16 %v5985, %v5968
    %v6547 = vpack.c.b16 %v5986, %v5969
    %v6548 = vpack.c.b16 %v5987, %v5970
    %v6549 = vpack.c.b16 %v5988, %v5971
    %v6550 = vpack.c.b16 %v5989, %v5972
    %v6551 = vpack.c.b16 %v5990, %v5973
    %v6552 = vpack.c.b16 %v6008, %v5991
    %v6553 = vpack.c.b16 %v6009, %v5992
    %v6554 = vpack.c.b16 %v6010, %v5993
    %v6555 = vpack.c.b16 %v6011, %v5994
    %v6556 = vpack.c.b16 %v6012, %v5995
    %v6557 = vpack.c.b16 %v6013, %v5996
    %v6558 = vpack.c.b16 %v6014, %v5997
    %v6559 = vpack.c.b16 %v6015, %v5998
    %v6560 = vpack.c.b16 %v6016, %v5999
    %v6561 = vpack.c.b16 %v6017, %v6000
    %v6562 = vpack.c.b16 %v6018, %v6001
    %v6563 = vpack.c.b16 %v6019, %v6002
    %v6564 = vpack.c.b16 %v6020, %v6003
    %v6565 = vpack.c.b16 %v6021, %v6004
    %v6566 = vpack.c.b16 %v6022, %v6005
    %v6567 = vpack.c.b16 %v6023, %v6006
    %v6568 = vpack.c.b16 %v6024, %v6007
    %7113 = vmatprep.subr.bf16.mxu0 %v6026
    %7114 = vmatpush1.bf16.msra.mxu0 %v6025
    %7115 = vmatprep.subr.bf16.mxu0 %v6043
    %7116 = vmatpush1.bf16.msra.mxu0 %v6042
    %7117 = vmatprep.subr.bf16.mxu0 %v6060
    %7118 = vmatpush1.bf16.msra.mxu0 %v6059
    %7119 = vmatprep.subr.bf16.mxu0 %v6077
    %7120 = vmatpush1.bf16.msra.mxu0 %v6076
    %7121 = vmatprep.subr.bf16.mxu0 %v6094
    %7122 = vmatpush1.bf16.msra.mxu0 %v6093
    %7123 = vmatprep.subr.bf16.mxu0 %v6111
    %7124 = vmatpush1.bf16.msra.mxu0 %v6110
    %7125 = vmatprep.subr.bf16.mxu0 %v6128
    %7126 = vmatpush1.bf16.msra.mxu0 %v6127
    %7127 = vmatprep.subr.bf16.mxu0 %v6145
    %7128 = vmatpush1.bf16.msra.mxu0 %v6144
    %7129 = vmatprep.subr.bf16.mxu0 %v6162
    %7130 = vmatpush1.bf16.msra.mxu0 %v6161
    %7131 = vmatprep.subr.bf16.mxu0 %v6179
    %7132 = vmatpush1.bf16.msra.mxu0 %v6178
    %7133 = vmatprep.subr.bf16.mxu0 %v6196
    %7134 = vmatpush1.bf16.msra.mxu0 %v6195
    %7135 = vmatprep.subr.bf16.mxu0 %v6213
    %7136 = vmatpush1.bf16.msra.mxu0 %v6212
    %7137 = vmatprep.subr.bf16.mxu0 %v6230
    %7138 = vmatpush1.bf16.msra.mxu0 %v6229
    %7139 = vmatprep.subr.bf16.mxu0 %v6247
    %7140 = vmatpush1.bf16.msra.mxu0 %v6246
    %7141 = vmatprep.subr.bf16.mxu0 %v6264
    %7142 = vmatpush1.bf16.msra.mxu0 %v6263
    %7143 = vmatprep.subr.bf16.mxu0 %v6281
    %7144 = vmatpush1.bf16.msra.mxu0 %v6280
    %7145 = vmatprep.mubr.bf16.mxu0 %v3782
    %7146 = vmatmul.mubr.bf16.gmra.mrb[0].mxu0 %v3781
    %v7147 = vpop.f32.mrb[0].mxu0
    %v7148 = vadd.f32 0.0, %v7147
    %v7149 = vpop.f32.mrb[0].mxu0
    %v7150 = vadd.f32 0.0, %v7149
    %v7151 = vpop.f32.mrb[0].mxu0
    %v7152 = vpop.f32.mrb[0].mxu0
    %7153 = vdwg.mxu0
    %7154 = vmatprep.subr.bf16.mxu0 %v6298
    %7155 = vmatpush1.bf16.msra.mxu0 %v6297
    %7156 = vmatprep.subr.bf16.mxu0 %v6315
    %7157 = vmatpush1.bf16.msra.mxu0 %v6314
    %7158 = vmatprep.subr.bf16.mxu0 %v6332
    %7159 = vmatpush1.bf16.msra.mxu0 %v6331
    %7160 = vmatprep.subr.bf16.mxu0 %v6349
    %7161 = vmatpush1.bf16.msra.mxu0 %v6348
    %7162 = vmatprep.subr.bf16.mxu0 %v6366
    %7163 = vmatpush1.bf16.msra.mxu0 %v6365
    %7164 = vmatprep.subr.bf16.mxu0 %v6383
    %7165 = vmatpush1.bf16.msra.mxu0 %v6382
    %7166 = vmatprep.subr.bf16.mxu0 %v6400
    %7167 = vmatpush1.bf16.msra.mxu0 %v6399
    %7168 = vmatprep.subr.bf16.mxu0 %v6417
    %7169 = vmatpush1.bf16.msra.mxu0 %v6416
    %7170 = vmatprep.subr.bf16.mxu0 %v6434
    %7171 = vmatpush1.bf16.msra.mxu0 %v6433
    %7172 = vmatprep.subr.bf16.mxu0 %v6451
    %7173 = vmatpush1.bf16.msra.mxu0 %v6450
    %7174 = vmatprep.subr.bf16.mxu0 %v6468
    %7175 = vmatpush1.bf16.msra.mxu0 %v6467
    %7176 = vmatprep.subr.bf16.mxu0 %v6485
    %7177 = vmatpush1.bf16.msra.mxu0 %v6484
    %7178 = vmatprep.subr.bf16.mxu0 %v6502
    %7179 = vmatpush1.bf16.msra.mxu0 %v6501
    %7180 = vmatprep.subr.bf16.mxu0 %v6519
    %7181 = vmatpush1.bf16.msra.mxu0 %v6518
    %7182 = vmatprep.subr.bf16.mxu0 %v6536
    %7183 = vmatpush1.bf16.msra.mxu0 %v6535
    %7184 = vmatprep.subr.bf16.mxu0 %v6553
    %7185 = vmatpush1.bf16.msra.mxu0 %v6552
    %7186 = vmatprep.mubr.bf16.mxu0 %v3784
    %7187 = vmatmul.mubr.bf16.gmra.mrb[0].mxu0 %v3783
    %v7188 = vpop.f32.mrb[0].mxu0
    %v7189 = vadd.f32 %v7148, %v7188
    %v7190 = vpop.f32.mrb[0].mxu0
    %v7191 = vadd.f32 %v7150, %v7190
    %v7192 = vpop.f32.mrb[0].mxu0
    %v7193 = vpop.f32.mrb[0].mxu0
    %7194 = vdwg.mxu0
    %7195 = vmatprep.subr.bf16.mxu0 %v6028
    %7196 = vmatpush1.bf16.msra.mxu0 %v6027
    %7197 = vmatprep.subr.bf16.mxu0 %v6045
    %7198 = vmatpush1.bf16.msra.mxu0 %v6044
    %7199 = vmatprep.subr.bf16.mxu0 %v6062
    %7200 = vmatpush1.bf16.msra.mxu0 %v6061
    %7201 = vmatprep.subr.bf16.mxu0 %v6079
    %7202 = vmatpush1.bf16.msra.mxu0 %v6078
    %7203 = vmatprep.subr.bf16.mxu0 %v6096
    %7204 = vmatpush1.bf16.msra.mxu0 %v6095
    %7205 = vmatprep.subr.bf16.mxu0 %v6113
    %7206 = vmatpush1.bf16.msra.mxu0 %v6112
    %7207 = vmatprep.subr.bf16.mxu0 %v6130
    %7208 = vmatpush1.bf16.msra.mxu0 %v6129
    %7209 = vmatprep.subr.bf16.mxu0 %v6147
    %7210 = vmatpush1.bf16.msra.mxu0 %v6146
    %7211 = vmatprep.subr.bf16.mxu0 %v6164
    %7212 = vmatpush1.bf16.msra.mxu0 %v6163
    %7213 = vmatprep.subr.bf16.mxu0 %v6181
    %7214 = vmatpush1.bf16.msra.mxu0 %v6180
    %7215 = vmatprep.subr.bf16.mxu0 %v6198
    %7216 = vmatpush1.bf16.msra.mxu0 %v6197
    %7217 = vmatprep.subr.bf16.mxu0 %v6215
    %7218 = vmatpush1.bf16.msra.mxu0 %v6214
    %7219 = vmatprep.subr.bf16.mxu0 %v6232
    %7220 = vmatpush1.bf16.msra.mxu0 %v6231
    %7221 = vmatprep.subr.bf16.mxu0 %v6249
    %7222 = vmatpush1.bf16.msra.mxu0 %v6248
    %7223 = vmatprep.subr.bf16.mxu0 %v6266
    %7224 = vmatpush1.bf16.msra.mxu0 %v6265
    %7225 = vmatprep.subr.bf16.mxu0 %v6283
    %7226 = vmatpush1.bf16.msra.mxu0 %v6282
    %7227 = vmatprep.mubr.bf16.mxu0 %v3782
    %7228 = vmatmul.mubr.bf16.gmra.mrb[0].mxu0 %v3781
    %v7229 = vpop.f32.mrb[0].mxu0
    %v7230 = vadd.f32 0.0, %v7229
    %v7231 = vpop.f32.mrb[0].mxu0
    %v7232 = vadd.f32 0.0, %v7231
    %v7233 = vpop.f32.mrb[0].mxu0
    %v7234 = vpop.f32.mrb[0].mxu0
    %7235 = vdwg.mxu0
    %7236 = vmatprep.subr.bf16.mxu0 %v6300
    %7237 = vmatpush1.bf16.msra.mxu0 %v6299
    %7238 = vmatprep.subr.bf16.mxu0 %v6317
    %7239 = vmatpush1.bf16.msra.mxu0 %v6316
    %7240 = vmatprep.subr.bf16.mxu0 %v6334
    %7241 = vmatpush1.bf16.msra.mxu0 %v6333
    %7242 = vmatprep.subr.bf16.mxu0 %v6351
    %7243 = vmatpush1.bf16.msra.mxu0 %v6350
    %7244 = vmatprep.subr.bf16.mxu0 %v6368
    %7245 = vmatpush1.bf16.msra.mxu0 %v6367
    %7246 = vmatprep.subr.bf16.mxu0 %v6385
    %7247 = vmatpush1.bf16.msra.mxu0 %v6384
    %7248 = vmatprep.subr.bf16.mxu0 %v6402
    %7249 = vmatpush1.bf16.msra.mxu0 %v6401
    %7250 = vmatprep.subr.bf16.mxu0 %v6419
    %7251 = vmatpush1.bf16.msra.mxu0 %v6418
    %7252 = vmatprep.subr.bf16.mxu0 %v6436
    %7253 = vmatpush1.bf16.msra.mxu0 %v6435
    %7254 = vmatprep.subr.bf16.mxu0 %v6453
    %7255 = vmatpush1.bf16.msra.mxu0 %v6452
    %7256 = vmatprep.subr.bf16.mxu0 %v6470
    %7257 = vmatpush1.bf16.msra.mxu0 %v6469
    %7258 = vmatprep.subr.bf16.mxu0 %v6487
    %7259 = vmatpush1.bf16.msra.mxu0 %v6486
    %7260 = vmatprep.subr.bf16.mxu0 %v6504
    %7261 = vmatpush1.bf16.msra.mxu0 %v6503
    %7262 = vmatprep.subr.bf16.mxu0 %v6521
    %7263 = vmatpush1.bf16.msra.mxu0 %v6520
    %7264 = vmatprep.subr.bf16.mxu0 %v6538
    %7265 = vmatpush1.bf16.msra.mxu0 %v6537
    %7266 = vmatprep.subr.bf16.mxu0 %v6555
    %7267 = vmatpush1.bf16.msra.mxu0 %v6554
    %7268 = vmatprep.mubr.bf16.mxu0 %v3784
    %7269 = vmatmul.mubr.bf16.gmra.mrb[0].mxu0 %v3783
    %v7270 = vpop.f32.mrb[0].mxu0
    %v7271 = vadd.f32 %v7230, %v7270
    %v7272 = vpop.f32.mrb[0].mxu0
    %v7273 = vadd.f32 %v7232, %v7272
    %v7274 = vpop.f32.mrb[0].mxu0
    %v7275 = vpop.f32.mrb[0].mxu0
    %7276 = vdwg.mxu0
    %7277 = vmatprep.subr.bf16.mxu0 %v6030
    %7278 = vmatpush1.bf16.msra.mxu0 %v6029
    %7279 = vmatprep.subr.bf16.mxu0 %v6047
    %7280 = vmatpush1.bf16.msra.mxu0 %v6046
    %7281 = vmatprep.subr.bf16.mxu0 %v6064
    %7282 = vmatpush1.bf16.msra.mxu0 %v6063
    %7283 = vmatprep.subr.bf16.mxu0 %v6081
    %7284 = vmatpush1.bf16.msra.mxu0 %v6080
    %7285 = vmatprep.subr.bf16.mxu0 %v6098
    %7286 = vmatpush1.bf16.msra.mxu0 %v6097
    %7287 = vmatprep.subr.bf16.mxu0 %v6115
    %7288 = vmatpush1.bf16.msra.mxu0 %v6114
    %7289 = vmatprep.subr.bf16.mxu0 %v6132
    %7290 = vmatpush1.bf16.msra.mxu0 %v6131
    %7291 = vmatprep.subr.bf16.mxu0 %v6149
    %7292 = vmatpush1.bf16.msra.mxu0 %v6148
    %7293 = vmatprep.subr.bf16.mxu0 %v6166
    %7294 = vmatpush1.bf16.msra.mxu0 %v6165
    %7295 = vmatprep.subr.bf16.mxu0 %v6183
    %7296 = vmatpush1.bf16.msra.mxu0 %v6182
    %7297 = vmatprep.subr.bf16.mxu0 %v6200
    %7298 = vmatpush1.bf16.msra.mxu0 %v6199
    %7299 = vmatprep.subr.bf16.mxu0 %v6217
    %7300 = vmatpush1.bf16.msra.mxu0 %v6216
    %7301 = vmatprep.subr.bf16.mxu0 %v6234
    %7302 = vmatpush1.bf16.msra.mxu0 %v6233
    %7303 = vmatprep.subr.bf16.mxu0 %v6251
    %7304 = vmatpush1.bf16.msra.mxu0 %v6250
    %7305 = vmatprep.subr.bf16.mxu0 %v6268
    %7306 = vmatpush1.bf16.msra.mxu0 %v6267
    %7307 = vmatprep.subr.bf16.mxu0 %v6285
    %7308 = vmatpush1.bf16.msra.mxu0 %v6284
    %7309 = vmatprep.mubr.bf16.mxu0 %v3782
    %7310 = vmatmul.mubr.bf16.gmra.mrb[0].mxu0 %v3781
    %v7311 = vpop.f32.mrb[0].mxu0
    %v7312 = vadd.f32 0.0, %v7311
    %v7313 = vpop.f32.mrb[0].mxu0
    %v7314 = vadd.f32 0.0, %v7313
    %v7315 = vpop.f32.mrb[0].mxu0
    %v7316 = vpop.f32.mrb[0].mxu0
    %7317 = vdwg.mxu0
    %7318 = vmatprep.subr.bf16.mxu0 %v6302
    %7319 = vmatpush1.bf16.msra.mxu0 %v6301
    %7320 = vmatprep.subr.bf16.mxu0 %v6319
    %7321 = vmatpush1.bf16.msra.mxu0 %v6318
    %7322 = vmatprep.subr.bf16.mxu0 %v6336
    %7323 = vmatpush1.bf16.msra.mxu0 %v6335
    %7324 = vmatprep.subr.bf16.mxu0 %v6353
    %7325 = vmatpush1.bf16.msra.mxu0 %v6352
    %7326 = vmatprep.subr.bf16.mxu0 %v6370
    %7327 = vmatpush1.bf16.msra.mxu0 %v6369
    %7328 = vmatprep.subr.bf16.mxu0 %v6387
    %7329 = vmatpush1.bf16.msra.mxu0 %v6386
    %7330 = vmatprep.subr.bf16.mxu0 %v6404
    %7331 = vmatpush1.bf16.msra.mxu0 %v6403
    %7332 = vmatprep.subr.bf16.mxu0 %v6421
    %7333 = vmatpush1.bf16.msra.mxu0 %v6420
    %7334 = vmatprep.subr.bf16.mxu0 %v6438
    %7335 = vmatpush1.bf16.msra.mxu0 %v6437
    %7336 = vmatprep.subr.bf16.mxu0 %v6455
    %7337 = vmatpush1.bf16.msra.mxu0 %v6454
    %7338 = vmatprep.subr.bf16.mxu0 %v6472
    %7339 = vmatpush1.bf16.msra.mxu0 %v6471
    %7340 = vmatprep.subr.bf16.mxu0 %v6489
    %7341 = vmatpush1.bf16.msra.mxu0 %v6488
    %7342 = vmatprep.subr.bf16.mxu0 %v6506
    %7343 = vmatpush1.bf16.msra.mxu0 %v6505
    %7344 = vmatprep.subr.bf16.mxu0 %v6523
    %7345 = vmatpush1.bf16.msra.mxu0 %v6522
    %7346 = vmatprep.subr.bf16.mxu0 %v6540
    %7347 = vmatpush1.bf16.msra.mxu0 %v6539
    %7348 = vmatprep.subr.bf16.mxu0 %v6557
    %7349 = vmatpush1.bf16.msra.mxu0 %v6556
    %7350 = vmatprep.mubr.bf16.mxu0 %v3784
    %7351 = vmatmul.mubr.bf16.gmra.mrb[0].mxu0 %v3783
    %v7352 = vpop.f32.mrb[0].mxu0
    %v7353 = vadd.f32 %v7312, %v7352
    %v7354 = vpop.f32.mrb[0].mxu0
    %v7355 = vadd.f32 %v7314, %v7354
    %v7356 = vpop.f32.mrb[0].mxu0
    %v7357 = vpop.f32.mrb[0].mxu0
    %7358 = vdwg.mxu0
    %7359 = vmatprep.subr.bf16.mxu0 %v6032
    %7360 = vmatpush1.bf16.msra.mxu0 %v6031
    %7361 = vmatprep.subr.bf16.mxu0 %v6049
    %7362 = vmatpush1.bf16.msra.mxu0 %v6048
    %7363 = vmatprep.subr.bf16.mxu0 %v6066
    %7364 = vmatpush1.bf16.msra.mxu0 %v6065
    %7365 = vmatprep.subr.bf16.mxu0 %v6083
    %7366 = vmatpush1.bf16.msra.mxu0 %v6082
    %7367 = vmatprep.subr.bf16.mxu0 %v6100
    %7368 = vmatpush1.bf16.msra.mxu0 %v6099
    %7369 = vmatprep.subr.bf16.mxu0 %v6117
    %7370 = vmatpush1.bf16.msra.mxu0 %v6116
    %7371 = vmatprep.subr.bf16.mxu0 %v6134
    %7372 = vmatpush1.bf16.msra.mxu0 %v6133
    %7373 = vmatprep.subr.bf16.mxu0 %v6151
    %7374 = vmatpush1.bf16.msra.mxu0 %v6150
    %7375 = vmatprep.subr.bf16.mxu0 %v6168
    %7376 = vmatpush1.bf16.msra.mxu0 %v6167
    %7377 = vmatprep.subr.bf16.mxu0 %v6185
    %7378 = vmatpush1.bf16.msra.mxu0 %v6184
    %7379 = vmatprep.subr.bf16.mxu0 %v6202
    %7380 = vmatpush1.bf16.msra.mxu0 %v6201
    %7381 = vmatprep.subr.bf16.mxu0 %v6219
    %7382 = vmatpush1.bf16.msra.mxu0 %v6218
    %7383 = vmatprep.subr.bf16.mxu0 %v6236
    %7384 = vmatpush1.bf16.msra.mxu0 %v6235
    %7385 = vmatprep.subr.bf16.mxu0 %v6253
    %7386 = vmatpush1.bf16.msra.mxu0 %v6252
    %7387 = vmatprep.subr.bf16.mxu0 %v6270
    %7388 = vmatpush1.bf16.msra.mxu0 %v6269
    %7389 = vmatprep.subr.bf16.mxu0 %v6287
    %7390 = vmatpush1.bf16.msra.mxu0 %v6286
    %7391 = vmatprep.mubr.bf16.mxu0 %v3782
    %7392 = vmatmul.mubr.bf16.gmra.mrb[0].mxu0 %v3781
    %v7393 = vpop.f32.mrb[0].mxu0
    %v7394 = vadd.f32 0.0, %v7393
    %v7395 = vpop.f32.mrb[0].mxu0
    %v7396 = vadd.f32 0.0, %v7395
    %v7397 = vpop.f32.mrb[0].mxu0
    %v7398 = vpop.f32.mrb[0].mxu0
    %7399 = vdwg.mxu0
    %7400 = vmatprep.subr.bf16.mxu0 %v6304
    %7401 = vmatpush1.bf16.msra.mxu0 %v6303
    %7402 = vmatprep.subr.bf16.mxu0 %v6321
    %7403 = vmatpush1.bf16.msra.mxu0 %v6320
    %7404 = vmatprep.subr.bf16.mxu0 %v6338
    %7405 = vmatpush1.bf16.msra.mxu0 %v6337
    %7406 = vmatprep.subr.bf16.mxu0 %v6355
    %7407 = vmatpush1.bf16.msra.mxu0 %v6354
    %7408 = vmatprep.subr.bf16.mxu0 %v6372
    %7409 = vmatpush1.bf16.msra.mxu0 %v6371
    %7410 = vmatprep.subr.bf16.mxu0 %v6389
    %7411 = vmatpush1.bf16.msra.mxu0 %v6388
    %7412 = vmatprep.subr.bf16.mxu0 %v6406
    %7413 = vmatpush1.bf16.msra.mxu0 %v6405
    %7414 = vmatprep.subr.bf16.mxu0 %v6423
    %7415 = vmatpush1.bf16.msra.mxu0 %v6422
    %7416 = vmatprep.subr.bf16.mxu0 %v6440
    %7417 = vmatpush1.bf16.msra.mxu0 %v6439
    %7418 = vmatprep.subr.bf16.mxu0 %v6457
    %7419 = vmatpush1.bf16.msra.mxu0 %v6456
    %7420 = vmatprep.subr.bf16.mxu0 %v6474
    %7421 = vmatpush1.bf16.msra.mxu0 %v6473
    %7422 = vmatprep.subr.bf16.mxu0 %v6491
    %7423 = vmatpush1.bf16.msra.mxu0 %v6490
    %7424 = vmatprep.subr.bf16.mxu0 %v6508
    %7425 = vmatpush1.bf16.msra.mxu0 %v6507
    %7426 = vmatprep.subr.bf16.mxu0 %v6525
    %7427 = vmatpush1.bf16.msra.mxu0 %v6524
    %7428 = vmatprep.subr.bf16.mxu0 %v6542
    %7429 = vmatpush1.bf16.msra.mxu0 %v6541
    %7430 = vmatprep.subr.bf16.mxu0 %v6559
    %7431 = vmatpush1.bf16.msra.mxu0 %v6558
    %7432 = vmatprep.mubr.bf16.mxu0 %v3784
    %7433 = vmatmul.mubr.bf16.gmra.mrb[0].mxu0 %v3783
    %v7434 = vpop.f32.mrb[0].mxu0
    %v7435 = vadd.f32 %v7394, %v7434
    %v7436 = vpop.f32.mrb[0].mxu0
    %v7437 = vadd.f32 %v7396, %v7436
    %v7438 = vpop.f32.mrb[0].mxu0
    %v7439 = vpop.f32.mrb[0].mxu0
    %7440 = vdwg.mxu0
    %7441 = vmatprep.subr.bf16.mxu0 %v6034
    %7442 = vmatpush1.bf16.msra.mxu0 %v6033
    %7443 = vmatprep.subr.bf16.mxu0 %v6051
    %7444 = vmatpush1.bf16.msra.mxu0 %v6050
    %7445 = vmatprep.subr.bf16.mxu0 %v6068
    %7446 = vmatpush1.bf16.msra.mxu0 %v6067
    %7447 = vmatprep.subr.bf16.mxu0 %v6085
    %7448 = vmatpush1.bf16.msra.mxu0 %v6084
    %7449 = vmatprep.subr.bf16.mxu0 %v6102
    %7450 = vmatpush1.bf16.msra.mxu0 %v6101
    %7451 = vmatprep.subr.bf16.mxu0 %v6119
    %7452 = vmatpush1.bf16.msra.mxu0 %v6118
    %7453 = vmatprep.subr.bf16.mxu0 %v6136
    %7454 = vmatpush1.bf16.msra.mxu0 %v6135
    %7455 = vmatprep.subr.bf16.mxu0 %v6153
    %7456 = vmatpush1.bf16.msra.mxu0 %v6152
    %7457 = vmatprep.subr.bf16.mxu0 %v6170
    %7458 = vmatpush1.bf16.msra.mxu0 %v6169
    %7459 = vmatprep.subr.bf16.mxu0 %v6187
    %7460 = vmatpush1.bf16.msra.mxu0 %v6186
    %7461 = vmatprep.subr.bf16.mxu0 %v6204
    %7462 = vmatpush1.bf16.msra.mxu0 %v6203
    %7463 = vmatprep.subr.bf16.mxu0 %v6221
    %7464 = vmatpush1.bf16.msra.mxu0 %v6220
    %7465 = vmatprep.subr.bf16.mxu0 %v6238
    %7466 = vmatpush1.bf16.msra.mxu0 %v6237
    %7467 = vmatprep.subr.bf16.mxu0 %v6255
    %7468 = vmatpush1.bf16.msra.mxu0 %v6254
    %7469 = vmatprep.subr.bf16.mxu0 %v6272
    %7470 = vmatpush1.bf16.msra.mxu0 %v6271
    %7471 = vmatprep.subr.bf16.mxu0 %v6289
    %7472 = vmatpush1.bf16.msra.mxu0 %v6288
    %7473 = vmatprep.mubr.bf16.mxu0 %v3782
    %7474 = vmatmul.mubr.bf16.gmra.mrb[0].mxu0 %v3781
    %v7475 = vpop.f32.mrb[0].mxu0
    %v7476 = vadd.f32 0.0, %v7475
    %v7477 = vpop.f32.mrb[0].mxu0
    %v7478 = vadd.f32 0.0, %v7477
    %v7479 = vpop.f32.mrb[0].mxu0
    %v7480 = vpop.f32.mrb[0].mxu0
    %7481 = vdwg.mxu0
    %7482 = vmatprep.subr.bf16.mxu0 %v6306
    %7483 = vmatpush1.bf16.msra.mxu0 %v6305
    %7484 = vmatprep.subr.bf16.mxu0 %v6323
    %7485 = vmatpush1.bf16.msra.mxu0 %v6322
    %7486 = vmatprep.subr.bf16.mxu0 %v6340
    %7487 = vmatpush1.bf16.msra.mxu0 %v6339
    %7488 = vmatprep.subr.bf16.mxu0 %v6357
    %7489 = vmatpush1.bf16.msra.mxu0 %v6356
    %7490 = vmatprep.subr.bf16.mxu0 %v6374
    %7491 = vmatpush1.bf16.msra.mxu0 %v6373
    %7492 = vmatprep.subr.bf16.mxu0 %v6391
    %7493 = vmatpush1.bf16.msra.mxu0 %v6390
    %7494 = vmatprep.subr.bf16.mxu0 %v6408
    %7495 = vmatpush1.bf16.msra.mxu0 %v6407
    %7496 = vmatprep.subr.bf16.mxu0 %v6425
    %7497 = vmatpush1.bf16.msra.mxu0 %v6424
    %7498 = vmatprep.subr.bf16.mxu0 %v6442
    %7499 = vmatpush1.bf16.msra.mxu0 %v6441
    %7500 = vmatprep.subr.bf16.mxu0 %v6459
    %7501 = vmatpush1.bf16.msra.mxu0 %v6458
    %7502 = vmatprep.subr.bf16.mxu0 %v6476
    %7503 = vmatpush1.bf16.msra.mxu0 %v6475
    %7504 = vmatprep.subr.bf16.mxu0 %v6493
    %7505 = vmatpush1.bf16.msra.mxu0 %v6492
    %7506 = vmatprep.subr.bf16.mxu0 %v6510
    %7507 = vmatpush1.bf16.msra.mxu0 %v6509
    %7508 = vmatprep.subr.bf16.mxu0 %v6527
    %7509 = vmatpush1.bf16.msra.mxu0 %v6526
    %7510 = vmatprep.subr.bf16.mxu0 %v6544
    %7511 = vmatpush1.bf16.msra.mxu0 %v6543
    %7512 = vmatprep.subr.bf16.mxu0 %v6561
    %7513 = vmatpush1.bf16.msra.mxu0 %v6560
    %7514 = vmatprep.mubr.bf16.mxu0 %v3784
    %7515 = vmatmul.mubr.bf16.gmra.mrb[0].mxu0 %v3783
    %v7516 = vpop.f32.mrb[0].mxu0
    %v7517 = vadd.f32 %v7476, %v7516
    %v7518 = vpop.f32.mrb[0].mxu0
    %v7519 = vadd.f32 %v7478, %v7518
    %v7520 = vpop.f32.mrb[0].mxu0
    %v7521 = vpop.f32.mrb[0].mxu0
    %7522 = vdwg.mxu0
    %7523 = vmatprep.subr.bf16.mxu0 %v6036
    %7524 = vmatpush1.bf16.msra.mxu0 %v6035
    %7525 = vmatprep.subr.bf16.mxu0 %v6053
    %7526 = vmatpush1.bf16.msra.mxu0 %v6052
    %7527 = vmatprep.subr.bf16.mxu0 %v6070
    %7528 = vmatpush1.bf16.msra.mxu0 %v6069
    %7529 = vmatprep.subr.bf16.mxu0 %v6087
    %7530 = vmatpush1.bf16.msra.mxu0 %v6086
    %7531 = vmatprep.subr.bf16.mxu0 %v6104
    %7532 = vmatpush1.bf16.msra.mxu0 %v6103
    %7533 = vmatprep.subr.bf16.mxu0 %v6121
    %7534 = vmatpush1.bf16.msra.mxu0 %v6120
    %7535 = vmatprep.subr.bf16.mxu0 %v6138
    %7536 = vmatpush1.bf16.msra.mxu0 %v6137
    %7537 = vmatprep.subr.bf16.mxu0 %v6155
    %7538 = vmatpush1.bf16.msra.mxu0 %v6154
    %7539 = vmatprep.subr.bf16.mxu0 %v6172
    %7540 = vmatpush1.bf16.msra.mxu0 %v6171
    %7541 = vmatprep.subr.bf16.mxu0 %v6189
    %7542 = vmatpush1.bf16.msra.mxu0 %v6188
    %7543 = vmatprep.subr.bf16.mxu0 %v6206
    %7544 = vmatpush1.bf16.msra.mxu0 %v6205
    %7545 = vmatprep.subr.bf16.mxu0 %v6223
    %7546 = vmatpush1.bf16.msra.mxu0 %v6222
    %7547 = vmatprep.subr.bf16.mxu0 %v6240
    %7548 = vmatpush1.bf16.msra.mxu0 %v6239
    %7549 = vmatprep.subr.bf16.mxu0 %v6257
    %7550 = vmatpush1.bf16.msra.mxu0 %v6256
    %7551 = vmatprep.subr.bf16.mxu0 %v6274
    %7552 = vmatpush1.bf16.msra.mxu0 %v6273
    %7553 = vmatprep.subr.bf16.mxu0 %v6291
    %7554 = vmatpush1.bf16.msra.mxu0 %v6290
    %7555 = vmatprep.mubr.bf16.mxu0 %v3782
    %7556 = vmatmul.mubr.bf16.gmra.mrb[0].mxu0 %v3781
    %v7557 = vpop.f32.mrb[0].mxu0
    %v7558 = vadd.f32 0.0, %v7557
    %v7559 = vpop.f32.mrb[0].mxu0
    %v7560 = vadd.f32 0.0, %v7559
    %v7561 = vpop.f32.mrb[0].mxu0
    %v7562 = vpop.f32.mrb[0].mxu0
    %7563 = vdwg.mxu0
    %7564 = vmatprep.subr.bf16.mxu0 %v6308
    %7565 = vmatpush1.bf16.msra.mxu0 %v6307
    %7566 = vmatprep.subr.bf16.mxu0 %v6325
    %7567 = vmatpush1.bf16.msra.mxu0 %v6324
    %7568 = vmatprep.subr.bf16.mxu0 %v6342
    %7569 = vmatpush1.bf16.msra.mxu0 %v6341
    %7570 = vmatprep.subr.bf16.mxu0 %v6359
    %7571 = vmatpush1.bf16.msra.mxu0 %v6358
    %7572 = vmatprep.subr.bf16.mxu0 %v6376
    %7573 = vmatpush1.bf16.msra.mxu0 %v6375
    %7574 = vmatprep.subr.bf16.mxu0 %v6393
    %7575 = vmatpush1.bf16.msra.mxu0 %v6392
    %7576 = vmatprep.subr.bf16.mxu0 %v6410
    %7577 = vmatpush1.bf16.msra.mxu0 %v6409
    %7578 = vmatprep.subr.bf16.mxu0 %v6427
    %7579 = vmatpush1.bf16.msra.mxu0 %v6426
    %7580 = vmatprep.subr.bf16.mxu0 %v6444
    %7581 = vmatpush1.bf16.msra.mxu0 %v6443
    %7582 = vmatprep.subr.bf16.mxu0 %v6461
    %7583 = vmatpush1.bf16.msra.mxu0 %v6460
    %7584 = vmatprep.subr.bf16.mxu0 %v6478
    %7585 = vmatpush1.bf16.msra.mxu0 %v6477
    %7586 = vmatprep.subr.bf16.mxu0 %v6495
    %7587 = vmatpush1.bf16.msra.mxu0 %v6494
    %7588 = vmatprep.subr.bf16.mxu0 %v6512
    %7589 = vmatpush1.bf16.msra.mxu0 %v6511
    %7590 = vmatprep.subr.bf16.mxu0 %v6529
    %7591 = vmatpush1.bf16.msra.mxu0 %v6528
    %7592 = vmatprep.subr.bf16.mxu0 %v6546
    %7593 = vmatpush1.bf16.msra.mxu0 %v6545
    %7594 = vmatprep.subr.bf16.mxu0 %v6563
    %7595 = vmatpush1.bf16.msra.mxu0 %v6562
    %7596 = vmatprep.mubr.bf16.mxu0 %v3784
    %7597 = vmatmul.mubr.bf16.gmra.mrb[0].mxu0 %v3783
    %v7598 = vpop.f32.mrb[0].mxu0
    %v7599 = vadd.f32 %v7558, %v7598
    %v7600 = vpop.f32.mrb[0].mxu0
    %v7601 = vadd.f32 %v7560, %v7600
    %v7602 = vpop.f32.mrb[0].mxu0
    %v7603 = vpop.f32.mrb[0].mxu0
    %7604 = vdwg.mxu0
    %7605 = vmatprep.subr.bf16.mxu0 %v6038
    %7606 = vmatpush1.bf16.msra.mxu0 %v6037
    %7607 = vmatprep.subr.bf16.mxu0 %v6055
    %7608 = vmatpush1.bf16.msra.mxu0 %v6054
    %7609 = vmatprep.subr.bf16.mxu0 %v6072
    %7610 = vmatpush1.bf16.msra.mxu0 %v6071
    %7611 = vmatprep.subr.bf16.mxu0 %v6089
    %7612 = vmatpush1.bf16.msra.mxu0 %v6088
    %7613 = vmatprep.subr.bf16.mxu0 %v6106
    %7614 = vmatpush1.bf16.msra.mxu0 %v6105
    %7615 = vmatprep.subr.bf16.mxu0 %v6123
    %7616 = vmatpush1.bf16.msra.mxu0 %v6122
    %7617 = vmatprep.subr.bf16.mxu0 %v6140
    %7618 = vmatpush1.bf16.msra.mxu0 %v6139
    %7619 = vmatprep.subr.bf16.mxu0 %v6157
    %7620 = vmatpush1.bf16.msra.mxu0 %v6156
    %7621 = vmatprep.subr.bf16.mxu0 %v6174
    %7622 = vmatpush1.bf16.msra.mxu0 %v6173
    %7623 = vmatprep.subr.bf16.mxu0 %v6191
    %7624 = vmatpush1.bf16.msra.mxu0 %v6190
    %7625 = vmatprep.subr.bf16.mxu0 %v6208
    %7626 = vmatpush1.bf16.msra.mxu0 %v6207
    %7627 = vmatprep.subr.bf16.mxu0 %v6225
    %7628 = vmatpush1.bf16.msra.mxu0 %v6224
    %7629 = vmatprep.subr.bf16.mxu0 %v6242
    %7630 = vmatpush1.bf16.msra.mxu0 %v6241
    %7631 = vmatprep.subr.bf16.mxu0 %v6259
    %7632 = vmatpush1.bf16.msra.mxu0 %v6258
    %7633 = vmatprep.subr.bf16.mxu0 %v6276
    %7634 = vmatpush1.bf16.msra.mxu0 %v6275
    %7635 = vmatprep.subr.bf16.mxu0 %v6293
    %7636 = vmatpush1.bf16.msra.mxu0 %v6292
    %7637 = vmatprep.mubr.bf16.mxu0 %v3782
    %7638 = vmatmul.mubr.bf16.gmra.mrb[0].mxu0 %v3781
    %v7639 = vpop.f32.mrb[0].mxu0
    %v7640 = vadd.f32 0.0, %v7639
    %v7641 = vpop.f32.mrb[0].mxu0
    %v7642 = vadd.f32 0.0, %v7641
    %v7643 = vpop.f32.mrb[0].mxu0
    %v7644 = vpop.f32.mrb[0].mxu0
    %7645 = vdwg.mxu0
    %7646 = vmatprep.subr.bf16.mxu0 %v6310
    %7647 = vmatpush1.bf16.msra.mxu0 %v6309
    %7648 = vmatprep.subr.bf16.mxu0 %v6327
    %7649 = vmatpush1.bf16.msra.mxu0 %v6326
    %7650 = vmatprep.subr.bf16.mxu0 %v6344
    %7651 = vmatpush1.bf16.msra.mxu0 %v6343
    %7652 = vmatprep.subr.bf16.mxu0 %v6361
    %7653 = vmatpush1.bf16.msra.mxu0 %v6360
    %7654 = vmatprep.subr.bf16.mxu0 %v6378
    %7655 = vmatpush1.bf16.msra.mxu0 %v6377
    %7656 = vmatprep.subr.bf16.mxu0 %v6395
    %7657 = vmatpush1.bf16.msra.mxu0 %v6394
    %7658 = vmatprep.subr.bf16.mxu0 %v6412
    %7659 = vmatpush1.bf16.msra.mxu0 %v6411
    %7660 = vmatprep.subr.bf16.mxu0 %v6429
    %7661 = vmatpush1.bf16.msra.mxu0 %v6428
    %7662 = vmatprep.subr.bf16.mxu0 %v6446
    %7663 = vmatpush1.bf16.msra.mxu0 %v6445
    %7664 = vmatprep.subr.bf16.mxu0 %v6463
    %7665 = vmatpush1.bf16.msra.mxu0 %v6462
    %7666 = vmatprep.subr.bf16.mxu0 %v6480
    %7667 = vmatpush1.bf16.msra.mxu0 %v6479
    %7668 = vmatprep.subr.bf16.mxu0 %v6497
    %7669 = vmatpush1.bf16.msra.mxu0 %v6496
    %7670 = vmatprep.subr.bf16.mxu0 %v6514
    %7671 = vmatpush1.bf16.msra.mxu0 %v6513
    %7672 = vmatprep.subr.bf16.mxu0 %v6531
    %7673 = vmatpush1.bf16.msra.mxu0 %v6530
    %7674 = vmatprep.subr.bf16.mxu0 %v6548
    %7675 = vmatpush1.bf16.msra.mxu0 %v6547
    %7676 = vmatprep.subr.bf16.mxu0 %v6565
    %7677 = vmatpush1.bf16.msra.mxu0 %v6564
    %7678 = vmatprep.mubr.bf16.mxu0 %v3784
    %7679 = vmatmul.mubr.bf16.gmra.mrb[0].mxu0 %v3783
    %v7680 = vpop.f32.mrb[0].mxu0
    %v7681 = vadd.f32 %v7640, %v7680
    %v7682 = vpop.f32.mrb[0].mxu0
    %v7683 = vadd.f32 %v7642, %v7682
    %v7684 = vpop.f32.mrb[0].mxu0
    %v7685 = vpop.f32.mrb[0].mxu0
    %7686 = vdwg.mxu0
    %7687 = vmatprep.subr.bf16.mxu0 %v6040
    %7688 = vmatpush1.bf16.msra.mxu0 %v6039
    %7689 = vmatprep.subr.bf16.mxu0 %v6057
    %7690 = vmatpush1.bf16.msra.mxu0 %v6056
    %7691 = vmatprep.subr.bf16.mxu0 %v6074
    %7692 = vmatpush1.bf16.msra.mxu0 %v6073
    %7693 = vmatprep.subr.bf16.mxu0 %v6091
    %7694 = vmatpush1.bf16.msra.mxu0 %v6090
    %7695 = vmatprep.subr.bf16.mxu0 %v6108
    %7696 = vmatpush1.bf16.msra.mxu0 %v6107
    %7697 = vmatprep.subr.bf16.mxu0 %v6125
    %7698 = vmatpush1.bf16.msra.mxu0 %v6124
    %7699 = vmatprep.subr.bf16.mxu0 %v6142
    %7700 = vmatpush1.bf16.msra.mxu0 %v6141
    %7701 = vmatprep.subr.bf16.mxu0 %v6159
    %7702 = vmatpush1.bf16.msra.mxu0 %v6158
    %7703 = vmatprep.subr.bf16.mxu0 %v6176
    %7704 = vmatpush1.bf16.msra.mxu0 %v6175
    %7705 = vmatprep.subr.bf16.mxu0 %v6193
    %7706 = vmatpush1.bf16.msra.mxu0 %v6192
    %7707 = vmatprep.subr.bf16.mxu0 %v6210
    %7708 = vmatpush1.bf16.msra.mxu0 %v6209
    %7709 = vmatprep.subr.bf16.mxu0 %v6227
    %7710 = vmatpush1.bf16.msra.mxu0 %v6226
    %7711 = vmatprep.subr.bf16.mxu0 %v6244
    %7712 = vmatpush1.bf16.msra.mxu0 %v6243
    %7713 = vmatprep.subr.bf16.mxu0 %v6261
    %7714 = vmatpush1.bf16.msra.mxu0 %v6260
    %7715 = vmatprep.subr.bf16.mxu0 %v6278
    %7716 = vmatpush1.bf16.msra.mxu0 %v6277
    %7717 = vmatprep.subr.bf16.mxu0 %v6295
    %7718 = vmatpush1.bf16.msra.mxu0 %v6294
    %7719 = vmatprep.mubr.bf16.mxu0 %v3782
    %7720 = vmatmul.mubr.bf16.gmra.mrb[0].mxu0 %v3781
    %v7721 = vpop.f32.mrb[0].mxu0
    %v7722 = vadd.f32 0.0, %v7721
    %v7723 = vpop.f32.mrb[0].mxu0
    %v7724 = vadd.f32 0.0, %v7723
    %v7725 = vpop.f32.mrb[0].mxu0
    %v7726 = vpop.f32.mrb[0].mxu0
    %7727 = vdwg.mxu0
    %7728 = vmatprep.subr.bf16.mxu0 %v6312
    %7729 = vmatpush1.bf16.msra.mxu0 %v6311
    %7730 = vmatprep.subr.bf16.mxu0 %v6329
    %7731 = vmatpush1.bf16.msra.mxu0 %v6328
    %7732 = vmatprep.subr.bf16.mxu0 %v6346
    %7733 = vmatpush1.bf16.msra.mxu0 %v6345
    %7734 = vmatprep.subr.bf16.mxu0 %v6363
    %7735 = vmatpush1.bf16.msra.mxu0 %v6362
    %7736 = vmatprep.subr.bf16.mxu0 %v6380
    %7737 = vmatpush1.bf16.msra.mxu0 %v6379
    %7738 = vmatprep.subr.bf16.mxu0 %v6397
    %7739 = vmatpush1.bf16.msra.mxu0 %v6396
    %7740 = vmatprep.subr.bf16.mxu0 %v6414
    %7741 = vmatpush1.bf16.msra.mxu0 %v6413
    %7742 = vmatprep.subr.bf16.mxu0 %v6431
    %7743 = vmatpush1.bf16.msra.mxu0 %v6430
    %7744 = vmatprep.subr.bf16.mxu0 %v6448
    %7745 = vmatpush1.bf16.msra.mxu0 %v6447
    %7746 = vmatprep.subr.bf16.mxu0 %v6465
    %7747 = vmatpush1.bf16.msra.mxu0 %v6464
    %7748 = vmatprep.subr.bf16.mxu0 %v6482
    %7749 = vmatpush1.bf16.msra.mxu0 %v6481
    %7750 = vmatprep.subr.bf16.mxu0 %v6499
    %7751 = vmatpush1.bf16.msra.mxu0 %v6498
    %7752 = vmatprep.subr.bf16.mxu0 %v6516
    %7753 = vmatpush1.bf16.msra.mxu0 %v6515
    %7754 = vmatprep.subr.bf16.mxu0 %v6533
    %7755 = vmatpush1.bf16.msra.mxu0 %v6532
    %7756 = vmatprep.subr.bf16.mxu0 %v6550
    %7757 = vmatpush1.bf16.msra.mxu0 %v6549
    %7758 = vmatprep.subr.bf16.mxu0 %v6567
    %7759 = vmatpush1.bf16.msra.mxu0 %v6566
    %7760 = vmatprep.mubr.bf16.mxu0 %v3784
    %7761 = vmatmul.mubr.bf16.gmra.mrb[0].mxu0 %v3783
    %v7762 = vpop.f32.mrb[0].mxu0
    %v7763 = vadd.f32 %v7722, %v7762
    %v7764 = vpop.f32.mrb[0].mxu0
    %v7765 = vadd.f32 %v7724, %v7764
    %v7766 = vpop.f32.mrb[0].mxu0
    %v7767 = vpop.f32.mrb[0].mxu0
    %7768 = vdwg.mxu0
    %7769 = vmatprep.subr.bf16.mxu0 0
    %7770 = vmatpush1.bf16.msra.mxu0 %v6041
    %7771 = vmatprep.subr.bf16.mxu0 0
    %7772 = vmatpush1.bf16.msra.mxu0 %v6058
    %7773 = vmatprep.subr.bf16.mxu0 0
    %7774 = vmatpush1.bf16.msra.mxu0 %v6075
    %7775 = vmatprep.subr.bf16.mxu0 0
    %7776 = vmatpush1.bf16.msra.mxu0 %v6092
    %7777 = vmatprep.subr.bf16.mxu0 0
    %7778 = vmatpush1.bf16.msra.mxu0 %v6109
    %7779 = vmatprep.subr.bf16.mxu0 0
    %7780 = vmatpush1.bf16.msra.mxu0 %v6126
    %7781 = vmatprep.subr.bf16.mxu0 0
    %7782 = vmatpush1.bf16.msra.mxu0 %v6143
    %7783 = vmatprep.subr.bf16.mxu0 0
    %7784 = vmatpush1.bf16.msra.mxu0 %v6160
    %7785 = vmatprep.subr.bf16.mxu0 0
    %7786 = vmatpush1.bf16.msra.mxu0 %v6177
    %7787 = vmatprep.subr.bf16.mxu0 0
    %7788 = vmatpush1.bf16.msra.mxu0 %v6194
    %7789 = vmatprep.subr.bf16.mxu0 0
    %7790 = vmatpush1.bf16.msra.mxu0 %v6211
    %7791 = vmatprep.subr.bf16.mxu0 0
    %7792 = vmatpush1.bf16.msra.mxu0 %v6228
    %7793 = vmatprep.subr.bf16.mxu0 0
    %7794 = vmatpush1.bf16.msra.mxu0 %v6245
    %7795 = vmatprep.subr.bf16.mxu0 0
    %7796 = vmatpush1.bf16.msra.mxu0 %v6262
    %7797 = vmatprep.subr.bf16.mxu0 0
    %7798 = vmatpush1.bf16.msra.mxu0 %v6279
    %7799 = vmatprep.subr.bf16.mxu0 0
    %7800 = vmatpush1.bf16.msra.mxu0 %v6296
    %7801 = vmatprep.mubr.bf16.mxu0 %v3782
    %7802 = vmatmul.mubr.bf16.gmra.mrb[0].mxu0 %v3781
    %v7803 = vpop.f32.mrb[0].mxu0
    %v7804 = vadd.f32 0.0, %v7803
    %v7805 = vpop.f32.mrb[0].mxu0
    %v7806 = vpop.f32.mrb[0].mxu0
    %v7807 = vpop.f32.mrb[0].mxu0
    %7808 = vdwg.mxu0
    %7809 = vmatprep.subr.bf16.mxu0 0
    %7810 = vmatpush1.bf16.msra.mxu0 %v6313
    %7811 = vmatprep.subr.bf16.mxu0 0
    %7812 = vmatpush1.bf16.msra.mxu0 %v6330
    %7813 = vmatprep.subr.bf16.mxu0 0
    %7814 = vmatpush1.bf16.msra.mxu0 %v6347
    %7815 = vmatprep.subr.bf16.mxu0 0
    %7816 = vmatpush1.bf16.msra.mxu0 %v6364
    %7817 = vmatprep.subr.bf16.mxu0 0
    %7818 = vmatpush1.bf16.msra.mxu0 %v6381
    %7819 = vmatprep.subr.bf16.mxu0 0
    %7820 = vmatpush1.bf16.msra.mxu0 %v6398
    %7821 = vmatprep.subr.bf16.mxu0 0
    %7822 = vmatpush1.bf16.msra.mxu0 %v6415
    %7823 = vmatprep.subr.bf16.mxu0 0
    %7824 = vmatpush1.bf16.msra.mxu0 %v6432
    %7825 = vmatprep.subr.bf16.mxu0 0
    %7826 = vmatpush1.bf16.msra.mxu0 %v6449
    %7827 = vmatprep.subr.bf16.mxu0 0
    %7828 = vmatpush1.bf16.msra.mxu0 %v6466
    %7829 = vmatprep.subr.bf16.mxu0 0
    %7830 = vmatpush1.bf16.msra.mxu0 %v6483
    %7831 = vmatprep.subr.bf16.mxu0 0
    %7832 = vmatpush1.bf16.msra.mxu0 %v6500
    %7833 = vmatprep.subr.bf16.mxu0 0
    %7834 = vmatpush1.bf16.msra.mxu0 %v6517
    %7835 = vmatprep.subr.bf16.mxu0 0
    %7836 = vmatpush1.bf16.msra.mxu0 %v6534
    %7837 = vmatprep.subr.bf16.mxu0 0
    %7838 = vmatpush1.bf16.msra.mxu0 %v6551
    %7839 = vmatprep.subr.bf16.mxu0 0
    %7840 = vmatpush1.bf16.msra.mxu0 %v6568
    %7841 = vmatprep.mubr.bf16.mxu0 %v3784
    %7842 = vmatmul.mubr.bf16.gmra.mrb[0].mxu0 %v3783
    %v7843 = vpop.f32.mrb[0].mxu0
    %v7844 = vadd.f32 %v7804, %v7843
    %v7845 = vpop.f32.mrb[0].mxu0
    %v7846 = vpop.f32.mrb[0].mxu0
    %v7847 = vpop.f32.mrb[0].mxu0
    %7848 = vdwg.mxu0
    %7849 = vst [vmem:[#allocation8] sm:$0xff] %v7189
    %7850 = vst [vmem:[#allocation8 + $0x8] sm:$0xff] %v7191
    %7851 = vst [vmem:[#allocation8 + $0x10] sm:$0xff] %v7271
    %7852 = vst [vmem:[#allocation8 + $0x18] sm:$0xff] %v7273
    %7853 = vst [vmem:[#allocation8 + $0x20] sm:$0xff] %v7353
    %7854 = vst [vmem:[#allocation8 + $0x28] sm:$0xff] %v7355
    %7855 = vst [vmem:[#allocation8 + $0x30] sm:$0xff] %v7435
    %7856 = vst [vmem:[#allocation8 + $0x38] sm:$0xff] %v7437
    %7857 = vst [vmem:[#allocation8 + $0x40] sm:$0xff] %v7517
    %7858 = vst [vmem:[#allocation8 + $0x48] sm:$0xff] %v7519
    %7859 = vst [vmem:[#allocation8 + $0x50] sm:$0xff] %v7599
    %7860 = vst [vmem:[#allocation8 + $0x58] sm:$0xff] %v7601
    %7861 = vst [vmem:[#allocation8 + $0x60] sm:$0xff] %v7681
    %7862 = vst [vmem:[#allocation8 + $0x68] sm:$0xff] %v7683
    %7863 = vst [vmem:[#allocation8 + $0x70] sm:$0xff] %v7763
    %7864 = vst [vmem:[#allocation8 + $0x78] sm:$0xff] %v7765
    %7865 = vst [vmem:[#allocation8 + $0x80] sm:$0xff] %v7844
    %v7866 = vld [vmem:[#allocation8] sm:$0xff]
    %v7867 = vld [vmem:[#allocation8 + $0x8] sm:$0xff]
    %v7868 = vld [vmem:[#allocation8 + $0x10] sm:$0xff]
    %v7869 = vld [vmem:[#allocation8 + $0x18] sm:$0xff]
    %v7870 = vld [vmem:[#allocation8 + $0x20] sm:$0xff]
    %v7871 = vld [vmem:[#allocation8 + $0x28] sm:$0xff]
    %v7872 = vld [vmem:[#allocation8 + $0x30] sm:$0xff]
    %v7873 = vld [vmem:[#allocation8 + $0x38] sm:$0xff]
    %v7874 = vld [vmem:[#allocation8 + $0x40] sm:$0xff]
    %v7875 = vld [vmem:[#allocation8 + $0x48] sm:$0xff]
    %v7876 = vld [vmem:[#allocation8 + $0x50] sm:$0xff]
    %v7877 = vld [vmem:[#allocation8 + $0x58] sm:$0xff]
    %v7878 = vld [vmem:[#allocation8 + $0x60] sm:$0xff]
    %v7879 = vld [vmem:[#allocation8 + $0x68] sm:$0xff]
    %v7880 = vld [vmem:[#allocation8 + $0x70] sm:$0xff]
    %v7881 = vld [vmem:[#allocation8 + $0x78] sm:$0xff]
    %7882 = vst [vmem:[#allocation9] sm:$0xff] %v7866
    %7883 = vst [vmem:[#allocation9 + $0x8] sm:$0xff] %v7867
    %7884 = vst [vmem:[#allocation9 + $0x10] sm:$0xff] %v7868
    %7885 = vst [vmem:[#allocation9 + $0x18] sm:$0xff] %v7869
    %7886 = vst [vmem:[#allocation9 + $0x20] sm:$0xff] %v7870
    %7887 = vst [vmem:[#allocation9 + $0x28] sm:$0xff] %v7871
    %7888 = vst [vmem:[#allocation9 + $0x30] sm:$0xff] %v7872
    %7889 = vst [vmem:[#allocation9 + $0x38] sm:$0xff] %v7873
    %7890 = vst [vmem:[#allocation9 + $0x40] sm:$0xff] %v7874
    %7891 = vst [vmem:[#allocation9 + $0x48] sm:$0xff] %v7875
    %7892 = vst [vmem:[#allocation9 + $0x50] sm:$0xff] %v7876
    %7893 = vst [vmem:[#allocation9 + $0x58] sm:$0xff] %v7877
    %7894 = vst [vmem:[#allocation9 + $0x60] sm:$0xff] %v7878
    %7895 = vst [vmem:[#allocation9 + $0x68] sm:$0xff] %v7879
    %7896 = vst [vmem:[#allocation9 + $0x70] sm:$0xff] %v7880
    %7897 = vst [vmem:[#allocation9 + $0x78] sm:$0xff] %v7881
    %v7898 = vld [vmem:[#allocation8] sm:$0xff]
    %v7899 = vld [vmem:[#allocation8 + $0x8] sm:$0xff]
    %v7900 = vld [vmem:[#allocation8 + $0x10] sm:$0xff]
    %v7901 = vld [vmem:[#allocation8 + $0x18] sm:$0xff]
    %v7902 = vld [vmem:[#allocation8 + $0x20] sm:$0xff]
    %v7903 = vld [vmem:[#allocation8 + $0x28] sm:$0xff]
    %v7904 = vld [vmem:[#allocation8 + $0x30] sm:$0xff]
    %v7905 = vld [vmem:[#allocation8 + $0x38] sm:$0xff]
    %v7906 = vld [vmem:[#allocation8 + $0x40] sm:$0xff]
    %v7907 = vld [vmem:[#allocation8 + $0x48] sm:$0xff]
    %v7908 = vld [vmem:[#allocation8 + $0x50] sm:$0xff]
    %v7909 = vld [vmem:[#allocation8 + $0x58] sm:$0xff]
    %v7910 = vld [vmem:[#allocation8 + $0x60] sm:$0xff]
    %v7911 = vld [vmem:[#allocation8 + $0x68] sm:$0xff]
    %v7912 = vld [vmem:[#allocation8 + $0x70] sm:$0xff]
    %v7913 = vld [vmem:[#allocation8 + $0x78] sm:$0xff]
    %v7914 = vld [vmem:[#allocation8 + $0x80] sm:$0xff]
    %7932 = vrot.lane.b32.xlu0 %v7898, 127
    %v7933 = vpop.permute.xlu0 %7932
    %7934 = vrot.lane.b32.xlu0 %v7899, 127
    %v7935 = vpop.permute.xlu0 %7934
    %7936 = vrot.lane.b32.xlu0 %v7900, 127
    %v7937 = vpop.permute.xlu0 %7936
    %7938 = vrot.lane.b32.xlu0 %v7901, 127
    %v7939 = vpop.permute.xlu0 %7938
    %7940 = vrot.lane.b32.xlu0 %v7902, 127
    %v7941 = vpop.permute.xlu0 %7940
    %7942 = vrot.lane.b32.xlu0 %v7903, 127
    %v7943 = vpop.permute.xlu0 %7942
    %7944 = vrot.lane.b32.xlu0 %v7904, 127
    %v7945 = vpop.permute.xlu0 %7944
    %7946 = vrot.lane.b32.xlu0 %v7905, 127
    %v7947 = vpop.permute.xlu0 %7946
    %7948 = vrot.lane.b32.xlu0 %v7906, 127
    %v7949 = vpop.permute.xlu0 %7948
    %7950 = vrot.lane.b32.xlu0 %v7907, 127
    %v7951 = vpop.permute.xlu0 %7950
    %7952 = vrot.lane.b32.xlu0 %v7908, 127
    %v7953 = vpop.permute.xlu0 %7952
    %7954 = vrot.lane.b32.xlu0 %v7909, 127
    %v7955 = vpop.permute.xlu0 %7954
    %7956 = vrot.lane.b32.xlu0 %v7910, 127
    %v7957 = vpop.permute.xlu0 %7956
    %7958 = vrot.lane.b32.xlu0 %v7911, 127
    %v7959 = vpop.permute.xlu0 %7958
    %7960 = vrot.lane.b32.xlu0 %v7912, 127
    %v7961 = vpop.permute.xlu0 %7960
    %7962 = vrot.lane.b32.xlu0 %v7913, 127
    %v7963 = vpop.permute.xlu0 %7962
    %7964 = vrot.lane.b32.xlu0 %v7914, 127
    %v7965 = vpop.permute.xlu0 %7964
    %v7966 = vsel %vm348, %v7933, %v7935
    %v7967 = vsel %vm348, %v7935, %v7937
    %v7968 = vsel %vm348, %v7937, %v7939
    %v7969 = vsel %vm348, %v7939, %v7941
    %v7970 = vsel %vm348, %v7941, %v7943
    %v7971 = vsel %vm348, %v7943, %v7945
    %v7972 = vsel %vm348, %v7945, %v7947
    %v7973 = vsel %vm348, %v7947, %v7949
    %v7974 = vsel %vm348, %v7949, %v7951
    %v7975 = vsel %vm348, %v7951, %v7953
    %v7976 = vsel %vm348, %v7953, %v7955
    %v7977 = vsel %vm348, %v7955, %v7957
    %v7978 = vsel %vm348, %v7957, %v7959
    %v7979 = vsel %vm348, %v7959, %v7961
    %v7980 = vsel %vm348, %v7961, %v7963
    %v7981 = vsel %vm348, %v7963, %v7965
    %7998 = vst [vmem:[#allocation9 + $0x80] sm:$0xff] %v7966
    %7999 = vst [vmem:[#allocation9 + $0x88] sm:$0xff] %v7967
    %8000 = vst [vmem:[#allocation9 + $0x90] sm:$0xff] %v7968
    %8001 = vst [vmem:[#allocation9 + $0x98] sm:$0xff] %v7969
    %8002 = vst [vmem:[#allocation9 + $0xa0] sm:$0xff] %v7970
    %8003 = vst [vmem:[#allocation9 + $0xa8] sm:$0xff] %v7971
    %8004 = vst [vmem:[#allocation9 + $0xb0] sm:$0xff] %v7972
    %8005 = vst [vmem:[#allocation9 + $0xb8] sm:$0xff] %v7973
    %8006 = vst [vmem:[#allocation9 + $0xc0] sm:$0xff] %v7974
    %8007 = vst [vmem:[#allocation9 + $0xc8] sm:$0xff] %v7975
    %8008 = vst [vmem:[#allocation9 + $0xd0] sm:$0xff] %v7976
    %8009 = vst [vmem:[#allocation9 + $0xd8] sm:$0xff] %v7977
    %8010 = vst [vmem:[#allocation9 + $0xe0] sm:$0xff] %v7978
    %8011 = vst [vmem:[#allocation9 + $0xe8] sm:$0xff] %v7979
    %8012 = vst [vmem:[#allocation9 + $0xf0] sm:$0xff] %v7980
    %8013 = vst [vmem:[#allocation9 + $0xf8] sm:$0xff] %v7981
    %v8014 = vld [vmem:[#allocation8] sm:$0xff]
    %v8015 = vld [vmem:[#allocation8 + $0x8] sm:$0xff]
    %v8016 = vld [vmem:[#allocation8 + $0x10] sm:$0xff]
    %v8017 = vld [vmem:[#allocation8 + $0x18] sm:$0xff]
    %v8018 = vld [vmem:[#allocation8 + $0x20] sm:$0xff]
    %v8019 = vld [vmem:[#allocation8 + $0x28] sm:$0xff]
    %v8020 = vld [vmem:[#allocation8 + $0x30] sm:$0xff]
    %v8021 = vld [vmem:[#allocation8 + $0x38] sm:$0xff]
    %v8022 = vld [vmem:[#allocation8 + $0x40] sm:$0xff]
    %v8023 = vld [vmem:[#allocation8 + $0x48] sm:$0xff]
    %v8024 = vld [vmem:[#allocation8 + $0x50] sm:$0xff]
    %v8025 = vld [vmem:[#allocation8 + $0x58] sm:$0xff]
    %v8026 = vld [vmem:[#allocation8 + $0x60] sm:$0xff]
    %v8027 = vld [vmem:[#allocation8 + $0x68] sm:$0xff]
    %v8028 = vld [vmem:[#allocation8 + $0x70] sm:$0xff]
    %v8029 = vld [vmem:[#allocation8 + $0x78] sm:$0xff]
    %v8030 = vld [vmem:[#allocation8 + $0x80] sm:$0xff]
    %8048 = vrot.lane.b32.xlu0 %v8014, 126
    %v8049 = vpop.permute.xlu0 %8048
    %8050 = vrot.lane.b32.xlu0 %v8015, 126
    %v8051 = vpop.permute.xlu0 %8050
    %8052 = vrot.lane.b32.xlu0 %v8016, 126
    %v8053 = vpop.permute.xlu0 %8052
    %8054 = vrot.lane.b32.xlu0 %v8017, 126
    %v8055 = vpop.permute.xlu0 %8054
    %8056 = vrot.lane.b32.xlu0 %v8018, 126
    %v8057 = vpop.permute.xlu0 %8056
    %8058 = vrot.lane.b32.xlu0 %v8019, 126
    %v8059 = vpop.permute.xlu0 %8058
    %8060 = vrot.lane.b32.xlu0 %v8020, 126
    %v8061 = vpop.permute.xlu0 %8060
    %8062 = vrot.lane.b32.xlu0 %v8021, 126
    %v8063 = vpop.permute.xlu0 %8062
    %8064 = vrot.lane.b32.xlu0 %v8022, 126
    %v8065 = vpop.permute.xlu0 %8064
    %8066 = vrot.lane.b32.xlu0 %v8023, 126
    %v8067 = vpop.permute.xlu0 %8066
    %8068 = vrot.lane.b32.xlu0 %v8024, 126
    %v8069 = vpop.permute.xlu0 %8068
    %8070 = vrot.lane.b32.xlu0 %v8025, 126
    %v8071 = vpop.permute.xlu0 %8070
    %8072 = vrot.lane.b32.xlu0 %v8026, 126
    %v8073 = vpop.permute.xlu0 %8072
    %8074 = vrot.lane.b32.xlu0 %v8027, 126
    %v8075 = vpop.permute.xlu0 %8074
    %8076 = vrot.lane.b32.xlu0 %v8028, 126
    %v8077 = vpop.permute.xlu0 %8076
    %8078 = vrot.lane.b32.xlu0 %v8029, 126
    %v8079 = vpop.permute.xlu0 %8078
    %8080 = vrot.lane.b32.xlu0 %v8030, 126
    %v8081 = vpop.permute.xlu0 %8080
    %v8082 = vsel %vm360, %v8049, %v8051
    %v8083 = vsel %vm360, %v8051, %v8053
    %v8084 = vsel %vm360, %v8053, %v8055
    %v8085 = vsel %vm360, %v8055, %v8057
    %v8086 = vsel %vm360, %v8057, %v8059
    %v8087 = vsel %vm360, %v8059, %v8061
    %v8088 = vsel %vm360, %v8061, %v8063
    %v8089 = vsel %vm360, %v8063, %v8065
    %v8090 = vsel %vm360, %v8065, %v8067
    %v8091 = vsel %vm360, %v8067, %v8069
    %v8092 = vsel %vm360, %v8069, %v8071
    %v8093 = vsel %vm360, %v8071, %v8073
    %v8094 = vsel %vm360, %v8073, %v8075
    %v8095 = vsel %vm360, %v8075, %v8077
    %v8096 = vsel %vm360, %v8077, %v8079
    %v8097 = vsel %vm360, %v8079, %v8081
    %8114 = vst [vmem:[#allocation9 + $0x100] sm:$0xff] %v8082
    %8115 = vst [vmem:[#allocation9 + $0x108] sm:$0xff] %v8083
    %8116 = vst [vmem:[#allocation9 + $0x110] sm:$0xff] %v8084
    %8117 = vst [vmem:[#allocation9 + $0x118] sm:$0xff] %v8085
    %8118 = vst [vmem:[#allocation9 + $0x120] sm:$0xff] %v8086
    %8119 = vst [vmem:[#allocation9 + $0x128] sm:$0xff] %v8087
    %8120 = vst [vmem:[#allocation9 + $0x130] sm:$0xff] %v8088
    %8121 = vst [vmem:[#allocation9 + $0x138] sm:$0xff] %v8089
    %8122 = vst [vmem:[#allocation9 + $0x140] sm:$0xff] %v8090
    %8123 = vst [vmem:[#allocation9 + $0x148] sm:$0xff] %v8091
    %8124 = vst [vmem:[#allocation9 + $0x150] sm:$0xff] %v8092
    %8125 = vst [vmem:[#allocation9 + $0x158] sm:$0xff] %v8093
    %8126 = vst [vmem:[#allocation9 + $0x160] sm:$0xff] %v8094
    %8127 = vst [vmem:[#allocation9 + $0x168] sm:$0xff] %v8095
    %8128 = vst [vmem:[#allocation9 + $0x170] sm:$0xff] %v8096
    %8129 = vst [vmem:[#allocation9 + $0x178] sm:$0xff] %v8097
    %v8130 = vld [vmem:[#allocation8] sm:$0xff]
    %v8131 = vld [vmem:[#allocation8 + $0x8] sm:$0xff]
    %v8132 = vld [vmem:[#allocation8 + $0x10] sm:$0xff]
    %v8133 = vld [vmem:[#allocation8 + $0x18] sm:$0xff]
    %v8134 = vld [vmem:[#allocation8 + $0x20] sm:$0xff]
    %v8135 = vld [vmem:[#allocation8 + $0x28] sm:$0xff]
    %v8136 = vld [vmem:[#allocation8 + $0x30] sm:$0xff]
    %v8137 = vld [vmem:[#allocation8 + $0x38] sm:$0xff]
    %v8138 = vld [vmem:[#allocation8 + $0x40] sm:$0xff]
    %v8139 = vld [vmem:[#allocation8 + $0x48] sm:$0xff]
    %v8140 = vld [vmem:[#allocation8 + $0x50] sm:$0xff]
    %v8141 = vld [vmem:[#allocation8 + $0x58] sm:$0xff]
    %v8142 = vld [vmem:[#allocation8 + $0x60] sm:$0xff]
    %v8143 = vld [vmem:[#allocation8 + $0x68] sm:$0xff]
    %v8144 = vld [vmem:[#allocation8 + $0x70] sm:$0xff]
    %v8145 = vld [vmem:[#allocation8 + $0x78] sm:$0xff]
    %v8146 = vld [vmem:[#allocation8 + $0x80] sm:$0xff]
    %8164 = vrot.lane.b32.xlu0 %v8130, 125
    %v8165 = vpop.permute.xlu0 %8164
    %8166 = vrot.lane.b32.xlu0 %v8131, 125
    %v8167 = vpop.permute.xlu0 %8166
    %8168 = vrot.lane.b32.xlu0 %v8132, 125
    %v8169 = vpop.permute.xlu0 %8168
    %8170 = vrot.lane.b32.xlu0 %v8133, 125
    %v8171 = vpop.permute.xlu0 %8170
    %8172 = vrot.lane.b32.xlu0 %v8134, 125
    %v8173 = vpop.permute.xlu0 %8172
    %8174 = vrot.lane.b32.xlu0 %v8135, 125
    %v8175 = vpop.permute.xlu0 %8174
    %8176 = vrot.lane.b32.xlu0 %v8136, 125
    %v8177 = vpop.permute.xlu0 %8176
    %8178 = vrot.lane.b32.xlu0 %v8137, 125
    %v8179 = vpop.permute.xlu0 %8178
    %8180 = vrot.lane.b32.xlu0 %v8138, 125
    %v8181 = vpop.permute.xlu0 %8180
    %8182 = vrot.lane.b32.xlu0 %v8139, 125
    %v8183 = vpop.permute.xlu0 %8182
    %8184 = vrot.lane.b32.xlu0 %v8140, 125
    %v8185 = vpop.permute.xlu0 %8184
    %8186 = vrot.lane.b32.xlu0 %v8141, 125
    %v8187 = vpop.permute.xlu0 %8186
    %8188 = vrot.lane.b32.xlu0 %v8142, 125
    %v8189 = vpop.permute.xlu0 %8188
    %8190 = vrot.lane.b32.xlu0 %v8143, 125
    %v8191 = vpop.permute.xlu0 %8190
    %8192 = vrot.lane.b32.xlu0 %v8144, 125
    %v8193 = vpop.permute.xlu0 %8192
    %8194 = vrot.lane.b32.xlu0 %v8145, 125
    %v8195 = vpop.permute.xlu0 %8194
    %8196 = vrot.lane.b32.xlu0 %v8146, 125
    %v8197 = vpop.permute.xlu0 %8196
    %v8198 = vsel %vm1079, %v8165, %v8167
    %v8199 = vsel %vm1079, %v8167, %v8169
    %v8200 = vsel %vm1079, %v8169, %v8171
    %v8201 = vsel %vm1079, %v8171, %v8173
    %v8202 = vsel %vm1079, %v8173, %v8175
    %v8203 = vsel %vm1079, %v8175, %v8177
    %v8204 = vsel %vm1079, %v8177, %v8179
    %v8205 = vsel %vm1079, %v8179, %v8181
    %v8206 = vsel %vm1079, %v8181, %v8183
    %v8207 = vsel %vm1079, %v8183, %v8185
    %v8208 = vsel %vm1079, %v8185, %v8187
    %v8209 = vsel %vm1079, %v8187, %v8189
    %v8210 = vsel %vm1079, %v8189, %v8191
    %v8211 = vsel %vm1079, %v8191, %v8193
    %v8212 = vsel %vm1079, %v8193, %v8195
    %v8213 = vsel %vm1079, %v8195, %v8197
    %8230 = vst [vmem:[#allocation9 + $0x180] sm:$0xff] %v8198
    %8231 = vst [vmem:[#allocation9 + $0x188] sm:$0xff] %v8199
    %8232 = vst [vmem:[#allocation9 + $0x190] sm:$0xff] %v8200
    %8233 = vst [vmem:[#allocation9 + $0x198] sm:$0xff] %v8201
    %8234 = vst [vmem:[#allocation9 + $0x1a0] sm:$0xff] %v8202
    %8235 = vst [vmem:[#allocation9 + $0x1a8] sm:$0xff] %v8203
    %8236 = vst [vmem:[#allocation9 + $0x1b0] sm:$0xff] %v8204
    %8237 = vst [vmem:[#allocation9 + $0x1b8] sm:$0xff] %v8205
    %8238 = vst [vmem:[#allocation9 + $0x1c0] sm:$0xff] %v8206
    %8239 = vst [vmem:[#allocation9 + $0x1c8] sm:$0xff] %v8207
    %8240 = vst [vmem:[#allocation9 + $0x1d0] sm:$0xff] %v8208
    %8241 = vst [vmem:[#allocation9 + $0x1d8] sm:$0xff] %v8209
    %8242 = vst [vmem:[#allocation9 + $0x1e0] sm:$0xff] %v8210
    %8243 = vst [vmem:[#allocation9 + $0x1e8] sm:$0xff] %v8211
    %8244 = vst [vmem:[#allocation9 + $0x1f0] sm:$0xff] %v8212
    %8245 = vst [vmem:[#allocation9 + $0x1f8] sm:$0xff] %v8213
    %v8246 = vld [vmem:[#allocation8] sm:$0xff]
    %v8247 = vld [vmem:[#allocation8 + $0x8] sm:$0xff]
    %v8248 = vld [vmem:[#allocation8 + $0x10] sm:$0xff]
    %v8249 = vld [vmem:[#allocation8 + $0x18] sm:$0xff]
    %v8250 = vld [vmem:[#allocation8 + $0x20] sm:$0xff]
    %v8251 = vld [vmem:[#allocation8 + $0x28] sm:$0xff]
    %v8252 = vld [vmem:[#allocation8 + $0x30] sm:$0xff]
    %v8253 = vld [vmem:[#allocation8 + $0x38] sm:$0xff]
    %v8254 = vld [vmem:[#allocation8 + $0x40] sm:$0xff]
    %v8255 = vld [vmem:[#allocation8 + $0x48] sm:$0xff]
    %v8256 = vld [vmem:[#allocation8 + $0x50] sm:$0xff]
    %v8257 = vld [vmem:[#allocation8 + $0x58] sm:$0xff]
    %v8258 = vld [vmem:[#allocation8 + $0x60] sm:$0xff]
    %v8259 = vld [vmem:[#allocation8 + $0x68] sm:$0xff]
    %v8260 = vld [vmem:[#allocation8 + $0x70] sm:$0xff]
    %v8261 = vld [vmem:[#allocation8 + $0x78] sm:$0xff]
    %v8262 = vld [vmem:[#allocation8 + $0x80] sm:$0xff]
    %8280 = vrot.lane.b32.xlu0 %v8246, 97
    %v8281 = vpop.permute.xlu0 %8280
    %8282 = vrot.lane.b32.xlu0 %v8247, 97
    %v8283 = vpop.permute.xlu0 %8282
    %8284 = vrot.lane.b32.xlu0 %v8248, 97
    %v8285 = vpop.permute.xlu0 %8284
    %8286 = vrot.lane.b32.xlu0 %v8249, 97
    %v8287 = vpop.permute.xlu0 %8286
    %8288 = vrot.lane.b32.xlu0 %v8250, 97
    %v8289 = vpop.permute.xlu0 %8288
    %8290 = vrot.lane.b32.xlu0 %v8251, 97
    %v8291 = vpop.permute.xlu0 %8290
    %8292 = vrot.lane.b32.xlu0 %v8252, 97
    %v8293 = vpop.permute.xlu0 %8292
    %8294 = vrot.lane.b32.xlu0 %v8253, 97
    %v8295 = vpop.permute.xlu0 %8294
    %8296 = vrot.lane.b32.xlu0 %v8254, 97
    %v8297 = vpop.permute.xlu0 %8296
    %8298 = vrot.lane.b32.xlu0 %v8255, 97
    %v8299 = vpop.permute.xlu0 %8298
    %8300 = vrot.lane.b32.xlu0 %v8256, 97
    %v8301 = vpop.permute.xlu0 %8300
    %8302 = vrot.lane.b32.xlu0 %v8257, 97
    %v8303 = vpop.permute.xlu0 %8302
    %8304 = vrot.lane.b32.xlu0 %v8258, 97
    %v8305 = vpop.permute.xlu0 %8304
    %8306 = vrot.lane.b32.xlu0 %v8259, 97
    %v8307 = vpop.permute.xlu0 %8306
    %8308 = vrot.lane.b32.xlu0 %v8260, 97
    %v8309 = vpop.permute.xlu0 %8308
    %8310 = vrot.lane.b32.xlu0 %v8261, 97
    %v8311 = vpop.permute.xlu0 %8310
    %8312 = vrot.lane.b32.xlu0 %v8262, 97
    %v8313 = vpop.permute.xlu0 %8312
    %v8314 = vsel %vm3431, %v8281, %v8283
    %v8315 = vsel %vm3431, %v8283, %v8285
    %v8316 = vsel %vm3431, %v8285, %v8287
    %v8317 = vsel %vm3431, %v8287, %v8289
    %v8318 = vsel %vm3431, %v8289, %v8291
    %v8319 = vsel %vm3431, %v8291, %v8293
    %v8320 = vsel %vm3431, %v8293, %v8295
    %v8321 = vsel %vm3431, %v8295, %v8297
    %v8322 = vsel %vm3431, %v8297, %v8299
    %v8323 = vsel %vm3431, %v8299, %v8301
    %v8324 = vsel %vm3431, %v8301, %v8303
    %v8325 = vsel %vm3431, %v8303, %v8305
    %v8326 = vsel %vm3431, %v8305, %v8307
    %v8327 = vsel %vm3431, %v8307, %v8309
    %v8328 = vsel %vm3431, %v8309, %v8311
    %v8329 = vsel %vm3431, %v8311, %v8313
    %8346 = vst [vmem:[#allocation9 + $0x200] sm:$0xff] %v8314
    %8347 = vst [vmem:[#allocation9 + $0x208] sm:$0xff] %v8315
    %8348 = vst [vmem:[#allocation9 + $0x210] sm:$0xff] %v8316
    %8349 = vst [vmem:[#allocation9 + $0x218] sm:$0xff] %v8317
    %8350 = vst [vmem:[#allocation9 + $0x220] sm:$0xff] %v8318
    %8351 = vst [vmem:[#allocation9 + $0x228] sm:$0xff] %v8319
    %8352 = vst [vmem:[#allocation9 + $0x230] sm:$0xff] %v8320
    %8353 = vst [vmem:[#allocation9 + $0x238] sm:$0xff] %v8321
    %8354 = vst [vmem:[#allocation9 + $0x240] sm:$0xff] %v8322
    %8355 = vst [vmem:[#allocation9 + $0x248] sm:$0xff] %v8323
    %8356 = vst [vmem:[#allocation9 + $0x250] sm:$0xff] %v8324
    %8357 = vst [vmem:[#allocation9 + $0x258] sm:$0xff] %v8325
    %8358 = vst [vmem:[#allocation9 + $0x260] sm:$0xff] %v8326
    %8359 = vst [vmem:[#allocation9 + $0x268] sm:$0xff] %v8327
    %8360 = vst [vmem:[#allocation9 + $0x270] sm:$0xff] %v8328
    %8361 = vst [vmem:[#allocation9 + $0x278] sm:$0xff] %v8329
    %v8362 = vld [vmem:[#allocation8] sm:$0xff]
    %v8363 = vld [vmem:[#allocation8 + $0x8] sm:$0xff]
    %v8364 = vld [vmem:[#allocation8 + $0x10] sm:$0xff]
    %v8365 = vld [vmem:[#allocation8 + $0x18] sm:$0xff]
    %v8366 = vld [vmem:[#allocation8 + $0x20] sm:$0xff]
    %v8367 = vld [vmem:[#allocation8 + $0x28] sm:$0xff]
    %v8368 = vld [vmem:[#allocation8 + $0x30] sm:$0xff]
    %v8369 = vld [vmem:[#allocation8 + $0x38] sm:$0xff]
    %v8370 = vld [vmem:[#allocation8 + $0x40] sm:$0xff]
    %v8371 = vld [vmem:[#allocation8 + $0x48] sm:$0xff]
    %v8372 = vld [vmem:[#allocation8 + $0x50] sm:$0xff]
    %v8373 = vld [vmem:[#allocation8 + $0x58] sm:$0xff]
    %v8374 = vld [vmem:[#allocation8 + $0x60] sm:$0xff]
    %v8375 = vld [vmem:[#allocation8 + $0x68] sm:$0xff]
    %v8376 = vld [vmem:[#allocation8 + $0x70] sm:$0xff]
    %v8377 = vld [vmem:[#allocation8 + $0x78] sm:$0xff]
    %v8378 = vld [vmem:[#allocation8 + $0x80] sm:$0xff]
    %8396 = vrot.lane.b32.xlu0 %v8362, 96
    %v8397 = vpop.permute.xlu0 %8396
    %8398 = vrot.lane.b32.xlu0 %v8363, 96
    %v8399 = vpop.permute.xlu0 %8398
    %8400 = vrot.lane.b32.xlu0 %v8364, 96
    %v8401 = vpop.permute.xlu0 %8400
    %8402 = vrot.lane.b32.xlu0 %v8365, 96
    %v8403 = vpop.permute.xlu0 %8402
    %8404 = vrot.lane.b32.xlu0 %v8366, 96
    %v8405 = vpop.permute.xlu0 %8404
    %8406 = vrot.lane.b32.xlu0 %v8367, 96
    %v8407 = vpop.permute.xlu0 %8406
    %8408 = vrot.lane.b32.xlu0 %v8368, 96
    %v8409 = vpop.permute.xlu0 %8408
    %8410 = vrot.lane.b32.xlu0 %v8369, 96
    %v8411 = vpop.permute.xlu0 %8410
    %8412 = vrot.lane.b32.xlu0 %v8370, 96
    %v8413 = vpop.permute.xlu0 %8412
    %8414 = vrot.lane.b32.xlu0 %v8371, 96
    %v8415 = vpop.permute.xlu0 %8414
    %8416 = vrot.lane.b32.xlu0 %v8372, 96
    %v8417 = vpop.permute.xlu0 %8416
    %8418 = vrot.lane.b32.xlu0 %v8373, 96
    %v8419 = vpop.permute.xlu0 %8418
    %8420 = vrot.lane.b32.xlu0 %v8374, 96
    %v8421 = vpop.permute.xlu0 %8420
    %8422 = vrot.lane.b32.xlu0 %v8375, 96
    %v8423 = vpop.permute.xlu0 %8422
    %8424 = vrot.lane.b32.xlu0 %v8376, 96
    %v8425 = vpop.permute.xlu0 %8424
    %8426 = vrot.lane.b32.xlu0 %v8377, 96
    %v8427 = vpop.permute.xlu0 %8426
    %8428 = vrot.lane.b32.xlu0 %v8378, 96
    %v8429 = vpop.permute.xlu0 %8428
    %v8430 = vsel %vm3496, %v8397, %v8399
    %v8431 = vsel %vm3496, %v8399, %v8401
    %v8432 = vsel %vm3496, %v8401, %v8403
    %v8433 = vsel %vm3496, %v8403, %v8405
    %v8434 = vsel %vm3496, %v8405, %v8407
    %v8435 = vsel %vm3496, %v8407, %v8409
    %v8436 = vsel %vm3496, %v8409, %v8411
    %v8437 = vsel %vm3496, %v8411, %v8413
    %v8438 = vsel %vm3496, %v8413, %v8415
    %v8439 = vsel %vm3496, %v8415, %v8417
    %v8440 = vsel %vm3496, %v8417, %v8419
    %v8441 = vsel %vm3496, %v8419, %v8421
    %v8442 = vsel %vm3496, %v8421, %v8423
    %v8443 = vsel %vm3496, %v8423, %v8425
    %v8444 = vsel %vm3496, %v8425, %v8427
    %v8445 = vsel %vm3496, %v8427, %v8429
    %8462 = vst [vmem:[#allocation9 + $0x280] sm:$0xff] %v8430
    %8463 = vst [vmem:[#allocation9 + $0x288] sm:$0xff] %v8431
    %8464 = vst [vmem:[#allocation9 + $0x290] sm:$0xff] %v8432
    %8465 = vst [vmem:[#allocation9 + $0x298] sm:$0xff] %v8433
    %8466 = vst [vmem:[#allocation9 + $0x2a0] sm:$0xff] %v8434
    %8467 = vst [vmem:[#allocation9 + $0x2a8] sm:$0xff] %v8435
    %8468 = vst [vmem:[#allocation9 + $0x2b0] sm:$0xff] %v8436
    %8469 = vst [vmem:[#allocation9 + $0x2b8] sm:$0xff] %v8437
    %8470 = vst [vmem:[#allocation9 + $0x2c0] sm:$0xff] %v8438
    %8471 = vst [vmem:[#allocation9 + $0x2c8] sm:$0xff] %v8439
    %8472 = vst [vmem:[#allocation9 + $0x2d0] sm:$0xff] %v8440
    %8473 = vst [vmem:[#allocation9 + $0x2d8] sm:$0xff] %v8441
    %8474 = vst [vmem:[#allocation9 + $0x2e0] sm:$0xff] %v8442
    %8475 = vst [vmem:[#allocation9 + $0x2e8] sm:$0xff] %v8443
    %8476 = vst [vmem:[#allocation9 + $0x2f0] sm:$0xff] %v8444
    %8477 = vst [vmem:[#allocation9 + $0x2f8] sm:$0xff] %v8445
    %v8478 = vld [vmem:[#allocation8] sm:$0xff]
    %v8479 = vld [vmem:[#allocation8 + $0x8] sm:$0xff]
    %v8480 = vld [vmem:[#allocation8 + $0x10] sm:$0xff]
    %v8481 = vld [vmem:[#allocation8 + $0x18] sm:$0xff]
    %v8482 = vld [vmem:[#allocation8 + $0x20] sm:$0xff]
    %v8483 = vld [vmem:[#allocation8 + $0x28] sm:$0xff]
    %v8484 = vld [vmem:[#allocation8 + $0x30] sm:$0xff]
    %v8485 = vld [vmem:[#allocation8 + $0x38] sm:$0xff]
    %v8486 = vld [vmem:[#allocation8 + $0x40] sm:$0xff]
    %v8487 = vld [vmem:[#allocation8 + $0x48] sm:$0xff]
    %v8488 = vld [vmem:[#allocation8 + $0x50] sm:$0xff]
    %v8489 = vld [vmem:[#allocation8 + $0x58] sm:$0xff]
    %v8490 = vld [vmem:[#allocation8 + $0x60] sm:$0xff]
    %v8491 = vld [vmem:[#allocation8 + $0x68] sm:$0xff]
    %v8492 = vld [vmem:[#allocation8 + $0x70] sm:$0xff]
    %v8493 = vld [vmem:[#allocation8 + $0x78] sm:$0xff]
    %v8494 = vld [vmem:[#allocation8 + $0x80] sm:$0xff]
    %8512 = vrot.lane.b32.xlu0 %v8478, 95
    %v8513 = vpop.permute.xlu0 %8512
    %8514 = vrot.lane.b32.xlu0 %v8479, 95
    %v8515 = vpop.permute.xlu0 %8514
    %8516 = vrot.lane.b32.xlu0 %v8480, 95
    %v8517 = vpop.permute.xlu0 %8516
    %8518 = vrot.lane.b32.xlu0 %v8481, 95
    %v8519 = vpop.permute.xlu0 %8518
    %8520 = vrot.lane.b32.xlu0 %v8482, 95
    %v8521 = vpop.permute.xlu0 %8520
    %8522 = vrot.lane.b32.xlu0 %v8483, 95
    %v8523 = vpop.permute.xlu0 %8522
    %8524 = vrot.lane.b32.xlu0 %v8484, 95
    %v8525 = vpop.permute.xlu0 %8524
    %8526 = vrot.lane.b32.xlu0 %v8485, 95
    %v8527 = vpop.permute.xlu0 %8526
    %8528 = vrot.lane.b32.xlu0 %v8486, 95
    %v8529 = vpop.permute.xlu0 %8528
    %8530 = vrot.lane.b32.xlu0 %v8487, 95
    %v8531 = vpop.permute.xlu0 %8530
    %8532 = vrot.lane.b32.xlu0 %v8488, 95
    %v8533 = vpop.permute.xlu0 %8532
    %8534 = vrot.lane.b32.xlu0 %v8489, 95
    %v8535 = vpop.permute.xlu0 %8534
    %8536 = vrot.lane.b32.xlu0 %v8490, 95
    %v8537 = vpop.permute.xlu0 %8536
    %8538 = vrot.lane.b32.xlu0 %v8491, 95
    %v8539 = vpop.permute.xlu0 %8538
    %8540 = vrot.lane.b32.xlu0 %v8492, 95
    %v8541 = vpop.permute.xlu0 %8540
    %8542 = vrot.lane.b32.xlu0 %v8493, 95
    %v8543 = vpop.permute.xlu0 %8542
    %8544 = vrot.lane.b32.xlu0 %v8494, 95
    %v8545 = vpop.permute.xlu0 %8544
    %vm8546 = vcmask 777216
    %v8547 = vsel %vm8546, %v8513, %v8515
    %v8548 = vsel %vm8546, %v8515, %v8517
    %v8549 = vsel %vm8546, %v8517, %v8519
    %v8550 = vsel %vm8546, %v8519, %v8521
    %v8551 = vsel %vm8546, %v8521, %v8523
    %v8552 = vsel %vm8546, %v8523, %v8525
    %v8553 = vsel %vm8546, %v8525, %v8527
    %v8554 = vsel %vm8546, %v8527, %v8529
    %v8555 = vsel %vm8546, %v8529, %v8531
    %v8556 = vsel %vm8546, %v8531, %v8533
    %v8557 = vsel %vm8546, %v8533, %v8535
    %v8558 = vsel %vm8546, %v8535, %v8537
    %v8559 = vsel %vm8546, %v8537, %v8539
    %v8560 = vsel %vm8546, %v8539, %v8541
    %v8561 = vsel %vm8546, %v8541, %v8543
    %v8562 = vsel %vm8546, %v8543, %v8545
    %8579 = vst [vmem:[#allocation9 + $0x300] sm:$0xff] %v8547
    %8580 = vst [vmem:[#allocation9 + $0x308] sm:$0xff] %v8548
    %8581 = vst [vmem:[#allocation9 + $0x310] sm:$0xff] %v8549
    %8582 = vst [vmem:[#allocation9 + $0x318] sm:$0xff] %v8550
    %8583 = vst [vmem:[#allocation9 + $0x320] sm:$0xff] %v8551
    %8584 = vst [vmem:[#allocation9 + $0x328] sm:$0xff] %v8552
    %8585 = vst [vmem:[#allocation9 + $0x330] sm:$0xff] %v8553
    %8586 = vst [vmem:[#allocation9 + $0x338] sm:$0xff] %v8554
    %8587 = vst [vmem:[#allocation9 + $0x340] sm:$0xff] %v8555
    %8588 = vst [vmem:[#allocation9 + $0x348] sm:$0xff] %v8556
    %8589 = vst [vmem:[#allocation9 + $0x350] sm:$0xff] %v8557
    %8590 = vst [vmem:[#allocation9 + $0x358] sm:$0xff] %v8558
    %8591 = vst [vmem:[#allocation9 + $0x360] sm:$0xff] %v8559
    %8592 = vst [vmem:[#allocation9 + $0x368] sm:$0xff] %v8560
    %8593 = vst [vmem:[#allocation9 + $0x370] sm:$0xff] %v8561
    %8594 = vst [vmem:[#allocation9 + $0x378] sm:$0xff] %v8562
    %v8595 = vld [vmem:[#allocation8] sm:$0xff]
    %v8596 = vld [vmem:[#allocation8 + $0x8] sm:$0xff]
    %v8597 = vld [vmem:[#allocation8 + $0x10] sm:$0xff]
    %v8598 = vld [vmem:[#allocation8 + $0x18] sm:$0xff]
    %v8599 = vld [vmem:[#allocation8 + $0x20] sm:$0xff]
    %v8600 = vld [vmem:[#allocation8 + $0x28] sm:$0xff]
    %v8601 = vld [vmem:[#allocation8 + $0x30] sm:$0xff]
    %v8602 = vld [vmem:[#allocation8 + $0x38] sm:$0xff]
    %v8603 = vld [vmem:[#allocation8 + $0x40] sm:$0xff]
    %v8604 = vld [vmem:[#allocation8 + $0x48] sm:$0xff]
    %v8605 = vld [vmem:[#allocation8 + $0x50] sm:$0xff]
    %v8606 = vld [vmem:[#allocation8 + $0x58] sm:$0xff]
    %v8607 = vld [vmem:[#allocation8 + $0x60] sm:$0xff]
    %v8608 = vld [vmem:[#allocation8 + $0x68] sm:$0xff]
    %v8609 = vld [vmem:[#allocation8 + $0x70] sm:$0xff]
    %v8610 = vld [vmem:[#allocation8 + $0x78] sm:$0xff]
    %v8611 = vld [vmem:[#allocation8 + $0x80] sm:$0xff]
    %8629 = vrot.lane.b32.xlu0 %v8595, 94
    %v8630 = vpop.permute.xlu0 %8629
    %8631 = vrot.lane.b32.xlu0 %v8596, 94
    %v8632 = vpop.permute.xlu0 %8631
    %8633 = vrot.lane.b32.xlu0 %v8597, 94
    %v8634 = vpop.permute.xlu0 %8633
    %8635 = vrot.lane.b32.xlu0 %v8598, 94
    %v8636 = vpop.permute.xlu0 %8635
    %8637 = vrot.lane.b32.xlu0 %v8599, 94
    %v8638 = vpop.permute.xlu0 %8637
    %8639 = vrot.lane.b32.xlu0 %v8600, 94
    %v8640 = vpop.permute.xlu0 %8639
    %8641 = vrot.lane.b32.xlu0 %v8601, 94
    %v8642 = vpop.permute.xlu0 %8641
    %8643 = vrot.lane.b32.xlu0 %v8602, 94
    %v8644 = vpop.permute.xlu0 %8643
    %8645 = vrot.lane.b32.xlu0 %v8603, 94
    %v8646 = vpop.permute.xlu0 %8645
    %8647 = vrot.lane.b32.xlu0 %v8604, 94
    %v8648 = vpop.permute.xlu0 %8647
    %8649 = vrot.lane.b32.xlu0 %v8605, 94
    %v8650 = vpop.permute.xlu0 %8649
    %8651 = vrot.lane.b32.xlu0 %v8606, 94
    %v8652 = vpop.permute.xlu0 %8651
    %8653 = vrot.lane.b32.xlu0 %v8607, 94
    %v8654 = vpop.permute.xlu0 %8653
    %8655 = vrot.lane.b32.xlu0 %v8608, 94
    %v8656 = vpop.permute.xlu0 %8655
    %8657 = vrot.lane.b32.xlu0 %v8609, 94
    %v8658 = vpop.permute.xlu0 %8657
    %8659 = vrot.lane.b32.xlu0 %v8610, 94
    %v8660 = vpop.permute.xlu0 %8659
    %8661 = vrot.lane.b32.xlu0 %v8611, 94
    %v8662 = vpop.permute.xlu0 %8661
    %vm8663 = vcmask 769024
    %v8664 = vsel %vm8663, %v8630, %v8632
    %v8665 = vsel %vm8663, %v8632, %v8634
    %v8666 = vsel %vm8663, %v8634, %v8636
    %v8667 = vsel %vm8663, %v8636, %v8638
    %v8668 = vsel %vm8663, %v8638, %v8640
    %v8669 = vsel %vm8663, %v8640, %v8642
    %v8670 = vsel %vm8663, %v8642, %v8644
    %v8671 = vsel %vm8663, %v8644, %v8646
    %v8672 = vsel %vm8663, %v8646, %v8648
    %v8673 = vsel %vm8663, %v8648, %v8650
    %v8674 = vsel %vm8663, %v8650, %v8652
    %v8675 = vsel %vm8663, %v8652, %v8654
    %v8676 = vsel %vm8663, %v8654, %v8656
    %v8677 = vsel %vm8663, %v8656, %v8658
    %v8678 = vsel %vm8663, %v8658, %v8660
    %v8679 = vsel %vm8663, %v8660, %v8662
    %8696 = vst [vmem:[#allocation9 + $0x380] sm:$0xff] %v8664
    %8697 = vst [vmem:[#allocation9 + $0x388] sm:$0xff] %v8665
    %8698 = vst [vmem:[#allocation9 + $0x390] sm:$0xff] %v8666
    %8699 = vst [vmem:[#allocation9 + $0x398] sm:$0xff] %v8667
    %8700 = vst [vmem:[#allocation9 + $0x3a0] sm:$0xff] %v8668
    %8701 = vst [vmem:[#allocation9 + $0x3a8] sm:$0xff] %v8669
    %8702 = vst [vmem:[#allocation9 + $0x3b0] sm:$0xff] %v8670
    %8703 = vst [vmem:[#allocation9 + $0x3b8] sm:$0xff] %v8671
    %8704 = vst [vmem:[#allocation9 + $0x3c0] sm:$0xff] %v8672
    %8705 = vst [vmem:[#allocation9 + $0x3c8] sm:$0xff] %v8673
    %8706 = vst [vmem:[#allocation9 + $0x3d0] sm:$0xff] %v8674
    %8707 = vst [vmem:[#allocation9 + $0x3d8] sm:$0xff] %v8675
    %8708 = vst [vmem:[#allocation9 + $0x3e0] sm:$0xff] %v8676
    %8709 = vst [vmem:[#allocation9 + $0x3e8] sm:$0xff] %v8677
    %8710 = vst [vmem:[#allocation9 + $0x3f0] sm:$0xff] %v8678
    %8711 = vst [vmem:[#allocation9 + $0x3f8] sm:$0xff] %v8679
    %v8712 = vld [vmem:[#allocation8] sm:$0xff]
    %v8713 = vld [vmem:[#allocation8 + $0x8] sm:$0xff]
    %v8714 = vld [vmem:[#allocation8 + $0x10] sm:$0xff]
    %v8715 = vld [vmem:[#allocation8 + $0x18] sm:$0xff]
    %v8716 = vld [vmem:[#allocation8 + $0x20] sm:$0xff]
    %v8717 = vld [vmem:[#allocation8 + $0x28] sm:$0xff]
    %v8718 = vld [vmem:[#allocation8 + $0x30] sm:$0xff]
    %v8719 = vld [vmem:[#allocation8 + $0x38] sm:$0xff]
    %v8720 = vld [vmem:[#allocation8 + $0x40] sm:$0xff]
    %v8721 = vld [vmem:[#allocation8 + $0x48] sm:$0xff]
    %v8722 = vld [vmem:[#allocation8 + $0x50] sm:$0xff]
    %v8723 = vld [vmem:[#allocation8 + $0x58] sm:$0xff]
    %v8724 = vld [vmem:[#allocation8 + $0x60] sm:$0xff]
    %v8725 = vld [vmem:[#allocation8 + $0x68] sm:$0xff]
    %v8726 = vld [vmem:[#allocation8 + $0x70] sm:$0xff]
    %v8727 = vld [vmem:[#allocation8 + $0x78] sm:$0xff]
    %v8728 = vld [vmem:[#allocation8 + $0x80] sm:$0xff]
    %8746 = vrot.lane.b32.xlu0 %v8712, 66
    %v8747 = vpop.permute.xlu0 %8746
    %8748 = vrot.lane.b32.xlu0 %v8713, 66
    %v8749 = vpop.permute.xlu0 %8748
    %8750 = vrot.lane.b32.xlu0 %v8714, 66
    %v8751 = vpop.permute.xlu0 %8750
    %8752 = vrot.lane.b32.xlu0 %v8715, 66
    %v8753 = vpop.permute.xlu0 %8752
    %8754 = vrot.lane.b32.xlu0 %v8716, 66
    %v8755 = vpop.permute.xlu0 %8754
    %8756 = vrot.lane.b32.xlu0 %v8717, 66
    %v8757 = vpop.permute.xlu0 %8756
    %8758 = vrot.lane.b32.xlu0 %v8718, 66
    %v8759 = vpop.permute.xlu0 %8758
    %8760 = vrot.lane.b32.xlu0 %v8719, 66
    %v8761 = vpop.permute.xlu0 %8760
    %8762 = vrot.lane.b32.xlu0 %v8720, 66
    %v8763 = vpop.permute.xlu0 %8762
    %8764 = vrot.lane.b32.xlu0 %v8721, 66
    %v8765 = vpop.permute.xlu0 %8764
    %8766 = vrot.lane.b32.xlu0 %v8722, 66
    %v8767 = vpop.permute.xlu0 %8766
    %8768 = vrot.lane.b32.xlu0 %v8723, 66
    %v8769 = vpop.permute.xlu0 %8768
    %8770 = vrot.lane.b32.xlu0 %v8724, 66
    %v8771 = vpop.permute.xlu0 %8770
    %8772 = vrot.lane.b32.xlu0 %v8725, 66
    %v8773 = vpop.permute.xlu0 %8772
    %8774 = vrot.lane.b32.xlu0 %v8726, 66
    %v8775 = vpop.permute.xlu0 %8774
    %8776 = vrot.lane.b32.xlu0 %v8727, 66
    %v8777 = vpop.permute.xlu0 %8776
    %8778 = vrot.lane.b32.xlu0 %v8728, 66
    %v8779 = vpop.permute.xlu0 %8778
    %vm8780 = vcmask 539648
    %v8781 = vsel %vm8780, %v8747, %v8749
    %v8782 = vsel %vm8780, %v8749, %v8751
    %v8783 = vsel %vm8780, %v8751, %v8753
    %v8784 = vsel %vm8780, %v8753, %v8755
    %v8785 = vsel %vm8780, %v8755, %v8757
    %v8786 = vsel %vm8780, %v8757, %v8759
    %v8787 = vsel %vm8780, %v8759, %v8761
    %v8788 = vsel %vm8780, %v8761, %v8763
    %v8789 = vsel %vm8780, %v8763, %v8765
    %v8790 = vsel %vm8780, %v8765, %v8767
    %v8791 = vsel %vm8780, %v8767, %v8769
    %v8792 = vsel %vm8780, %v8769, %v8771
    %v8793 = vsel %vm8780, %v8771, %v8773
    %v8794 = vsel %vm8780, %v8773, %v8775
    %v8795 = vsel %vm8780, %v8775, %v8777
    %v8796 = vsel %vm8780, %v8777, %v8779
    %8813 = vst [vmem:[#allocation9 + $0x400] sm:$0xff] %v8781
    %8814 = vst [vmem:[#allocation9 + $0x408] sm:$0xff] %v8782
    %8815 = vst [vmem:[#allocation9 + $0x410] sm:$0xff] %v8783
    %8816 = vst [vmem:[#allocation9 + $0x418] sm:$0xff] %v8784
    %8817 = vst [vmem:[#allocation9 + $0x420] sm:$0xff] %v8785
    %8818 = vst [vmem:[#allocation9 + $0x428] sm:$0xff] %v8786
    %8819 = vst [vmem:[#allocation9 + $0x430] sm:$0xff] %v8787
    %8820 = vst [vmem:[#allocation9 + $0x438] sm:$0xff] %v8788
    %8821 = vst [vmem:[#allocation9 + $0x440] sm:$0xff] %v8789
    %8822 = vst [vmem:[#allocation9 + $0x448] sm:$0xff] %v8790
    %8823 = vst [vmem:[#allocation9 + $0x450] sm:$0xff] %v8791
    %8824 = vst [vmem:[#allocation9 + $0x458] sm:$0xff] %v8792
    %8825 = vst [vmem:[#allocation9 + $0x460] sm:$0xff] %v8793
    %8826 = vst [vmem:[#allocation9 + $0x468] sm:$0xff] %v8794
    %8827 = vst [vmem:[#allocation9 + $0x470] sm:$0xff] %v8795
    %8828 = vst [vmem:[#allocation9 + $0x478] sm:$0xff] %v8796
    %v8829 = vld [vmem:[#allocation8] sm:$0xff]
    %v8830 = vld [vmem:[#allocation8 + $0x8] sm:$0xff]
    %v8831 = vld [vmem:[#allocation8 + $0x10] sm:$0xff]
    %v8832 = vld [vmem:[#allocation8 + $0x18] sm:$0xff]
    %v8833 = vld [vmem:[#allocation8 + $0x20] sm:$0xff]
    %v8834 = vld [vmem:[#allocation8 + $0x28] sm:$0xff]
    %v8835 = vld [vmem:[#allocation8 + $0x30] sm:$0xff]
    %v8836 = vld [vmem:[#allocation8 + $0x38] sm:$0xff]
    %v8837 = vld [vmem:[#allocation8 + $0x40] sm:$0xff]
    %v8838 = vld [vmem:[#allocation8 + $0x48] sm:$0xff]
    %v8839 = vld [vmem:[#allocation8 + $0x50] sm:$0xff]
    %v8840 = vld [vmem:[#allocation8 + $0x58] sm:$0xff]
    %v8841 = vld [vmem:[#allocation8 + $0x60] sm:$0xff]
    %v8842 = vld [vmem:[#allocation8 + $0x68] sm:$0xff]
    %v8843 = vld [vmem:[#allocation8 + $0x70] sm:$0xff]
    %v8844 = vld [vmem:[#allocation8 + $0x78] sm:$0xff]
    %v8845 = vld [vmem:[#allocation8 + $0x80] sm:$0xff]
    %8863 = vrot.lane.b32.xlu0 %v8829, 65
    %v8864 = vpop.permute.xlu0 %8863
    %8865 = vrot.lane.b32.xlu0 %v8830, 65
    %v8866 = vpop.permute.xlu0 %8865
    %8867 = vrot.lane.b32.xlu0 %v8831, 65
    %v8868 = vpop.permute.xlu0 %8867
    %8869 = vrot.lane.b32.xlu0 %v8832, 65
    %v8870 = vpop.permute.xlu0 %8869
    %8871 = vrot.lane.b32.xlu0 %v8833, 65
    %v8872 = vpop.permute.xlu0 %8871
    %8873 = vrot.lane.b32.xlu0 %v8834, 65
    %v8874 = vpop.permute.xlu0 %8873
    %8875 = vrot.lane.b32.xlu0 %v8835, 65
    %v8876 = vpop.permute.xlu0 %8875
    %8877 = vrot.lane.b32.xlu0 %v8836, 65
    %v8878 = vpop.permute.xlu0 %8877
    %8879 = vrot.lane.b32.xlu0 %v8837, 65
    %v8880 = vpop.permute.xlu0 %8879
    %8881 = vrot.lane.b32.xlu0 %v8838, 65
    %v8882 = vpop.permute.xlu0 %8881
    %8883 = vrot.lane.b32.xlu0 %v8839, 65
    %v8884 = vpop.permute.xlu0 %8883
    %8885 = vrot.lane.b32.xlu0 %v8840, 65
    %v8886 = vpop.permute.xlu0 %8885
    %8887 = vrot.lane.b32.xlu0 %v8841, 65
    %v8888 = vpop.permute.xlu0 %8887
    %8889 = vrot.lane.b32.xlu0 %v8842, 65
    %v8890 = vpop.permute.xlu0 %8889
    %8891 = vrot.lane.b32.xlu0 %v8843, 65
    %v8892 = vpop.permute.xlu0 %8891
    %8893 = vrot.lane.b32.xlu0 %v8844, 65
    %v8894 = vpop.permute.xlu0 %8893
    %8895 = vrot.lane.b32.xlu0 %v8845, 65
    %v8896 = vpop.permute.xlu0 %8895
    %vm8897 = vcmask 531456
    %v8898 = vsel %vm8897, %v8864, %v8866
    %v8899 = vsel %vm8897, %v8866, %v8868
    %v8900 = vsel %vm8897, %v8868, %v8870
    %v8901 = vsel %vm8897, %v8870, %v8872
    %v8902 = vsel %vm8897, %v8872, %v8874
    %v8903 = vsel %vm8897, %v8874, %v8876
    %v8904 = vsel %vm8897, %v8876, %v8878
    %v8905 = vsel %vm8897, %v8878, %v8880
    %v8906 = vsel %vm8897, %v8880, %v8882
    %v8907 = vsel %vm8897, %v8882, %v8884
    %v8908 = vsel %vm8897, %v8884, %v8886
    %v8909 = vsel %vm8897, %v8886, %v8888
    %v8910 = vsel %vm8897, %v8888, %v8890
    %v8911 = vsel %vm8897, %v8890, %v8892
    %v8912 = vsel %vm8897, %v8892, %v8894
    %v8913 = vsel %vm8897, %v8894, %v8896
    %8930 = vst [vmem:[#allocation9 + $0x480] sm:$0xff] %v8898
    %8931 = vst [vmem:[#allocation9 + $0x488] sm:$0xff] %v8899
    %8932 = vst [vmem:[#allocation9 + $0x490] sm:$0xff] %v8900
    %8933 = vst [vmem:[#allocation9 + $0x498] sm:$0xff] %v8901
    %8934 = vst [vmem:[#allocation9 + $0x4a0] sm:$0xff] %v8902
    %8935 = vst [vmem:[#allocation9 + $0x4a8] sm:$0xff] %v8903
    %8936 = vst [vmem:[#allocation9 + $0x4b0] sm:$0xff] %v8904
    %8937 = vst [vmem:[#allocation9 + $0x4b8] sm:$0xff] %v8905
    %8938 = vst [vmem:[#allocation9 + $0x4c0] sm:$0xff] %v8906
    %8939 = vst [vmem:[#allocation9 + $0x4c8] sm:$0xff] %v8907
    %8940 = vst [vmem:[#allocation9 + $0x4d0] sm:$0xff] %v8908
    %8941 = vst [vmem:[#allocation9 + $0x4d8] sm:$0xff] %v8909
    %8942 = vst [vmem:[#allocation9 + $0x4e0] sm:$0xff] %v8910
    %8943 = vst [vmem:[#allocation9 + $0x4e8] sm:$0xff] %v8911
    %8944 = vst [vmem:[#allocation9 + $0x4f0] sm:$0xff] %v8912
    %8945 = vst [vmem:[#allocation9 + $0x4f8] sm:$0xff] %v8913
    %v8946 = vld [vmem:[#allocation8] sm:$0xff]
    %v8947 = vld [vmem:[#allocation8 + $0x8] sm:$0xff]
    %v8948 = vld [vmem:[#allocation8 + $0x10] sm:$0xff]
    %v8949 = vld [vmem:[#allocation8 + $0x18] sm:$0xff]
    %v8950 = vld [vmem:[#allocation8 + $0x20] sm:$0xff]
    %v8951 = vld [vmem:[#allocation8 + $0x28] sm:$0xff]
    %v8952 = vld [vmem:[#allocation8 + $0x30] sm:$0xff]
    %v8953 = vld [vmem:[#allocation8 + $0x38] sm:$0xff]
    %v8954 = vld [vmem:[#allocation8 + $0x40] sm:$0xff]
    %v8955 = vld [vmem:[#allocation8 + $0x48] sm:$0xff]
    %v8956 = vld [vmem:[#allocation8 + $0x50] sm:$0xff]
    %v8957 = vld [vmem:[#allocation8 + $0x58] sm:$0xff]
    %v8958 = vld [vmem:[#allocation8 + $0x60] sm:$0xff]
    %v8959 = vld [vmem:[#allocation8 + $0x68] sm:$0xff]
    %v8960 = vld [vmem:[#allocation8 + $0x70] sm:$0xff]
    %v8961 = vld [vmem:[#allocation8 + $0x78] sm:$0xff]
    %v8962 = vld [vmem:[#allocation8 + $0x80] sm:$0xff]
    %8980 = vrot.lane.b32.xlu0 %v8946, 64
    %v8981 = vpop.permute.xlu0 %8980
    %8982 = vrot.lane.b32.xlu0 %v8947, 64
    %v8983 = vpop.permute.xlu0 %8982
    %8984 = vrot.lane.b32.xlu0 %v8948, 64
    %v8985 = vpop.permute.xlu0 %8984
    %8986 = vrot.lane.b32.xlu0 %v8949, 64
    %v8987 = vpop.permute.xlu0 %8986
    %8988 = vrot.lane.b32.xlu0 %v8950, 64
    %v8989 = vpop.permute.xlu0 %8988
    %8990 = vrot.lane.b32.xlu0 %v8951, 64
    %v8991 = vpop.permute.xlu0 %8990
    %8992 = vrot.lane.b32.xlu0 %v8952, 64
    %v8993 = vpop.permute.xlu0 %8992
    %8994 = vrot.lane.b32.xlu0 %v8953, 64
    %v8995 = vpop.permute.xlu0 %8994
    %8996 = vrot.lane.b32.xlu0 %v8954, 64
    %v8997 = vpop.permute.xlu0 %8996
    %8998 = vrot.lane.b32.xlu0 %v8955, 64
    %v8999 = vpop.permute.xlu0 %8998
    %9000 = vrot.lane.b32.xlu0 %v8956, 64
    %v9001 = vpop.permute.xlu0 %9000
    %9002 = vrot.lane.b32.xlu0 %v8957, 64
    %v9003 = vpop.permute.xlu0 %9002
    %9004 = vrot.lane.b32.xlu0 %v8958, 64
    %v9005 = vpop.permute.xlu0 %9004
    %9006 = vrot.lane.b32.xlu0 %v8959, 64
    %v9007 = vpop.permute.xlu0 %9006
    %9008 = vrot.lane.b32.xlu0 %v8960, 64
    %v9009 = vpop.permute.xlu0 %9008
    %9010 = vrot.lane.b32.xlu0 %v8961, 64
    %v9011 = vpop.permute.xlu0 %9010
    %9012 = vrot.lane.b32.xlu0 %v8962, 64
    %v9013 = vpop.permute.xlu0 %9012
    %vm9014 = vcmask 523264
    %v9015 = vsel %vm9014, %v8981, %v8983
    %v9016 = vsel %vm9014, %v8983, %v8985
    %v9017 = vsel %vm9014, %v8985, %v8987
    %v9018 = vsel %vm9014, %v8987, %v8989
    %v9019 = vsel %vm9014, %v8989, %v8991
    %v9020 = vsel %vm9014, %v8991, %v8993
    %v9021 = vsel %vm9014, %v8993, %v8995
    %v9022 = vsel %vm9014, %v8995, %v8997
    %v9023 = vsel %vm9014, %v8997, %v8999
    %v9024 = vsel %vm9014, %v8999, %v9001
    %v9025 = vsel %vm9014, %v9001, %v9003
    %v9026 = vsel %vm9014, %v9003, %v9005
    %v9027 = vsel %vm9014, %v9005, %v9007
    %v9028 = vsel %vm9014, %v9007, %v9009
    %v9029 = vsel %vm9014, %v9009, %v9011
    %v9030 = vsel %vm9014, %v9011, %v9013
    %9047 = vst [vmem:[#allocation9 + $0x500] sm:$0xff] %v9015
    %9048 = vst [vmem:[#allocation9 + $0x508] sm:$0xff] %v9016
    %9049 = vst [vmem:[#allocation9 + $0x510] sm:$0xff] %v9017
    %9050 = vst [vmem:[#allocation9 + $0x518] sm:$0xff] %v9018
    %9051 = vst [vmem:[#allocation9 + $0x520] sm:$0xff] %v9019
    %9052 = vst [vmem:[#allocation9 + $0x528] sm:$0xff] %v9020
    %9053 = vst [vmem:[#allocation9 + $0x530] sm:$0xff] %v9021
    %9054 = vst [vmem:[#allocation9 + $0x538] sm:$0xff] %v9022
    %9055 = vst [vmem:[#allocation9 + $0x540] sm:$0xff] %v9023
    %9056 = vst [vmem:[#allocation9 + $0x548] sm:$0xff] %v9024
    %9057 = vst [vmem:[#allocation9 + $0x550] sm:$0xff] %v9025
    %9058 = vst [vmem:[#allocation9 + $0x558] sm:$0xff] %v9026
    %9059 = vst [vmem:[#allocation9 + $0x560] sm:$0xff] %v9027
    %9060 = vst [vmem:[#allocation9 + $0x568] sm:$0xff] %v9028
    %9061 = vst [vmem:[#allocation9 + $0x570] sm:$0xff] %v9029
    %9062 = vst [vmem:[#allocation9 + $0x578] sm:$0xff] %v9030
    %v9063 = vld [vmem:[#allocation8] sm:$0xff]
    %v9064 = vld [vmem:[#allocation8 + $0x8] sm:$0xff]
    %v9065 = vld [vmem:[#allocation8 + $0x10] sm:$0xff]
    %v9066 = vld [vmem:[#allocation8 + $0x18] sm:$0xff]
    %v9067 = vld [vmem:[#allocation8 + $0x20] sm:$0xff]
    %v9068 = vld [vmem:[#allocation8 + $0x28] sm:$0xff]
    %v9069 = vld [vmem:[#allocation8 + $0x30] sm:$0xff]
    %v9070 = vld [vmem:[#allocation8 + $0x38] sm:$0xff]
    %v9071 = vld [vmem:[#allocation8 + $0x40] sm:$0xff]
    %v9072 = vld [vmem:[#allocation8 + $0x48] sm:$0xff]
    %v9073 = vld [vmem:[#allocation8 + $0x50] sm:$0xff]
    %v9074 = vld [vmem:[#allocation8 + $0x58] sm:$0xff]
    %v9075 = vld [vmem:[#allocation8 + $0x60] sm:$0xff]
    %v9076 = vld [vmem:[#allocation8 + $0x68] sm:$0xff]
    %v9077 = vld [vmem:[#allocation8 + $0x70] sm:$0xff]
    %v9078 = vld [vmem:[#allocation8 + $0x78] sm:$0xff]
    %v9079 = vld [vmem:[#allocation8 + $0x80] sm:$0xff]
    %9097 = vrot.lane.b32.xlu0 %v9063, 63
    %v9098 = vpop.permute.xlu0 %9097
    %9099 = vrot.lane.b32.xlu0 %v9064, 63
    %v9100 = vpop.permute.xlu0 %9099
    %9101 = vrot.lane.b32.xlu0 %v9065, 63
    %v9102 = vpop.permute.xlu0 %9101
    %9103 = vrot.lane.b32.xlu0 %v9066, 63
    %v9104 = vpop.permute.xlu0 %9103
    %9105 = vrot.lane.b32.xlu0 %v9067, 63
    %v9106 = vpop.permute.xlu0 %9105
    %9107 = vrot.lane.b32.xlu0 %v9068, 63
    %v9108 = vpop.permute.xlu0 %9107
    %9109 = vrot.lane.b32.xlu0 %v9069, 63
    %v9110 = vpop.permute.xlu0 %9109
    %9111 = vrot.lane.b32.xlu0 %v9070, 63
    %v9112 = vpop.permute.xlu0 %9111
    %9113 = vrot.lane.b32.xlu0 %v9071, 63
    %v9114 = vpop.permute.xlu0 %9113
    %9115 = vrot.lane.b32.xlu0 %v9072, 63
    %v9116 = vpop.permute.xlu0 %9115
    %9117 = vrot.lane.b32.xlu0 %v9073, 63
    %v9118 = vpop.permute.xlu0 %9117
    %9119 = vrot.lane.b32.xlu0 %v9074, 63
    %v9120 = vpop.permute.xlu0 %9119
    %9121 = vrot.lane.b32.xlu0 %v9075, 63
    %v9122 = vpop.permute.xlu0 %9121
    %9123 = vrot.lane.b32.xlu0 %v9076, 63
    %v9124 = vpop.permute.xlu0 %9123
    %9125 = vrot.lane.b32.xlu0 %v9077, 63
    %v9126 = vpop.permute.xlu0 %9125
    %9127 = vrot.lane.b32.xlu0 %v9078, 63
    %v9128 = vpop.permute.xlu0 %9127
    %9129 = vrot.lane.b32.xlu0 %v9079, 63
    %v9130 = vpop.permute.xlu0 %9129
    %vm9131 = vcmask 515072
    %v9132 = vsel %vm9131, %v9098, %v9100
    %v9133 = vsel %vm9131, %v9100, %v9102
    %v9134 = vsel %vm9131, %v9102, %v9104
    %v9135 = vsel %vm9131, %v9104, %v9106
    %v9136 = vsel %vm9131, %v9106, %v9108
    %v9137 = vsel %vm9131, %v9108, %v9110
    %v9138 = vsel %vm9131, %v9110, %v9112
    %v9139 = vsel %vm9131, %v9112, %v9114
    %v9140 = vsel %vm9131, %v9114, %v9116
    %v9141 = vsel %vm9131, %v9116, %v9118
    %v9142 = vsel %vm9131, %v9118, %v9120
    %v9143 = vsel %vm9131, %v9120, %v9122
    %v9144 = vsel %vm9131, %v9122, %v9124
    %v9145 = vsel %vm9131, %v9124, %v9126
    %v9146 = vsel %vm9131, %v9126, %v9128
    %v9147 = vsel %vm9131, %v9128, %v9130
    %9164 = vst [vmem:[#allocation9 + $0x580] sm:$0xff] %v9132
    %9165 = vst [vmem:[#allocation9 + $0x588] sm:$0xff] %v9133
    %9166 = vst [vmem:[#allocation9 + $0x590] sm:$0xff] %v9134
    %9167 = vst [vmem:[#allocation9 + $0x598] sm:$0xff] %v9135
    %9168 = vst [vmem:[#allocation9 + $0x5a0] sm:$0xff] %v9136
    %9169 = vst [vmem:[#allocation9 + $0x5a8] sm:$0xff] %v9137
    %9170 = vst [vmem:[#allocation9 + $0x5b0] sm:$0xff] %v9138
    %9171 = vst [vmem:[#allocation9 + $0x5b8] sm:$0xff] %v9139
    %9172 = vst [vmem:[#allocation9 + $0x5c0] sm:$0xff] %v9140
    %9173 = vst [vmem:[#allocation9 + $0x5c8] sm:$0xff] %v9141
    %9174 = vst [vmem:[#allocation9 + $0x5d0] sm:$0xff] %v9142
    %9175 = vst [vmem:[#allocation9 + $0x5d8] sm:$0xff] %v9143
    %9176 = vst [vmem:[#allocation9 + $0x5e0] sm:$0xff] %v9144
    %9177 = vst [vmem:[#allocation9 + $0x5e8] sm:$0xff] %v9145
    %9178 = vst [vmem:[#allocation9 + $0x5f0] sm:$0xff] %v9146
    %9179 = vst [vmem:[#allocation9 + $0x5f8] sm:$0xff] %v9147
    %v9180 = vld [vmem:[#allocation8] sm:$0xff]
    %v9181 = vld [vmem:[#allocation8 + $0x8] sm:$0xff]
    %v9182 = vld [vmem:[#allocation8 + $0x10] sm:$0xff]
    %v9183 = vld [vmem:[#allocation8 + $0x18] sm:$0xff]
    %v9184 = vld [vmem:[#allocation8 + $0x20] sm:$0xff]
    %v9185 = vld [vmem:[#allocation8 + $0x28] sm:$0xff]
    %v9186 = vld [vmem:[#allocation8 + $0x30] sm:$0xff]
    %v9187 = vld [vmem:[#allocation8 + $0x38] sm:$0xff]
    %v9188 = vld [vmem:[#allocation8 + $0x40] sm:$0xff]
    %v9189 = vld [vmem:[#allocation8 + $0x48] sm:$0xff]
    %v9190 = vld [vmem:[#allocation8 + $0x50] sm:$0xff]
    %v9191 = vld [vmem:[#allocation8 + $0x58] sm:$0xff]
    %v9192 = vld [vmem:[#allocation8 + $0x60] sm:$0xff]
    %v9193 = vld [vmem:[#allocation8 + $0x68] sm:$0xff]
    %v9194 = vld [vmem:[#allocation8 + $0x70] sm:$0xff]
    %v9195 = vld [vmem:[#allocation8 + $0x78] sm:$0xff]
    %v9196 = vld [vmem:[#allocation8 + $0x80] sm:$0xff]
    %9214 = vrot.lane.b32.xlu0 %v9180, 35
    %v9215 = vpop.permute.xlu0 %9214
    %9216 = vrot.lane.b32.xlu0 %v9181, 35
    %v9217 = vpop.permute.xlu0 %9216
    %9218 = vrot.lane.b32.xlu0 %v9182, 35
    %v9219 = vpop.permute.xlu0 %9218
    %9220 = vrot.lane.b32.xlu0 %v9183, 35
    %v9221 = vpop.permute.xlu0 %9220
    %9222 = vrot.lane.b32.xlu0 %v9184, 35
    %v9223 = vpop.permute.xlu0 %9222
    %9224 = vrot.lane.b32.xlu0 %v9185, 35
    %v9225 = vpop.permute.xlu0 %9224
    %9226 = vrot.lane.b32.xlu0 %v9186, 35
    %v9227 = vpop.permute.xlu0 %9226
    %9228 = vrot.lane.b32.xlu0 %v9187, 35
    %v9229 = vpop.permute.xlu0 %9228
    %9230 = vrot.lane.b32.xlu0 %v9188, 35
    %v9231 = vpop.permute.xlu0 %9230
    %9232 = vrot.lane.b32.xlu0 %v9189, 35
    %v9233 = vpop.permute.xlu0 %9232
    %9234 = vrot.lane.b32.xlu0 %v9190, 35
    %v9235 = vpop.permute.xlu0 %9234
    %9236 = vrot.lane.b32.xlu0 %v9191, 35
    %v9237 = vpop.permute.xlu0 %9236
    %9238 = vrot.lane.b32.xlu0 %v9192, 35
    %v9239 = vpop.permute.xlu0 %9238
    %9240 = vrot.lane.b32.xlu0 %v9193, 35
    %v9241 = vpop.permute.xlu0 %9240
    %9242 = vrot.lane.b32.xlu0 %v9194, 35
    %v9243 = vpop.permute.xlu0 %9242
    %9244 = vrot.lane.b32.xlu0 %v9195, 35
    %v9245 = vpop.permute.xlu0 %9244
    %9246 = vrot.lane.b32.xlu0 %v9196, 35
    %v9247 = vpop.permute.xlu0 %9246
    %vm9248 = vcmask 285696
    %v9249 = vsel %vm9248, %v9215, %v9217
    %v9250 = vsel %vm9248, %v9217, %v9219
    %v9251 = vsel %vm9248, %v9219, %v9221
    %v9252 = vsel %vm9248, %v9221, %v9223
    %v9253 = vsel %vm9248, %v9223, %v9225
    %v9254 = vsel %vm9248, %v9225, %v9227
    %v9255 = vsel %vm9248, %v9227, %v9229
    %v9256 = vsel %vm9248, %v9229, %v9231
    %v9257 = vsel %vm9248, %v9231, %v9233
    %v9258 = vsel %vm9248, %v9233, %v9235
    %v9259 = vsel %vm9248, %v9235, %v9237
    %v9260 = vsel %vm9248, %v9237, %v9239
    %v9261 = vsel %vm9248, %v9239, %v9241
    %v9262 = vsel %vm9248, %v9241, %v9243
    %v9263 = vsel %vm9248, %v9243, %v9245
    %v9264 = vsel %vm9248, %v9245, %v9247
    %9281 = vst [vmem:[#allocation9 + $0x600] sm:$0xff] %v9249
    %9282 = vst [vmem:[#allocation9 + $0x608] sm:$0xff] %v9250
    %9283 = vst [vmem:[#allocation9 + $0x610] sm:$0xff] %v9251
    %9284 = vst [vmem:[#allocation9 + $0x618] sm:$0xff] %v9252
    %9285 = vst [vmem:[#allocation9 + $0x620] sm:$0xff] %v9253
    %9286 = vst [vmem:[#allocation9 + $0x628] sm:$0xff] %v9254
    %9287 = vst [vmem:[#allocation9 + $0x630] sm:$0xff] %v9255
    %9288 = vst [vmem:[#allocation9 + $0x638] sm:$0xff] %v9256
    %9289 = vst [vmem:[#allocation9 + $0x640] sm:$0xff] %v9257
    %9290 = vst [vmem:[#allocation9 + $0x648] sm:$0xff] %v9258
    %9291 = vst [vmem:[#allocation9 + $0x650] sm:$0xff] %v9259
    %9292 = vst [vmem:[#allocation9 + $0x658] sm:$0xff] %v9260
    %9293 = vst [vmem:[#allocation9 + $0x660] sm:$0xff] %v9261
    %9294 = vst [vmem:[#allocation9 + $0x668] sm:$0xff] %v9262
    %9295 = vst [vmem:[#allocation9 + $0x670] sm:$0xff] %v9263
    %9296 = vst [vmem:[#allocation9 + $0x678] sm:$0xff] %v9264
    %v9297 = vld [vmem:[#allocation8] sm:$0xff]
    %v9298 = vld [vmem:[#allocation8 + $0x8] sm:$0xff]
    %v9299 = vld [vmem:[#allocation8 + $0x10] sm:$0xff]
    %v9300 = vld [vmem:[#allocation8 + $0x18] sm:$0xff]
    %v9301 = vld [vmem:[#allocation8 + $0x20] sm:$0xff]
    %v9302 = vld [vmem:[#allocation8 + $0x28] sm:$0xff]
    %v9303 = vld [vmem:[#allocation8 + $0x30] sm:$0xff]
    %v9304 = vld [vmem:[#allocation8 + $0x38] sm:$0xff]
    %v9305 = vld [vmem:[#allocation8 + $0x40] sm:$0xff]
    %v9306 = vld [vmem:[#allocation8 + $0x48] sm:$0xff]
    %v9307 = vld [vmem:[#allocation8 + $0x50] sm:$0xff]
    %v9308 = vld [vmem:[#allocation8 + $0x58] sm:$0xff]
    %v9309 = vld [vmem:[#allocation8 + $0x60] sm:$0xff]
    %v9310 = vld [vmem:[#allocation8 + $0x68] sm:$0xff]
    %v9311 = vld [vmem:[#allocation8 + $0x70] sm:$0xff]
    %v9312 = vld [vmem:[#allocation8 + $0x78] sm:$0xff]
    %v9313 = vld [vmem:[#allocation8 + $0x80] sm:$0xff]
    %9331 = vrot.lane.b32.xlu0 %v9297, 34
    %v9332 = vpop.permute.xlu0 %9331
    %9333 = vrot.lane.b32.xlu0 %v9298, 34
    %v9334 = vpop.permute.xlu0 %9333
    %9335 = vrot.lane.b32.xlu0 %v9299, 34
    %v9336 = vpop.permute.xlu0 %9335
    %9337 = vrot.lane.b32.xlu0 %v9300, 34
    %v9338 = vpop.permute.xlu0 %9337
    %9339 = vrot.lane.b32.xlu0 %v9301, 34
    %v9340 = vpop.permute.xlu0 %9339
    %9341 = vrot.lane.b32.xlu0 %v9302, 34
    %v9342 = vpop.permute.xlu0 %9341
    %9343 = vrot.lane.b32.xlu0 %v9303, 34
    %v9344 = vpop.permute.xlu0 %9343
    %9345 = vrot.lane.b32.xlu0 %v9304, 34
    %v9346 = vpop.permute.xlu0 %9345
    %9347 = vrot.lane.b32.xlu0 %v9305, 34
    %v9348 = vpop.permute.xlu0 %9347
    %9349 = vrot.lane.b32.xlu0 %v9306, 34
    %v9350 = vpop.permute.xlu0 %9349
    %9351 = vrot.lane.b32.xlu0 %v9307, 34
    %v9352 = vpop.permute.xlu0 %9351
    %9353 = vrot.lane.b32.xlu0 %v9308, 34
    %v9354 = vpop.permute.xlu0 %9353
    %9355 = vrot.lane.b32.xlu0 %v9309, 34
    %v9356 = vpop.permute.xlu0 %9355
    %9357 = vrot.lane.b32.xlu0 %v9310, 34
    %v9358 = vpop.permute.xlu0 %9357
    %9359 = vrot.lane.b32.xlu0 %v9311, 34
    %v9360 = vpop.permute.xlu0 %9359
    %9361 = vrot.lane.b32.xlu0 %v9312, 34
    %v9362 = vpop.permute.xlu0 %9361
    %9363 = vrot.lane.b32.xlu0 %v9313, 34
    %v9364 = vpop.permute.xlu0 %9363
    %vm9365 = vcmask 277504
    %v9366 = vsel %vm9365, %v9332, %v9334
    %v9367 = vsel %vm9365, %v9334, %v9336
    %v9368 = vsel %vm9365, %v9336, %v9338
    %v9369 = vsel %vm9365, %v9338, %v9340
    %v9370 = vsel %vm9365, %v9340, %v9342
    %v9371 = vsel %vm9365, %v9342, %v9344
    %v9372 = vsel %vm9365, %v9344, %v9346
    %v9373 = vsel %vm9365, %v9346, %v9348
    %v9374 = vsel %vm9365, %v9348, %v9350
    %v9375 = vsel %vm9365, %v9350, %v9352
    %v9376 = vsel %vm9365, %v9352, %v9354
    %v9377 = vsel %vm9365, %v9354, %v9356
    %v9378 = vsel %vm9365, %v9356, %v9358
    %v9379 = vsel %vm9365, %v9358, %v9360
    %v9380 = vsel %vm9365, %v9360, %v9362
    %v9381 = vsel %vm9365, %v9362, %v9364
    %9398 = vst [vmem:[#allocation9 + $0x680] sm:$0xff] %v9366
    %9399 = vst [vmem:[#allocation9 + $0x688] sm:$0xff] %v9367
    %9400 = vst [vmem:[#allocation9 + $0x690] sm:$0xff] %v9368
    %9401 = vst [vmem:[#allocation9 + $0x698] sm:$0xff] %v9369
    %9402 = vst [vmem:[#allocation9 + $0x6a0] sm:$0xff] %v9370
    %9403 = vst [vmem:[#allocation9 + $0x6a8] sm:$0xff] %v9371
    %9404 = vst [vmem:[#allocation9 + $0x6b0] sm:$0xff] %v9372
    %9405 = vst [vmem:[#allocation9 + $0x6b8] sm:$0xff] %v9373
    %9406 = vst [vmem:[#allocation9 + $0x6c0] sm:$0xff] %v9374
    %9407 = vst [vmem:[#allocation9 + $0x6c8] sm:$0xff] %v9375
    %9408 = vst [vmem:[#allocation9 + $0x6d0] sm:$0xff] %v9376
    %9409 = vst [vmem:[#allocation9 + $0x6d8] sm:$0xff] %v9377
    %9410 = vst [vmem:[#allocation9 + $0x6e0] sm:$0xff] %v9378
    %9411 = vst [vmem:[#allocation9 + $0x6e8] sm:$0xff] %v9379
    %9412 = vst [vmem:[#allocation9 + $0x6f0] sm:$0xff] %v9380
    %9413 = vst [vmem:[#allocation9 + $0x6f8] sm:$0xff] %v9381
    %v9414 = vld [vmem:[#allocation8] sm:$0xff]
    %v9415 = vld [vmem:[#allocation8 + $0x8] sm:$0xff]
    %v9416 = vld [vmem:[#allocation8 + $0x10] sm:$0xff]
    %v9417 = vld [vmem:[#allocation8 + $0x18] sm:$0xff]
    %v9418 = vld [vmem:[#allocation8 + $0x20] sm:$0xff]
    %v9419 = vld [vmem:[#allocation8 + $0x28] sm:$0xff]
    %v9420 = vld [vmem:[#allocation8 + $0x30] sm:$0xff]
    %v9421 = vld [vmem:[#allocation8 + $0x38] sm:$0xff]
    %v9422 = vld [vmem:[#allocation8 + $0x40] sm:$0xff]
    %v9423 = vld [vmem:[#allocation8 + $0x48] sm:$0xff]
    %v9424 = vld [vmem:[#allocation8 + $0x50] sm:$0xff]
    %v9425 = vld [vmem:[#allocation8 + $0x58] sm:$0xff]
    %v9426 = vld [vmem:[#allocation8 + $0x60] sm:$0xff]
    %v9427 = vld [vmem:[#allocation8 + $0x68] sm:$0xff]
    %v9428 = vld [vmem:[#allocation8 + $0x70] sm:$0xff]
    %v9429 = vld [vmem:[#allocation8 + $0x78] sm:$0xff]
    %v9430 = vld [vmem:[#allocation8 + $0x80] sm:$0xff]
    %9448 = vrot.lane.b32.xlu0 %v9414, 33
    %v9449 = vpop.permute.xlu0 %9448
    %9450 = vrot.lane.b32.xlu0 %v9415, 33
    %v9451 = vpop.permute.xlu0 %9450
    %9452 = vrot.lane.b32.xlu0 %v9416, 33
    %v9453 = vpop.permute.xlu0 %9452
    %9454 = vrot.lane.b32.xlu0 %v9417, 33
    %v9455 = vpop.permute.xlu0 %9454
    %9456 = vrot.lane.b32.xlu0 %v9418, 33
    %v9457 = vpop.permute.xlu0 %9456
    %9458 = vrot.lane.b32.xlu0 %v9419, 33
    %v9459 = vpop.permute.xlu0 %9458
    %9460 = vrot.lane.b32.xlu0 %v9420, 33
    %v9461 = vpop.permute.xlu0 %9460
    %9462 = vrot.lane.b32.xlu0 %v9421, 33
    %v9463 = vpop.permute.xlu0 %9462
    %9464 = vrot.lane.b32.xlu0 %v9422, 33
    %v9465 = vpop.permute.xlu0 %9464
    %9466 = vrot.lane.b32.xlu0 %v9423, 33
    %v9467 = vpop.permute.xlu0 %9466
    %9468 = vrot.lane.b32.xlu0 %v9424, 33
    %v9469 = vpop.permute.xlu0 %9468
    %9470 = vrot.lane.b32.xlu0 %v9425, 33
    %v9471 = vpop.permute.xlu0 %9470
    %9472 = vrot.lane.b32.xlu0 %v9426, 33
    %v9473 = vpop.permute.xlu0 %9472
    %9474 = vrot.lane.b32.xlu0 %v9427, 33
    %v9475 = vpop.permute.xlu0 %9474
    %9476 = vrot.lane.b32.xlu0 %v9428, 33
    %v9477 = vpop.permute.xlu0 %9476
    %9478 = vrot.lane.b32.xlu0 %v9429, 33
    %v9479 = vpop.permute.xlu0 %9478
    %9480 = vrot.lane.b32.xlu0 %v9430, 33
    %v9481 = vpop.permute.xlu0 %9480
    %vm9482 = vcmask 269312
    %v9483 = vsel %vm9482, %v9449, %v9451
    %v9484 = vsel %vm9482, %v9451, %v9453
    %v9485 = vsel %vm9482, %v9453, %v9455
    %v9486 = vsel %vm9482, %v9455, %v9457
    %v9487 = vsel %vm9482, %v9457, %v9459
    %v9488 = vsel %vm9482, %v9459, %v9461
    %v9489 = vsel %vm9482, %v9461, %v9463
    %v9490 = vsel %vm9482, %v9463, %v9465
    %v9491 = vsel %vm9482, %v9465, %v9467
    %v9492 = vsel %vm9482, %v9467, %v9469
    %v9493 = vsel %vm9482, %v9469, %v9471
    %v9494 = vsel %vm9482, %v9471, %v9473
    %v9495 = vsel %vm9482, %v9473, %v9475
    %v9496 = vsel %vm9482, %v9475, %v9477
    %v9497 = vsel %vm9482, %v9477, %v9479
    %v9498 = vsel %vm9482, %v9479, %v9481
    %9515 = vst [vmem:[#allocation9 + $0x700] sm:$0xff] %v9483
    %9516 = vst [vmem:[#allocation9 + $0x708] sm:$0xff] %v9484
    %9517 = vst [vmem:[#allocation9 + $0x710] sm:$0xff] %v9485
    %9518 = vst [vmem:[#allocation9 + $0x718] sm:$0xff] %v9486
    %9519 = vst [vmem:[#allocation9 + $0x720] sm:$0xff] %v9487
    %9520 = vst [vmem:[#allocation9 + $0x728] sm:$0xff] %v9488
    %9521 = vst [vmem:[#allocation9 + $0x730] sm:$0xff] %v9489
    %9522 = vst [vmem:[#allocation9 + $0x738] sm:$0xff] %v9490
    %9523 = vst [vmem:[#allocation9 + $0x740] sm:$0xff] %v9491
    %9524 = vst [vmem:[#allocation9 + $0x748] sm:$0xff] %v9492
    %9525 = vst [vmem:[#allocation9 + $0x750] sm:$0xff] %v9493
    %9526 = vst [vmem:[#allocation9 + $0x758] sm:$0xff] %v9494
    %9527 = vst [vmem:[#allocation9 + $0x760] sm:$0xff] %v9495
    %9528 = vst [vmem:[#allocation9 + $0x768] sm:$0xff] %v9496
    %9529 = vst [vmem:[#allocation9 + $0x770] sm:$0xff] %v9497
    %9530 = vst [vmem:[#allocation9 + $0x778] sm:$0xff] %v9498
    %v9531 = vld [vmem:[#allocation8] sm:$0xff]
    %v9532 = vld [vmem:[#allocation8 + $0x8] sm:$0xff]
    %v9533 = vld [vmem:[#allocation8 + $0x10] sm:$0xff]
    %v9534 = vld [vmem:[#allocation8 + $0x18] sm:$0xff]
    %v9535 = vld [vmem:[#allocation8 + $0x20] sm:$0xff]
    %v9536 = vld [vmem:[#allocation8 + $0x28] sm:$0xff]
    %v9537 = vld [vmem:[#allocation8 + $0x30] sm:$0xff]
    %v9538 = vld [vmem:[#allocation8 + $0x38] sm:$0xff]
    %v9539 = vld [vmem:[#allocation8 + $0x40] sm:$0xff]
    %v9540 = vld [vmem:[#allocation8 + $0x48] sm:$0xff]
    %v9541 = vld [vmem:[#allocation8 + $0x50] sm:$0xff]
    %v9542 = vld [vmem:[#allocation8 + $0x58] sm:$0xff]
    %v9543 = vld [vmem:[#allocation8 + $0x60] sm:$0xff]
    %v9544 = vld [vmem:[#allocation8 + $0x68] sm:$0xff]
    %v9545 = vld [vmem:[#allocation8 + $0x70] sm:$0xff]
    %v9546 = vld [vmem:[#allocation8 + $0x78] sm:$0xff]
    %v9547 = vld [vmem:[#allocation8 + $0x80] sm:$0xff]
    %9565 = vrot.lane.b32.xlu0 %v9531, 32
    %v9566 = vpop.permute.xlu0 %9565
    %9567 = vrot.lane.b32.xlu0 %v9532, 32
    %v9568 = vpop.permute.xlu0 %9567
    %9569 = vrot.lane.b32.xlu0 %v9533, 32
    %v9570 = vpop.permute.xlu0 %9569
    %9571 = vrot.lane.b32.xlu0 %v9534, 32
    %v9572 = vpop.permute.xlu0 %9571
    %9573 = vrot.lane.b32.xlu0 %v9535, 32
    %v9574 = vpop.permute.xlu0 %9573
    %9575 = vrot.lane.b32.xlu0 %v9536, 32
    %v9576 = vpop.permute.xlu0 %9575
    %9577 = vrot.lane.b32.xlu0 %v9537, 32
    %v9578 = vpop.permute.xlu0 %9577
    %9579 = vrot.lane.b32.xlu0 %v9538, 32
    %v9580 = vpop.permute.xlu0 %9579
    %9581 = vrot.lane.b32.xlu0 %v9539, 32
    %v9582 = vpop.permute.xlu0 %9581
    %9583 = vrot.lane.b32.xlu0 %v9540, 32
    %v9584 = vpop.permute.xlu0 %9583
    %9585 = vrot.lane.b32.xlu0 %v9541, 32
    %v9586 = vpop.permute.xlu0 %9585
    %9587 = vrot.lane.b32.xlu0 %v9542, 32
    %v9588 = vpop.permute.xlu0 %9587
    %9589 = vrot.lane.b32.xlu0 %v9543, 32
    %v9590 = vpop.permute.xlu0 %9589
    %9591 = vrot.lane.b32.xlu0 %v9544, 32
    %v9592 = vpop.permute.xlu0 %9591
    %9593 = vrot.lane.b32.xlu0 %v9545, 32
    %v9594 = vpop.permute.xlu0 %9593
    %9595 = vrot.lane.b32.xlu0 %v9546, 32
    %v9596 = vpop.permute.xlu0 %9595
    %9597 = vrot.lane.b32.xlu0 %v9547, 32
    %v9598 = vpop.permute.xlu0 %9597
    %vm9599 = vcmask 261120
    %v9600 = vsel %vm9599, %v9566, %v9568
    %v9601 = vsel %vm9599, %v9568, %v9570
    %v9602 = vsel %vm9599, %v9570, %v9572
    %v9603 = vsel %vm9599, %v9572, %v9574
    %v9604 = vsel %vm9599, %v9574, %v9576
    %v9605 = vsel %vm9599, %v9576, %v9578
    %v9606 = vsel %vm9599, %v9578, %v9580
    %v9607 = vsel %vm9599, %v9580, %v9582
    %v9608 = vsel %vm9599, %v9582, %v9584
    %v9609 = vsel %vm9599, %v9584, %v9586
    %v9610 = vsel %vm9599, %v9586, %v9588
    %v9611 = vsel %vm9599, %v9588, %v9590
    %v9612 = vsel %vm9599, %v9590, %v9592
    %v9613 = vsel %vm9599, %v9592, %v9594
    %v9614 = vsel %vm9599, %v9594, %v9596
    %v9615 = vsel %vm9599, %v9596, %v9598
    %9632 = vst [vmem:[#allocation9 + $0x780] sm:$0xff] %v9600
    %9633 = vst [vmem:[#allocation9 + $0x788] sm:$0xff] %v9601
    %9634 = vst [vmem:[#allocation9 + $0x790] sm:$0xff] %v9602
    %9635 = vst [vmem:[#allocation9 + $0x798] sm:$0xff] %v9603
    %9636 = vst [vmem:[#allocation9 + $0x7a0] sm:$0xff] %v9604
    %9637 = vst [vmem:[#allocation9 + $0x7a8] sm:$0xff] %v9605
    %9638 = vst [vmem:[#allocation9 + $0x7b0] sm:$0xff] %v9606
    %9639 = vst [vmem:[#allocation9 + $0x7b8] sm:$0xff] %v9607
    %9640 = vst [vmem:[#allocation9 + $0x7c0] sm:$0xff] %v9608
    %9641 = vst [vmem:[#allocation9 + $0x7c8] sm:$0xff] %v9609
    %9642 = vst [vmem:[#allocation9 + $0x7d0] sm:$0xff] %v9610
    %9643 = vst [vmem:[#allocation9 + $0x7d8] sm:$0xff] %v9611
    %9644 = vst [vmem:[#allocation9 + $0x7e0] sm:$0xff] %v9612
    %9645 = vst [vmem:[#allocation9 + $0x7e8] sm:$0xff] %v9613
    %9646 = vst [vmem:[#allocation9 + $0x7f0] sm:$0xff] %v9614
    %9647 = vst [vmem:[#allocation9 + $0x7f8] sm:$0xff] %v9615
    %v9648 = vld [vmem:[#allocation24] sm:$0xf]
    %v9649 = vld [vmem:[#allocation9] sm:$0xff]
    %v9650 = vld [vmem:[#allocation9 + $0x8] sm:$0xff]
    %v9651 = vld [vmem:[#allocation9 + $0x10] sm:$0xff]
    %v9652 = vld [vmem:[#allocation9 + $0x18] sm:$0xff]
    %v9653 = vld [vmem:[#allocation9 + $0x20] sm:$0xff]
    %v9654 = vld [vmem:[#allocation9 + $0x28] sm:$0xff]
    %v9655 = vld [vmem:[#allocation9 + $0x30] sm:$0xff]
    %v9656 = vld [vmem:[#allocation9 + $0x38] sm:$0xff]
    %v9657 = vld [vmem:[#allocation9 + $0x40] sm:$0xff]
    %v9658 = vld [vmem:[#allocation9 + $0x48] sm:$0xff]
    %v9659 = vld [vmem:[#allocation9 + $0x50] sm:$0xff]
    %v9660 = vld [vmem:[#allocation9 + $0x58] sm:$0xff]
    %v9661 = vld [vmem:[#allocation9 + $0x60] sm:$0xff]
    %v9662 = vld [vmem:[#allocation9 + $0x68] sm:$0xff]
    %v9663 = vld [vmem:[#allocation9 + $0x70] sm:$0xff]
    %v9664 = vld [vmem:[#allocation9 + $0x78] sm:$0xff]
    %v9665 = vld [vmem:[#allocation9 + $0x80] sm:$0xff]
    %v9666 = vld [vmem:[#allocation9 + $0x88] sm:$0xff]
    %v9667 = vld [vmem:[#allocation9 + $0x90] sm:$0xff]
    %v9668 = vld [vmem:[#allocation9 + $0x98] sm:$0xff]
    %v9669 = vld [vmem:[#allocation9 + $0xa0] sm:$0xff]
    %v9670 = vld [vmem:[#allocation9 + $0xa8] sm:$0xff]
    %v9671 = vld [vmem:[#allocation9 + $0xb0] sm:$0xff]
    %v9672 = vld [vmem:[#allocation9 + $0xb8] sm:$0xff]
    %v9673 = vld [vmem:[#allocation9 + $0xc0] sm:$0xff]
    %v9674 = vld [vmem:[#allocation9 + $0xc8] sm:$0xff]
    %v9675 = vld [vmem:[#allocation9 + $0xd0] sm:$0xff]
    %v9676 = vld [vmem:[#allocation9 + $0xd8] sm:$0xff]
    %v9677 = vld [vmem:[#allocation9 + $0xe0] sm:$0xff]
    %v9678 = vld [vmem:[#allocation9 + $0xe8] sm:$0xff]
    %v9679 = vld [vmem:[#allocation9 + $0xf0] sm:$0xff]
    %v9680 = vld [vmem:[#allocation9 + $0xf8] sm:$0xff]
    %v9681 = vld [vmem:[#allocation9 + $0x100] sm:$0xff]
    %v9682 = vld [vmem:[#allocation9 + $0x108] sm:$0xff]
    %v9683 = vld [vmem:[#allocation9 + $0x110] sm:$0xff]
    %v9684 = vld [vmem:[#allocation9 + $0x118] sm:$0xff]
    %v9685 = vld [vmem:[#allocation9 + $0x120] sm:$0xff]
    %v9686 = vld [vmem:[#allocation9 + $0x128] sm:$0xff]
    %v9687 = vld [vmem:[#allocation9 + $0x130] sm:$0xff]
    %v9688 = vld [vmem:[#allocation9 + $0x138] sm:$0xff]
    %v9689 = vld [vmem:[#allocation9 + $0x140] sm:$0xff]
    %v9690 = vld [vmem:[#allocation9 + $0x148] sm:$0xff]
    %v9691 = vld [vmem:[#allocation9 + $0x150] sm:$0xff]
    %v9692 = vld [vmem:[#allocation9 + $0x158] sm:$0xff]
    %v9693 = vld [vmem:[#allocation9 + $0x160] sm:$0xff]
    %v9694 = vld [vmem:[#allocation9 + $0x168] sm:$0xff]
    %v9695 = vld [vmem:[#allocation9 + $0x170] sm:$0xff]
    %v9696 = vld [vmem:[#allocation9 + $0x178] sm:$0xff]
    %v9697 = vld [vmem:[#allocation9 + $0x180] sm:$0xff]
    %v9698 = vld [vmem:[#allocation9 + $0x188] sm:$0xff]
    %v9699 = vld [vmem:[#allocation9 + $0x190] sm:$0xff]
    %v9700 = vld [vmem:[#allocation9 + $0x198] sm:$0xff]
    %v9701 = vld [vmem:[#allocation9 + $0x1a0] sm:$0xff]
    %v9702 = vld [vmem:[#allocation9 + $0x1a8] sm:$0xff]
    %v9703 = vld [vmem:[#allocation9 + $0x1b0] sm:$0xff]
    %v9704 = vld [vmem:[#allocation9 + $0x1b8] sm:$0xff]
    %v9705 = vld [vmem:[#allocation9 + $0x1c0] sm:$0xff]
    %v9706 = vld [vmem:[#allocation9 + $0x1c8] sm:$0xff]
    %v9707 = vld [vmem:[#allocation9 + $0x1d0] sm:$0xff]
    %v9708 = vld [vmem:[#allocation9 + $0x1d8] sm:$0xff]
    %v9709 = vld [vmem:[#allocation9 + $0x1e0] sm:$0xff]
    %v9710 = vld [vmem:[#allocation9 + $0x1e8] sm:$0xff]
    %v9711 = vld [vmem:[#allocation9 + $0x1f0] sm:$0xff]
    %v9712 = vld [vmem:[#allocation9 + $0x1f8] sm:$0xff]
    %v9713 = vld [vmem:[#allocation9 + $0x200] sm:$0xff]
    %v9714 = vld [vmem:[#allocation9 + $0x208] sm:$0xff]
    %v9715 = vld [vmem:[#allocation9 + $0x210] sm:$0xff]
    %v9716 = vld [vmem:[#allocation9 + $0x218] sm:$0xff]
    %v9717 = vld [vmem:[#allocation9 + $0x220] sm:$0xff]
    %v9718 = vld [vmem:[#allocation9 + $0x228] sm:$0xff]
    %v9719 = vld [vmem:[#allocation9 + $0x230] sm:$0xff]
    %v9720 = vld [vmem:[#allocation9 + $0x238] sm:$0xff]
    %v9721 = vld [vmem:[#allocation9 + $0x240] sm:$0xff]
    %v9722 = vld [vmem:[#allocation9 + $0x248] sm:$0xff]
    %v9723 = vld [vmem:[#allocation9 + $0x250] sm:$0xff]
    %v9724 = vld [vmem:[#allocation9 + $0x258] sm:$0xff]
    %v9725 = vld [vmem:[#allocation9 + $0x260] sm:$0xff]
    %v9726 = vld [vmem:[#allocation9 + $0x268] sm:$0xff]
    %v9727 = vld [vmem:[#allocation9 + $0x270] sm:$0xff]
    %v9728 = vld [vmem:[#allocation9 + $0x278] sm:$0xff]
    %v9729 = vld [vmem:[#allocation9 + $0x280] sm:$0xff]
    %v9730 = vld [vmem:[#allocation9 + $0x288] sm:$0xff]
    %v9731 = vld [vmem:[#allocation9 + $0x290] sm:$0xff]
    %v9732 = vld [vmem:[#allocation9 + $0x298] sm:$0xff]
    %v9733 = vld [vmem:[#allocation9 + $0x2a0] sm:$0xff]
    %v9734 = vld [vmem:[#allocation9 + $0x2a8] sm:$0xff]
    %v9735 = vld [vmem:[#allocation9 + $0x2b0] sm:$0xff]
    %v9736 = vld [vmem:[#allocation9 + $0x2b8] sm:$0xff]
    %v9737 = vld [vmem:[#allocation9 + $0x2c0] sm:$0xff]
    %v9738 = vld [vmem:[#allocation9 + $0x2c8] sm:$0xff]
    %v9739 = vld [vmem:[#allocation9 + $0x2d0] sm:$0xff]
    %v9740 = vld [vmem:[#allocation9 + $0x2d8] sm:$0xff]
    %v9741 = vld [vmem:[#allocation9 + $0x2e0] sm:$0xff]
    %v9742 = vld [vmem:[#allocation9 + $0x2e8] sm:$0xff]
    %v9743 = vld [vmem:[#allocation9 + $0x2f0] sm:$0xff]
    %v9744 = vld [vmem:[#allocation9 + $0x2f8] sm:$0xff]
    %v9745 = vld [vmem:[#allocation9 + $0x300] sm:$0xff]
    %v9746 = vld [vmem:[#allocation9 + $0x308] sm:$0xff]
    %v9747 = vld [vmem:[#allocation9 + $0x310] sm:$0xff]
    %v9748 = vld [vmem:[#allocation9 + $0x318] sm:$0xff]
    %v9749 = vld [vmem:[#allocation9 + $0x320] sm:$0xff]
    %v9750 = vld [vmem:[#allocation9 + $0x328] sm:$0xff]
    %v9751 = vld [vmem:[#allocation9 + $0x330] sm:$0xff]
    %v9752 = vld [vmem:[#allocation9 + $0x338] sm:$0xff]
    %v9753 = vld [vmem:[#allocation9 + $0x340] sm:$0xff]
    %v9754 = vld [vmem:[#allocation9 + $0x348] sm:$0xff]
    %v9755 = vld [vmem:[#allocation9 + $0x350] sm:$0xff]
    %v9756 = vld [vmem:[#allocation9 + $0x358] sm:$0xff]
    %v9757 = vld [vmem:[#allocation9 + $0x360] sm:$0xff]
    %v9758 = vld [vmem:[#allocation9 + $0x368] sm:$0xff]
    %v9759 = vld [vmem:[#allocation9 + $0x370] sm:$0xff]
    %v9760 = vld [vmem:[#allocation9 + $0x378] sm:$0xff]
    %v9761 = vld [vmem:[#allocation9 + $0x380] sm:$0xff]
    %v9762 = vld [vmem:[#allocation9 + $0x388] sm:$0xff]
    %v9763 = vld [vmem:[#allocation9 + $0x390] sm:$0xff]
    %v9764 = vld [vmem:[#allocation9 + $0x398] sm:$0xff]
    %v9765 = vld [vmem:[#allocation9 + $0x3a0] sm:$0xff]
    %v9766 = vld [vmem:[#allocation9 + $0x3a8] sm:$0xff]
    %v9767 = vld [vmem:[#allocation9 + $0x3b0] sm:$0xff]
    %v9768 = vld [vmem:[#allocation9 + $0x3b8] sm:$0xff]
    %v9769 = vld [vmem:[#allocation9 + $0x3c0] sm:$0xff]
    %v9770 = vld [vmem:[#allocation9 + $0x3c8] sm:$0xff]
    %v9771 = vld [vmem:[#allocation9 + $0x3d0] sm:$0xff]
    %v9772 = vld [vmem:[#allocation9 + $0x3d8] sm:$0xff]
    %v9773 = vld [vmem:[#allocation9 + $0x3e0] sm:$0xff]
    %v9774 = vld [vmem:[#allocation9 + $0x3e8] sm:$0xff]
    %v9775 = vld [vmem:[#allocation9 + $0x3f0] sm:$0xff]
    %v9776 = vld [vmem:[#allocation9 + $0x3f8] sm:$0xff]
    %v9777 = vld [vmem:[#allocation9 + $0x400] sm:$0xff]
    %v9778 = vld [vmem:[#allocation9 + $0x408] sm:$0xff]
    %v9779 = vld [vmem:[#allocation9 + $0x410] sm:$0xff]
    %v9780 = vld [vmem:[#allocation9 + $0x418] sm:$0xff]
    %v9781 = vld [vmem:[#allocation9 + $0x420] sm:$0xff]
    %v9782 = vld [vmem:[#allocation9 + $0x428] sm:$0xff]
    %v9783 = vld [vmem:[#allocation9 + $0x430] sm:$0xff]
    %v9784 = vld [vmem:[#allocation9 + $0x438] sm:$0xff]
    %v9785 = vld [vmem:[#allocation9 + $0x440] sm:$0xff]
    %v9786 = vld [vmem:[#allocation9 + $0x448] sm:$0xff]
    %v9787 = vld [vmem:[#allocation9 + $0x450] sm:$0xff]
    %v9788 = vld [vmem:[#allocation9 + $0x458] sm:$0xff]
    %v9789 = vld [vmem:[#allocation9 + $0x460] sm:$0xff]
    %v9790 = vld [vmem:[#allocation9 + $0x468] sm:$0xff]
    %v9791 = vld [vmem:[#allocation9 + $0x470] sm:$0xff]
    %v9792 = vld [vmem:[#allocation9 + $0x478] sm:$0xff]
    %v9793 = vld [vmem:[#allocation9 + $0x480] sm:$0xff]
    %v9794 = vld [vmem:[#allocation9 + $0x488] sm:$0xff]
    %v9795 = vld [vmem:[#allocation9 + $0x490] sm:$0xff]
    %v9796 = vld [vmem:[#allocation9 + $0x498] sm:$0xff]
    %v9797 = vld [vmem:[#allocation9 + $0x4a0] sm:$0xff]
    %v9798 = vld [vmem:[#allocation9 + $0x4a8] sm:$0xff]
    %v9799 = vld [vmem:[#allocation9 + $0x4b0] sm:$0xff]
    %v9800 = vld [vmem:[#allocation9 + $0x4b8] sm:$0xff]
    %v9801 = vld [vmem:[#allocation9 + $0x4c0] sm:$0xff]
    %v9802 = vld [vmem:[#allocation9 + $0x4c8] sm:$0xff]
    %v9803 = vld [vmem:[#allocation9 + $0x4d0] sm:$0xff]
    %v9804 = vld [vmem:[#allocation9 + $0x4d8] sm:$0xff]
    %v9805 = vld [vmem:[#allocation9 + $0x4e0] sm:$0xff]
    %v9806 = vld [vmem:[#allocation9 + $0x4e8] sm:$0xff]
    %v9807 = vld [vmem:[#allocation9 + $0x4f0] sm:$0xff]
    %v9808 = vld [vmem:[#allocation9 + $0x4f8] sm:$0xff]
    %v9809 = vld [vmem:[#allocation9 + $0x500] sm:$0xff]
    %v9810 = vld [vmem:[#allocation9 + $0x508] sm:$0xff]
    %v9811 = vld [vmem:[#allocation9 + $0x510] sm:$0xff]
    %v9812 = vld [vmem:[#allocation9 + $0x518] sm:$0xff]
    %v9813 = vld [vmem:[#allocation9 + $0x520] sm:$0xff]
    %v9814 = vld [vmem:[#allocation9 + $0x528] sm:$0xff]
    %v9815 = vld [vmem:[#allocation9 + $0x530] sm:$0xff]
    %v9816 = vld [vmem:[#allocation9 + $0x538] sm:$0xff]
    %v9817 = vld [vmem:[#allocation9 + $0x540] sm:$0xff]
    %v9818 = vld [vmem:[#allocation9 + $0x548] sm:$0xff]
    %v9819 = vld [vmem:[#allocation9 + $0x550] sm:$0xff]
    %v9820 = vld [vmem:[#allocation9 + $0x558] sm:$0xff]
    %v9821 = vld [vmem:[#allocation9 + $0x560] sm:$0xff]
    %v9822 = vld [vmem:[#allocation9 + $0x568] sm:$0xff]
    %v9823 = vld [vmem:[#allocation9 + $0x570] sm:$0xff]
    %v9824 = vld [vmem:[#allocation9 + $0x578] sm:$0xff]
    %v9825 = vld [vmem:[#allocation9 + $0x580] sm:$0xff]
    %v9826 = vld [vmem:[#allocation9 + $0x588] sm:$0xff]
    %v9827 = vld [vmem:[#allocation9 + $0x590] sm:$0xff]
    %v9828 = vld [vmem:[#allocation9 + $0x598] sm:$0xff]
    %v9829 = vld [vmem:[#allocation9 + $0x5a0] sm:$0xff]
    %v9830 = vld [vmem:[#allocation9 + $0x5a8] sm:$0xff]
    %v9831 = vld [vmem:[#allocation9 + $0x5b0] sm:$0xff]
    %v9832 = vld [vmem:[#allocation9 + $0x5b8] sm:$0xff]
    %v9833 = vld [vmem:[#allocation9 + $0x5c0] sm:$0xff]
    %v9834 = vld [vmem:[#allocation9 + $0x5c8] sm:$0xff]
    %v9835 = vld [vmem:[#allocation9 + $0x5d0] sm:$0xff]
    %v9836 = vld [vmem:[#allocation9 + $0x5d8] sm:$0xff]
    %v9837 = vld [vmem:[#allocation9 + $0x5e0] sm:$0xff]
    %v9838 = vld [vmem:[#allocation9 + $0x5e8] sm:$0xff]
    %v9839 = vld [vmem:[#allocation9 + $0x5f0] sm:$0xff]
    %v9840 = vld [vmem:[#allocation9 + $0x5f8] sm:$0xff]
    %v9841 = vld [vmem:[#allocation9 + $0x600] sm:$0xff]
    %v9842 = vld [vmem:[#allocation9 + $0x608] sm:$0xff]
    %v9843 = vld [vmem:[#allocation9 + $0x610] sm:$0xff]
    %v9844 = vld [vmem:[#allocation9 + $0x618] sm:$0xff]
    %v9845 = vld [vmem:[#allocation9 + $0x620] sm:$0xff]
    %v9846 = vld [vmem:[#allocation9 + $0x628] sm:$0xff]
    %v9847 = vld [vmem:[#allocation9 + $0x630] sm:$0xff]
    %v9848 = vld [vmem:[#allocation9 + $0x638] sm:$0xff]
    %v9849 = vld [vmem:[#allocation9 + $0x640] sm:$0xff]
    %v9850 = vld [vmem:[#allocation9 + $0x648] sm:$0xff]
    %v9851 = vld [vmem:[#allocation9 + $0x650] sm:$0xff]
    %v9852 = vld [vmem:[#allocation9 + $0x658] sm:$0xff]
    %v9853 = vld [vmem:[#allocation9 + $0x660] sm:$0xff]
    %v9854 = vld [vmem:[#allocation9 + $0x668] sm:$0xff]
    %v9855 = vld [vmem:[#allocation9 + $0x670] sm:$0xff]
    %v9856 = vld [vmem:[#allocation9 + $0x678] sm:$0xff]
    %v9857 = vld [vmem:[#allocation9 + $0x680] sm:$0xff]
    %v9858 = vld [vmem:[#allocation9 + $0x688] sm:$0xff]
    %v9859 = vld [vmem:[#allocation9 + $0x690] sm:$0xff]
    %v9860 = vld [vmem:[#allocation9 + $0x698] sm:$0xff]
    %v9861 = vld [vmem:[#allocation9 + $0x6a0] sm:$0xff]
    %v9862 = vld [vmem:[#allocation9 + $0x6a8] sm:$0xff]
    %v9863 = vld [vmem:[#allocation9 + $0x6b0] sm:$0xff]
    %v9864 = vld [vmem:[#allocation9 + $0x6b8] sm:$0xff]
    %v9865 = vld [vmem:[#allocation9 + $0x6c0] sm:$0xff]
    %v9866 = vld [vmem:[#allocation9 + $0x6c8] sm:$0xff]
    %v9867 = vld [vmem:[#allocation9 + $0x6d0] sm:$0xff]
    %v9868 = vld [vmem:[#allocation9 + $0x6d8] sm:$0xff]
    %v9869 = vld [vmem:[#allocation9 + $0x6e0] sm:$0xff]
    %v9870 = vld [vmem:[#allocation9 + $0x6e8] sm:$0xff]
    %v9871 = vld [vmem:[#allocation9 + $0x6f0] sm:$0xff]
    %v9872 = vld [vmem:[#allocation9 + $0x6f8] sm:$0xff]
    %v9873 = vld [vmem:[#allocation9 + $0x700] sm:$0xff]
    %v9874 = vld [vmem:[#allocation9 + $0x708] sm:$0xff]
    %v9875 = vld [vmem:[#allocation9 + $0x710] sm:$0xff]
    %v9876 = vld [vmem:[#allocation9 + $0x718] sm:$0xff]
    %v9877 = vld [vmem:[#allocation9 + $0x720] sm:$0xff]
    %v9878 = vld [vmem:[#allocation9 + $0x728] sm:$0xff]
    %v9879 = vld [vmem:[#allocation9 + $0x730] sm:$0xff]
    %v9880 = vld [vmem:[#allocation9 + $0x738] sm:$0xff]
    %v9881 = vld [vmem:[#allocation9 + $0x740] sm:$0xff]
    %v9882 = vld [vmem:[#allocation9 + $0x748] sm:$0xff]
    %v9883 = vld [vmem:[#allocation9 + $0x750] sm:$0xff]
    %v9884 = vld [vmem:[#allocation9 + $0x758] sm:$0xff]
    %v9885 = vld [vmem:[#allocation9 + $0x760] sm:$0xff]
    %v9886 = vld [vmem:[#allocation9 + $0x768] sm:$0xff]
    %v9887 = vld [vmem:[#allocation9 + $0x770] sm:$0xff]
    %v9888 = vld [vmem:[#allocation9 + $0x778] sm:$0xff]
    %v9889 = vld [vmem:[#allocation9 + $0x780] sm:$0xff]
    %v9890 = vld [vmem:[#allocation9 + $0x788] sm:$0xff]
    %v9891 = vld [vmem:[#allocation9 + $0x790] sm:$0xff]
    %v9892 = vld [vmem:[#allocation9 + $0x798] sm:$0xff]
    %v9893 = vld [vmem:[#allocation9 + $0x7a0] sm:$0xff]
    %v9894 = vld [vmem:[#allocation9 + $0x7a8] sm:$0xff]
    %v9895 = vld [vmem:[#allocation9 + $0x7b0] sm:$0xff]
    %v9896 = vld [vmem:[#allocation9 + $0x7b8] sm:$0xff]
    %v9897 = vld [vmem:[#allocation9 + $0x7c0] sm:$0xff]
    %v9898 = vld [vmem:[#allocation9 + $0x7c8] sm:$0xff]
    %v9899 = vld [vmem:[#allocation9 + $0x7d0] sm:$0xff]
    %v9900 = vld [vmem:[#allocation9 + $0x7d8] sm:$0xff]
    %v9901 = vld [vmem:[#allocation9 + $0x7e0] sm:$0xff]
    %v9902 = vld [vmem:[#allocation9 + $0x7e8] sm:$0xff]
    %v9903 = vld [vmem:[#allocation9 + $0x7f0] sm:$0xff]
    %v9904 = vld [vmem:[#allocation9 + $0x7f8] sm:$0xff]
    %v9905 = vpack.c.bf16 %v9665, %v9649
    %v9906 = vpack.c.bf16 %v9666, %v9650
    %v9907 = vpack.c.bf16 %v9667, %v9651
    %v9908 = vpack.c.bf16 %v9668, %v9652
    %v9909 = vpack.c.bf16 %v9669, %v9653
    %v9910 = vpack.c.bf16 %v9670, %v9654
    %v9911 = vpack.c.bf16 %v9671, %v9655
    %v9912 = vpack.c.bf16 %v9672, %v9656
    %v9913 = vpack.c.bf16 %v9673, %v9657
    %v9914 = vpack.c.bf16 %v9674, %v9658
    %v9915 = vpack.c.bf16 %v9675, %v9659
    %v9916 = vpack.c.bf16 %v9676, %v9660
    %v9917 = vpack.c.bf16 %v9677, %v9661
    %v9918 = vpack.c.bf16 %v9678, %v9662
    %v9919 = vpack.c.bf16 %v9679, %v9663
    %v9920 = vpack.c.bf16 %v9680, %v9664
    %v9921 = vpack.c.bf16 %v9697, %v9681
    %v9922 = vpack.c.bf16 %v9698, %v9682
    %v9923 = vpack.c.bf16 %v9699, %v9683
    %v9924 = vpack.c.bf16 %v9700, %v9684
    %v9925 = vpack.c.bf16 %v9701, %v9685
    %v9926 = vpack.c.bf16 %v9702, %v9686
    %v9927 = vpack.c.bf16 %v9703, %v9687
    %v9928 = vpack.c.bf16 %v9704, %v9688
    %v9929 = vpack.c.bf16 %v9705, %v9689
    %v9930 = vpack.c.bf16 %v9706, %v9690
    %v9931 = vpack.c.bf16 %v9707, %v9691
    %v9932 = vpack.c.bf16 %v9708, %v9692
    %v9933 = vpack.c.bf16 %v9709, %v9693
    %v9934 = vpack.c.bf16 %v9710, %v9694
    %v9935 = vpack.c.bf16 %v9711, %v9695
    %v9936 = vpack.c.bf16 %v9712, %v9696
    %v9937 = vpack.c.bf16 %v9729, %v9713
    %v9938 = vpack.c.bf16 %v9730, %v9714
    %v9939 = vpack.c.bf16 %v9731, %v9715
    %v9940 = vpack.c.bf16 %v9732, %v9716
    %v9941 = vpack.c.bf16 %v9733, %v9717
    %v9942 = vpack.c.bf16 %v9734, %v9718
    %v9943 = vpack.c.bf16 %v9735, %v9719
    %v9944 = vpack.c.bf16 %v9736, %v9720
    %v9945 = vpack.c.bf16 %v9737, %v9721
    %v9946 = vpack.c.bf16 %v9738, %v9722
    %v9947 = vpack.c.bf16 %v9739, %v9723
    %v9948 = vpack.c.bf16 %v9740, %v9724
    %v9949 = vpack.c.bf16 %v9741, %v9725
    %v9950 = vpack.c.bf16 %v9742, %v9726
    %v9951 = vpack.c.bf16 %v9743, %v9727
    %v9952 = vpack.c.bf16 %v9744, %v9728
    %v9953 = vpack.c.bf16 %v9761, %v9745
    %v9954 = vpack.c.bf16 %v9762, %v9746
    %v9955 = vpack.c.bf16 %v9763, %v9747
    %v9956 = vpack.c.bf16 %v9764, %v9748
    %v9957 = vpack.c.bf16 %v9765, %v9749
    %v9958 = vpack.c.bf16 %v9766, %v9750
    %v9959 = vpack.c.bf16 %v9767, %v9751
    %v9960 = vpack.c.bf16 %v9768, %v9752
    %v9961 = vpack.c.bf16 %v9769, %v9753
    %v9962 = vpack.c.bf16 %v9770, %v9754
    %v9963 = vpack.c.bf16 %v9771, %v9755
    %v9964 = vpack.c.bf16 %v9772, %v9756
    %v9965 = vpack.c.bf16 %v9773, %v9757
    %v9966 = vpack.c.bf16 %v9774, %v9758
    %v9967 = vpack.c.bf16 %v9775, %v9759
    %v9968 = vpack.c.bf16 %v9776, %v9760
    %v9969 = vpack.c.bf16 %v9793, %v9777
    %v9970 = vpack.c.bf16 %v9794, %v9778
    %v9971 = vpack.c.bf16 %v9795, %v9779
    %v9972 = vpack.c.bf16 %v9796, %v9780
    %v9973 = vpack.c.bf16 %v9797, %v9781
    %v9974 = vpack.c.bf16 %v9798, %v9782
    %v9975 = vpack.c.bf16 %v9799, %v9783
    %v9976 = vpack.c.bf16 %v9800, %v9784
    %v9977 = vpack.c.bf16 %v9801, %v9785
    %v9978 = vpack.c.bf16 %v9802, %v9786
    %v9979 = vpack.c.bf16 %v9803, %v9787
    %v9980 = vpack.c.bf16 %v9804, %v9788
    %v9981 = vpack.c.bf16 %v9805, %v9789
    %v9982 = vpack.c.bf16 %v9806, %v9790
    %v9983 = vpack.c.bf16 %v9807, %v9791
    %v9984 = vpack.c.bf16 %v9808, %v9792
    %v9985 = vpack.c.bf16 %v9825, %v9809
    %v9986 = vpack.c.bf16 %v9826, %v9810
    %v9987 = vpack.c.bf16 %v9827, %v9811
    %v9988 = vpack.c.bf16 %v9828, %v9812
    %v9989 = vpack.c.bf16 %v9829, %v9813
    %v9990 = vpack.c.bf16 %v9830, %v9814
    %v9991 = vpack.c.bf16 %v9831, %v9815
    %v9992 = vpack.c.bf16 %v9832, %v9816
    %v9993 = vpack.c.bf16 %v9833, %v9817
    %v9994 = vpack.c.bf16 %v9834, %v9818
    %v9995 = vpack.c.bf16 %v9835, %v9819
    %v9996 = vpack.c.bf16 %v9836, %v9820
    %v9997 = vpack.c.bf16 %v9837, %v9821
    %v9998 = vpack.c.bf16 %v9838, %v9822
    %v9999 = vpack.c.bf16 %v9839, %v9823
    %v10000 = vpack.c.bf16 %v9840, %v9824
    %v10001 = vpack.c.bf16 %v9857, %v9841
    %v10002 = vpack.c.bf16 %v9858, %v9842
    %v10003 = vpack.c.bf16 %v9859, %v9843
    %v10004 = vpack.c.bf16 %v9860, %v9844
    %v10005 = vpack.c.bf16 %v9861, %v9845
    %v10006 = vpack.c.bf16 %v9862, %v9846
    %v10007 = vpack.c.bf16 %v9863, %v9847
    %v10008 = vpack.c.bf16 %v9864, %v9848
    %v10009 = vpack.c.bf16 %v9865, %v9849
    %v10010 = vpack.c.bf16 %v9866, %v9850
    %v10011 = vpack.c.bf16 %v9867, %v9851
    %v10012 = vpack.c.bf16 %v9868, %v9852
    %v10013 = vpack.c.bf16 %v9869, %v9853
    %v10014 = vpack.c.bf16 %v9870, %v9854
    %v10015 = vpack.c.bf16 %v9871, %v9855
    %v10016 = vpack.c.bf16 %v9872, %v9856
    %v10017 = vpack.c.bf16 %v9889, %v9873
    %v10018 = vpack.c.bf16 %v9890, %v9874
    %v10019 = vpack.c.bf16 %v9891, %v9875
    %v10020 = vpack.c.bf16 %v9892, %v9876
    %v10021 = vpack.c.bf16 %v9893, %v9877
    %v10022 = vpack.c.bf16 %v9894, %v9878
    %v10023 = vpack.c.bf16 %v9895, %v9879
    %v10024 = vpack.c.bf16 %v9896, %v9880
    %v10025 = vpack.c.bf16 %v9897, %v9881
    %v10026 = vpack.c.bf16 %v9898, %v9882
    %v10027 = vpack.c.bf16 %v9899, %v9883
    %v10028 = vpack.c.bf16 %v9900, %v9884
    %v10029 = vpack.c.bf16 %v9901, %v9885
    %v10030 = vpack.c.bf16 %v9902, %v9886
    %v10031 = vpack.c.bf16 %v9903, %v9887
    %v10032 = vpack.c.bf16 %v9904, %v9888
    %v10033 = vld [vmem:[%s12] sm:$0xff]
    %10035 = vset.pattern.permute.xlu0 0
    %10036 = vperm.xlu0 %10035, %v10033
    %v10037 = vpop.permute.xlu0 %10036
    %10039 = vmatprep.subr.bf16.mxu0 %v9906
    %10040 = vmatpush1.bf16.msra.mxu0 %v9905
    %10041 = vmatprep.subr.bf16.mxu0 %v9922
    %10042 = vmatpush1.bf16.msra.mxu0 %v9921
    %10043 = vmatprep.subr.bf16.mxu0 %v9938
    %10044 = vmatpush1.bf16.msra.mxu0 %v9937
    %10045 = vmatprep.subr.bf16.mxu0 %v9954
    %10046 = vmatpush1.bf16.msra.mxu0 %v9953
    %10047 = vmatprep.subr.bf16.mxu0 %v9970
    %10048 = vmatpush1.bf16.msra.mxu0 %v9969
    %10049 = vmatprep.subr.bf16.mxu0 %v9986
    %10050 = vmatpush1.bf16.msra.mxu0 %v9985
    %10051 = vmatprep.subr.bf16.mxu0 %v10002
    %10052 = vmatpush1.bf16.msra.mxu0 %v10001
    %10053 = vmatprep.subr.bf16.mxu0 %v10018
    %10054 = vmatpush1.bf16.msra.mxu0 %v10017
    %10055 = vmatprep.subr.bf16.mxu0 0
    %10056 = vmatpush1.bf16.msra.mxu0 0
    %10057 = vmatprep.subr.bf16.mxu0 0
    %10058 = vmatpush1.bf16.msra.mxu0 0
    %10059 = vmatprep.subr.bf16.mxu0 0
    %10060 = vmatpush1.bf16.msra.mxu0 0
    %10061 = vmatprep.subr.bf16.mxu0 0
    %10062 = vmatpush1.bf16.msra.mxu0 0
    %10063 = vmatprep.subr.bf16.mxu0 0
    %10064 = vmatpush1.bf16.msra.mxu0 0
    %10065 = vmatprep.subr.bf16.mxu0 0
    %10066 = vmatpush1.bf16.msra.mxu0 0
    %10067 = vmatprep.subr.bf16.mxu0 0
    %10068 = vmatpush1.bf16.msra.mxu0 0
    %10069 = vmatprep.subr.bf16.mxu0 0
    %10070 = vmatpush1.bf16.msra.mxu0 0
    %10071 = vmatprep.mubr.bf16.mxu0 0
    %10072 = vmatmul.mubr.bf16.gmra.mrb[0].mxu0 %v9648
    %v10073 = vpop.f32.mrb[0].mxu0
    %v10074 = vadd.f32 %v10037, %v10073
    %v10075 = vpop.f32.mrb[0].mxu0
    %v10076 = vadd.f32 %v10037, %v10075
    %v10077 = vpop.f32.mrb[0].mxu0
    %v10078 = vpop.f32.mrb[0].mxu0
    %10079 = vdwg.mxu0
    %10080 = vmatprep.subr.bf16.mxu0 %v9908
    %10081 = vmatpush1.bf16.msra.mxu0 %v9907
    %10082 = vmatprep.subr.bf16.mxu0 %v9924
    %10083 = vmatpush1.bf16.msra.mxu0 %v9923
    %10084 = vmatprep.subr.bf16.mxu0 %v9940
    %10085 = vmatpush1.bf16.msra.mxu0 %v9939
    %10086 = vmatprep.subr.bf16.mxu0 %v9956
    %10087 = vmatpush1.bf16.msra.mxu0 %v9955
    %10088 = vmatprep.subr.bf16.mxu0 %v9972
    %10089 = vmatpush1.bf16.msra.mxu0 %v9971
    %10090 = vmatprep.subr.bf16.mxu0 %v9988
    %10091 = vmatpush1.bf16.msra.mxu0 %v9987
    %10092 = vmatprep.subr.bf16.mxu0 %v10004
    %10093 = vmatpush1.bf16.msra.mxu0 %v10003
    %10094 = vmatprep.subr.bf16.mxu0 %v10020
    %10095 = vmatpush1.bf16.msra.mxu0 %v10019
    %10096 = vmatprep.subr.bf16.mxu0 0
    %10097 = vmatpush1.bf16.msra.mxu0 0
    %10098 = vmatprep.subr.bf16.mxu0 0
    %10099 = vmatpush1.bf16.msra.mxu0 0
    %10100 = vmatprep.subr.bf16.mxu0 0
    %10101 = vmatpush1.bf16.msra.mxu0 0
    %10102 = vmatprep.subr.bf16.mxu0 0
    %10103 = vmatpush1.bf16.msra.mxu0 0
    %10104 = vmatprep.subr.bf16.mxu0 0
    %10105 = vmatpush1.bf16.msra.mxu0 0
    %10106 = vmatprep.subr.bf16.mxu0 0
    %10107 = vmatpush1.bf16.msra.mxu0 0
    %10108 = vmatprep.subr.bf16.mxu0 0
    %10109 = vmatpush1.bf16.msra.mxu0 0
    %10110 = vmatprep.subr.bf16.mxu0 0
    %10111 = vmatpush1.bf16.msra.mxu0 0
    %10112 = vmatprep.mubr.bf16.mxu0 0
    %10113 = vmatmul.mubr.bf16.gmra.mrb[0].mxu0 %v9648
    %v10114 = vpop.f32.mrb[0].mxu0
    %v10115 = vadd.f32 %v10037, %v10114
    %v10116 = vpop.f32.mrb[0].mxu0
    %v10117 = vadd.f32 %v10037, %v10116
    %v10118 = vpop.f32.mrb[0].mxu0
    %v10119 = vpop.f32.mrb[0].mxu0
    %10120 = vdwg.mxu0
    %10121 = vmatprep.subr.bf16.mxu0 %v9910
    %10122 = vmatpush1.bf16.msra.mxu0 %v9909
    %10123 = vmatprep.subr.bf16.mxu0 %v9926
    %10124 = vmatpush1.bf16.msra.mxu0 %v9925
    %10125 = vmatprep.subr.bf16.mxu0 %v9942
    %10126 = vmatpush1.bf16.msra.mxu0 %v9941
    %10127 = vmatprep.subr.bf16.mxu0 %v9958
    %10128 = vmatpush1.bf16.msra.mxu0 %v9957
    %10129 = vmatprep.subr.bf16.mxu0 %v9974
    %10130 = vmatpush1.bf16.msra.mxu0 %v9973
    %10131 = vmatprep.subr.bf16.mxu0 %v9990
    %10132 = vmatpush1.bf16.msra.mxu0 %v9989
    %10133 = vmatprep.subr.bf16.mxu0 %v10006
    %10134 = vmatpush1.bf16.msra.mxu0 %v10005
    %10135 = vmatprep.subr.bf16.mxu0 %v10022
    %10136 = vmatpush1.bf16.msra.mxu0 %v10021
    %10137 = vmatprep.subr.bf16.mxu0 0
    %10138 = vmatpush1.bf16.msra.mxu0 0
    %10139 = vmatprep.subr.bf16.mxu0 0
    %10140 = vmatpush1.bf16.msra.mxu0 0
    %10141 = vmatprep.subr.bf16.mxu0 0
    %10142 = vmatpush1.bf16.msra.mxu0 0
    %10143 = vmatprep.subr.bf16.mxu0 0
    %10144 = vmatpush1.bf16.msra.mxu0 0
    %10145 = vmatprep.subr.bf16.mxu0 0
    %10146 = vmatpush1.bf16.msra.mxu0 0
    %10147 = vmatprep.subr.bf16.mxu0 0
    %10148 = vmatpush1.bf16.msra.mxu0 0
    %10149 = vmatprep.subr.bf16.mxu0 0
    %10150 = vmatpush1.bf16.msra.mxu0 0
    %10151 = vmatprep.subr.bf16.mxu0 0
    %10152 = vmatpush1.bf16.msra.mxu0 0
    %10153 = vmatprep.mubr.bf16.mxu0 0
    %10154 = vmatmul.mubr.bf16.gmra.mrb[0].mxu0 %v9648
    %v10155 = vpop.f32.mrb[0].mxu0
    %v10156 = vadd.f32 %v10037, %v10155
    %v10157 = vpop.f32.mrb[0].mxu0
    %v10158 = vadd.f32 %v10037, %v10157
    %v10159 = vpop.f32.mrb[0].mxu0
    %v10160 = vpop.f32.mrb[0].mxu0
    %10161 = vdwg.mxu0
    %10162 = vmatprep.subr.bf16.mxu0 %v9912
    %10163 = vmatpush1.bf16.msra.mxu0 %v9911
    %10164 = vmatprep.subr.bf16.mxu0 %v9928
    %10165 = vmatpush1.bf16.msra.mxu0 %v9927
    %10166 = vmatprep.subr.bf16.mxu0 %v9944
    %10167 = vmatpush1.bf16.msra.mxu0 %v9943
    %10168 = vmatprep.subr.bf16.mxu0 %v9960
    %10169 = vmatpush1.bf16.msra.mxu0 %v9959
    %10170 = vmatprep.subr.bf16.mxu0 %v9976
    %10171 = vmatpush1.bf16.msra.mxu0 %v9975
    %10172 = vmatprep.subr.bf16.mxu0 %v9992
    %10173 = vmatpush1.bf16.msra.mxu0 %v9991
    %10174 = vmatprep.subr.bf16.mxu0 %v10008
    %10175 = vmatpush1.bf16.msra.mxu0 %v10007
    %10176 = vmatprep.subr.bf16.mxu0 %v10024
    %10177 = vmatpush1.bf16.msra.mxu0 %v10023
    %10178 = vmatprep.subr.bf16.mxu0 0
    %10179 = vmatpush1.bf16.msra.mxu0 0
    %10180 = vmatprep.subr.bf16.mxu0 0
    %10181 = vmatpush1.bf16.msra.mxu0 0
    %10182 = vmatprep.subr.bf16.mxu0 0
    %10183 = vmatpush1.bf16.msra.mxu0 0
    %10184 = vmatprep.subr.bf16.mxu0 0
    %10185 = vmatpush1.bf16.msra.mxu0 0
    %10186 = vmatprep.subr.bf16.mxu0 0
    %10187 = vmatpush1.bf16.msra.mxu0 0
    %10188 = vmatprep.subr.bf16.mxu0 0
    %10189 = vmatpush1.bf16.msra.mxu0 0
    %10190 = vmatprep.subr.bf16.mxu0 0
    %10191 = vmatpush1.bf16.msra.mxu0 0
    %10192 = vmatprep.subr.bf16.mxu0 0
    %10193 = vmatpush1.bf16.msra.mxu0 0
    %10194 = vmatprep.mubr.bf16.mxu0 0
    %10195 = vmatmul.mubr.bf16.gmra.mrb[0].mxu0 %v9648
    %v10196 = vpop.f32.mrb[0].mxu0
    %v10197 = vadd.f32 %v10037, %v10196
    %v10198 = vpop.f32.mrb[0].mxu0
    %v10199 = vadd.f32 %v10037, %v10198
    %v10200 = vpop.f32.mrb[0].mxu0
    %v10201 = vpop.f32.mrb[0].mxu0
    %10202 = vdwg.mxu0
    %10203 = vmatprep.subr.bf16.mxu0 %v9914
    %10204 = vmatpush1.bf16.msra.mxu0 %v9913
    %10205 = vmatprep.subr.bf16.mxu0 %v9930
    %10206 = vmatpush1.bf16.msra.mxu0 %v9929
    %10207 = vmatprep.subr.bf16.mxu0 %v9946
    %10208 = vmatpush1.bf16.msra.mxu0 %v9945
    %10209 = vmatprep.subr.bf16.mxu0 %v9962
    %10210 = vmatpush1.bf16.msra.mxu0 %v9961
    %10211 = vmatprep.subr.bf16.mxu0 %v9978
    %10212 = vmatpush1.bf16.msra.mxu0 %v9977
    %10213 = vmatprep.subr.bf16.mxu0 %v9994
    %10214 = vmatpush1.bf16.msra.mxu0 %v9993
    %10215 = vmatprep.subr.bf16.mxu0 %v10010
    %10216 = vmatpush1.bf16.msra.mxu0 %v10009
    %10217 = vmatprep.subr.bf16.mxu0 %v10026
    %10218 = vmatpush1.bf16.msra.mxu0 %v10025
    %10219 = vmatprep.subr.bf16.mxu0 0
    %10220 = vmatpush1.bf16.msra.mxu0 0
    %10221 = vmatprep.subr.bf16.mxu0 0
    %10222 = vmatpush1.bf16.msra.mxu0 0
    %10223 = vmatprep.subr.bf16.mxu0 0
    %10224 = vmatpush1.bf16.msra.mxu0 0
    %10225 = vmatprep.subr.bf16.mxu0 0
    %10226 = vmatpush1.bf16.msra.mxu0 0
    %10227 = vmatprep.subr.bf16.mxu0 0
    %10228 = vmatpush1.bf16.msra.mxu0 0
    %10229 = vmatprep.subr.bf16.mxu0 0
    %10230 = vmatpush1.bf16.msra.mxu0 0
    %10231 = vmatprep.subr.bf16.mxu0 0
    %10232 = vmatpush1.bf16.msra.mxu0 0
    %10233 = vmatprep.subr.bf16.mxu0 0
    %10234 = vmatpush1.bf16.msra.mxu0 0
    %10235 = vmatprep.mubr.bf16.mxu0 0
    %10236 = vmatmul.mubr.bf16.gmra.mrb[0].mxu0 %v9648
    %v10237 = vpop.f32.mrb[0].mxu0
    %v10238 = vadd.f32 %v10037, %v10237
    %v10239 = vpop.f32.mrb[0].mxu0
    %v10240 = vadd.f32 %v10037, %v10239
    %v10241 = vpop.f32.mrb[0].mxu0
    %v10242 = vpop.f32.mrb[0].mxu0
    %10243 = vdwg.mxu0
    %10244 = vmatprep.subr.bf16.mxu0 %v9916
    %10245 = vmatpush1.bf16.msra.mxu0 %v9915
    %10246 = vmatprep.subr.bf16.mxu0 %v9932
    %10247 = vmatpush1.bf16.msra.mxu0 %v9931
    %10248 = vmatprep.subr.bf16.mxu0 %v9948
    %10249 = vmatpush1.bf16.msra.mxu0 %v9947
    %10250 = vmatprep.subr.bf16.mxu0 %v9964
    %10251 = vmatpush1.bf16.msra.mxu0 %v9963
    %10252 = vmatprep.subr.bf16.mxu0 %v9980
    %10253 = vmatpush1.bf16.msra.mxu0 %v9979
    %10254 = vmatprep.subr.bf16.mxu0 %v9996
    %10255 = vmatpush1.bf16.msra.mxu0 %v9995
    %10256 = vmatprep.subr.bf16.mxu0 %v10012
    %10257 = vmatpush1.bf16.msra.mxu0 %v10011
    %10258 = vmatprep.subr.bf16.mxu0 %v10028
    %10259 = vmatpush1.bf16.msra.mxu0 %v10027
    %10260 = vmatprep.subr.bf16.mxu0 0
    %10261 = vmatpush1.bf16.msra.mxu0 0
    %10262 = vmatprep.subr.bf16.mxu0 0
    %10263 = vmatpush1.bf16.msra.mxu0 0
    %10264 = vmatprep.subr.bf16.mxu0 0
    %10265 = vmatpush1.bf16.msra.mxu0 0
    %10266 = vmatprep.subr.bf16.mxu0 0
    %10267 = vmatpush1.bf16.msra.mxu0 0
    %10268 = vmatprep.subr.bf16.mxu0 0
    %10269 = vmatpush1.bf16.msra.mxu0 0
    %10270 = vmatprep.subr.bf16.mxu0 0
    %10271 = vmatpush1.bf16.msra.mxu0 0
    %10272 = vmatprep.subr.bf16.mxu0 0
    %10273 = vmatpush1.bf16.msra.mxu0 0
    %10274 = vmatprep.subr.bf16.mxu0 0
    %10275 = vmatpush1.bf16.msra.mxu0 0
    %10276 = vmatprep.mubr.bf16.mxu0 0
    %10277 = vmatmul.mubr.bf16.gmra.mrb[0].mxu0 %v9648
    %v10278 = vpop.f32.mrb[0].mxu0
    %v10279 = vadd.f32 %v10037, %v10278
    %v10280 = vpop.f32.mrb[0].mxu0
    %v10281 = vadd.f32 %v10037, %v10280
    %v10282 = vpop.f32.mrb[0].mxu0
    %v10283 = vpop.f32.mrb[0].mxu0
    %10284 = vdwg.mxu0
    %10285 = vmatprep.subr.bf16.mxu0 %v9918
    %10286 = vmatpush1.bf16.msra.mxu0 %v9917
    %10287 = vmatprep.subr.bf16.mxu0 %v9934
    %10288 = vmatpush1.bf16.msra.mxu0 %v9933
    %10289 = vmatprep.subr.bf16.mxu0 %v9950
    %10290 = vmatpush1.bf16.msra.mxu0 %v9949
    %10291 = vmatprep.subr.bf16.mxu0 %v9966
    %10292 = vmatpush1.bf16.msra.mxu0 %v9965
    %10293 = vmatprep.subr.bf16.mxu0 %v9982
    %10294 = vmatpush1.bf16.msra.mxu0 %v9981
    %10295 = vmatprep.subr.bf16.mxu0 %v9998
    %10296 = vmatpush1.bf16.msra.mxu0 %v9997
    %10297 = vmatprep.subr.bf16.mxu0 %v10014
    %10298 = vmatpush1.bf16.msra.mxu0 %v10013
    %10299 = vmatprep.subr.bf16.mxu0 %v10030
    %10300 = vmatpush1.bf16.msra.mxu0 %v10029
    %10301 = vmatprep.subr.bf16.mxu0 0
    %10302 = vmatpush1.bf16.msra.mxu0 0
    %10303 = vmatprep.subr.bf16.mxu0 0
    %10304 = vmatpush1.bf16.msra.mxu0 0
    %10305 = vmatprep.subr.bf16.mxu0 0
    %10306 = vmatpush1.bf16.msra.mxu0 0
    %10307 = vmatprep.subr.bf16.mxu0 0
    %10308 = vmatpush1.bf16.msra.mxu0 0
    %10309 = vmatprep.subr.bf16.mxu0 0
    %10310 = vmatpush1.bf16.msra.mxu0 0
    %10311 = vmatprep.subr.bf16.mxu0 0
    %10312 = vmatpush1.bf16.msra.mxu0 0
    %10313 = vmatprep.subr.bf16.mxu0 0
    %10314 = vmatpush1.bf16.msra.mxu0 0
    %10315 = vmatprep.subr.bf16.mxu0 0
    %10316 = vmatpush1.bf16.msra.mxu0 0
    %10317 = vmatprep.mubr.bf16.mxu0 0
    %10318 = vmatmul.mubr.bf16.gmra.mrb[0].mxu0 %v9648
    %v10319 = vpop.f32.mrb[0].mxu0
    %v10320 = vadd.f32 %v10037, %v10319
    %v10321 = vpop.f32.mrb[0].mxu0
    %v10322 = vadd.f32 %v10037, %v10321
    %v10323 = vpop.f32.mrb[0].mxu0
    %v10324 = vpop.f32.mrb[0].mxu0
    %10325 = vdwg.mxu0
    %10326 = vmatprep.subr.bf16.mxu0 %v9920
    %10327 = vmatpush1.bf16.msra.mxu0 %v9919
    %10328 = vmatprep.subr.bf16.mxu0 %v9936
    %10329 = vmatpush1.bf16.msra.mxu0 %v9935
    %10330 = vmatprep.subr.bf16.mxu0 %v9952
    %10331 = vmatpush1.bf16.msra.mxu0 %v9951
    %10332 = vmatprep.subr.bf16.mxu0 %v9968
    %10333 = vmatpush1.bf16.msra.mxu0 %v9967
    %10334 = vmatprep.subr.bf16.mxu0 %v9984
    %10335 = vmatpush1.bf16.msra.mxu0 %v9983
    %10336 = vmatprep.subr.bf16.mxu0 %v10000
    %10337 = vmatpush1.bf16.msra.mxu0 %v9999
    %10338 = vmatprep.subr.bf16.mxu0 %v10016
    %10339 = vmatpush1.bf16.msra.mxu0 %v10015
    %10340 = vmatprep.subr.bf16.mxu0 %v10032
    %10341 = vmatpush1.bf16.msra.mxu0 %v10031
    %10342 = vmatprep.subr.bf16.mxu0 0
    %10343 = vmatpush1.bf16.msra.mxu0 0
    %10344 = vmatprep.subr.bf16.mxu0 0
    %10345 = vmatpush1.bf16.msra.mxu0 0
    %10346 = vmatprep.subr.bf16.mxu0 0
    %10347 = vmatpush1.bf16.msra.mxu0 0
    %10348 = vmatprep.subr.bf16.mxu0 0
    %10349 = vmatpush1.bf16.msra.mxu0 0
    %10350 = vmatprep.subr.bf16.mxu0 0
    %10351 = vmatpush1.bf16.msra.mxu0 0
    %10352 = vmatprep.subr.bf16.mxu0 0
    %10353 = vmatpush1.bf16.msra.mxu0 0
    %10354 = vmatprep.subr.bf16.mxu0 0
    %10355 = vmatpush1.bf16.msra.mxu0 0
    %10356 = vmatprep.subr.bf16.mxu0 0
    %10357 = vmatpush1.bf16.msra.mxu0 0
    %10358 = vmatprep.mubr.bf16.mxu0 0
    %10359 = vmatmul.mubr.bf16.gmra.mrb[0].mxu0 %v9648
    %v10360 = vpop.f32.mrb[0].mxu0
    %v10361 = vadd.f32 %v10037, %v10360
    %v10362 = vpop.f32.mrb[0].mxu0
    %v10363 = vadd.f32 %v10037, %v10362
    %v10364 = vpop.f32.mrb[0].mxu0
    %v10365 = vpop.f32.mrb[0].mxu0
    %10366 = vdwg.mxu0
    %v10367 = vtanh.pop %v10074
    %v10368 = vtanh.pop %v10076
    %v10369 = vtanh.pop %v10115
    %v10370 = vtanh.pop %v10117
    %v10371 = vtanh.pop %v10156
    %v10372 = vtanh.pop %v10158
    %v10373 = vtanh.pop %v10197
    %v10374 = vtanh.pop %v10199
    %v10375 = vtanh.pop %v10238
    %v10376 = vtanh.pop %v10240
    %v10377 = vtanh.pop %v10279
    %v10378 = vtanh.pop %v10281
    %v10379 = vtanh.pop %v10320
    %v10380 = vtanh.pop %v10322
    %v10381 = vtanh.pop %v10361
    %v10382 = vtanh.pop %v10363
    %10383 = vst [vmem:[#allocation30] sm:$0xff] %v10367
    %10384 = vst [vmem:[#allocation30 + $0x8] sm:$0xff] %v10368
    %10385 = vst [vmem:[#allocation30 + $0x10] sm:$0xff] %v10369
    %10386 = vst [vmem:[#allocation30 + $0x18] sm:$0xff] %v10370
    %10387 = vst [vmem:[#allocation30 + $0x20] sm:$0xff] %v10371
    %10388 = vst [vmem:[#allocation30 + $0x28] sm:$0xff] %v10372
    %10389 = vst [vmem:[#allocation30 + $0x30] sm:$0xff] %v10373
    %10390 = vst [vmem:[#allocation30 + $0x38] sm:$0xff] %v10374
    %10391 = vst [vmem:[#allocation30 + $0x40] sm:$0xff] %v10375
    %10392 = vst [vmem:[#allocation30 + $0x48] sm:$0xff] %v10376
    %10393 = vst [vmem:[#allocation30 + $0x50] sm:$0xff] %v10377
    %10394 = vst [vmem:[#allocation30 + $0x58] sm:$0xff] %v10378
    %10395 = vst [vmem:[#allocation30 + $0x60] sm:$0xff] %v10379
    %10396 = vst [vmem:[#allocation30 + $0x68] sm:$0xff] %v10380
    %10397 = vst [vmem:[#allocation30 + $0x70] sm:$0xff] %v10381
    %10398 = vst [vmem:[#allocation30 + $0x78] sm:$0xff] %v10382
    // Predicated region
    $region102: #{tpu_custom_call.1} parent=1 // pred_check
      _
    $region103: #{tpu_custom_call.1} parent=1 // pred_check_branch
      %10400 = sbr.rel (0) target = $region105
    $region104: #{tpu_custom_call.1} parent=1 // pred_region
      %s10402 = ssub.s32 2048, 2048
      %10403 = vsyncadd [#allocation12], %s10402
      %s10405 = sshll.u32 [#allocation30], 4
      %s10406 = int_to_ptr.vmem [resolvable:$true] %s10405
      %10408 = dma.vmem_to_hbm [thread:$0]  %s10406, 2048, %s13, [#allocation12]
    $region105: #{tpu_custom_call.1} parent=1 // pred_fallthru
      _
    // Predicated region
    $region106: #{tpu_custom_call.1} parent=1 // pred_check
      _
    $region107: #{tpu_custom_call.1} parent=1 // pred_check_branch
      %10410 = sbr.rel (0) target = $region109
    $region108: #{tpu_custom_call.1} parent=1 // pred_region
      %10411 = dma.done [#allocation12], 2048
    $region109: #{tpu_custom_call.1} parent=1 // pred_fallthru
      _
    %10412 = vsyncpa [#allocation11], 1
    %10413 = vsyncpa [#allocation14], 1
    %10414 = vsyncpa [#allocation17], 1
    %10415 = vsyncpa [#allocation20], 1
    %10416 = vsyncpa [#allocation23], 1
    %10417 = vsyncpa [#allocation26], 1
    %10418 = vsyncpa [#allocation29], 1
    %10419 = vsyncpa [#allocation12], 1

</llo_original>
